<compile_context>
chip_gen: v7x
topology: tpu7x:2x2x1
jax: 0.10.0
libtpu: 0.0.40
codegen_flags: <defaults>
</compile_context>

<pallas_src>
import functools
import math

import jax
import jax.numpy as jnp
from jax.experimental import pallas as pl
from jax.experimental.pallas import tpu as pltpu


_MM_DTYPE = jnp.bfloat16            # MXU operand dtype (f32 accumulation)
_VMEM_LIMIT = 48 * 1024 * 1024      # scoped-VMEM budget; v7x-safe (64 MiB phys)


# --------------------------------------------------------------------------
# In-kernel helpers (traced inside Pallas kernels)
# --------------------------------------------------------------------------
def _layernorm(x, g, b, eps):
    """x: (M, D) f32, g/b: (1, D) f32."""
    mean = jnp.mean(x, axis=-1, keepdims=True)
    xc = x - mean
    var = jnp.mean(xc * xc, axis=-1, keepdims=True)
    return xc * jax.lax.rsqrt(var + eps) * g + b


def _qk_dot(a, b):
    """(Lq, dh) x (Lk, dh) contracted over dh -> (Lq, Lk), bf16 in / f32 out."""
    return jax.lax.dot_general(
        a.astype(_MM_DTYPE), b.astype(_MM_DTYPE),
        (((1,), (1,)), ((), ())),
        preferred_element_type=jnp.float32)


def _mm(a, b):
    """Plain matmul with bf16 operands and f32 accumulation."""
    return jnp.dot(a.astype(_MM_DTYPE), b.astype(_MM_DTYPE),
                   preferred_element_type=jnp.float32)


# --------------------------------------------------------------------------
# Pallas kernels
# --------------------------------------------------------------------------
def _self_attn_kernel(x_ref, qp_ref, wqk_ref, bqk_ref, wv_ref, bv_ref,
                      wo_ref, bo_ref, g_ref, beta_ref, o_ref,
                      *, nhead, scale, eps):
    """One batch element: q=k=x+qp, v=x; MHA + out-proj + residual + LN1.

    Scale is folded into q; per-head outputs accumulate straight into the
    out-projection (no lane concatenate).
    """
    x = x_ref[0]                                                 # (Lq, D) f32
    D = x.shape[-1]
    dh = D // nhead
    q_in = x + qp_ref[0]
    # packed (D, 2D) projection: one MXU pass for Q and K
    qk = _mm(q_in, wqk_ref[...]) + bqk_ref[...]
    q = (qk[:, :D] * scale).astype(_MM_DTYPE)                    # scale folded in
    k = qk[:, D:].astype(_MM_DTYPE)
    v = (_mm(x, wv_ref[...]) + bv_ref[...]).astype(_MM_DTYPE)

    y = jnp.zeros((x.shape[0], D), jnp.float32)
    for h in range(nhead):
        sl = slice(h * dh, (h + 1) * dh)
        s = _qk_dot(q[:, sl], k[:, sl])                          # (Lq, Lq)
        m = jnp.max(s, axis=-1, keepdims=True)
        p = jnp.exp(s - m)
        denom = jnp.sum(p, axis=-1, keepdims=True)
        oh = _mm(p, v[:, sl])                                    # (Lq, dh)
        oh = oh * pl.reciprocal(denom, approx=True)              # post-AV scale
        y = y + _mm(oh, wo_ref[sl, :])                           # lane-dense acc
    y = y + bo_ref[...]
    y = x + y                                                    # residual
    o_ref[0] = _layernorm(y, g_ref[...], beta_ref[...], eps).astype(o_ref.dtype)


def _cross_attn_flash_kernel(x_ref, qp_ref, memk_ref, mem_ref,
                             wq_ref, bq_ref, wk_ref, bk_ref, wv_ref, bv_ref,
                             wo_ref, bo_ref, g_ref, beta_ref, o_ref,
                             q_scr, m_scr, l_scr, acc_scr,
                             *, nhead, scale, eps):
    """Flash-style cross-attention over streamed memory (K/V) tiles.

    grid = (batch, Lq-tiles, Lk-tiles); Lk is the innermost ("arbitrary") axis.
    q projection (scaled) is computed once per (b, q-tile) and cached in VMEM;
    m/l/acc online-softmax state lives in per-head VMEM scratch.
    Finalize (last Lk tile): out-projection accumulated per head + residual +
    LayerNorm2.
    """
    ki = pl.program_id(2)
    nk = pl.num_programs(2)
    D = x_ref.shape[-1]
    dh = D // nhead

    @pl.when(ki == 0)
    def _init():
        q = _mm(x_ref[0] + qp_ref[0], wq_ref[...]) + bq_ref[...]
        q = q * scale                                            # fold softmax scale
        for h in range(nhead):
            q_scr[h] = q[:, h * dh:(h + 1) * dh].astype(q_scr.dtype)
        m_scr[...] = jnp.full(m_scr.shape, -jnp.inf, m_scr.dtype)
        l_scr[...] = jnp.zeros(l_scr.shape, l_scr.dtype)
        acc_scr[...] = jnp.zeros(acc_scr.shape, acc_scr.dtype)

    # K/V projections of this memory tile (tk, D)
    k = (_mm(memk_ref[0], wk_ref[...]) + bk_ref[...]).astype(_MM_DTYPE)
    v = (_mm(mem_ref[0], wv_ref[...]) + bv_ref[...]).astype(_MM_DTYPE)

    for h in range(nhead):
        sl = slice(h * dh, (h + 1) * dh)
        s = _qk_dot(q_scr[h], k[:, sl])                          # (tq, tk) f32
        m_prev = m_scr[h]                                        # (tq, 1)
        m_new = jnp.maximum(m_prev, jnp.max(s, axis=-1, keepdims=True))
        alpha = jnp.exp(m_prev - m_new)
        p = jnp.exp(s - m_new)
        l_scr[h] = alpha * l_scr[h] + jnp.sum(p, axis=-1, keepdims=True)
        acc_scr[h] = alpha * acc_scr[h] + _mm(p, v[:, sl])       # (tq, dh)
        m_scr[h] = m_new

    @pl.when(ki == nk - 1)
    def _finalize():
        x = x_ref[0]                                             # (tq, D)
        y = jnp.zeros((x.shape[0], D), jnp.float32)
        for h in range(nhead):
            sl = slice(h * dh, (h + 1) * dh)
            oh = acc_scr[h] * pl.reciprocal(l_scr[h], approx=True)
            y = y + _mm(oh, wo_ref[sl, :])                       # lane-dense acc
        y = y + bo_ref[...]
        y = x + y
        o_ref[0] = _layernorm(y, g_ref[...], beta_ref[...], eps).astype(o_ref.dtype)


def _ffn_kernel(x_ref, w1_ref, b1_ref, w2_ref, b2_ref,
                g3_ref, b3_ref, gf_ref, bf_ref, o_ref, inter_ref, *, eps):
    """Row-tile: FFN + residual + LayerNorm3, plus the final decoder norm.

    The (tm, dim_ffn) intermediate stays in VMEM/vregs (never written to HBM).
    """
    x = x_ref[...]                                               # (tm, D)
    h = _mm(x, w1_ref[...]) + b1_ref[...]
    h = jnp.maximum(h, 0.0)
    y = _mm(h, w2_ref[...]) + b2_ref[...]
    y = x.astype(jnp.float32) + y
    yn = _layernorm(y, g3_ref[...], b3_ref[...], eps)
    o_ref[...] = yn.astype(o_ref.dtype)
    inter_ref[...] = _layernorm(yn, gf_ref[...], bf_ref[...], eps).astype(
        inter_ref.dtype)


def _mlp2_kernel(x_ref, w1_ref, b1_ref, w2_ref, b2_ref, o_ref):
    """ref_point_head MLP: Linear -> ReLU -> Linear, fused in one kernel."""
    h = _mm(x_ref[...], w1_ref[...]) + b1_ref[...]
    h = jnp.maximum(h, 0.0)
    y = _mm(h, w2_ref[...]) + b2_ref[...]
    o_ref[...] = y.astype(o_ref.dtype)


# --------------------------------------------------------------------------
# pallas_call wrappers
# --------------------------------------------------------------------------
def _pick_tile(m, max_tile):
    """Largest tile <= max_tile that divides m (multiple of 8), else m."""
    if m <= max_tile:
        return m
    t = (max_tile // 8) * 8
    while t >= 8:
        if m % t == 0:
            return t
        t -= 8
    return m


def fused_self_attn(x, qp, p, norm_g, norm_b, nhead, eps=1e-5):
    """x, qp: (B, Lq, D) -> (B, Lq, D). Grid over batch."""
    B, Lq, D = x.shape
    dh = D // nhead
    kernel = functools.partial(_self_attn_kernel, nhead=nhead,
                               scale=1.0 / math.sqrt(dh), eps=eps)
    return pl.pallas_call(
        kernel,
        out_shape=jax.ShapeDtypeStruct((B, Lq, D), x.dtype),
        grid=(B,),
        in_specs=[
            pl.BlockSpec((1, Lq, D), lambda b: (b, 0, 0)),   # tgt
            pl.BlockSpec((1, Lq, D), lambda b: (b, 0, 0)),   # query_pos
            pl.BlockSpec((D, 2 * D), lambda b: (0, 0)),      # wqk (packed, bf16)
            pl.BlockSpec((1, 2 * D), lambda b: (0, 0)),      # bqk
            pl.BlockSpec((D, D), lambda b: (0, 0)),          # wv (bf16)
            pl.BlockSpec((1, D), lambda b: (0, 0)),          # bv
            pl.BlockSpec((D, D), lambda b: (0, 0)),          # wo (bf16)
            pl.BlockSpec((1, D), lambda b: (0, 0)),          # bo
            pl.BlockSpec((1, D), lambda b: (0, 0)),          # norm1 gamma
            pl.BlockSpec((1, D), lambda b: (0, 0)),          # norm1 beta
        ],
        out_specs=pl.BlockSpec((1, Lq, D), lambda b: (b, 0, 0)),
        compiler_params=pltpu.CompilerParams(
            dimension_semantics=("parallel",),
            vmem_limit_bytes=_VMEM_LIMIT),
    )(x, qp,
      p["wqk"].astype(_MM_DTYPE), p["bqk"].reshape(1, 2 * D),
      p["wv"].astype(_MM_DTYPE), p["bv"].reshape(1, D),
      p["wo"].astype(_MM_DTYPE), p["bo"].reshape(1, D),
      norm_g.reshape(1, D), norm_b.reshape(1, D))


def fused_cross_attn(x, qp, memk, mem, p, norm_g, norm_b, nhead, eps=1e-5,
                     max_tq=256, max_tk=512):
    """x, qp: (B, Lq, D); memk = memory+pos, mem: (B, Lk, D).

    Flash-style streaming over Lk tiles: working set is O(tq*D + tk*D).
    """
    B, Lq, D = x.shape
    Lk = mem.shape[1]
    dh = D // nhead
    tq = _pick_tile(Lq, max_tq)
    tk = _pick_tile(Lk, max_tk)
    kernel = functools.partial(_cross_attn_flash_kernel, nhead=nhead,
                               scale=1.0 / math.sqrt(dh), eps=eps)
    return pl.pallas_call(
        kernel,
        out_shape=jax.ShapeDtypeStruct((B, Lq, D), x.dtype),
        grid=(B, Lq // tq, Lk // tk),
        in_specs=[
            pl.BlockSpec((1, tq, D), lambda b, qi, ki: (b, qi, 0)),   # tgt
            pl.BlockSpec((1, tq, D), lambda b, qi, ki: (b, qi, 0)),   # query_pos
            pl.BlockSpec((1, tk, D), lambda b, qi, ki: (b, ki, 0)),   # memory+pos
            pl.BlockSpec((1, tk, D), lambda b, qi, ki: (b, ki, 0)),   # memory
            pl.BlockSpec((D, D), lambda b, qi, ki: (0, 0)),           # wq (bf16)
            pl.BlockSpec((1, D), lambda b, qi, ki: (0, 0)),           # bq
            pl.BlockSpec((D, D), lambda b, qi, ki: (0, 0)),           # wk (bf16)
            pl.BlockSpec((1, D), lambda b, qi, ki: (0, 0)),           # bk
            pl.BlockSpec((D, D), lambda b, qi, ki: (0, 0)),           # wv (bf16)
            pl.BlockSpec((1, D), lambda b, qi, ki: (0, 0)),           # bv
            pl.BlockSpec((D, D), lambda b, qi, ki: (0, 0)),           # wo (bf16)
            pl.BlockSpec((1, D), lambda b, qi, ki: (0, 0)),           # bo
            pl.BlockSpec((1, D), lambda b, qi, ki: (0, 0)),           # norm2 gamma
            pl.BlockSpec((1, D), lambda b, qi, ki: (0, 0)),           # norm2 beta
        ],
        out_specs=pl.BlockSpec((1, tq, D), lambda b, qi, ki: (b, qi, 0)),
        scratch_shapes=[
            pltpu.VMEM((nhead, tq, dh), _MM_DTYPE),      # cached scaled q
            pltpu.VMEM((nhead, tq, 1), jnp.float32),     # m (running max)
            pltpu.VMEM((nhead, tq, 1), jnp.float32),     # l (running denom)
            pltpu.VMEM((nhead, tq, dh), jnp.float32),    # acc
        ],
        compiler_params=pltpu.CompilerParams(
            dimension_semantics=("parallel", "parallel", "arbitrary"),
            vmem_limit_bytes=_VMEM_LIMIT),
    )(x, qp, memk, mem,
      p["wq"].astype(_MM_DTYPE), p["bq"].reshape(1, D),
      p["wk"].astype(_MM_DTYPE), p["bk"].reshape(1, D),
      p["wv"].astype(_MM_DTYPE), p["bv"].reshape(1, D),
      p["wo"].astype(_MM_DTYPE), p["bo"].reshape(1, D),
      norm_g.reshape(1, D), norm_b.reshape(1, D))


def fused_ffn(x, lp, norm_g, norm_b, eps=1e-5):
    """x: (M, D) -> (post-norm3 output, final-norm intermediate), both (M, D)."""
    M, D = x.shape
    F = lp["ffn_w1"].shape[1]
    tm = _pick_tile(M, 512)
    kernel = functools.partial(_ffn_kernel, eps=eps)
    return pl.pallas_call(
        kernel,
        out_shape=(jax.ShapeDtypeStruct((M, D), x.dtype),
                   jax.ShapeDtypeStruct((M, D), x.dtype)),
        grid=(M // tm,),
        in_specs=[
            pl.BlockSpec((tm, D), lambda i: (i, 0)),          # x
            pl.BlockSpec((D, F), lambda i: (0, 0)),           # w1 (bf16)
            pl.BlockSpec((1, F), lambda i: (0, 0)),           # b1
            pl.BlockSpec((F, D), lambda i: (0, 0)),           # w2 (bf16)
            pl.BlockSpec((1, D), lambda i: (0, 0)),           # b2
            pl.BlockSpec((1, D), lambda i: (0, 0)),           # norm3 gamma
            pl.BlockSpec((1, D), lambda i: (0, 0)),           # norm3 beta
            pl.BlockSpec((1, D), lambda i: (0, 0)),           # final norm gamma
            pl.BlockSpec((1, D), lambda i: (0, 0)),           # final norm beta
        ],
        out_specs=(pl.BlockSpec((tm, D), lambda i: (i, 0)),
                   pl.BlockSpec((tm, D), lambda i: (i, 0))),
        compiler_params=pltpu.CompilerParams(
            dimension_semantics=("parallel",),
            vmem_limit_bytes=_VMEM_LIMIT),
    )(x, lp["ffn_w1"].astype(_MM_DTYPE), lp["ffn_b1"].reshape(1, F),
      lp["ffn_w2"].astype(_MM_DTYPE), lp["ffn_b2"].reshape(1, D),
      lp["norm3_g"].reshape(1, D), lp["norm3_b"].reshape(1, D),
      norm_g.reshape(1, D), norm_b.reshape(1, D))


def ref_point_head(x, w1, b1, w2, b2):
    """x: (M, 2D) -> (M, D). Fused 2-layer MLP with ReLU."""
    M, K = x.shape
    H = w1.shape[1]
    N = w2.shape[1]
    tm = _pick_tile(M, 512)
    return pl.pallas_call(
        _mlp2_kernel,
        out_shape=jax.ShapeDtypeStruct((M, N), x.dtype),
        grid=(M // tm,),
        in_specs=[
            pl.BlockSpec((tm, K), lambda i: (i, 0)),
            pl.BlockSpec((K, H), lambda i: (0, 0)),
            pl.BlockSpec((1, H), lambda i: (0, 0)),
            pl.BlockSpec((H, N), lambda i: (0, 0)),
            pl.BlockSpec((1, N), lambda i: (0, 0)),
        ],
        out_specs=pl.BlockSpec((tm, N), lambda i: (i, 0)),
        compiler_params=pltpu.CompilerParams(
            dimension_semantics=("parallel",),
            vmem_limit_bytes=_VMEM_LIMIT),
    )(x, w1.astype(_MM_DTYPE), b1.reshape(1, H),
      w2.astype(_MM_DTYPE), b2.reshape(1, N))


# --------------------------------------------------------------------------
# Plain-JAX glue
# --------------------------------------------------------------------------
def gen_sineembed_for_position(pos_tensor, d_model):
    """pos_tensor: (B, nq, 4) -> (B, nq, 2*d_model). Matches DAB-DETR."""
    half = d_model // 2
    scale = 2.0 * math.pi
    dim_t = jnp.arange(half, dtype=jnp.float32)
    dim_t = 10000.0 ** (2.0 * jnp.floor(dim_t / 2.0) / half)

    def embed(coord):  # coord: (B, nq)
        pos = coord[:, :, None] * scale / dim_t                       # (B, nq, half)
        s = jnp.sin(pos[:, :, 0::2])
        c = jnp.cos(pos[:, :, 1::2])
        return jnp.stack([s, c], axis=3).reshape(coord.shape[0], coord.shape[1], half)

    pos_y = embed(pos_tensor[:, :, 1])
    pos_x = embed(pos_tensor[:, :, 0])
    pos_w = embed(pos_tensor[:, :, 2])
    pos_h = embed(pos_tensor[:, :, 3])
    return jnp.concatenate([pos_y, pos_x, pos_w, pos_h], axis=2)


def transformer_decoder_forward(params, tgt, memory, pos, refpoints_unsigmoid,
                                valid_ratios, nhead):
    """Mirrors TransformerDecoder.forward with rln_embed/bbox_embed/query_scale
    == None (as in the reference __init__) and return_intermediate=True."""
    nq, bs, d = tgt.shape

    # batch-first internal layout; avoids per-MHA HBM transposes and makes
    # the intermediate outputs already (bs, nq, d).
    x = jnp.transpose(tgt, (1, 0, 2))                                 # (bs, nq, d)
    mem = jnp.transpose(memory, (1, 0, 2))                            # (bs, hw, d)
    memk = mem + jnp.transpose(pos, (1, 0, 2))   # loop-invariant key input (hoisted)

    reference_points = jax.nn.sigmoid(refpoints_unsigmoid)            # (nq, bs, 4)
    ref_points = [reference_points]

    # ---- hoisted loop-invariant query_pos (bbox_embed & query_scale are None,
    # so reference_points / raw_query_pos are identical every layer) ----------
    vr = jnp.concatenate([valid_ratios, valid_ratios], axis=-1)       # (bs, nlev, 4)
    rp_input = reference_points[:, :, None, :] * vr[None]             # (nq, bs, nlev, 4)
    rp_bf = jnp.transpose(rp_input[:, :, 0, :], (1, 0, 2))            # (bs, nq, 4)
    query_sine_embed = gen_sineembed_for_position(rp_bf, d)           # (bs, nq, 2d)
    query_pos = ref_point_head(
        query_sine_embed.reshape(bs * nq, 2 * d),
        params["rph_w1"], params["rph_b1"],
        params["rph_w2"], params["rph_b2"]).reshape(bs, nq, d)

    intermediate = []
    for lp in params["layers"]:
        # self-attention + residual + norm1 (one pallas_call)
        x = fused_self_attn(x, query_pos, lp["self_attn"],
                            lp["norm1_g"], lp["norm1_b"], nhead)
        # Lk-streamed flash cross-attention + residual + norm2 (one pallas_call)
        x = fused_cross_attn(x, query_pos, memk, mem, lp["cross_attn"],
                             lp["norm2_g"], lp["norm2_b"], nhead)
        # FFN + residual + norm3 + final decoder norm (one pallas_call)
        x2d, inter2d = fused_ffn(x.reshape(bs * nq, d), lp,
                                 params["norm_g"], params["norm_b"])
        x = x2d.reshape(bs, nq, d)
        intermediate.append(inter2d.reshape(bs, nq, d))

    hs = intermediate                                                  # (bs, nq, d) each
    refs = [jnp.transpose(r, (1, 0, 2)) for r in ref_points]           # (bs, nq, 4)
    return [hs, refs, []]


# --------------------------------------------------------------------------
# Deterministic parameter initialization
# --------------------------------------------------------------------------
def init_params(seed, d_model, dim_ffn, num_layers):
    base = jax.random.PRNGKey(seed)
    counter = [0]

    def next_key():
        counter[0] += 1
        return jax.random.fold_in(base, counter[0])

    def dense(fan_in, fan_out):
        w = jax.random.normal(next_key(), (fan_in, fan_out), jnp.float32) / math.sqrt(fan_in)
        b = jax.random.normal(next_key(), (fan_out,), jnp.float32) * 0.02
        return w, b

    def mha_params(pack_qk=False):
        raw = {}
        for name in ("q", "k", "v", "o"):
            w, b = dense(d_model, d_model)
            raw["w" + name] = w
            raw["b" + name] = b
        if pack_qk:
            return {
                "wqk": jnp.concatenate([raw["wq"], raw["wk"]], axis=1),
                "bqk": jnp.concatenate([raw["bq"], raw["bk"]], axis=0),
                "wv": raw["wv"], "bv": raw["bv"],
                "wo": raw["wo"], "bo": raw["bo"],
            }
        return raw

    params = {}
    params["rph_w1"], params["rph_b1"] = dense(2 * d_model, d_model)
    params["rph_w2"], params["rph_b2"] = dense(d_model, d_model)
    params["norm_g"] = jnp.ones((d_model,), jnp.float32)
    params["norm_b"] = jnp.zeros((d_model,), jnp.float32)

    layers = []
    for _ in range(num_layers):
        lp = {"self_attn": mha_params(pack_qk=True),
              "cross_attn": mha_params(pack_qk=False)}
        lp["ffn_w1"], lp["ffn_b1"] = dense(d_model, dim_ffn)
        lp["ffn_w2"], lp["ffn_b2"] = dense(dim_ffn, d_model)
        for n in ("norm1", "norm2", "norm3"):
            lp[n + "_g"] = jnp.ones((d_model,), jnp.float32)
            lp[n + "_b"] = jnp.zeros((d_model,), jnp.float32)
        layers.append(lp)
    params["layers"] = layers
    return params


# --------------------------------------------------------------------------
if __name__ == "__main__":
    d_model = 32
    nhead = 4
    dim_ffn = 64
    num_layers = 2
    query_dim = 4
    num_levels = 1
    # hw = 1024 > max_tk = 512 so the flash cross-attention streams over 2 Lk
    # tiles and exercises the online-softmax init/update/finalize path.
    nq, bs, hw = 8, 2, 1024

    params = init_params(0, d_model, dim_ffn, num_layers)

    key = jax.random.PRNGKey(0)
    k1, k2, k3, k4 = jax.random.split(key, 4)
    tgt = jax.random.normal(k1, (nq, bs, d_model), jnp.float32)
    memory = jax.random.normal(k2, (hw, bs, d_model), jnp.float32)
    pos = jax.random.normal(k3, (hw, bs, d_model), jnp.float32)
    refpoints_unsigmoid = jax.random.normal(k4, (nq, bs, query_dim), jnp.float32)
    valid_ratios = jnp.ones((bs, num_levels, 2), jnp.float32)

    fwd = jax.jit(transformer_decoder_forward, static_argnames=("nhead",))
    hs, refs, out_rln = fwd(params, tgt, memory, pos, refpoints_unsigmoid,
                            valid_ratios, nhead=nhead)

    jax.block_until_ready(hs)
    jax.block_until_ready(refs)

    assert len(hs) == num_layers and hs[0].shape == (bs, nq, d_model)
    assert len(refs) == 1 and refs[0].shape == (bs, nq, query_dim)
    assert len(out_rln) == 0
    assert all(bool(jnp.isfinite(h).all()) for h in hs)

    print("KERNEL_OK")
</pallas_src>

<mosaic_0001>
module attributes {stable_mosaic.version = 11 : i64} {
  func.func @_mlp2_kernel(%arg0: i32, %arg1: memref<16x64xf32, #tpu.memory_space<vmem>>, %arg2: memref<64x32xbf16, #tpu.memory_space<vmem>>, %arg3: memref<1x32xf32, #tpu.memory_space<vmem>>, %arg4: memref<32x32xbf16, #tpu.memory_space<vmem>>, %arg5: memref<1x32xf32, #tpu.memory_space<vmem>>, %arg6: memref<16x32xf32, #tpu.memory_space<vmem>>) attributes {dimension_semantics = [#tpu.dimension_semantics<parallel>], iteration_bounds = array<i64: 1>, scalar_prefetch = 0 : i64, scratch_operands = 0 : i64, tpu.core_type = #tpu.core_type<tc>, window_params = [{transform_indices = @transform_0, window_bounds = array<i64: 16, 64>}, {pipeline_mode = #tpu.pipeline_mode<synchronous>, transform_indices = @transform_1, window_bounds = array<i64: 64, 32>}, {pipeline_mode = #tpu.pipeline_mode<synchronous>, transform_indices = @transform_2, window_bounds = array<i64: 1, 32>}, {pipeline_mode = #tpu.pipeline_mode<synchronous>, transform_indices = @transform_3, window_bounds = array<i64: 32, 32>}, {pipeline_mode = #tpu.pipeline_mode<synchronous>, transform_indices = @transform_4, window_bounds = array<i64: 1, 32>}, {transform_indices = @transform_5, window_bounds = array<i64: 16, 32>}]} {
    %c0 = arith.constant 0 : index
    %c0_0 = arith.constant 0 : index
    %0 = vector.load %arg1[%c0, %c0_0] : memref<16x64xf32, #tpu.memory_space<vmem>>, vector<16x64xf32>
    %c0_1 = arith.constant 0 : index
    %c0_2 = arith.constant 0 : index
    %1 = vector.load %arg2[%c0_1, %c0_2] : memref<64x32xbf16, #tpu.memory_space<vmem>>, vector<64x32xbf16>
    %2 = arith.truncf %0 : vector<16x64xf32> to vector<16x64xbf16>
    %cst = arith.constant dense<0.000000e+00> : vector<16x32xf32>
    %3 = tpu.matmul %2, %1, %cst {dimension_numbers = #tpu.dot_dimension_numbers<[1], [0], [0], [1], [0, 0, 1, 1], [], []>} : vector<16x64xbf16>, vector<64x32xbf16>, vector<16x32xf32> -> vector<16x32xf32>
    %c0_3 = arith.constant 0 : index
    %c0_4 = arith.constant 0 : index
    %4 = vector.load %arg3[%c0_3, %c0_4] : memref<1x32xf32, #tpu.memory_space<vmem>>, vector<1x32xf32>
    %5 = vector.broadcast %4 : vector<1x32xf32> to vector<16x32xf32>
    %6 = arith.addf %3, %5 : vector<16x32xf32>
    %cst_5 = arith.constant 0.000000e+00 : f32
    %7 = vector.broadcast %cst_5 : f32 to vector<16x32xf32>
    %8 = arith.maximumf %6, %7 : vector<16x32xf32>
    %c0_6 = arith.constant 0 : index
    %c0_7 = arith.constant 0 : index
    %9 = vector.load %arg4[%c0_6, %c0_7] : memref<32x32xbf16, #tpu.memory_space<vmem>>, vector<32x32xbf16>
    %10 = arith.truncf %8 : vector<16x32xf32> to vector<16x32xbf16>
    %cst_8 = arith.constant dense<0.000000e+00> : vector<16x32xf32>
    %11 = tpu.matmul %10, %9, %cst_8 {dimension_numbers = #tpu.dot_dimension_numbers<[1], [0], [0], [1], [0, 0, 1, 1], [], []>} : vector<16x32xbf16>, vector<32x32xbf16>, vector<16x32xf32> -> vector<16x32xf32>
    %c0_9 = arith.constant 0 : index
    %c0_10 = arith.constant 0 : index
    %12 = vector.load %arg5[%c0_9, %c0_10] : memref<1x32xf32, #tpu.memory_space<vmem>>, vector<1x32xf32>
    %13 = vector.broadcast %12 : vector<1x32xf32> to vector<16x32xf32>
    %14 = arith.addf %11, %13 : vector<16x32xf32>
    %c0_11 = arith.constant 0 : index
    %c0_12 = arith.constant 0 : index
    %15 = vector.load %arg6[%c0_11, %c0_12] : memref<16x32xf32, #tpu.memory_space<vmem>>, vector<16x32xf32>
    tpu.vector_store %arg6[%c0_11, %c0_12], %14 {strides = array<i32>} : memref<16x32xf32, #tpu.memory_space<vmem>>, vector<16x32xf32>,
    return
  }
  func.func @transform_0(%arg0: i32) -> (i32, i32) {
    %c0_i32 = arith.constant 0 : i32
    %c0_i32_0 = arith.constant 0 : i32
    return %arg0, %c0_i32 : i32, i32
  }
  func.func @transform_1(%arg0: i32) -> (i32, i32) {
    %c0_i32 = arith.constant 0 : i32
    %c0_i32_0 = arith.constant 0 : i32
    %c0_i32_1 = arith.constant 0 : i32
    return %c0_i32, %c0_i32_0 : i32, i32
  }
  func.func @transform_2(%arg0: i32) -> (i32, i32) {
    %c0_i32 = arith.constant 0 : i32
    %c0_i32_0 = arith.constant 0 : i32
    %c0_i32_1 = arith.constant 0 : i32
    return %c0_i32, %c0_i32_0 : i32, i32
  }
  func.func @transform_3(%arg0: i32) -> (i32, i32) {
    %c0_i32 = arith.constant 0 : i32
    %c0_i32_0 = arith.constant 0 : i32
    %c0_i32_1 = arith.constant 0 : i32
    return %c0_i32, %c0_i32_0 : i32, i32
  }
  func.func @transform_4(%arg0: i32) -> (i32, i32) {
    %c0_i32 = arith.constant 0 : i32
    %c0_i32_0 = arith.constant 0 : i32
    %c0_i32_1 = arith.constant 0 : i32
    return %c0_i32, %c0_i32_0 : i32, i32
  }
  func.func @transform_5(%arg0: i32) -> (i32, i32) {
    %c0_i32 = arith.constant 0 : i32
    %c0_i32_0 = arith.constant 0 : i32
    return %arg0, %c0_i32 : i32, i32
  }
}

module attributes {stable_mosaic.version = 11 : i64} {
  func.func @_self_attn_kernel(%arg0: i32, %arg1: memref<1x8x32xf32, #tpu.memory_space<vmem>>, %arg2: memref<1x8x32xf32, #tpu.memory_space<vmem>>, %arg3: memref<32x64xbf16, #tpu.memory_space<vmem>>, %arg4: memref<1x64xf32, #tpu.memory_space<vmem>>, %arg5: memref<32x32xbf16, #tpu.memory_space<vmem>>, %arg6: memref<1x32xf32, #tpu.memory_space<vmem>>, %arg7: memref<32x32xbf16, #tpu.memory_space<vmem>>, %arg8: memref<1x32xf32, #tpu.memory_space<vmem>>, %arg9: memref<1x32xf32, #tpu.memory_space<vmem>>, %arg10: memref<1x32xf32, #tpu.memory_space<vmem>>, %arg11: memref<1x8x32xf32, #tpu.memory_space<vmem>>) attributes {dimension_semantics = [#tpu.dimension_semantics<parallel>], iteration_bounds = array<i64: 2>, scalar_prefetch = 0 : i64, scratch_operands = 0 : i64, tpu.core_type = #tpu.core_type<tc>, window_params = [{transform_indices = @transform_0, window_bounds = array<i64: 1, 8, 32>}, {transform_indices = @transform_1, window_bounds = array<i64: 1, 8, 32>}, {pipeline_mode = #tpu.pipeline_mode<synchronous>, transform_indices = @transform_2, window_bounds = array<i64: 32, 64>}, {pipeline_mode = #tpu.pipeline_mode<synchronous>, transform_indices = @transform_3, window_bounds = array<i64: 1, 64>}, {pipeline_mode = #tpu.pipeline_mode<synchronous>, transform_indices = @transform_4, window_bounds = array<i64: 32, 32>}, {pipeline_mode = #tpu.pipeline_mode<synchronous>, transform_indices = @transform_5, window_bounds = array<i64: 1, 32>}, {pipeline_mode = #tpu.pipeline_mode<synchronous>, transform_indices = @transform_6, window_bounds = array<i64: 32, 32>}, {pipeline_mode = #tpu.pipeline_mode<synchronous>, transform_indices = @transform_7, window_bounds = array<i64: 1, 32>}, {pipeline_mode = #tpu.pipeline_mode<synchronous>, transform_indices = @transform_8, window_bounds = array<i64: 1, 32>}, {pipeline_mode = #tpu.pipeline_mode<synchronous>, transform_indices = @transform_9, window_bounds = array<i64: 1, 32>}, {transform_indices = @transform_10, window_bounds = array<i64: 1, 8, 32>}]} {
    %c0 = arith.constant 0 : index
    %c0_0 = arith.constant 0 : index
    %c0_1 = arith.constant 0 : index
    %0 = vector.load %arg1[%c0, %c0_0, %c0_1] : memref<1x8x32xf32, #tpu.memory_space<vmem>>, vector<1x8x32xf32>
    %1 = vector.shape_cast %0 : vector<1x8x32xf32> to vector<8x32xf32>
    %c0_2 = arith.constant 0 : index
    %c0_3 = arith.constant 0 : index
    %c0_4 = arith.constant 0 : index
    %2 = vector.load %arg2[%c0_2, %c0_3, %c0_4] : memref<1x8x32xf32, #tpu.memory_space<vmem>>, vector<1x8x32xf32>
    %3 = vector.shape_cast %2 : vector<1x8x32xf32> to vector<8x32xf32>
    %4 = arith.addf %1, %3 : vector<8x32xf32>
    %c0_5 = arith.constant 0 : index
    %c0_6 = arith.constant 0 : index
    %5 = vector.load %arg3[%c0_5, %c0_6] : memref<32x64xbf16, #tpu.memory_space<vmem>>, vector<32x64xbf16>
    %6 = arith.truncf %4 : vector<8x32xf32> to vector<8x32xbf16>
    %cst = arith.constant dense<0.000000e+00> : vector<8x64xf32>
    %7 = tpu.matmul %6, %5, %cst {dimension_numbers = #tpu.dot_dimension_numbers<[1], [0], [0], [1], [0, 0, 1, 1], [], []>} : vector<8x32xbf16>, vector<32x64xbf16>, vector<8x64xf32> -> vector<8x64xf32>
    %c0_7 = arith.constant 0 : index
    %c0_8 = arith.constant 0 : index
    %8 = vector.load %arg4[%c0_7, %c0_8] : memref<1x64xf32, #tpu.memory_space<vmem>>, vector<1x64xf32>
    %9 = vector.broadcast %8 : vector<1x64xf32> to vector<8x64xf32>
    %10 = arith.addf %7, %9 : vector<8x64xf32>
    %11 = vector.extract_strided_slice %10 {offsets = [0, 0], sizes = [8, 32], strides = [1, 1]} : vector<8x64xf32> to vector<8x32xf32>
    %cst_9 = arith.constant 0.353553385 : f32
    %12 = vector.broadcast %cst_9 : f32 to vector<8x32xf32>
    %13 = arith.mulf %11, %12 : vector<8x32xf32>
    %14 = arith.truncf %13 : vector<8x32xf32> to vector<8x32xbf16>
    %15 = vector.extract_strided_slice %10 {offsets = [0, 32], sizes = [8, 32], strides = [1, 1]} : vector<8x64xf32> to vector<8x32xf32>
    %16 = arith.truncf %15 : vector<8x32xf32> to vector<8x32xbf16>
    %c0_10 = arith.constant 0 : index
    %c0_11 = arith.constant 0 : index
    %17 = vector.load %arg5[%c0_10, %c0_11] : memref<32x32xbf16, #tpu.memory_space<vmem>>, vector<32x32xbf16>
    %18 = arith.truncf %1 : vector<8x32xf32> to vector<8x32xbf16>
    %cst_12 = arith.constant dense<0.000000e+00> : vector<8x32xf32>
    %19 = tpu.matmul %18, %17, %cst_12 {dimension_numbers = #tpu.dot_dimension_numbers<[1], [0], [0], [1], [0, 0, 1, 1], [], []>} : vector<8x32xbf16>, vector<32x32xbf16>, vector<8x32xf32> -> vector<8x32xf32>
    %c0_13 = arith.constant 0 : index
    %c0_14 = arith.constant 0 : index
    %20 = vector.load %arg6[%c0_13, %c0_14] : memref<1x32xf32, #tpu.memory_space<vmem>>, vector<1x32xf32>
    %21 = vector.broadcast %20 : vector<1x32xf32> to vector<8x32xf32>
    %22 = arith.addf %19, %21 : vector<8x32xf32>
    %23 = arith.truncf %22 : vector<8x32xf32> to vector<8x32xbf16>
    %cst_15 = arith.constant 0.000000e+00 : f32
    %24 = vector.broadcast %cst_15 : f32 to vector<8x32xf32>
    %25 = vector.extract_strided_slice %14 {offsets = [0, 0], sizes = [8, 8], strides = [1, 1]} : vector<8x32xbf16> to vector<8x8xbf16>
    %26 = vector.extract_strided_slice %16 {offsets = [0, 0], sizes = [8, 8], strides = [1, 1]} : vector<8x32xbf16> to vector<8x8xbf16>
    %cst_16 = arith.constant dense<0.000000e+00> : vector<8x8xf32>
    %27 = tpu.matmul %25, %26, %cst_16 {dimension_numbers = #tpu.dot_dimension_numbers<[1], [1], [0], [0], [0, 0, 1, 0], [], []>} : vector<8x8xbf16>, vector<8x8xbf16>, vector<8x8xf32> -> vector<8x8xf32>
    %cst_17 = arith.constant dense<0xFF800000> : vector<8xf32>
    %28 = vector.multi_reduction <maximumf>, %27, %cst_17 [1] : vector<8x8xf32> to vector<8xf32>
    %29 = vector.shape_cast %28 : vector<8xf32> to vector<8x1xf32>
    %30 = vector.broadcast %29 : vector<8x1xf32> to vector<8x8xf32>
    %31 = arith.subf %27, %30 : vector<8x8xf32>
    %32 = math.exp %31 : vector<8x8xf32>
    %cst_18 = arith.constant dense<0.000000e+00> : vector<8xf32>
    %33 = vector.multi_reduction <add>, %32, %cst_18 [1] : vector<8x8xf32> to vector<8xf32>
    %34 = vector.shape_cast %33 : vector<8xf32> to vector<8x1xf32>
    %35 = vector.extract_strided_slice %23 {offsets = [0, 0], sizes = [8, 8], strides = [1, 1]} : vector<8x32xbf16> to vector<8x8xbf16>
    %36 = arith.truncf %32 : vector<8x8xf32> to vector<8x8xbf16>
    %cst_19 = arith.constant dense<0.000000e+00> : vector<8x8xf32>
    %37 = tpu.matmul %36, %35, %cst_19 {dimension_numbers = #tpu.dot_dimension_numbers<[1], [0], [0], [1], [0, 0, 1, 1], [], []>} : vector<8x8xbf16>, vector<8x8xbf16>, vector<8x8xf32> -> vector<8x8xf32>
    %38 = tpu.reciprocal %34 {approx = true} : vector<8x1xf32> -> vector<8x1xf32>
    %39 = vector.broadcast %38 : vector<8x1xf32> to vector<8x8xf32>
    %40 = arith.mulf %37, %39 : vector<8x8xf32>
    %c0_20 = arith.constant 0 : index
    %c0_21 = arith.constant 0 : index
    %41 = vector.load %arg7[%c0_20, %c0_21] : memref<32x32xbf16, #tpu.memory_space<vmem>>, vector<8x32xbf16>
    %42 = arith.truncf %40 : vector<8x8xf32> to vector<8x8xbf16>
    %cst_22 = arith.constant dense<0.000000e+00> : vector<8x32xf32>
    %43 = tpu.matmul %42, %41, %cst_22 {dimension_numbers = #tpu.dot_dimension_numbers<[1], [0], [0], [1], [0, 0, 1, 1], [], []>} : vector<8x8xbf16>, vector<8x32xbf16>, vector<8x32xf32> -> vector<8x32xf32>
    %44 = arith.addf %24, %43 : vector<8x32xf32>
    %45 = vector.extract_strided_slice %14 {offsets = [0, 8], sizes = [8, 8], strides = [1, 1]} : vector<8x32xbf16> to vector<8x8xbf16>
    %46 = vector.extract_strided_slice %16 {offsets = [0, 8], sizes = [8, 8], strides = [1, 1]} : vector<8x32xbf16> to vector<8x8xbf16>
    %cst_23 = arith.constant dense<0.000000e+00> : vector<8x8xf32>
    %47 = tpu.matmul %45, %46, %cst_23 {dimension_numbers = #tpu.dot_dimension_numbers<[1], [1], [0], [0], [0, 0, 1, 0], [], []>} : vector<8x8xbf16>, vector<8x8xbf16>, vector<8x8xf32> -> vector<8x8xf32>
    %cst_24 = arith.constant dense<0xFF800000> : vector<8xf32>
    %48 = vector.multi_reduction <maximumf>, %47, %cst_24 [1] : vector<8x8xf32> to vector<8xf32>
    %49 = vector.shape_cast %48 : vector<8xf32> to vector<8x1xf32>
    %50 = vector.broadcast %49 : vector<8x1xf32> to vector<8x8xf32>
    %51 = arith.subf %47, %50 : vector<8x8xf32>
    %52 = math.exp %51 : vector<8x8xf32>
    %cst_25 = arith.constant dense<0.000000e+00> : vector<8xf32>
    %53 = vector.multi_reduction <add>, %52, %cst_25 [1] : vector<8x8xf32> to vector<8xf32>
    %54 = vector.shape_cast %53 : vector<8xf32> to vector<8x1xf32>
    %55 = vector.extract_strided_slice %23 {offsets = [0, 8], sizes = [8, 8], strides = [1, 1]} : vector<8x32xbf16> to vector<8x8xbf16>
    %56 = arith.truncf %52 : vector<8x8xf32> to vector<8x8xbf16>
    %cst_26 = arith.constant dense<0.000000e+00> : vector<8x8xf32>
    %57 = tpu.matmul %56, %55, %cst_26 {dimension_numbers = #tpu.dot_dimension_numbers<[1], [0], [0], [1], [0, 0, 1, 1], [], []>} : vector<8x8xbf16>, vector<8x8xbf16>, vector<8x8xf32> -> vector<8x8xf32>
    %58 = tpu.reciprocal %54 {approx = true} : vector<8x1xf32> -> vector<8x1xf32>
    %59 = vector.broadcast %58 : vector<8x1xf32> to vector<8x8xf32>
    %60 = arith.mulf %57, %59 : vector<8x8xf32>
    %c8 = arith.constant 8 : index
    %c0_27 = arith.constant 0 : index
    %61 = vector.load %arg7[%c8, %c0_27] : memref<32x32xbf16, #tpu.memory_space<vmem>>, vector<8x32xbf16>
    %62 = arith.truncf %60 : vector<8x8xf32> to vector<8x8xbf16>
    %cst_28 = arith.constant dense<0.000000e+00> : vector<8x32xf32>
    %63 = tpu.matmul %62, %61, %cst_28 {dimension_numbers = #tpu.dot_dimension_numbers<[1], [0], [0], [1], [0, 0, 1, 1], [], []>} : vector<8x8xbf16>, vector<8x32xbf16>, vector<8x32xf32> -> vector<8x32xf32>
    %64 = arith.addf %44, %63 : vector<8x32xf32>
    %65 = vector.extract_strided_slice %14 {offsets = [0, 16], sizes = [8, 8], strides = [1, 1]} : vector<8x32xbf16> to vector<8x8xbf16>
    %66 = vector.extract_strided_slice %16 {offsets = [0, 16], sizes = [8, 8], strides = [1, 1]} : vector<8x32xbf16> to vector<8x8xbf16>
    %cst_29 = arith.constant dense<0.000000e+00> : vector<8x8xf32>
    %67 = tpu.matmul %65, %66, %cst_29 {dimension_numbers = #tpu.dot_dimension_numbers<[1], [1], [0], [0], [0, 0, 1, 0], [], []>} : vector<8x8xbf16>, vector<8x8xbf16>, vector<8x8xf32> -> vector<8x8xf32>
    %cst_30 = arith.constant dense<0xFF800000> : vector<8xf32>
    %68 = vector.multi_reduction <maximumf>, %67, %cst_30 [1] : vector<8x8xf32> to vector<8xf32>
    %69 = vector.shape_cast %68 : vector<8xf32> to vector<8x1xf32>
    %70 = vector.broadcast %69 : vector<8x1xf32> to vector<8x8xf32>
    %71 = arith.subf %67, %70 : vector<8x8xf32>
    %72 = math.exp %71 : vector<8x8xf32>
    %cst_31 = arith.constant dense<0.000000e+00> : vector<8xf32>
    %73 = vector.multi_reduction <add>, %72, %cst_31 [1] : vector<8x8xf32> to vector<8xf32>
    %74 = vector.shape_cast %73 : vector<8xf32> to vector<8x1xf32>
    %75 = vector.extract_strided_slice %23 {offsets = [0, 16], sizes = [8, 8], strides = [1, 1]} : vector<8x32xbf16> to vector<8x8xbf16>
    %76 = arith.truncf %72 : vector<8x8xf32> to vector<8x8xbf16>
    %cst_32 = arith.constant dense<0.000000e+00> : vector<8x8xf32>
    %77 = tpu.matmul %76, %75, %cst_32 {dimension_numbers = #tpu.dot_dimension_numbers<[1], [0], [0], [1], [0, 0, 1, 1], [], []>} : vector<8x8xbf16>, vector<8x8xbf16>, vector<8x8xf32> -> vector<8x8xf32>
    %78 = tpu.reciprocal %74 {approx = true} : vector<8x1xf32> -> vector<8x1xf32>
    %79 = vector.broadcast %78 : vector<8x1xf32> to vector<8x8xf32>
    %80 = arith.mulf %77, %79 : vector<8x8xf32>
    %c16 = arith.constant 16 : index
    %c0_33 = arith.constant 0 : index
    %81 = vector.load %arg7[%c16, %c0_33] : memref<32x32xbf16, #tpu.memory_space<vmem>>, vector<8x32xbf16>
    %82 = arith.truncf %80 : vector<8x8xf32> to vector<8x8xbf16>
    %cst_34 = arith.constant dense<0.000000e+00> : vector<8x32xf32>
    %83 = tpu.matmul %82, %81, %cst_34 {dimension_numbers = #tpu.dot_dimension_numbers<[1], [0], [0], [1], [0, 0, 1, 1], [], []>} : vector<8x8xbf16>, vector<8x32xbf16>, vector<8x32xf32> -> vector<8x32xf32>
    %84 = arith.addf %64, %83 : vector<8x32xf32>
    %85 = vector.extract_strided_slice %14 {offsets = [0, 24], sizes = [8, 8], strides = [1, 1]} : vector<8x32xbf16> to vector<8x8xbf16>
    %86 = vector.extract_strided_slice %16 {offsets = [0, 24], sizes = [8, 8], strides = [1, 1]} : vector<8x32xbf16> to vector<8x8xbf16>
    %cst_35 = arith.constant dense<0.000000e+00> : vector<8x8xf32>
    %87 = tpu.matmul %85, %86, %cst_35 {dimension_numbers = #tpu.dot_dimension_numbers<[1], [1], [0], [0], [0, 0, 1, 0], [], []>} : vector<8x8xbf16>, vector<8x8xbf16>, vector<8x8xf32> -> vector<8x8xf32>
    %cst_36 = arith.constant dense<0xFF800000> : vector<8xf32>
    %88 = vector.multi_reduction <maximumf>, %87, %cst_36 [1] : vector<8x8xf32> to vector<8xf32>
    %89 = vector.shape_cast %88 : vector<8xf32> to vector<8x1xf32>
    %90 = vector.broadcast %89 : vector<8x1xf32> to vector<8x8xf32>
    %91 = arith.subf %87, %90 : vector<8x8xf32>
    %92 = math.exp %91 : vector<8x8xf32>
    %cst_37 = arith.constant dense<0.000000e+00> : vector<8xf32>
    %93 = vector.multi_reduction <add>, %92, %cst_37 [1] : vector<8x8xf32> to vector<8xf32>
    %94 = vector.shape_cast %93 : vector<8xf32> to vector<8x1xf32>
    %95 = vector.extract_strided_slice %23 {offsets = [0, 24], sizes = [8, 8], strides = [1, 1]} : vector<8x32xbf16> to vector<8x8xbf16>
    %96 = arith.truncf %92 : vector<8x8xf32> to vector<8x8xbf16>
    %cst_38 = arith.constant dense<0.000000e+00> : vector<8x8xf32>
    %97 = tpu.matmul %96, %95, %cst_38 {dimension_numbers = #tpu.dot_dimension_numbers<[1], [0], [0], [1], [0, 0, 1, 1], [], []>} : vector<8x8xbf16>, vector<8x8xbf16>, vector<8x8xf32> -> vector<8x8xf32>
    %98 = tpu.reciprocal %94 {approx = true} : vector<8x1xf32> -> vector<8x1xf32>
    %99 = vector.broadcast %98 : vector<8x1xf32> to vector<8x8xf32>
    %100 = arith.mulf %97, %99 : vector<8x8xf32>
    %c24 = arith.constant 24 : index
    %c0_39 = arith.constant 0 : index
    %101 = vector.load %arg7[%c24, %c0_39] : memref<32x32xbf16, #tpu.memory_space<vmem>>, vector<8x32xbf16>
    %102 = arith.truncf %100 : vector<8x8xf32> to vector<8x8xbf16>
    %cst_40 = arith.constant dense<0.000000e+00> : vector<8x32xf32>
    %103 = tpu.matmul %102, %101, %cst_40 {dimension_numbers = #tpu.dot_dimension_numbers<[1], [0], [0], [1], [0, 0, 1, 1], [], []>} : vector<8x8xbf16>, vector<8x32xbf16>, vector<8x32xf32> -> vector<8x32xf32>
    %104 = arith.addf %84, %103 : vector<8x32xf32>
    %c0_41 = arith.constant 0 : index
    %c0_42 = arith.constant 0 : index
    %105 = vector.load %arg8[%c0_41, %c0_42] : memref<1x32xf32, #tpu.memory_space<vmem>>, vector<1x32xf32>
    %106 = vector.broadcast %105 : vector<1x32xf32> to vector<8x32xf32>
    %107 = arith.addf %104, %106 : vector<8x32xf32>
    %108 = arith.addf %1, %107 : vector<8x32xf32>
    %c0_43 = arith.constant 0 : index
    %c0_44 = arith.constant 0 : index
    %109 = vector.load %arg9[%c0_43, %c0_44] : memref<1x32xf32, #tpu.memory_space<vmem>>, vector<1x32xf32>
    %c0_45 = arith.constant 0 : index
    %c0_46 = arith.constant 0 : index
    %110 = vector.load %arg10[%c0_45, %c0_46] : memref<1x32xf32, #tpu.memory_space<vmem>>, vector<1x32xf32>
    %cst_47 = arith.constant dense<0.000000e+00> : vector<8xf32>
    %111 = vector.multi_reduction <add>, %108, %cst_47 [1] : vector<8x32xf32> to vector<8xf32>
    %112 = vector.shape_cast %111 : vector<8xf32> to vector<8x1xf32>
    %cst_48 = arith.constant 3.200000e+01 : f32
    %113 = vector.broadcast %cst_48 : f32 to vector<8x1xf32>
    %114 = arith.divf %112, %113 : vector<8x1xf32>
    %115 = vector.broadcast %114 : vector<8x1xf32> to vector<8x32xf32>
    %116 = arith.subf %108, %115 : vector<8x32xf32>
    %117 = arith.mulf %116, %116 : vector<8x32xf32>
    %cst_49 = arith.constant dense<0.000000e+00> : vector<8xf32>
    %118 = vector.multi_reduction <add>, %117, %cst_49 [1] : vector<8x32xf32> to vector<8xf32>
    %119 = vector.shape_cast %118 : vector<8xf32> to vector<8x1xf32>
    %cst_50 = arith.constant 3.200000e+01 : f32
    %120 = vector.broadcast %cst_50 : f32 to vector<8x1xf32>
    %121 = arith.divf %119, %120 : vector<8x1xf32>
    %cst_51 = arith.constant 9.99999974E-6 : f32
    %122 = vector.broadcast %cst_51 : f32 to vector<8x1xf32>
    %123 = arith.addf %121, %122 : vector<8x1xf32>
    %124 = math.rsqrt %123 : vector<8x1xf32>
    %125 = vector.broadcast %124 : vector<8x1xf32> to vector<8x32xf32>
    %126 = arith.mulf %116, %125 : vector<8x32xf32>
    %127 = vector.broadcast %109 : vector<1x32xf32> to vector<8x32xf32>
    %128 = arith.mulf %126, %127 : vector<8x32xf32>
    %129 = vector.broadcast %110 : vector<1x32xf32> to vector<8x32xf32>
    %130 = arith.addf %128, %129 : vector<8x32xf32>
    %c0_52 = arith.constant 0 : index
    %c0_53 = arith.constant 0 : index
    %c0_54 = arith.constant 0 : index
    %131 = vector.load %arg11[%c0_52, %c0_53, %c0_54] : memref<1x8x32xf32, #tpu.memory_space<vmem>>, vector<1x8x32xf32>
    %132 = vector.shape_cast %131 : vector<1x8x32xf32> to vector<8x32xf32>
    %133 = vector.shape_cast %130 : vector<8x32xf32> to vector<1x8x32xf32>
    tpu.vector_store %arg11[%c0_52, %c0_53, %c0_54], %133 {strides = array<i32>} : memref<1x8x32xf32, #tpu.memory_space<vmem>>, vector<1x8x32xf32>,
    return
  }
  func.func @transform_0(%arg0: i32) -> (i32, i32, i32) {
    %c0_i32 = arith.constant 0 : i32
    %c0_i32_0 = arith.constant 0 : i32
    %c0_i32_1 = arith.constant 0 : i32
    return %arg0, %c0_i32, %c0_i32_0 : i32, i32, i32
  }
  func.func @transform_1(%arg0: i32) -> (i32, i32, i32) {
    %c0_i32 = arith.constant 0 : i32
    %c0_i32_0 = arith.constant 0 : i32
    %c0_i32_1 = arith.constant 0 : i32
    return %arg0, %c0_i32, %c0_i32_0 : i32, i32, i32
  }
  func.func @transform_2(%arg0: i32) -> (i32, i32) {
    %c0_i32 = arith.constant 0 : i32
    %c0_i32_0 = arith.constant 0 : i32
    %c0_i32_1 = arith.constant 0 : i32
    return %c0_i32, %c0_i32_0 : i32, i32
  }
  func.func @transform_3(%arg0: i32) -> (i32, i32) {
    %c0_i32 = arith.constant 0 : i32
    %c0_i32_0 = arith.constant 0 : i32
    %c0_i32_1 = arith.constant 0 : i32
    return %c0_i32, %c0_i32_0 : i32, i32
  }
  func.func @transform_4(%arg0: i32) -> (i32, i32) {
    %c0_i32 = arith.constant 0 : i32
    %c0_i32_0 = arith.constant 0 : i32
    %c0_i32_1 = arith.constant 0 : i32
    return %c0_i32, %c0_i32_0 : i32, i32
  }
  func.func @transform_5(%arg0: i32) -> (i32, i32) {
    %c0_i32 = arith.constant 0 : i32
    %c0_i32_0 = arith.constant 0 : i32
    %c0_i32_1 = arith.constant 0 : i32
    return %c0_i32, %c0_i32_0 : i32, i32
  }
  func.func @transform_6(%arg0: i32) -> (i32, i32) {
    %c0_i32 = arith.constant 0 : i32
    %c0_i32_0 = arith.constant 0 : i32
    %c0_i32_1 = arith.constant 0 : i32
    return %c0_i32, %c0_i32_0 : i32, i32
  }
  func.func @transform_7(%arg0: i32) -> (i32, i32) {
    %c0_i32 = arith.constant 0 : i32
    %c0_i32_0 = arith.constant 0 : i32
    %c0_i32_1 = arith.constant 0 : i32
    return %c0_i32, %c0_i32_0 : i32, i32
  }
  func.func @transform_8(%arg0: i32) -> (i32, i32) {
    %c0_i32 = arith.constant 0 : i32
    %c0_i32_0 = arith.constant 0 : i32
    %c0_i32_1 = arith.constant 0 : i32
    return %c0_i32, %c0_i32_0 : i32, i32
  }
  func.func @transform_9(%arg0: i32) -> (i32, i32) {
    %c0_i32 = arith.constant 0 : i32
    %c0_i32_0 = arith.constant 0 : i32
    %c0_i32_1 = arith.constant 0 : i32
    return %c0_i32, %c0_i32_0 : i32, i32
  }
  func.func @transform_10(%arg0: i32) -> (i32, i32, i32) {
    %c0_i32 = arith.constant 0 : i32
    %c0_i32_0 = arith.constant 0 : i32
    %c0_i32_1 = arith.constant 0 : i32
    return %arg0, %c0_i32, %c0_i32_0 : i32, i32, i32
  }
}

module attributes {stable_mosaic.version = 11 : i64} {
  func.func @_cross_attn_flash_kernel(%arg0: i32, %arg1: i32, %arg2: i32, %arg3: memref<1x8x32xf32, #tpu.memory_space<vmem>>, %arg4: memref<1x8x32xf32, #tpu.memory_space<vmem>>, %arg5: memref<1x512x32xf32, #tpu.memory_space<vmem>>, %arg6: memref<1x512x32xf32, #tpu.memory_space<vmem>>, %arg7: memref<32x32xbf16, #tpu.memory_space<vmem>>, %arg8: memref<1x32xf32, #tpu.memory_space<vmem>>, %arg9: memref<32x32xbf16, #tpu.memory_space<vmem>>, %arg10: memref<1x32xf32, #tpu.memory_space<vmem>>, %arg11: memref<32x32xbf16, #tpu.memory_space<vmem>>, %arg12: memref<1x32xf32, #tpu.memory_space<vmem>>, %arg13: memref<32x32xbf16, #tpu.memory_space<vmem>>, %arg14: memref<1x32xf32, #tpu.memory_space<vmem>>, %arg15: memref<1x32xf32, #tpu.memory_space<vmem>>, %arg16: memref<1x32xf32, #tpu.memory_space<vmem>>, %arg17: memref<1x8x32xf32, #tpu.memory_space<vmem>>, %arg18: memref<4x8x8xbf16, #tpu.memory_space<vmem>>, %arg19: memref<4x8x1xf32, #tpu.memory_space<vmem>>, %arg20: memref<4x8x1xf32, #tpu.memory_space<vmem>>, %arg21: memref<4x8x8xf32, #tpu.memory_space<vmem>>) attributes {dimension_semantics = [#tpu.dimension_semantics<parallel>, #tpu.dimension_semantics<parallel>, #tpu.dimension_semantics<arbitrary>], iteration_bounds = array<i64: 2, 1, 2>, scalar_prefetch = 0 : i64, scratch_operands = 4 : i64, tpu.core_type = #tpu.core_type<tc>, window_params = [{transform_indices = @transform_0, window_bounds = array<i64: 1, 8, 32>}, {transform_indices = @transform_1, window_bounds = array<i64: 1, 8, 32>}, {transform_indices = @transform_2, window_bounds = array<i64: 1, 512, 32>}, {transform_indices = @transform_3, window_bounds = array<i64: 1, 512, 32>}, {pipeline_mode = #tpu.pipeline_mode<synchronous>, transform_indices = @transform_4, window_bounds = array<i64: 32, 32>}, {pipeline_mode = #tpu.pipeline_mode<synchronous>, transform_indices = @transform_5, window_bounds = array<i64: 1, 32>}, {pipeline_mode = #tpu.pipeline_mode<synchronous>, transform_indices = @transform_6, window_bounds = array<i64: 32, 32>}, {pipeline_mode = #tpu.pipeline_mode<synchronous>, transform_indices = @transform_7, window_bounds = array<i64: 1, 32>}, {pipeline_mode = #tpu.pipeline_mode<synchronous>, transform_indices = @transform_8, window_bounds = array<i64: 32, 32>}, {pipeline_mode = #tpu.pipeline_mode<synchronous>, transform_indices = @transform_9, window_bounds = array<i64: 1, 32>}, {pipeline_mode = #tpu.pipeline_mode<synchronous>, transform_indices = @transform_10, window_bounds = array<i64: 32, 32>}, {pipeline_mode = #tpu.pipeline_mode<synchronous>, transform_indices = @transform_11, window_bounds = array<i64: 1, 32>}, {pipeline_mode = #tpu.pipeline_mode<synchronous>, transform_indices = @transform_12, window_bounds = array<i64: 1, 32>}, {pipeline_mode = #tpu.pipeline_mode<synchronous>, transform_indices = @transform_13, window_bounds = array<i64: 1, 32>}, {transform_indices = @transform_14, window_bounds = array<i64: 1, 8, 32>}]} {
    %c0_i32 = arith.constant 0 : i32
    %0 = arith.cmpi eq, %arg2, %c0_i32 : i32
    %1 = arith.extui %0 : i1 to i32
    %c0_i32_0 = arith.constant 0 : i32
    %2 = arith.cmpi ne, %1, %c0_i32_0 : i32
    scf.if %2 {
      %c0_113 = arith.constant 0 : index
      %c0_114 = arith.constant 0 : index
      %c0_115 = arith.constant 0 : index
      %172 = vector.load %arg3[%c0_113, %c0_114, %c0_115] : memref<1x8x32xf32, #tpu.memory_space<vmem>>, vector<1x8x32xf32>
      %173 = vector.shape_cast %172 : vector<1x8x32xf32> to vector<8x32xf32>
      %c0_116 = arith.constant 0 : index
      %c0_117 = arith.constant 0 : index
      %c0_118 = arith.constant 0 : index
      %174 = vector.load %arg4[%c0_116, %c0_117, %c0_118] : memref<1x8x32xf32, #tpu.memory_space<vmem>>, vector<1x8x32xf32>
      %175 = vector.shape_cast %174 : vector<1x8x32xf32> to vector<8x32xf32>
      %176 = arith.addf %173, %175 : vector<8x32xf32>
      %c0_119 = arith.constant 0 : index
      %c0_120 = arith.constant 0 : index
      %177 = vector.load %arg7[%c0_119, %c0_120] : memref<32x32xbf16, #tpu.memory_space<vmem>>, vector<32x32xbf16>
      %178 = arith.truncf %176 : vector<8x32xf32> to vector<8x32xbf16>
      %cst_121 = arith.constant dense<0.000000e+00> : vector<8x32xf32>
      %179 = tpu.matmul %178, %177, %cst_121 {dimension_numbers = #tpu.dot_dimension_numbers<[1], [0], [0], [1], [0, 0, 1, 1], [], []>} : vector<8x32xbf16>, vector<32x32xbf16>, vector<8x32xf32> -> vector<8x32xf32>
      %c0_122 = arith.constant 0 : index
      %c0_123 = arith.constant 0 : index
      %180 = vector.load %arg8[%c0_122, %c0_123] : memref<1x32xf32, #tpu.memory_space<vmem>>, vector<1x32xf32>
      %181 = vector.broadcast %180 : vector<1x32xf32> to vector<8x32xf32>
      %182 = arith.addf %179, %181 : vector<8x32xf32>
      %cst_124 = arith.constant 0.353553385 : f32
      %183 = vector.broadcast %cst_124 : f32 to vector<8x32xf32>
      %184 = arith.mulf %182, %183 : vector<8x32xf32>
      %185 = vector.extract_strided_slice %184 {offsets = [0, 0], sizes = [8, 8], strides = [1, 1]} : vector<8x32xf32> to vector<8x8xf32>
      %186 = arith.truncf %185 : vector<8x8xf32> to vector<8x8xbf16>
      %c0_125 = arith.constant 0 : index
      %c0_126 = arith.constant 0 : index
      %c0_127 = arith.constant 0 : index
      %187 = vector.load %arg18[%c0_125, %c0_126, %c0_127] : memref<4x8x8xbf16, #tpu.memory_space<vmem>>, vector<1x8x8xbf16>
      %188 = vector.shape_cast %187 : vector<1x8x8xbf16> to vector<8x8xbf16>
      %189 = vector.shape_cast %186 : vector<8x8xbf16> to vector<1x8x8xbf16>
      tpu.vector_store %arg18[%c0_125, %c0_126, %c0_127], %189 {strides = array<i32>} : memref<4x8x8xbf16, #tpu.memory_space<vmem>>, vector<1x8x8xbf16>,
      %190 = vector.extract_strided_slice %184 {offsets = [0, 8], sizes = [8, 8], strides = [1, 1]} : vector<8x32xf32> to vector<8x8xf32>
      %191 = arith.truncf %190 : vector<8x8xf32> to vector<8x8xbf16>
      %c1_128 = arith.constant 1 : index
      %c0_129 = arith.constant 0 : index
      %c0_130 = arith.constant 0 : index
      %192 = vector.load %arg18[%c1_128, %c0_129, %c0_130] : memref<4x8x8xbf16, #tpu.memory_space<vmem>>, vector<1x8x8xbf16>
      %193 = vector.shape_cast %192 : vector<1x8x8xbf16> to vector<8x8xbf16>
      %194 = vector.shape_cast %191 : vector<8x8xbf16> to vector<1x8x8xbf16>
      tpu.vector_store %arg18[%c1_128, %c0_129, %c0_130], %194 {strides = array<i32>} : memref<4x8x8xbf16, #tpu.memory_space<vmem>>, vector<1x8x8xbf16>,
      %195 = vector.extract_strided_slice %184 {offsets = [0, 16], sizes = [8, 8], strides = [1, 1]} : vector<8x32xf32> to vector<8x8xf32>
      %196 = arith.truncf %195 : vector<8x8xf32> to vector<8x8xbf16>
      %c2_131 = arith.constant 2 : index
      %c0_132 = arith.constant 0 : index
      %c0_133 = arith.constant 0 : index
      %197 = vector.load %arg18[%c2_131, %c0_132, %c0_133] : memref<4x8x8xbf16, #tpu.memory_space<vmem>>, vector<1x8x8xbf16>
      %198 = vector.shape_cast %197 : vector<1x8x8xbf16> to vector<8x8xbf16>
      %199 = vector.shape_cast %196 : vector<8x8xbf16> to vector<1x8x8xbf16>
      tpu.vector_store %arg18[%c2_131, %c0_132, %c0_133], %199 {strides = array<i32>} : memref<4x8x8xbf16, #tpu.memory_space<vmem>>, vector<1x8x8xbf16>,
      %200 = vector.extract_strided_slice %184 {offsets = [0, 24], sizes = [8, 8], strides = [1, 1]} : vector<8x32xf32> to vector<8x8xf32>
      %201 = arith.truncf %200 : vector<8x8xf32> to vector<8x8xbf16>
      %c3_134 = arith.constant 3 : index
      %c0_135 = arith.constant 0 : index
      %c0_136 = arith.constant 0 : index
      %202 = vector.load %arg18[%c3_134, %c0_135, %c0_136] : memref<4x8x8xbf16, #tpu.memory_space<vmem>>, vector<1x8x8xbf16>
      %203 = vector.shape_cast %202 : vector<1x8x8xbf16> to vector<8x8xbf16>
      %204 = vector.shape_cast %201 : vector<8x8xbf16> to vector<1x8x8xbf16>
      tpu.vector_store %arg18[%c3_134, %c0_135, %c0_136], %204 {strides = array<i32>} : memref<4x8x8xbf16, #tpu.memory_space<vmem>>, vector<1x8x8xbf16>,
      %cst_137 = arith.constant 0xFF800000 : f32
      %205 = vector.broadcast %cst_137 : f32 to vector<4x8x1xf32>
      %c0_138 = arith.constant 0 : index
      %c0_139 = arith.constant 0 : index
      %c0_140 = arith.constant 0 : index
      %206 = vector.load %arg19[%c0_138, %c0_139, %c0_140] : memref<4x8x1xf32, #tpu.memory_space<vmem>>, vector<4x8x1xf32>
      tpu.vector_store %arg19[%c0_138, %c0_139, %c0_140], %205 {strides = array<i32>} : memref<4x8x1xf32, #tpu.memory_space<vmem>>, vector<4x8x1xf32>,
      %cst_141 = arith.constant 0.000000e+00 : f32
      %207 = vector.broadcast %cst_141 : f32 to vector<4x8x1xf32>
      %c0_142 = arith.constant 0 : index
      %c0_143 = arith.constant 0 : index
      %c0_144 = arith.constant 0 : index
      %208 = vector.load %arg20[%c0_142, %c0_143, %c0_144] : memref<4x8x1xf32, #tpu.memory_space<vmem>>, vector<4x8x1xf32>
      tpu.vector_store %arg20[%c0_142, %c0_143, %c0_144], %207 {strides = array<i32>} : memref<4x8x1xf32, #tpu.memory_space<vmem>>, vector<4x8x1xf32>,
      %cst_145 = arith.constant 0.000000e+00 : f32
      %209 = vector.broadcast %cst_145 : f32 to vector<4x8x8xf32>
      %c0_146 = arith.constant 0 : index
      %c0_147 = arith.constant 0 : index
      %c0_148 = arith.constant 0 : index
      %210 = vector.load %arg21[%c0_146, %c0_147, %c0_148] : memref<4x8x8xf32, #tpu.memory_space<vmem>>, vector<4x8x8xf32>
      tpu.vector_store %arg21[%c0_146, %c0_147, %c0_148], %209 {strides = array<i32>} : memref<4x8x8xf32, #tpu.memory_space<vmem>>, vector<4x8x8xf32>,
    } else {
    }
    %c0 = arith.constant 0 : index
    %c0_1 = arith.constant 0 : index
    %c0_2 = arith.constant 0 : index
    %3 = vector.load %arg5[%c0, %c0_1, %c0_2] : memref<1x512x32xf32, #tpu.memory_space<vmem>>, vector<1x512x32xf32>
    %4 = vector.shape_cast %3 : vector<1x512x32xf32> to vector<512x32xf32>
    %c0_3 = arith.constant 0 : index
    %c0_4 = arith.constant 0 : index
    %5 = vector.load %arg9[%c0_3, %c0_4] : memref<32x32xbf16, #tpu.memory_space<vmem>>, vector<32x32xbf16>
    %6 = arith.truncf %4 : vector<512x32xf32> to vector<512x32xbf16>
    %cst = arith.constant dense<0.000000e+00> : vector<512x32xf32>
    %7 = tpu.matmul %6, %5, %cst {dimension_numbers = #tpu.dot_dimension_numbers<[1], [0], [0], [1], [0, 0, 1, 1], [], []>} : vector<512x32xbf16>, vector<32x32xbf16>, vector<512x32xf32> -> vector<512x32xf32>
    %c0_5 = arith.constant 0 : index
    %c0_6 = arith.constant 0 : index
    %8 = vector.load %arg10[%c0_5, %c0_6] : memref<1x32xf32, #tpu.memory_space<vmem>>, vector<1x32xf32>
    %9 = vector.broadcast %8 : vector<1x32xf32> to vector<512x32xf32>
    %10 = arith.addf %7, %9 : vector<512x32xf32>
    %11 = arith.truncf %10 : vector<512x32xf32> to vector<512x32xbf16>
    %c0_7 = arith.constant 0 : index
    %c0_8 = arith.constant 0 : index
    %c0_9 = arith.constant 0 : index
    %12 = vector.load %arg6[%c0_7, %c0_8, %c0_9] : memref<1x512x32xf32, #tpu.memory_space<vmem>>, vector<1x512x32xf32>
    %13 = vector.shape_cast %12 : vector<1x512x32xf32> to vector<512x32xf32>
    %c0_10 = arith.constant 0 : index
    %c0_11 = arith.constant 0 : index
    %14 = vector.load %arg11[%c0_10, %c0_11] : memref<32x32xbf16, #tpu.memory_space<vmem>>, vector<32x32xbf16>
    %15 = arith.truncf %13 : vector<512x32xf32> to vector<512x32xbf16>
    %cst_12 = arith.constant dense<0.000000e+00> : vector<512x32xf32>
    %16 = tpu.matmul %15, %14, %cst_12 {dimension_numbers = #tpu.dot_dimension_numbers<[1], [0], [0], [1], [0, 0, 1, 1], [], []>} : vector<512x32xbf16>, vector<32x32xbf16>, vector<512x32xf32> -> vector<512x32xf32>
    %c0_13 = arith.constant 0 : index
    %c0_14 = arith.constant 0 : index
    %17 = vector.load %arg12[%c0_13, %c0_14] : memref<1x32xf32, #tpu.memory_space<vmem>>, vector<1x32xf32>
    %18 = vector.broadcast %17 : vector<1x32xf32> to vector<512x32xf32>
    %19 = arith.addf %16, %18 : vector<512x32xf32>
    %20 = arith.truncf %19 : vector<512x32xf32> to vector<512x32xbf16>
    %c0_15 = arith.constant 0 : index
    %c0_16 = arith.constant 0 : index
    %c0_17 = arith.constant 0 : index
    %21 = vector.load %arg18[%c0_15, %c0_16, %c0_17] : memref<4x8x8xbf16, #tpu.memory_space<vmem>>, vector<1x8x8xbf16>
    %22 = vector.shape_cast %21 : vector<1x8x8xbf16> to vector<8x8xbf16>
    %23 = vector.extract_strided_slice %11 {offsets = [0, 0], sizes = [512, 8], strides = [1, 1]} : vector<512x32xbf16> to vector<512x8xbf16>
    %cst_18 = arith.constant dense<0.000000e+00> : vector<8x512xf32>
    %24 = tpu.matmul %22, %23, %cst_18 {dimension_numbers = #tpu.dot_dimension_numbers<[1], [1], [0], [0], [0, 0, 1, 0], [], []>} : vector<8x8xbf16>, vector<512x8xbf16>, vector<8x512xf32> -> vector<8x512xf32>
    %c0_19 = arith.constant 0 : index
    %c0_20 = arith.constant 0 : index
    %c0_21 = arith.constant 0 : index
    %25 = vector.load %arg19[%c0_19, %c0_20, %c0_21] : memref<4x8x1xf32, #tpu.memory_space<vmem>>, vector<1x8x1xf32>
    %26 = vector.shape_cast %25 : vector<1x8x1xf32> to vector<8x1xf32>
    %cst_22 = arith.constant dense<0xFF800000> : vector<8xf32>
    %27 = vector.multi_reduction <maximumf>, %24, %cst_22 [1] : vector<8x512xf32> to vector<8xf32>
    %28 = vector.shape_cast %27 : vector<8xf32> to vector<8x1xf32>
    %29 = arith.maximumf %26, %28 : vector<8x1xf32>
    %30 = arith.subf %26, %29 : vector<8x1xf32>
    %31 = math.exp %30 : vector<8x1xf32>
    %32 = vector.broadcast %29 : vector<8x1xf32> to vector<8x512xf32>
    %33 = arith.subf %24, %32 : vector<8x512xf32>
    %34 = math.exp %33 : vector<8x512xf32>
    %c0_23 = arith.constant 0 : index
    %c0_24 = arith.constant 0 : index
    %c0_25 = arith.constant 0 : index
    %35 = vector.load %arg20[%c0_23, %c0_24, %c0_25] : memref<4x8x1xf32, #tpu.memory_space<vmem>>, vector<1x8x1xf32>
    %36 = vector.shape_cast %35 : vector<1x8x1xf32> to vector<8x1xf32>
    %37 = arith.mulf %31, %36 : vector<8x1xf32>
    %cst_26 = arith.constant dense<0.000000e+00> : vector<8xf32>
    %38 = vector.multi_reduction <add>, %34, %cst_26 [1] : vector<8x512xf32> to vector<8xf32>
    %39 = vector.shape_cast %38 : vector<8xf32> to vector<8x1xf32>
    %40 = arith.addf %37, %39 : vector<8x1xf32>
    %c0_27 = arith.constant 0 : index
    %c0_28 = arith.constant 0 : index
    %c0_29 = arith.constant 0 : index
    %41 = vector.load %arg20[%c0_27, %c0_28, %c0_29] : memref<4x8x1xf32, #tpu.memory_space<vmem>>, vector<1x8x1xf32>
    %42 = vector.shape_cast %41 : vector<1x8x1xf32> to vector<8x1xf32>
    %43 = vector.shape_cast %40 : vector<8x1xf32> to vector<1x8x1xf32>
    tpu.vector_store %arg20[%c0_27, %c0_28, %c0_29], %43 {strides = array<i32>} : memref<4x8x1xf32, #tpu.memory_space<vmem>>, vector<1x8x1xf32>,
    %c0_30 = arith.constant 0 : index
    %c0_31 = arith.constant 0 : index
    %c0_32 = arith.constant 0 : index
    %44 = vector.load %arg21[%c0_30, %c0_31, %c0_32] : memref<4x8x8xf32, #tpu.memory_space<vmem>>, vector<1x8x8xf32>
    %45 = vector.shape_cast %44 : vector<1x8x8xf32> to vector<8x8xf32>
    %46 = vector.broadcast %31 : vector<8x1xf32> to vector<8x8xf32>
    %47 = arith.mulf %46, %45 : vector<8x8xf32>
    %48 = vector.extract_strided_slice %20 {offsets = [0, 0], sizes = [512, 8], strides = [1, 1]} : vector<512x32xbf16> to vector<512x8xbf16>
    %49 = arith.truncf %34 : vector<8x512xf32> to vector<8x512xbf16>
    %cst_33 = arith.constant dense<0.000000e+00> : vector<8x8xf32>
    %50 = tpu.matmul %49, %48, %cst_33 {dimension_numbers = #tpu.dot_dimension_numbers<[1], [0], [0], [1], [0, 0, 1, 1], [], []>} : vector<8x512xbf16>, vector<512x8xbf16>, vector<8x8xf32> -> vector<8x8xf32>
    %51 = arith.addf %47, %50 : vector<8x8xf32>
    %c0_34 = arith.constant 0 : index
    %c0_35 = arith.constant 0 : index
    %c0_36 = arith.constant 0 : index
    %52 = vector.load %arg21[%c0_34, %c0_35, %c0_36] : memref<4x8x8xf32, #tpu.memory_space<vmem>>, vector<1x8x8xf32>
    %53 = vector.shape_cast %52 : vector<1x8x8xf32> to vector<8x8xf32>
    %54 = vector.shape_cast %51 : vector<8x8xf32> to vector<1x8x8xf32>
    tpu.vector_store %arg21[%c0_34, %c0_35, %c0_36], %54 {strides = array<i32>} : memref<4x8x8xf32, #tpu.memory_space<vmem>>, vector<1x8x8xf32>,
    %c0_37 = arith.constant 0 : index
    %c0_38 = arith.constant 0 : index
    %c0_39 = arith.constant 0 : index
    %55 = vector.load %arg19[%c0_37, %c0_38, %c0_39] : memref<4x8x1xf32, #tpu.memory_space<vmem>>, vector<1x8x1xf32>
    %56 = vector.shape_cast %55 : vector<1x8x1xf32> to vector<8x1xf32>
    %57 = vector.shape_cast %29 : vector<8x1xf32> to vector<1x8x1xf32>
    tpu.vector_store %arg19[%c0_37, %c0_38, %c0_39], %57 {strides = array<i32>} : memref<4x8x1xf32, #tpu.memory_space<vmem>>, vector<1x8x1xf32>,
    %c1 = arith.constant 1 : index
    %c0_40 = arith.constant 0 : index
    %c0_41 = arith.constant 0 : index
    %58 = vector.load %arg18[%c1, %c0_40, %c0_41] : memref<4x8x8xbf16, #tpu.memory_space<vmem>>, vector<1x8x8xbf16>
    %59 = vector.shape_cast %58 : vector<1x8x8xbf16> to vector<8x8xbf16>
    %60 = vector.extract_strided_slice %11 {offsets = [0, 8], sizes = [512, 8], strides = [1, 1]} : vector<512x32xbf16> to vector<512x8xbf16>
    %cst_42 = arith.constant dense<0.000000e+00> : vector<8x512xf32>
    %61 = tpu.matmul %59, %60, %cst_42 {dimension_numbers = #tpu.dot_dimension_numbers<[1], [1], [0], [0], [0, 0, 1, 0], [], []>} : vector<8x8xbf16>, vector<512x8xbf16>, vector<8x512xf32> -> vector<8x512xf32>
    %c1_43 = arith.constant 1 : index
    %c0_44 = arith.constant 0 : index
    %c0_45 = arith.constant 0 : index
    %62 = vector.load %arg19[%c1_43, %c0_44, %c0_45] : memref<4x8x1xf32, #tpu.memory_space<vmem>>, vector<1x8x1xf32>
    %63 = vector.shape_cast %62 : vector<1x8x1xf32> to vector<8x1xf32>
    %cst_46 = arith.constant dense<0xFF800000> : vector<8xf32>
    %64 = vector.multi_reduction <maximumf>, %61, %cst_46 [1] : vector<8x512xf32> to vector<8xf32>
    %65 = vector.shape_cast %64 : vector<8xf32> to vector<8x1xf32>
    %66 = arith.maximumf %63, %65 : vector<8x1xf32>
    %67 = arith.subf %63, %66 : vector<8x1xf32>
    %68 = math.exp %67 : vector<8x1xf32>
    %69 = vector.broadcast %66 : vector<8x1xf32> to vector<8x512xf32>
    %70 = arith.subf %61, %69 : vector<8x512xf32>
    %71 = math.exp %70 : vector<8x512xf32>
    %c1_47 = arith.constant 1 : index
    %c0_48 = arith.constant 0 : index
    %c0_49 = arith.constant 0 : index
    %72 = vector.load %arg20[%c1_47, %c0_48, %c0_49] : memref<4x8x1xf32, #tpu.memory_space<vmem>>, vector<1x8x1xf32>
    %73 = vector.shape_cast %72 : vector<1x8x1xf32> to vector<8x1xf32>
    %74 = arith.mulf %68, %73 : vector<8x1xf32>
    %cst_50 = arith.constant dense<0.000000e+00> : vector<8xf32>
    %75 = vector.multi_reduction <add>, %71, %cst_50 [1] : vector<8x512xf32> to vector<8xf32>
    %76 = vector.shape_cast %75 : vector<8xf32> to vector<8x1xf32>
    %77 = arith.addf %74, %76 : vector<8x1xf32>
    %c1_51 = arith.constant 1 : index
    %c0_52 = arith.constant 0 : index
    %c0_53 = arith.constant 0 : index
    %78 = vector.load %arg20[%c1_51, %c0_52, %c0_53] : memref<4x8x1xf32, #tpu.memory_space<vmem>>, vector<1x8x1xf32>
    %79 = vector.shape_cast %78 : vector<1x8x1xf32> to vector<8x1xf32>
    %80 = vector.shape_cast %77 : vector<8x1xf32> to vector<1x8x1xf32>
    tpu.vector_store %arg20[%c1_51, %c0_52, %c0_53], %80 {strides = array<i32>} : memref<4x8x1xf32, #tpu.memory_space<vmem>>, vector<1x8x1xf32>,
    %c1_54 = arith.constant 1 : index
    %c0_55 = arith.constant 0 : index
    %c0_56 = arith.constant 0 : index
    %81 = vector.load %arg21[%c1_54, %c0_55, %c0_56] : memref<4x8x8xf32, #tpu.memory_space<vmem>>, vector<1x8x8xf32>
    %82 = vector.shape_cast %81 : vector<1x8x8xf32> to vector<8x8xf32>
    %83 = vector.broadcast %68 : vector<8x1xf32> to vector<8x8xf32>
    %84 = arith.mulf %83, %82 : vector<8x8xf32>
    %85 = vector.extract_strided_slice %20 {offsets = [0, 8], sizes = [512, 8], strides = [1, 1]} : vector<512x32xbf16> to vector<512x8xbf16>
    %86 = arith.truncf %71 : vector<8x512xf32> to vector<8x512xbf16>
    %cst_57 = arith.constant dense<0.000000e+00> : vector<8x8xf32>
    %87 = tpu.matmul %86, %85, %cst_57 {dimension_numbers = #tpu.dot_dimension_numbers<[1], [0], [0], [1], [0, 0, 1, 1], [], []>} : vector<8x512xbf16>, vector<512x8xbf16>, vector<8x8xf32> -> vector<8x8xf32>
    %88 = arith.addf %84, %87 : vector<8x8xf32>
    %c1_58 = arith.constant 1 : index
    %c0_59 = arith.constant 0 : index
    %c0_60 = arith.constant 0 : index
    %89 = vector.load %arg21[%c1_58, %c0_59, %c0_60] : memref<4x8x8xf32, #tpu.memory_space<vmem>>, vector<1x8x8xf32>
    %90 = vector.shape_cast %89 : vector<1x8x8xf32> to vector<8x8xf32>
    %91 = vector.shape_cast %88 : vector<8x8xf32> to vector<1x8x8xf32>
    tpu.vector_store %arg21[%c1_58, %c0_59, %c0_60], %91 {strides = array<i32>} : memref<4x8x8xf32, #tpu.memory_space<vmem>>, vector<1x8x8xf32>,
    %c1_61 = arith.constant 1 : index
    %c0_62 = arith.constant 0 : index
    %c0_63 = arith.constant 0 : index
    %92 = vector.load %arg19[%c1_61, %c0_62, %c0_63] : memref<4x8x1xf32, #tpu.memory_space<vmem>>, vector<1x8x1xf32>
    %93 = vector.shape_cast %92 : vector<1x8x1xf32> to vector<8x1xf32>
    %94 = vector.shape_cast %66 : vector<8x1xf32> to vector<1x8x1xf32>
    tpu.vector_store %arg19[%c1_61, %c0_62, %c0_63], %94 {strides = array<i32>} : memref<4x8x1xf32, #tpu.memory_space<vmem>>, vector<1x8x1xf32>,
    %c2 = arith.constant 2 : index
    %c0_64 = arith.constant 0 : index
    %c0_65 = arith.constant 0 : index
    %95 = vector.load %arg18[%c2, %c0_64, %c0_65] : memref<4x8x8xbf16, #tpu.memory_space<vmem>>, vector<1x8x8xbf16>
    %96 = vector.shape_cast %95 : vector<1x8x8xbf16> to vector<8x8xbf16>
    %97 = vector.extract_strided_slice %11 {offsets = [0, 16], sizes = [512, 8], strides = [1, 1]} : vector<512x32xbf16> to vector<512x8xbf16>
    %cst_66 = arith.constant dense<0.000000e+00> : vector<8x512xf32>
    %98 = tpu.matmul %96, %97, %cst_66 {dimension_numbers = #tpu.dot_dimension_numbers<[1], [1], [0], [0], [0, 0, 1, 0], [], []>} : vector<8x8xbf16>, vector<512x8xbf16>, vector<8x512xf32> -> vector<8x512xf32>
    %c2_67 = arith.constant 2 : index
    %c0_68 = arith.constant 0 : index
    %c0_69 = arith.constant 0 : index
    %99 = vector.load %arg19[%c2_67, %c0_68, %c0_69] : memref<4x8x1xf32, #tpu.memory_space<vmem>>, vector<1x8x1xf32>
    %100 = vector.shape_cast %99 : vector<1x8x1xf32> to vector<8x1xf32>
    %cst_70 = arith.constant dense<0xFF800000> : vector<8xf32>
    %101 = vector.multi_reduction <maximumf>, %98, %cst_70 [1] : vector<8x512xf32> to vector<8xf32>
    %102 = vector.shape_cast %101 : vector<8xf32> to vector<8x1xf32>
    %103 = arith.maximumf %100, %102 : vector<8x1xf32>
    %104 = arith.subf %100, %103 : vector<8x1xf32>
    %105 = math.exp %104 : vector<8x1xf32>
    %106 = vector.broadcast %103 : vector<8x1xf32> to vector<8x512xf32>
    %107 = arith.subf %98, %106 : vector<8x512xf32>
    %108 = math.exp %107 : vector<8x512xf32>
    %c2_71 = arith.constant 2 : index
    %c0_72 = arith.constant 0 : index
    %c0_73 = arith.constant 0 : index
    %109 = vector.load %arg20[%c2_71, %c0_72, %c0_73] : memref<4x8x1xf32, #tpu.memory_space<vmem>>, vector<1x8x1xf32>
    %110 = vector.shape_cast %109 : vector<1x8x1xf32> to vector<8x1xf32>
    %111 = arith.mulf %105, %110 : vector<8x1xf32>
    %cst_74 = arith.constant dense<0.000000e+00> : vector<8xf32>
    %112 = vector.multi_reduction <add>, %108, %cst_74 [1] : vector<8x512xf32> to vector<8xf32>
    %113 = vector.shape_cast %112 : vector<8xf32> to vector<8x1xf32>
    %114 = arith.addf %111, %113 : vector<8x1xf32>
    %c2_75 = arith.constant 2 : index
    %c0_76 = arith.constant 0 : index
    %c0_77 = arith.constant 0 : index
    %115 = vector.load %arg20[%c2_75, %c0_76, %c0_77] : memref<4x8x1xf32, #tpu.memory_space<vmem>>, vector<1x8x1xf32>
    %116 = vector.shape_cast %115 : vector<1x8x1xf32> to vector<8x1xf32>
    %117 = vector.shape_cast %114 : vector<8x1xf32> to vector<1x8x1xf32>
    tpu.vector_store %arg20[%c2_75, %c0_76, %c0_77], %117 {strides = array<i32>} : memref<4x8x1xf32, #tpu.memory_space<vmem>>, vector<1x8x1xf32>,
    %c2_78 = arith.constant 2 : index
    %c0_79 = arith.constant 0 : index
    %c0_80 = arith.constant 0 : index
    %118 = vector.load %arg21[%c2_78, %c0_79, %c0_80] : memref<4x8x8xf32, #tpu.memory_space<vmem>>, vector<1x8x8xf32>
    %119 = vector.shape_cast %118 : vector<1x8x8xf32> to vector<8x8xf32>
    %120 = vector.broadcast %105 : vector<8x1xf32> to vector<8x8xf32>
    %121 = arith.mulf %120, %119 : vector<8x8xf32>
    %122 = vector.extract_strided_slice %20 {offsets = [0, 16], sizes = [512, 8], strides = [1, 1]} : vector<512x32xbf16> to vector<512x8xbf16>
    %123 = arith.truncf %108 : vector<8x512xf32> to vector<8x512xbf16>
    %cst_81 = arith.constant dense<0.000000e+00> : vector<8x8xf32>
    %124 = tpu.matmul %123, %122, %cst_81 {dimension_numbers = #tpu.dot_dimension_numbers<[1], [0], [0], [1], [0, 0, 1, 1], [], []>} : vector<8x512xbf16>, vector<512x8xbf16>, vector<8x8xf32> -> vector<8x8xf32>
    %125 = arith.addf %121, %124 : vector<8x8xf32>
    %c2_82 = arith.constant 2 : index
    %c0_83 = arith.constant 0 : index
    %c0_84 = arith.constant 0 : index
    %126 = vector.load %arg21[%c2_82, %c0_83, %c0_84] : memref<4x8x8xf32, #tpu.memory_space<vmem>>, vector<1x8x8xf32>
    %127 = vector.shape_cast %126 : vector<1x8x8xf32> to vector<8x8xf32>
    %128 = vector.shape_cast %125 : vector<8x8xf32> to vector<1x8x8xf32>
    tpu.vector_store %arg21[%c2_82, %c0_83, %c0_84], %128 {strides = array<i32>} : memref<4x8x8xf32, #tpu.memory_space<vmem>>, vector<1x8x8xf32>,
    %c2_85 = arith.constant 2 : index
    %c0_86 = arith.constant 0 : index
    %c0_87 = arith.constant 0 : index
    %129 = vector.load %arg19[%c2_85, %c0_86, %c0_87] : memref<4x8x1xf32, #tpu.memory_space<vmem>>, vector<1x8x1xf32>
    %130 = vector.shape_cast %129 : vector<1x8x1xf32> to vector<8x1xf32>
    %131 = vector.shape_cast %103 : vector<8x1xf32> to vector<1x8x1xf32>
    tpu.vector_store %arg19[%c2_85, %c0_86, %c0_87], %131 {strides = array<i32>} : memref<4x8x1xf32, #tpu.memory_space<vmem>>, vector<1x8x1xf32>,
    %c3 = arith.constant 3 : index
    %c0_88 = arith.constant 0 : index
    %c0_89 = arith.constant 0 : index
    %132 = vector.load %arg18[%c3, %c0_88, %c0_89] : memref<4x8x8xbf16, #tpu.memory_space<vmem>>, vector<1x8x8xbf16>
    %133 = vector.shape_cast %132 : vector<1x8x8xbf16> to vector<8x8xbf16>
    %134 = vector.extract_strided_slice %11 {offsets = [0, 24], sizes = [512, 8], strides = [1, 1]} : vector<512x32xbf16> to vector<512x8xbf16>
    %cst_90 = arith.constant dense<0.000000e+00> : vector<8x512xf32>
    %135 = tpu.matmul %133, %134, %cst_90 {dimension_numbers = #tpu.dot_dimension_numbers<[1], [1], [0], [0], [0, 0, 1, 0], [], []>} : vector<8x8xbf16>, vector<512x8xbf16>, vector<8x512xf32> -> vector<8x512xf32>
    %c3_91 = arith.constant 3 : index
    %c0_92 = arith.constant 0 : index
    %c0_93 = arith.constant 0 : index
    %136 = vector.load %arg19[%c3_91, %c0_92, %c0_93] : memref<4x8x1xf32, #tpu.memory_space<vmem>>, vector<1x8x1xf32>
    %137 = vector.shape_cast %136 : vector<1x8x1xf32> to vector<8x1xf32>
    %cst_94 = arith.constant dense<0xFF800000> : vector<8xf32>
    %138 = vector.multi_reduction <maximumf>, %135, %cst_94 [1] : vector<8x512xf32> to vector<8xf32>
    %139 = vector.shape_cast %138 : vector<8xf32> to vector<8x1xf32>
    %140 = arith.maximumf %137, %139 : vector<8x1xf32>
    %141 = arith.subf %137, %140 : vector<8x1xf32>
    %142 = math.exp %141 : vector<8x1xf32>
    %143 = vector.broadcast %140 : vector<8x1xf32> to vector<8x512xf32>
    %144 = arith.subf %135, %143 : vector<8x512xf32>
    %145 = math.exp %144 : vector<8x512xf32>
    %c3_95 = arith.constant 3 : index
    %c0_96 = arith.constant 0 : index
    %c0_97 = arith.constant 0 : index
    %146 = vector.load %arg20[%c3_95, %c0_96, %c0_97] : memref<4x8x1xf32, #tpu.memory_space<vmem>>, vector<1x8x1xf32>
    %147 = vector.shape_cast %146 : vector<1x8x1xf32> to vector<8x1xf32>
    %148 = arith.mulf %142, %147 : vector<8x1xf32>
    %cst_98 = arith.constant dense<0.000000e+00> : vector<8xf32>
    %149 = vector.multi_reduction <add>, %145, %cst_98 [1] : vector<8x512xf32> to vector<8xf32>
    %150 = vector.shape_cast %149 : vector<8xf32> to vector<8x1xf32>
    %151 = arith.addf %148, %150 : vector<8x1xf32>
    %c3_99 = arith.constant 3 : index
    %c0_100 = arith.constant 0 : index
    %c0_101 = arith.constant 0 : index
    %152 = vector.load %arg20[%c3_99, %c0_100, %c0_101] : memref<4x8x1xf32, #tpu.memory_space<vmem>>, vector<1x8x1xf32>
    %153 = vector.shape_cast %152 : vector<1x8x1xf32> to vector<8x1xf32>
    %154 = vector.shape_cast %151 : vector<8x1xf32> to vector<1x8x1xf32>
    tpu.vector_store %arg20[%c3_99, %c0_100, %c0_101], %154 {strides = array<i32>} : memref<4x8x1xf32, #tpu.memory_space<vmem>>, vector<1x8x1xf32>,
    %c3_102 = arith.constant 3 : index
    %c0_103 = arith.constant 0 : index
    %c0_104 = arith.constant 0 : index
    %155 = vector.load %arg21[%c3_102, %c0_103, %c0_104] : memref<4x8x8xf32, #tpu.memory_space<vmem>>, vector<1x8x8xf32>
    %156 = vector.shape_cast %155 : vector<1x8x8xf32> to vector<8x8xf32>
    %157 = vector.broadcast %142 : vector<8x1xf32> to vector<8x8xf32>
    %158 = arith.mulf %157, %156 : vector<8x8xf32>
    %159 = vector.extract_strided_slice %20 {offsets = [0, 24], sizes = [512, 8], strides = [1, 1]} : vector<512x32xbf16> to vector<512x8xbf16>
    %160 = arith.truncf %145 : vector<8x512xf32> to vector<8x512xbf16>
    %cst_105 = arith.constant dense<0.000000e+00> : vector<8x8xf32>
    %161 = tpu.matmul %160, %159, %cst_105 {dimension_numbers = #tpu.dot_dimension_numbers<[1], [0], [0], [1], [0, 0, 1, 1], [], []>} : vector<8x512xbf16>, vector<512x8xbf16>, vector<8x8xf32> -> vector<8x8xf32>
    %162 = arith.addf %158, %161 : vector<8x8xf32>
    %c3_106 = arith.constant 3 : index
    %c0_107 = arith.constant 0 : index
    %c0_108 = arith.constant 0 : index
    %163 = vector.load %arg21[%c3_106, %c0_107, %c0_108] : memref<4x8x8xf32, #tpu.memory_space<vmem>>, vector<1x8x8xf32>
    %164 = vector.shape_cast %163 : vector<1x8x8xf32> to vector<8x8xf32>
    %165 = vector.shape_cast %162 : vector<8x8xf32> to vector<1x8x8xf32>
    tpu.vector_store %arg21[%c3_106, %c0_107, %c0_108], %165 {strides = array<i32>} : memref<4x8x8xf32, #tpu.memory_space<vmem>>, vector<1x8x8xf32>,
    %c3_109 = arith.constant 3 : index
    %c0_110 = arith.constant 0 : index
    %c0_111 = arith.constant 0 : index
    %166 = vector.load %arg19[%c3_109, %c0_110, %c0_111] : memref<4x8x1xf32, #tpu.memory_space<vmem>>, vector<1x8x1xf32>
    %167 = vector.shape_cast %166 : vector<1x8x1xf32> to vector<8x1xf32>
    %168 = vector.shape_cast %140 : vector<8x1xf32> to vector<1x8x1xf32>
    tpu.vector_store %arg19[%c3_109, %c0_110, %c0_111], %168 {strides = array<i32>} : memref<4x8x1xf32, #tpu.memory_space<vmem>>, vector<1x8x1xf32>,
    %c1_i32 = arith.constant 1 : i32
    %169 = arith.cmpi eq, %arg2, %c1_i32 : i32
    %170 = arith.extui %169 : i1 to i32
    %c0_i32_112 = arith.constant 0 : i32
    %171 = arith.cmpi ne, %170, %c0_i32_112 : i32
    scf.if %171 {
      %c0_113 = arith.constant 0 : index
      %c0_114 = arith.constant 0 : index
      %c0_115 = arith.constant 0 : index
      %172 = vector.load %arg3[%c0_113, %c0_114, %c0_115] : memref<1x8x32xf32, #tpu.memory_space<vmem>>, vector<1x8x32xf32>
      %173 = vector.shape_cast %172 : vector<1x8x32xf32> to vector<8x32xf32>
      %cst_116 = arith.constant 0.000000e+00 : f32
      %174 = vector.broadcast %cst_116 : f32 to vector<8x32xf32>
      %c0_117 = arith.constant 0 : index
      %c0_118 = arith.constant 0 : index
      %c0_119 = arith.constant 0 : index
      %175 = vector.load %arg21[%c0_117, %c0_118, %c0_119] : memref<4x8x8xf32, #tpu.memory_space<vmem>>, vector<1x8x8xf32>
      %176 = vector.shape_cast %175 : vector<1x8x8xf32> to vector<8x8xf32>
      %c0_120 = arith.constant 0 : index
      %c0_121 = arith.constant 0 : index
      %c0_122 = arith.constant 0 : index
      %177 = vector.load %arg20[%c0_120, %c0_121, %c0_122] : memref<4x8x1xf32, #tpu.memory_space<vmem>>, vector<1x8x1xf32>
      %178 = vector.shape_cast %177 : vector<1x8x1xf32> to vector<8x1xf32>
      %179 = tpu.reciprocal %178 {approx = true} : vector<8x1xf32> -> vector<8x1xf32>
      %180 = vector.broadcast %179 : vector<8x1xf32> to vector<8x8xf32>
      %181 = arith.mulf %176, %180 : vector<8x8xf32>
      %c0_123 = arith.constant 0 : index
      %c0_124 = arith.constant 0 : index
      %182 = vector.load %arg13[%c0_123, %c0_124] : memref<32x32xbf16, #tpu.memory_space<vmem>>, vector<8x32xbf16>
      %183 = arith.truncf %181 : vector<8x8xf32> to vector<8x8xbf16>
      %cst_125 = arith.constant dense<0.000000e+00> : vector<8x32xf32>
      %184 = tpu.matmul %183, %182, %cst_125 {dimension_numbers = #tpu.dot_dimension_numbers<[1], [0], [0], [1], [0, 0, 1, 1], [], []>} : vector<8x8xbf16>, vector<8x32xbf16>, vector<8x32xf32> -> vector<8x32xf32>
      %185 = arith.addf %174, %184 : vector<8x32xf32>
      %c1_126 = arith.constant 1 : index
      %c0_127 = arith.constant 0 : index
      %c0_128 = arith.constant 0 : index
      %186 = vector.load %arg21[%c1_126, %c0_127, %c0_128] : memref<4x8x8xf32, #tpu.memory_space<vmem>>, vector<1x8x8xf32>
      %187 = vector.shape_cast %186 : vector<1x8x8xf32> to vector<8x8xf32>
      %c1_129 = arith.constant 1 : index
      %c0_130 = arith.constant 0 : index
      %c0_131 = arith.constant 0 : index
      %188 = vector.load %arg20[%c1_129, %c0_130, %c0_131] : memref<4x8x1xf32, #tpu.memory_space<vmem>>, vector<1x8x1xf32>
      %189 = vector.shape_cast %188 : vector<1x8x1xf32> to vector<8x1xf32>
      %190 = tpu.reciprocal %189 {approx = true} : vector<8x1xf32> -> vector<8x1xf32>
      %191 = vector.broadcast %190 : vector<8x1xf32> to vector<8x8xf32>
      %192 = arith.mulf %187, %191 : vector<8x8xf32>
      %c8 = arith.constant 8 : index
      %c0_132 = arith.constant 0 : index
      %193 = vector.load %arg13[%c8, %c0_132] : memref<32x32xbf16, #tpu.memory_space<vmem>>, vector<8x32xbf16>
      %194 = arith.truncf %192 : vector<8x8xf32> to vector<8x8xbf16>
      %cst_133 = arith.constant dense<0.000000e+00> : vector<8x32xf32>
      %195 = tpu.matmul %194, %193, %cst_133 {dimension_numbers = #tpu.dot_dimension_numbers<[1], [0], [0], [1], [0, 0, 1, 1], [], []>} : vector<8x8xbf16>, vector<8x32xbf16>, vector<8x32xf32> -> vector<8x32xf32>
      %196 = arith.addf %185, %195 : vector<8x32xf32>
      %c2_134 = arith.constant 2 : index
      %c0_135 = arith.constant 0 : index
      %c0_136 = arith.constant 0 : index
      %197 = vector.load %arg21[%c2_134, %c0_135, %c0_136] : memref<4x8x8xf32, #tpu.memory_space<vmem>>, vector<1x8x8xf32>
      %198 = vector.shape_cast %197 : vector<1x8x8xf32> to vector<8x8xf32>
      %c2_137 = arith.constant 2 : index
      %c0_138 = arith.constant 0 : index
      %c0_139 = arith.constant 0 : index
      %199 = vector.load %arg20[%c2_137, %c0_138, %c0_139] : memref<4x8x1xf32, #tpu.memory_space<vmem>>, vector<1x8x1xf32>
      %200 = vector.shape_cast %199 : vector<1x8x1xf32> to vector<8x1xf32>
      %201 = tpu.reciprocal %200 {approx = true} : vector<8x1xf32> -> vector<8x1xf32>
      %202 = vector.broadcast %201 : vector<8x1xf32> to vector<8x8xf32>
      %203 = arith.mulf %198, %202 : vector<8x8xf32>
      %c16 = arith.constant 16 : index
      %c0_140 = arith.constant 0 : index
      %204 = vector.load %arg13[%c16, %c0_140] : memref<32x32xbf16, #tpu.memory_space<vmem>>, vector<8x32xbf16>
      %205 = arith.truncf %203 : vector<8x8xf32> to vector<8x8xbf16>
      %cst_141 = arith.constant dense<0.000000e+00> : vector<8x32xf32>
      %206 = tpu.matmul %205, %204, %cst_141 {dimension_numbers = #tpu.dot_dimension_numbers<[1], [0], [0], [1], [0, 0, 1, 1], [], []>} : vector<8x8xbf16>, vector<8x32xbf16>, vector<8x32xf32> -> vector<8x32xf32>
      %207 = arith.addf %196, %206 : vector<8x32xf32>
      %c3_142 = arith.constant 3 : index
      %c0_143 = arith.constant 0 : index
      %c0_144 = arith.constant 0 : index
      %208 = vector.load %arg21[%c3_142, %c0_143, %c0_144] : memref<4x8x8xf32, #tpu.memory_space<vmem>>, vector<1x8x8xf32>
      %209 = vector.shape_cast %208 : vector<1x8x8xf32> to vector<8x8xf32>
      %c3_145 = arith.constant 3 : index
      %c0_146 = arith.constant 0 : index
      %c0_147 = arith.constant 0 : index
      %210 = vector.load %arg20[%c3_145, %c0_146, %c0_147] : memref<4x8x1xf32, #tpu.memory_space<vmem>>, vector<1x8x1xf32>
      %211 = vector.shape_cast %210 : vector<1x8x1xf32> to vector<8x1xf32>
      %212 = tpu.reciprocal %211 {approx = true} : vector<8x1xf32> -> vector<8x1xf32>
      %213 = vector.broadcast %212 : vector<8x1xf32> to vector<8x8xf32>
      %214 = arith.mulf %209, %213 : vector<8x8xf32>
      %c24 = arith.constant 24 : index
      %c0_148 = arith.constant 0 : index
      %215 = vector.load %arg13[%c24, %c0_148] : memref<32x32xbf16, #tpu.memory_space<vmem>>, vector<8x32xbf16>
      %216 = arith.truncf %214 : vector<8x8xf32> to vector<8x8xbf16>
      %cst_149 = arith.constant dense<0.000000e+00> : vector<8x32xf32>
      %217 = tpu.matmul %216, %215, %cst_149 {dimension_numbers = #tpu.dot_dimension_numbers<[1], [0], [0], [1], [0, 0, 1, 1], [], []>} : vector<8x8xbf16>, vector<8x32xbf16>, vector<8x32xf32> -> vector<8x32xf32>
      %218 = arith.addf %207, %217 : vector<8x32xf32>
      %c0_150 = arith.constant 0 : index
      %c0_151 = arith.constant 0 : index
      %219 = vector.load %arg14[%c0_150, %c0_151] : memref<1x32xf32, #tpu.memory_space<vmem>>, vector<1x32xf32>
      %220 = vector.broadcast %219 : vector<1x32xf32> to vector<8x32xf32>
      %221 = arith.addf %218, %220 : vector<8x32xf32>
      %222 = arith.addf %173, %221 : vector<8x32xf32>
      %c0_152 = arith.constant 0 : index
      %c0_153 = arith.constant 0 : index
      %223 = vector.load %arg15[%c0_152, %c0_153] : memref<1x32xf32, #tpu.memory_space<vmem>>, vector<1x32xf32>
      %c0_154 = arith.constant 0 : index
      %c0_155 = arith.constant 0 : index
      %224 = vector.load %arg16[%c0_154, %c0_155] : memref<1x32xf32, #tpu.memory_space<vmem>>, vector<1x32xf32>
      %cst_156 = arith.constant dense<0.000000e+00> : vector<8xf32>
      %225 = vector.multi_reduction <add>, %222, %cst_156 [1] : vector<8x32xf32> to vector<8xf32>
      %226 = vector.shape_cast %225 : vector<8xf32> to vector<8x1xf32>
      %cst_157 = arith.constant 3.200000e+01 : f32
      %227 = vector.broadcast %cst_157 : f32 to vector<8x1xf32>
      %228 = arith.divf %226, %227 : vector<8x1xf32>
      %229 = vector.broadcast %228 : vector<8x1xf32> to vector<8x32xf32>
      %230 = arith.subf %222, %229 : vector<8x32xf32>
      %231 = arith.mulf %230, %230 : vector<8x32xf32>
      %cst_158 = arith.constant dense<0.000000e+00> : vector<8xf32>
      %232 = vector.multi_reduction <add>, %231, %cst_158 [1] : vector<8x32xf32> to vector<8xf32>
      %233 = vector.shape_cast %232 : vector<8xf32> to vector<8x1xf32>
      %cst_159 = arith.constant 3.200000e+01 : f32
      %234 = vector.broadcast %cst_159 : f32 to vector<8x1xf32>
      %235 = arith.divf %233, %234 : vector<8x1xf32>
      %cst_160 = arith.constant 9.99999974E-6 : f32
      %236 = vector.broadcast %cst_160 : f32 to vector<8x1xf32>
      %237 = arith.addf %235, %236 : vector<8x1xf32>
      %238 = math.rsqrt %237 : vector<8x1xf32>
      %239 = vector.broadcast %238 : vector<8x1xf32> to vector<8x32xf32>
      %240 = arith.mulf %230, %239 : vector<8x32xf32>
      %241 = vector.broadcast %223 : vector<1x32xf32> to vector<8x32xf32>
      %242 = arith.mulf %240, %241 : vector<8x32xf32>
      %243 = vector.broadcast %224 : vector<1x32xf32> to vector<8x32xf32>
      %244 = arith.addf %242, %243 : vector<8x32xf32>
      %c0_161 = arith.constant 0 : index
      %c0_162 = arith.constant 0 : index
      %c0_163 = arith.constant 0 : index
      %245 = vector.load %arg17[%c0_161, %c0_162, %c0_163] : memref<1x8x32xf32, #tpu.memory_space<vmem>>, vector<1x8x32xf32>
      %246 = vector.shape_cast %245 : vector<1x8x32xf32> to vector<8x32xf32>
      %247 = vector.shape_cast %244 : vector<8x32xf32> to vector<1x8x32xf32>
      tpu.vector_store %arg17[%c0_161, %c0_162, %c0_163], %247 {strides = array<i32>} : memref<1x8x32xf32, #tpu.memory_space<vmem>>, vector<1x8x32xf32>,
    } else {
    }
    return
  }
  func.func @transform_0(%arg0: i32, %arg1: i32, %arg2: i32) -> (i32, i32, i32) {
    %c0_i32 = arith.constant 0 : i32
    %c0_i32_0 = arith.constant 0 : i32
    return %arg0, %arg1, %c0_i32 : i32, i32, i32
  }
  func.func @transform_1(%arg0: i32, %arg1: i32, %arg2: i32) -> (i32, i32, i32) {
    %c0_i32 = arith.constant 0 : i32
    %c0_i32_0 = arith.constant 0 : i32
    return %arg0, %arg1, %c0_i32 : i32, i32, i32
  }
  func.func @transform_2(%arg0: i32, %arg1: i32, %arg2: i32) -> (i32, i32, i32) {
    %c0_i32 = arith.constant 0 : i32
    %c0_i32_0 = arith.constant 0 : i32
    return %arg0, %arg2, %c0_i32 : i32, i32, i32
  }
  func.func @transform_3(%arg0: i32, %arg1: i32, %arg2: i32) -> (i32, i32, i32) {
    %c0_i32 = arith.constant 0 : i32
    %c0_i32_0 = arith.constant 0 : i32
    return %arg0, %arg2, %c0_i32 : i32, i32, i32
  }
  func.func @transform_4(%arg0: i32, %arg1: i32, %arg2: i32) -> (i32, i32) {
    %c0_i32 = arith.constant 0 : i32
    %c0_i32_0 = arith.constant 0 : i32
    %c0_i32_1 = arith.constant 0 : i32
    return %c0_i32, %c0_i32_0 : i32, i32
  }
  func.func @transform_5(%arg0: i32, %arg1: i32, %arg2: i32) -> (i32, i32) {
    %c0_i32 = arith.constant 0 : i32
    %c0_i32_0 = arith.constant 0 : i32
    %c0_i32_1 = arith.constant 0 : i32
    return %c0_i32, %c0_i32_0 : i32, i32
  }
  func.func @transform_6(%arg0: i32, %arg1: i32, %arg2: i32) -> (i32, i32) {
    %c0_i32 = arith.constant 0 : i32
    %c0_i32_0 = arith.constant 0 : i32
    %c0_i32_1 = arith.constant 0 : i32
    return %c0_i32, %c0_i32_0 : i32, i32
  }
  func.func @transform_7(%arg0: i32, %arg1: i32, %arg2: i32) -> (i32, i32) {
    %c0_i32 = arith.constant 0 : i32
    %c0_i32_0 = arith.constant 0 : i32
    %c0_i32_1 = arith.constant 0 : i32
    return %c0_i32, %c0_i32_0 : i32, i32
  }
  func.func @transform_8(%arg0: i32, %arg1: i32, %arg2: i32) -> (i32, i32) {
    %c0_i32 = arith.constant 0 : i32
    %c0_i32_0 = arith.constant 0 : i32
    %c0_i32_1 = arith.constant 0 : i32
    return %c0_i32, %c0_i32_0 : i32, i32
  }
  func.func @transform_9(%arg0: i32, %arg1: i32, %arg2: i32) -> (i32, i32) {
    %c0_i32 = arith.constant 0 : i32
    %c0_i32_0 = arith.constant 0 : i32
    %c0_i32_1 = arith.constant 0 : i32
    return %c0_i32, %c0_i32_0 : i32, i32
  }
  func.func @transform_10(%arg0: i32, %arg1: i32, %arg2: i32) -> (i32, i32) {
    %c0_i32 = arith.constant 0 : i32
    %c0_i32_0 = arith.constant 0 : i32
    %c0_i32_1 = arith.constant 0 : i32
    return %c0_i32, %c0_i32_0 : i32, i32
  }
  func.func @transform_11(%arg0: i32, %arg1: i32, %arg2: i32) -> (i32, i32) {
    %c0_i32 = arith.constant 0 : i32
    %c0_i32_0 = arith.constant 0 : i32
    %c0_i32_1 = arith.constant 0 : i32
    return %c0_i32, %c0_i32_0 : i32, i32
  }
  func.func @transform_12(%arg0: i32, %arg1: i32, %arg2: i32) -> (i32, i32) {
    %c0_i32 = arith.constant 0 : i32
    %c0_i32_0 = arith.constant 0 : i32
    %c0_i32_1 = arith.constant 0 : i32
    return %c0_i32, %c0_i32_0 : i32, i32
  }
  func.func @transform_13(%arg0: i32, %arg1: i32, %arg2: i32) -> (i32, i32) {
    %c0_i32 = arith.constant 0 : i32
    %c0_i32_0 = arith.constant 0 : i32
    %c0_i32_1 = arith.constant 0 : i32
    return %c0_i32, %c0_i32_0 : i32, i32
  }
  func.func @transform_14(%arg0: i32, %arg1: i32, %arg2: i32) -> (i32, i32, i32) {
    %c0_i32 = arith.constant 0 : i32
    %c0_i32_0 = arith.constant 0 : i32
    return %arg0, %arg1, %c0_i32 : i32, i32, i32
  }
}

module attributes {stable_mosaic.version = 11 : i64} {
  func.func @_ffn_kernel(%arg0: i32, %arg1: memref<16x32xf32, #tpu.memory_space<vmem>>, %arg2: memref<32x64xbf16, #tpu.memory_space<vmem>>, %arg3: memref<1x64xf32, #tpu.memory_space<vmem>>, %arg4: memref<64x32xbf16, #tpu.memory_space<vmem>>, %arg5: memref<1x32xf32, #tpu.memory_space<vmem>>, %arg6: memref<1x32xf32, #tpu.memory_space<vmem>>, %arg7: memref<1x32xf32, #tpu.memory_space<vmem>>, %arg8: memref<1x32xf32, #tpu.memory_space<vmem>>, %arg9: memref<1x32xf32, #tpu.memory_space<vmem>>, %arg10: memref<16x32xf32, #tpu.memory_space<vmem>>, %arg11: memref<16x32xf32, #tpu.memory_space<vmem>>) attributes {dimension_semantics = [#tpu.dimension_semantics<parallel>], iteration_bounds = array<i64: 1>, scalar_prefetch = 0 : i64, scratch_operands = 0 : i64, tpu.core_type = #tpu.core_type<tc>, window_params = [{transform_indices = @transform_0, window_bounds = array<i64: 16, 32>}, {pipeline_mode = #tpu.pipeline_mode<synchronous>, transform_indices = @transform_1, window_bounds = array<i64: 32, 64>}, {pipeline_mode = #tpu.pipeline_mode<synchronous>, transform_indices = @transform_2, window_bounds = array<i64: 1, 64>}, {pipeline_mode = #tpu.pipeline_mode<synchronous>, transform_indices = @transform_3, window_bounds = array<i64: 64, 32>}, {pipeline_mode = #tpu.pipeline_mode<synchronous>, transform_indices = @transform_4, window_bounds = array<i64: 1, 32>}, {pipeline_mode = #tpu.pipeline_mode<synchronous>, transform_indices = @transform_5, window_bounds = array<i64: 1, 32>}, {pipeline_mode = #tpu.pipeline_mode<synchronous>, transform_indices = @transform_6, window_bounds = array<i64: 1, 32>}, {pipeline_mode = #tpu.pipeline_mode<synchronous>, transform_indices = @transform_7, window_bounds = array<i64: 1, 32>}, {pipeline_mode = #tpu.pipeline_mode<synchronous>, transform_indices = @transform_8, window_bounds = array<i64: 1, 32>}, {transform_indices = @transform_9, window_bounds = array<i64: 16, 32>}, {transform_indices = @transform_10, window_bounds = array<i64: 16, 32>}]} {
    %c0 = arith.constant 0 : index
    %c0_0 = arith.constant 0 : index
    %0 = vector.load %arg1[%c0, %c0_0] : memref<16x32xf32, #tpu.memory_space<vmem>>, vector<16x32xf32>
    %c0_1 = arith.constant 0 : index
    %c0_2 = arith.constant 0 : index
    %1 = vector.load %arg2[%c0_1, %c0_2] : memref<32x64xbf16, #tpu.memory_space<vmem>>, vector<32x64xbf16>
    %2 = arith.truncf %0 : vector<16x32xf32> to vector<16x32xbf16>
    %cst = arith.constant dense<0.000000e+00> : vector<16x64xf32>
    %3 = tpu.matmul %2, %1, %cst {dimension_numbers = #tpu.dot_dimension_numbers<[1], [0], [0], [1], [0, 0, 1, 1], [], []>} : vector<16x32xbf16>, vector<32x64xbf16>, vector<16x64xf32> -> vector<16x64xf32>
    %c0_3 = arith.constant 0 : index
    %c0_4 = arith.constant 0 : index
    %4 = vector.load %arg3[%c0_3, %c0_4] : memref<1x64xf32, #tpu.memory_space<vmem>>, vector<1x64xf32>
    %5 = vector.broadcast %4 : vector<1x64xf32> to vector<16x64xf32>
    %6 = arith.addf %3, %5 : vector<16x64xf32>
    %cst_5 = arith.constant 0.000000e+00 : f32
    %7 = vector.broadcast %cst_5 : f32 to vector<16x64xf32>
    %8 = arith.maximumf %6, %7 : vector<16x64xf32>
    %c0_6 = arith.constant 0 : index
    %c0_7 = arith.constant 0 : index
    %9 = vector.load %arg4[%c0_6, %c0_7] : memref<64x32xbf16, #tpu.memory_space<vmem>>, vector<64x32xbf16>
    %10 = arith.truncf %8 : vector<16x64xf32> to vector<16x64xbf16>
    %cst_8 = arith.constant dense<0.000000e+00> : vector<16x32xf32>
    %11 = tpu.matmul %10, %9, %cst_8 {dimension_numbers = #tpu.dot_dimension_numbers<[1], [0], [0], [1], [0, 0, 1, 1], [], []>} : vector<16x64xbf16>, vector<64x32xbf16>, vector<16x32xf32> -> vector<16x32xf32>
    %c0_9 = arith.constant 0 : index
    %c0_10 = arith.constant 0 : index
    %12 = vector.load %arg5[%c0_9, %c0_10] : memref<1x32xf32, #tpu.memory_space<vmem>>, vector<1x32xf32>
    %13 = vector.broadcast %12 : vector<1x32xf32> to vector<16x32xf32>
    %14 = arith.addf %11, %13 : vector<16x32xf32>
    %15 = arith.addf %0, %14 : vector<16x32xf32>
    %c0_11 = arith.constant 0 : index
    %c0_12 = arith.constant 0 : index
    %16 = vector.load %arg6[%c0_11, %c0_12] : memref<1x32xf32, #tpu.memory_space<vmem>>, vector<1x32xf32>
    %c0_13 = arith.constant 0 : index
    %c0_14 = arith.constant 0 : index
    %17 = vector.load %arg7[%c0_13, %c0_14] : memref<1x32xf32, #tpu.memory_space<vmem>>, vector<1x32xf32>
    %cst_15 = arith.constant dense<0.000000e+00> : vector<16xf32>
    %18 = vector.multi_reduction <add>, %15, %cst_15 [1] : vector<16x32xf32> to vector<16xf32>
    %19 = vector.shape_cast %18 : vector<16xf32> to vector<16x1xf32>
    %cst_16 = arith.constant 3.200000e+01 : f32
    %20 = vector.broadcast %cst_16 : f32 to vector<16x1xf32>
    %21 = arith.divf %19, %20 : vector<16x1xf32>
    %22 = vector.broadcast %21 : vector<16x1xf32> to vector<16x32xf32>
    %23 = arith.subf %15, %22 : vector<16x32xf32>
    %24 = arith.mulf %23, %23 : vector<16x32xf32>
    %cst_17 = arith.constant dense<0.000000e+00> : vector<16xf32>
    %25 = vector.multi_reduction <add>, %24, %cst_17 [1] : vector<16x32xf32> to vector<16xf32>
    %26 = vector.shape_cast %25 : vector<16xf32> to vector<16x1xf32>
    %cst_18 = arith.constant 3.200000e+01 : f32
    %27 = vector.broadcast %cst_18 : f32 to vector<16x1xf32>
    %28 = arith.divf %26, %27 : vector<16x1xf32>
    %cst_19 = arith.constant 9.99999974E-6 : f32
    %29 = vector.broadcast %cst_19 : f32 to vector<16x1xf32>
    %30 = arith.addf %28, %29 : vector<16x1xf32>
    %31 = math.rsqrt %30 : vector<16x1xf32>
    %32 = vector.broadcast %31 : vector<16x1xf32> to vector<16x32xf32>
    %33 = arith.mulf %23, %32 : vector<16x32xf32>
    %34 = vector.broadcast %16 : vector<1x32xf32> to vector<16x32xf32>
    %35 = arith.mulf %33, %34 : vector<16x32xf32>
    %36 = vector.broadcast %17 : vector<1x32xf32> to vector<16x32xf32>
    %37 = arith.addf %35, %36 : vector<16x32xf32>
    %c0_20 = arith.constant 0 : index
    %c0_21 = arith.constant 0 : index
    %38 = vector.load %arg10[%c0_20, %c0_21] : memref<16x32xf32, #tpu.memory_space<vmem>>, vector<16x32xf32>
    tpu.vector_store %arg10[%c0_20, %c0_21], %37 {strides = array<i32>} : memref<16x32xf32, #tpu.memory_space<vmem>>, vector<16x32xf32>,
    %c0_22 = arith.constant 0 : index
    %c0_23 = arith.constant 0 : index
    %39 = vector.load %arg8[%c0_22, %c0_23] : memref<1x32xf32, #tpu.memory_space<vmem>>, vector<1x32xf32>
    %c0_24 = arith.constant 0 : index
    %c0_25 = arith.constant 0 : index
    %40 = vector.load %arg9[%c0_24, %c0_25] : memref<1x32xf32, #tpu.memory_space<vmem>>, vector<1x32xf32>
    %cst_26 = arith.constant dense<0.000000e+00> : vector<16xf32>
    %41 = vector.multi_reduction <add>, %37, %cst_26 [1] : vector<16x32xf32> to vector<16xf32>
    %42 = vector.shape_cast %41 : vector<16xf32> to vector<16x1xf32>
    %cst_27 = arith.constant 3.200000e+01 : f32
    %43 = vector.broadcast %cst_27 : f32 to vector<16x1xf32>
    %44 = arith.divf %42, %43 : vector<16x1xf32>
    %45 = vector.broadcast %44 : vector<16x1xf32> to vector<16x32xf32>
    %46 = arith.subf %37, %45 : vector<16x32xf32>
    %47 = arith.mulf %46, %46 : vector<16x32xf32>
    %cst_28 = arith.constant dense<0.000000e+00> : vector<16xf32>
    %48 = vector.multi_reduction <add>, %47, %cst_28 [1] : vector<16x32xf32> to vector<16xf32>
    %49 = vector.shape_cast %48 : vector<16xf32> to vector<16x1xf32>
    %cst_29 = arith.constant 3.200000e+01 : f32
    %50 = vector.broadcast %cst_29 : f32 to vector<16x1xf32>
    %51 = arith.divf %49, %50 : vector<16x1xf32>
    %cst_30 = arith.constant 9.99999974E-6 : f32
    %52 = vector.broadcast %cst_30 : f32 to vector<16x1xf32>
    %53 = arith.addf %51, %52 : vector<16x1xf32>
    %54 = math.rsqrt %53 : vector<16x1xf32>
    %55 = vector.broadcast %54 : vector<16x1xf32> to vector<16x32xf32>
    %56 = arith.mulf %46, %55 : vector<16x32xf32>
    %57 = vector.broadcast %39 : vector<1x32xf32> to vector<16x32xf32>
    %58 = arith.mulf %56, %57 : vector<16x32xf32>
    %59 = vector.broadcast %40 : vector<1x32xf32> to vector<16x32xf32>
    %60 = arith.addf %58, %59 : vector<16x32xf32>
    %c0_31 = arith.constant 0 : index
    %c0_32 = arith.constant 0 : index
    %61 = vector.load %arg11[%c0_31, %c0_32] : memref<16x32xf32, #tpu.memory_space<vmem>>, vector<16x32xf32>
    tpu.vector_store %arg11[%c0_31, %c0_32], %60 {strides = array<i32>} : memref<16x32xf32, #tpu.memory_space<vmem>>, vector<16x32xf32>,
    return
  }
  func.func @transform_0(%arg0: i32) -> (i32, i32) {
    %c0_i32 = arith.constant 0 : i32
    %c0_i32_0 = arith.constant 0 : i32
    return %arg0, %c0_i32 : i32, i32
  }
  func.func @transform_1(%arg0: i32) -> (i32, i32) {
    %c0_i32 = arith.constant 0 : i32
    %c0_i32_0 = arith.constant 0 : i32
    %c0_i32_1 = arith.constant 0 : i32
    return %c0_i32, %c0_i32_0 : i32, i32
  }
  func.func @transform_2(%arg0: i32) -> (i32, i32) {
    %c0_i32 = arith.constant 0 : i32
    %c0_i32_0 = arith.constant 0 : i32
    %c0_i32_1 = arith.constant 0 : i32
    return %c0_i32, %c0_i32_0 : i32, i32
  }
  func.func @transform_3(%arg0: i32) -> (i32, i32) {
    %c0_i32 = arith.constant 0 : i32
    %c0_i32_0 = arith.constant 0 : i32
    %c0_i32_1 = arith.constant 0 : i32
    return %c0_i32, %c0_i32_0 : i32, i32
  }
  func.func @transform_4(%arg0: i32) -> (i32, i32) {
    %c0_i32 = arith.constant 0 : i32
    %c0_i32_0 = arith.constant 0 : i32
    %c0_i32_1 = arith.constant 0 : i32
    return %c0_i32, %c0_i32_0 : i32, i32
  }
  func.func @transform_5(%arg0: i32) -> (i32, i32) {
    %c0_i32 = arith.constant 0 : i32
    %c0_i32_0 = arith.constant 0 : i32
    %c0_i32_1 = arith.constant 0 : i32
    return %c0_i32, %c0_i32_0 : i32, i32
  }
  func.func @transform_6(%arg0: i32) -> (i32, i32) {
    %c0_i32 = arith.constant 0 : i32
    %c0_i32_0 = arith.constant 0 : i32
    %c0_i32_1 = arith.constant 0 : i32
    return %c0_i32, %c0_i32_0 : i32, i32
  }
  func.func @transform_7(%arg0: i32) -> (i32, i32) {
    %c0_i32 = arith.constant 0 : i32
    %c0_i32_0 = arith.constant 0 : i32
    %c0_i32_1 = arith.constant 0 : i32
    return %c0_i32, %c0_i32_0 : i32, i32
  }
  func.func @transform_8(%arg0: i32) -> (i32, i32) {
    %c0_i32 = arith.constant 0 : i32
    %c0_i32_0 = arith.constant 0 : i32
    %c0_i32_1 = arith.constant 0 : i32
    return %c0_i32, %c0_i32_0 : i32, i32
  }
  func.func @transform_9(%arg0: i32) -> (i32, i32) {
    %c0_i32 = arith.constant 0 : i32
    %c0_i32_0 = arith.constant 0 : i32
    return %arg0, %c0_i32 : i32, i32
  }
  func.func @transform_10(%arg0: i32) -> (i32, i32) {
    %c0_i32 = arith.constant 0 : i32
    %c0_i32_0 = arith.constant 0 : i32
    return %arg0, %c0_i32 : i32, i32
  }
}

module attributes {stable_mosaic.version = 11 : i64} {
  func.func @_ffn_kernel(%arg0: i32, %arg1: memref<16x32xf32, #tpu.memory_space<vmem>>, %arg2: memref<32x64xbf16, #tpu.memory_space<vmem>>, %arg3: memref<1x64xf32, #tpu.memory_space<vmem>>, %arg4: memref<64x32xbf16, #tpu.memory_space<vmem>>, %arg5: memref<1x32xf32, #tpu.memory_space<vmem>>, %arg6: memref<1x32xf32, #tpu.memory_space<vmem>>, %arg7: memref<1x32xf32, #tpu.memory_space<vmem>>, %arg8: memref<1x32xf32, #tpu.memory_space<vmem>>, %arg9: memref<1x32xf32, #tpu.memory_space<vmem>>, %arg10: memref<16x32xf32, #tpu.memory_space<vmem>>, %arg11: memref<16x32xf32, #tpu.memory_space<vmem>>) attributes {dimension_semantics = [#tpu.dimension_semantics<parallel>], iteration_bounds = array<i64: 1>, scalar_prefetch = 0 : i64, scratch_operands = 0 : i64, tpu.core_type = #tpu.core_type<tc>, window_params = [{transform_indices = @transform_0, window_bounds = array<i64: 16, 32>}, {pipeline_mode = #tpu.pipeline_mode<synchronous>, transform_indices = @transform_1, window_bounds = array<i64: 32, 64>}, {pipeline_mode = #tpu.pipeline_mode<synchronous>, transform_indices = @transform_2, window_bounds = array<i64: 1, 64>}, {pipeline_mode = #tpu.pipeline_mode<synchronous>, transform_indices = @transform_3, window_bounds = array<i64: 64, 32>}, {pipeline_mode = #tpu.pipeline_mode<synchronous>, transform_indices = @transform_4, window_bounds = array<i64: 1, 32>}, {pipeline_mode = #tpu.pipeline_mode<synchronous>, transform_indices = @transform_5, window_bounds = array<i64: 1, 32>}, {pipeline_mode = #tpu.pipeline_mode<synchronous>, transform_indices = @transform_6, window_bounds = array<i64: 1, 32>}, {pipeline_mode = #tpu.pipeline_mode<synchronous>, transform_indices = @transform_7, window_bounds = array<i64: 1, 32>}, {pipeline_mode = #tpu.pipeline_mode<synchronous>, transform_indices = @transform_8, window_bounds = array<i64: 1, 32>}, {transform_indices = @transform_9, window_bounds = array<i64: 16, 32>}, {transform_indices = @transform_10, window_bounds = array<i64: 16, 32>}]} {
    %c0 = arith.constant 0 : index
    %c0_0 = arith.constant 0 : index
    %0 = vector.load %arg1[%c0, %c0_0] : memref<16x32xf32, #tpu.memory_space<vmem>>, vector<16x32xf32>
    %c0_1 = arith.constant 0 : index
    %c0_2 = arith.constant 0 : index
    %1 = vector.load %arg2[%c0_1, %c0_2] : memref<32x64xbf16, #tpu.memory_space<vmem>>, vector<32x64xbf16>
    %2 = arith.truncf %0 : vector<16x32xf32> to vector<16x32xbf16>
    %cst = arith.constant dense<0.000000e+00> : vector<16x64xf32>
    %3 = tpu.matmul %2, %1, %cst {dimension_numbers = #tpu.dot_dimension_numbers<[1], [0], [0], [1], [0, 0, 1, 1], [], []>} : vector<16x32xbf16>, vector<32x64xbf16>, vector<16x64xf32> -> vector<16x64xf32>
    %c0_3 = arith.constant 0 : index
    %c0_4 = arith.constant 0 : index
    %4 = vector.load %arg3[%c0_3, %c0_4] : memref<1x64xf32, #tpu.memory_space<vmem>>, vector<1x64xf32>
    %5 = vector.broadcast %4 : vector<1x64xf32> to vector<16x64xf32>
    %6 = arith.addf %3, %5 : vector<16x64xf32>
    %cst_5 = arith.constant 0.000000e+00 : f32
    %7 = vector.broadcast %cst_5 : f32 to vector<16x64xf32>
    %8 = arith.maximumf %6, %7 : vector<16x64xf32>
    %c0_6 = arith.constant 0 : index
    %c0_7 = arith.constant 0 : index
    %9 = vector.load %arg4[%c0_6, %c0_7] : memref<64x32xbf16, #tpu.memory_space<vmem>>, vector<64x32xbf16>
    %10 = arith.truncf %8 : vector<16x64xf32> to vector<16x64xbf16>
    %cst_8 = arith.constant dense<0.000000e+00> : vector<16x32xf32>
    %11 = tpu.matmul %10, %9, %cst_8 {dimension_numbers = #tpu.dot_dimension_numbers<[1], [0], [0], [1], [0, 0, 1, 1], [], []>} : vector<16x64xbf16>, vector<64x32xbf16>, vector<16x32xf32> -> vector<16x32xf32>
    %c0_9 = arith.constant 0 : index
    %c0_10 = arith.constant 0 : index
    %12 = vector.load %arg5[%c0_9, %c0_10] : memref<1x32xf32, #tpu.memory_space<vmem>>, vector<1x32xf32>
    %13 = vector.broadcast %12 : vector<1x32xf32> to vector<16x32xf32>
    %14 = arith.addf %11, %13 : vector<16x32xf32>
    %15 = arith.addf %0, %14 : vector<16x32xf32>
    %c0_11 = arith.constant 0 : index
    %c0_12 = arith.constant 0 : index
    %16 = vector.load %arg6[%c0_11, %c0_12] : memref<1x32xf32, #tpu.memory_space<vmem>>, vector<1x32xf32>
    %c0_13 = arith.constant 0 : index
    %c0_14 = arith.constant 0 : index
    %17 = vector.load %arg7[%c0_13, %c0_14] : memref<1x32xf32, #tpu.memory_space<vmem>>, vector<1x32xf32>
    %cst_15 = arith.constant dense<0.000000e+00> : vector<16xf32>
    %18 = vector.multi_reduction <add>, %15, %cst_15 [1] : vector<16x32xf32> to vector<16xf32>
    %19 = vector.shape_cast %18 : vector<16xf32> to vector<16x1xf32>
    %cst_16 = arith.constant 3.200000e+01 : f32
    %20 = vector.broadcast %cst_16 : f32 to vector<16x1xf32>
    %21 = arith.divf %19, %20 : vector<16x1xf32>
    %22 = vector.broadcast %21 : vector<16x1xf32> to vector<16x32xf32>
    %23 = arith.subf %15, %22 : vector<16x32xf32>
    %24 = arith.mulf %23, %23 : vector<16x32xf32>
    %cst_17 = arith.constant dense<0.000000e+00> : vector<16xf32>
    %25 = vector.multi_reduction <add>, %24, %cst_17 [1] : vector<16x32xf32> to vector<16xf32>
    %26 = vector.shape_cast %25 : vector<16xf32> to vector<16x1xf32>
    %cst_18 = arith.constant 3.200000e+01 : f32
    %27 = vector.broadcast %cst_18 : f32 to vector<16x1xf32>
    %28 = arith.divf %26, %27 : vector<16x1xf32>
    %cst_19 = arith.constant 9.99999974E-6 : f32
    %29 = vector.broadcast %cst_19 : f32 to vector<16x1xf32>
    %30 = arith.addf %28, %29 : vector<16x1xf32>
    %31 = math.rsqrt %30 : vector<16x1xf32>
    %32 = vector.broadcast %31 : vector<16x1xf32> to vector<16x32xf32>
    %33 = arith.mulf %23, %32 : vector<16x32xf32>
    %34 = vector.broadcast %16 : vector<1x32xf32> to vector<16x32xf32>
    %35 = arith.mulf %33, %34 : vector<16x32xf32>
    %36 = vector.broadcast %17 : vector<1x32xf32> to vector<16x32xf32>
    %37 = arith.addf %35, %36 : vector<16x32xf32>
    %c0_20 = arith.constant 0 : index
    %c0_21 = arith.constant 0 : index
    %38 = vector.load %arg10[%c0_20, %c0_21] : memref<16x32xf32, #tpu.memory_space<vmem>>, vector<16x32xf32>
    tpu.vector_store %arg10[%c0_20, %c0_21], %37 {strides = array<i32>} : memref<16x32xf32, #tpu.memory_space<vmem>>, vector<16x32xf32>,
    %c0_22 = arith.constant 0 : index
    %c0_23 = arith.constant 0 : index
    %39 = vector.load %arg8[%c0_22, %c0_23] : memref<1x32xf32, #tpu.memory_space<vmem>>, vector<1x32xf32>
    %c0_24 = arith.constant 0 : index
    %c0_25 = arith.constant 0 : index
    %40 = vector.load %arg9[%c0_24, %c0_25] : memref<1x32xf32, #tpu.memory_space<vmem>>, vector<1x32xf32>
    %cst_26 = arith.constant dense<0.000000e+00> : vector<16xf32>
    %41 = vector.multi_reduction <add>, %37, %cst_26 [1] : vector<16x32xf32> to vector<16xf32>
    %42 = vector.shape_cast %41 : vector<16xf32> to vector<16x1xf32>
    %cst_27 = arith.constant 3.200000e+01 : f32
    %43 = vector.broadcast %cst_27 : f32 to vector<16x1xf32>
    %44 = arith.divf %42, %43 : vector<16x1xf32>
    %45 = vector.broadcast %44 : vector<16x1xf32> to vector<16x32xf32>
    %46 = arith.subf %37, %45 : vector<16x32xf32>
    %47 = arith.mulf %46, %46 : vector<16x32xf32>
    %cst_28 = arith.constant dense<0.000000e+00> : vector<16xf32>
    %48 = vector.multi_reduction <add>, %47, %cst_28 [1] : vector<16x32xf32> to vector<16xf32>
    %49 = vector.shape_cast %48 : vector<16xf32> to vector<16x1xf32>
    %cst_29 = arith.constant 3.200000e+01 : f32
    %50 = vector.broadcast %cst_29 : f32 to vector<16x1xf32>
    %51 = arith.divf %49, %50 : vector<16x1xf32>
    %cst_30 = arith.constant 9.99999974E-6 : f32
    %52 = vector.broadcast %cst_30 : f32 to vector<16x1xf32>
    %53 = arith.addf %51, %52 : vector<16x1xf32>
    %54 = math.rsqrt %53 : vector<16x1xf32>
    %55 = vector.broadcast %54 : vector<16x1xf32> to vector<16x32xf32>
    %56 = arith.mulf %46, %55 : vector<16x32xf32>
    %57 = vector.broadcast %39 : vector<1x32xf32> to vector<16x32xf32>
    %58 = arith.mulf %56, %57 : vector<16x32xf32>
    %59 = vector.broadcast %40 : vector<1x32xf32> to vector<16x32xf32>
    %60 = arith.addf %58, %59 : vector<16x32xf32>
    %c0_31 = arith.constant 0 : index
    %c0_32 = arith.constant 0 : index
    %61 = vector.load %arg11[%c0_31, %c0_32] : memref<16x32xf32, #tpu.memory_space<vmem>>, vector<16x32xf32>
    tpu.vector_store %arg11[%c0_31, %c0_32], %60 {strides = array<i32>} : memref<16x32xf32, #tpu.memory_space<vmem>>, vector<16x32xf32>,
    return
  }
  func.func @transform_0(%arg0: i32) -> (i32, i32) {
    %c0_i32 = arith.constant 0 : i32
    %c0_i32_0 = arith.constant 0 : i32
    return %arg0, %c0_i32 : i32, i32
  }
  func.func @transform_1(%arg0: i32) -> (i32, i32) {
    %c0_i32 = arith.constant 0 : i32
    %c0_i32_0 = arith.constant 0 : i32
    %c0_i32_1 = arith.constant 0 : i32
    return %c0_i32, %c0_i32_0 : i32, i32
  }
  func.func @transform_2(%arg0: i32) -> (i32, i32) {
    %c0_i32 = arith.constant 0 : i32
    %c0_i32_0 = arith.constant 0 : i32
    %c0_i32_1 = arith.constant 0 : i32
    return %c0_i32, %c0_i32_0 : i32, i32
  }
  func.func @transform_3(%arg0: i32) -> (i32, i32) {
    %c0_i32 = arith.constant 0 : i32
    %c0_i32_0 = arith.constant 0 : i32
    %c0_i32_1 = arith.constant 0 : i32
    return %c0_i32, %c0_i32_0 : i32, i32
  }
  func.func @transform_4(%arg0: i32) -> (i32, i32) {
    %c0_i32 = arith.constant 0 : i32
    %c0_i32_0 = arith.constant 0 : i32
    %c0_i32_1 = arith.constant 0 : i32
    return %c0_i32, %c0_i32_0 : i32, i32
  }
  func.func @transform_5(%arg0: i32) -> (i32, i32) {
    %c0_i32 = arith.constant 0 : i32
    %c0_i32_0 = arith.constant 0 : i32
    %c0_i32_1 = arith.constant 0 : i32
    return %c0_i32, %c0_i32_0 : i32, i32
  }
  func.func @transform_6(%arg0: i32) -> (i32, i32) {
    %c0_i32 = arith.constant 0 : i32
    %c0_i32_0 = arith.constant 0 : i32
    %c0_i32_1 = arith.constant 0 : i32
    return %c0_i32, %c0_i32_0 : i32, i32
  }
  func.func @transform_7(%arg0: i32) -> (i32, i32) {
    %c0_i32 = arith.constant 0 : i32
    %c0_i32_0 = arith.constant 0 : i32
    %c0_i32_1 = arith.constant 0 : i32
    return %c0_i32, %c0_i32_0 : i32, i32
  }
  func.func @transform_8(%arg0: i32) -> (i32, i32) {
    %c0_i32 = arith.constant 0 : i32
    %c0_i32_0 = arith.constant 0 : i32
    %c0_i32_1 = arith.constant 0 : i32
    return %c0_i32, %c0_i32_0 : i32, i32
  }
  func.func @transform_9(%arg0: i32) -> (i32, i32) {
    %c0_i32 = arith.constant 0 : i32
    %c0_i32_0 = arith.constant 0 : i32
    return %arg0, %c0_i32 : i32, i32
  }
  func.func @transform_10(%arg0: i32) -> (i32, i32) {
    %c0_i32 = arith.constant 0 : i32
    %c0_i32_0 = arith.constant 0 : i32
    return %arg0, %c0_i32 : i32, i32
  }
}

</mosaic_0001>

<llo_original>
// kernel: transformer_decoder_forward.7
$region0: #{transformer_decoder_forward.7}
  #allocation0 [shape = 'u32[]', space=smem, size = 0x4, offset = 0x4, fixed_abs, tag = 'smem constant byte address 0x4 - core index']
  #allocation1 [shape = 'u32[144,128]{1,0:T(1,128)}', space=vmem, size = 0x12000, scoped, tag = 'internal scratch']
  %s0 = inlined_call_operand.vmem [shape: f32[16,64], index: 0, kind: input, shape index: {}]
  %s1 = inlined_call_operand.vmem [shape: bf16[64,32], index: 1, kind: input, shape index: {}]
  %s2 = inlined_call_operand.vmem [shape: f32[1,32], index: 2, kind: input, shape index: {}]
  %s3 = inlined_call_operand.vmem [shape: bf16[32,32], index: 3, kind: input, shape index: {}]
  %s4 = inlined_call_operand.vmem [shape: f32[1,32], index: 4, kind: input, shape index: {}]
  %s5 = inlined_call_operand.vmem [shape: f32[16,32], index: 5, kind: output, shape index: {}]
  %s6 = sld [smem:[#allocation0]]
  $region30: #{transformer_decoder_forward.7} parent=0
    _
  %s8 = ssub.s32 1, %s6
  %s9 = scalar_select 0, %s8, %s6
  // Predicated region
  $region2: #{transformer_decoder_forward.7} parent=0 // pred_check
    _
  $region3: #{transformer_decoder_forward.7} parent=0 // pred_check_branch
    %11 = sbr.rel (0) target = $region5
  $region4: #{transformer_decoder_forward.7} parent=0 // pred_region
    _
  $region5: #{transformer_decoder_forward.7} parent=0 // pred_fallthru
    _
  // Predicated region
  $region6: #{transformer_decoder_forward.7} parent=0 // pred_check
    _
  $region7: #{transformer_decoder_forward.7} parent=0 // pred_check_branch
    %13 = sbr.rel (0) target = $region9
  $region8: #{transformer_decoder_forward.7} parent=0 // pred_region
    _
  $region9: #{transformer_decoder_forward.7} parent=0 // pred_fallthru
    _
  // Predicated region
  $region10: #{transformer_decoder_forward.7} parent=0 // pred_check
    _
  $region11: #{transformer_decoder_forward.7} parent=0 // pred_check_branch
    %15 = sbr.rel (0) target = $region13
  $region12: #{transformer_decoder_forward.7} parent=0 // pred_region
    _
  $region13: #{transformer_decoder_forward.7} parent=0 // pred_fallthru
    _
  // Predicated region
  $region14: #{transformer_decoder_forward.7} parent=0 // pred_check
    _
  $region15: #{transformer_decoder_forward.7} parent=0 // pred_check_branch
    %17 = sbr.rel (0) target = $region17
  $region16: #{transformer_decoder_forward.7} parent=0 // pred_region
    _
  $region17: #{transformer_decoder_forward.7} parent=0 // pred_fallthru
    _
  // Predicated region
  $region18: #{transformer_decoder_forward.7} parent=0 // pred_check
    _
  $region19: #{transformer_decoder_forward.7} parent=0 // pred_check_branch
    %19 = sbr.rel (0) target = $region21
  $region20: #{transformer_decoder_forward.7} parent=0 // pred_region
    _
  $region21: #{transformer_decoder_forward.7} parent=0 // pred_fallthru
    _
  %v21 = vld [vmem:[%s0] sm:$0xff]
  %v22 = vld [vmem:[%s0 + $0x8] sm:$0xff]
  %v23 = vld [vmem:[%s1] sm:$0xf]
  %v24 = vld [vmem:[%s1 + $0x4] sm:$0xf]
  %v25 = vld [vmem:[%s1 + $0x8] sm:$0xf]
  %v26 = vld [vmem:[%s1 + $0xc] sm:$0xf]
  %v27 = vld [vmem:[%s1 + $0x10] sm:$0xf]
  %v28 = vld [vmem:[%s1 + $0x14] sm:$0xf]
  %v29 = vld [vmem:[%s1 + $0x18] sm:$0xf]
  %v30 = vld [vmem:[%s1 + $0x1c] sm:$0xf]
  %v31 = vpack.c.bf16 %v22, %v21
  %v32 = vld [vmem:[%s2] sm:$0x1]
  %v34 = vlaneseq
  %v35 = vshrl.u32 %v34, 7
  %v36 = vsub.s32 0, %v35
  %v37 = vrot.slane %v32, %v36
  %v47 = vunpack.c.l.b16 %v23
  %v48 = vunpack.c.l.b16 %v24
  %v49 = vunpack.c.l.b16 %v25
  %v50 = vunpack.c.l.b16 %v26
  %v51 = vunpack.c.l.b16 %v27
  %v52 = vunpack.c.l.b16 %v28
  %v53 = vunpack.c.l.b16 %v29
  %v54 = vunpack.c.l.b16 %v30
  %v55 = vpack.c.b16 %v48, %v47
  %v56 = vpack.c.b16 %v50, %v49
  %v57 = vpack.c.b16 %v52, %v51
  %v58 = vpack.c.b16 %v54, %v53
  %vm63 = vcmask 523264
  %v65 = vsel %vm63, %v31, 0
  %67 = vmatprep.subr.bf16.mxu0 0
  %68 = vmatpush1.bf16.msra.mxu0 %v55
  %69 = vmatprep.subr.bf16.mxu0 0
  %70 = vmatpush1.bf16.msra.mxu0 %v56
  %71 = vmatprep.subr.bf16.mxu0 0
  %72 = vmatpush1.bf16.msra.mxu0 %v57
  %73 = vmatprep.subr.bf16.mxu0 0
  %74 = vmatpush1.bf16.msra.mxu0 %v58
  %75 = vmatprep.subr.bf16.mxu0 0
  %76 = vmatpush1.bf16.msra.mxu0 0
  %77 = vmatprep.subr.bf16.mxu0 0
  %78 = vmatpush1.bf16.msra.mxu0 0
  %79 = vmatprep.subr.bf16.mxu0 0
  %80 = vmatpush1.bf16.msra.mxu0 0
  %81 = vmatprep.subr.bf16.mxu0 0
  %82 = vmatpush1.bf16.msra.mxu0 0
  %83 = vmatprep.subr.bf16.mxu0 0
  %84 = vmatpush1.bf16.msra.mxu0 0
  %85 = vmatprep.subr.bf16.mxu0 0
  %86 = vmatpush1.bf16.msra.mxu0 0
  %87 = vmatprep.subr.bf16.mxu0 0
  %88 = vmatpush1.bf16.msra.mxu0 0
  %89 = vmatprep.subr.bf16.mxu0 0
  %90 = vmatpush1.bf16.msra.mxu0 0
  %91 = vmatprep.subr.bf16.mxu0 0
  %92 = vmatpush1.bf16.msra.mxu0 0
  %93 = vmatprep.subr.bf16.mxu0 0
  %94 = vmatpush1.bf16.msra.mxu0 0
  %95 = vmatprep.subr.bf16.mxu0 0
  %96 = vmatpush1.bf16.msra.mxu0 0
  %97 = vmatprep.subr.bf16.mxu0 0
  %98 = vmatpush1.bf16.msra.mxu0 0
  %99 = vmatprep.mubr.bf16.mxu0 0
  %100 = vmatmul.mubr.bf16.gmra.mrb[0].mxu0 %v65
  %v101 = vpop.f32.mrb[0].mxu0
  %v102 = vadd.f32 %v37, %v101
  %v103 = vpop.f32.mrb[0].mxu0
  %v104 = vpop.f32.mrb[0].mxu0
  %v105 = vadd.f32 %v37, %v104
  %v106 = vpop.f32.mrb[0].mxu0
  %107 = vdwg.mxu0
  %v108 = vmax.f32 %v102, 0.0
  %v109 = vmax.f32 %v105, 0.0
  %v110 = vld [vmem:[%s3] sm:$0xf]
  %v111 = vld [vmem:[%s3 + $0x4] sm:$0xf]
  %v112 = vld [vmem:[%s3 + $0x8] sm:$0xf]
  %v113 = vld [vmem:[%s3 + $0xc] sm:$0xf]
  %v114 = vpack.c.bf16 %v109, %v108
  %v115 = vld [vmem:[%s4] sm:$0x1]
  %v117 = vlaneseq
  %v118 = vshrl.u32 %v117, 7
  %v119 = vsub.s32 0, %v118
  %v120 = vrot.slane %v115, %v119
  %v126 = vunpack.c.l.b16 %v110
  %v127 = vunpack.c.l.b16 %v111
  %v128 = vunpack.c.l.b16 %v112
  %v129 = vunpack.c.l.b16 %v113
  %v130 = vpack.c.b16 %v127, %v126
  %v131 = vpack.c.b16 %v129, %v128
  %vm134 = vcmask 261120
  %v136 = vsel %vm134, %v114, 0
  %138 = vmatprep.subr.bf16.mxu0 0
  %139 = vmatpush1.bf16.msra.mxu0 %v130
  %140 = vmatprep.subr.bf16.mxu0 0
  %141 = vmatpush1.bf16.msra.mxu0 %v131
  %142 = vmatprep.subr.bf16.mxu0 0
  %143 = vmatpush1.bf16.msra.mxu0 0
  %144 = vmatprep.subr.bf16.mxu0 0
  %145 = vmatpush1.bf16.msra.mxu0 0
  %146 = vmatprep.subr.bf16.mxu0 0
  %147 = vmatpush1.bf16.msra.mxu0 0
  %148 = vmatprep.subr.bf16.mxu0 0
  %149 = vmatpush1.bf16.msra.mxu0 0
  %150 = vmatprep.subr.bf16.mxu0 0
  %151 = vmatpush1.bf16.msra.mxu0 0
  %152 = vmatprep.subr.bf16.mxu0 0
  %153 = vmatpush1.bf16.msra.mxu0 0
  %154 = vmatprep.subr.bf16.mxu0 0
  %155 = vmatpush1.bf16.msra.mxu0 0
  %156 = vmatprep.subr.bf16.mxu0 0
  %157 = vmatpush1.bf16.msra.mxu0 0
  %158 = vmatprep.subr.bf16.mxu0 0
  %159 = vmatpush1.bf16.msra.mxu0 0
  %160 = vmatprep.subr.bf16.mxu0 0
  %161 = vmatpush1.bf16.msra.mxu0 0
  %162 = vmatprep.subr.bf16.mxu0 0
  %163 = vmatpush1.bf16.msra.mxu0 0
  %164 = vmatprep.subr.bf16.mxu0 0
  %165 = vmatpush1.bf16.msra.mxu0 0
  %166 = vmatprep.subr.bf16.mxu0 0
  %167 = vmatpush1.bf16.msra.mxu0 0
  %168 = vmatprep.subr.bf16.mxu0 0
  %169 = vmatpush1.bf16.msra.mxu0 0
  %170 = vmatprep.mubr.bf16.mxu0 0
  %171 = vmatmul.mubr.bf16.gmra.mrb[0].mxu0 %v136
  %v172 = vpop.f32.mrb[0].mxu0
  %v173 = vadd.f32 %v120, %v172
  %v174 = vpop.f32.mrb[0].mxu0
  %v175 = vpop.f32.mrb[0].mxu0
  %v176 = vadd.f32 %v120, %v175
  %v177 = vpop.f32.mrb[0].mxu0
  %178 = vdwg.mxu0
  %179 = vst.msk [vmem:[%s5] sm:$0xff] %vm134, %v173
  %180 = vst.msk [vmem:[%s5 + $0x8] sm:$0xff] %vm134, %v176
  // Predicated region
  $region22: #{transformer_decoder_forward.7} parent=0 // pred_check
    _
  $region23: #{transformer_decoder_forward.7} parent=0 // pred_check_branch
    %182 = sbr.rel (0) target = $region25
  $region24: #{transformer_decoder_forward.7} parent=0 // pred_region
    _
  $region25: #{transformer_decoder_forward.7} parent=0 // pred_fallthru
    _
  // Predicated region
  $region26: #{transformer_decoder_forward.7} parent=0 // pred_check
    _
  $region27: #{transformer_decoder_forward.7} parent=0 // pred_check_branch
    %184 = sbr.rel (0) target = $region29
  $region28: #{transformer_decoder_forward.7} parent=0 // pred_region
    _
  $region29: #{transformer_decoder_forward.7} parent=0 // pred_fallthru
    _

// kernel: transformer_decoder_forward.10
$region0: #{transformer_decoder_forward.10}
  #allocation0 [shape = 'u32[]', space=smem, size = 0x4, offset = 0x4, fixed_abs, tag = 'smem constant byte address 0x4 - core index']
  #allocation1 [shape = 'u32[144,128]{1,0:T(1,128)}', space=vmem, size = 0x12000, scoped, tag = 'internal scratch']
  %s0 = inlined_call_operand.vmem [shape: f32[16,32], index: 0, kind: input, shape index: {}]
  %s1 = inlined_call_operand.vmem [shape: bf16[32,64], index: 1, kind: input, shape index: {}]
  %s2 = inlined_call_operand.vmem [shape: f32[1,64], index: 2, kind: input, shape index: {}]
  %s3 = inlined_call_operand.vmem [shape: bf16[64,32], index: 3, kind: input, shape index: {}]
  %s4 = inlined_call_operand.vmem [shape: f32[1,32], index: 4, kind: input, shape index: {}]
  %s5 = inlined_call_operand.vmem [shape: f32[1,32], index: 5, kind: input, shape index: {}]
  %s6 = inlined_call_operand.vmem [shape: f32[1,32], index: 6, kind: input, shape index: {}]
  %s7 = inlined_call_operand.vmem [shape: f32[1,32], index: 7, kind: input, shape index: {}]
  %s8 = inlined_call_operand.vmem [shape: f32[1,32], index: 8, kind: input, shape index: {}]
  %s9 = inlined_call_operand.vmem [shape: f32[16,32], index: 9, kind: output, shape index: {0}]
  %s10 = inlined_call_operand.hbm [shape: f32[16,32], index: 10, kind: output, shape index: {1}]
  %11 = xla_tuple %s9, %s10
  %s12 = sld [smem:[#allocation0]]
  $region54: #{transformer_decoder_forward.10} parent=0
    _
  %s14 = ssub.s32 1, %s12
  %s15 = scalar_select 0, %s14, %s12
  $region1: #{transformer_decoder_forward.10} parent=0
    #allocation2 [shape = 'u8[8192]{0}', space=vmem, size = 0x2000, scoped, tag = 'output window, operand 1, single buffered']
    #allocation3 [shape = 's32[1]{0}', space=sflag, size = 0x4, scoped, tag = 'scoped memory for transformer_decoder_forward.10']
    %16 = vsyncpa [#allocation3], 0
    // Predicated region
    $region2: #{transformer_decoder_forward.10} parent=1 // pred_check
      _
    $region3: #{transformer_decoder_forward.10} parent=1 // pred_check_branch
      %18 = sbr.rel (0) target = $region5
    $region4: #{transformer_decoder_forward.10} parent=1 // pred_region
      _
    $region5: #{transformer_decoder_forward.10} parent=1 // pred_fallthru
      _
    // Predicated region
    $region6: #{transformer_decoder_forward.10} parent=1 // pred_check
      _
    $region7: #{transformer_decoder_forward.10} parent=1 // pred_check_branch
      %20 = sbr.rel (0) target = $region9
    $region8: #{transformer_decoder_forward.10} parent=1 // pred_region
      _
    $region9: #{transformer_decoder_forward.10} parent=1 // pred_fallthru
      _
    // Predicated region
    $region10: #{transformer_decoder_forward.10} parent=1 // pred_check
      _
    $region11: #{transformer_decoder_forward.10} parent=1 // pred_check_branch
      %22 = sbr.rel (0) target = $region13
    $region12: #{transformer_decoder_forward.10} parent=1 // pred_region
      _
    $region13: #{transformer_decoder_forward.10} parent=1 // pred_fallthru
      _
    // Predicated region
    $region14: #{transformer_decoder_forward.10} parent=1 // pred_check
      _
    $region15: #{transformer_decoder_forward.10} parent=1 // pred_check_branch
      %24 = sbr.rel (0) target = $region17
    $region16: #{transformer_decoder_forward.10} parent=1 // pred_region
      _
    $region17: #{transformer_decoder_forward.10} parent=1 // pred_fallthru
      _
    // Predicated region
    $region18: #{transformer_decoder_forward.10} parent=1 // pred_check
      _
    $region19: #{transformer_decoder_forward.10} parent=1 // pred_check_branch
      %26 = sbr.rel (0) target = $region21
    $region20: #{transformer_decoder_forward.10} parent=1 // pred_region
      _
    $region21: #{transformer_decoder_forward.10} parent=1 // pred_fallthru
      _
    // Predicated region
    $region22: #{transformer_decoder_forward.10} parent=1 // pred_check
      _
    $region23: #{transformer_decoder_forward.10} parent=1 // pred_check_branch
      %28 = sbr.rel (0) target = $region25
    $region24: #{transformer_decoder_forward.10} parent=1 // pred_region
      _
    $region25: #{transformer_decoder_forward.10} parent=1 // pred_fallthru
      _
    // Predicated region
    $region26: #{transformer_decoder_forward.10} parent=1 // pred_check
      _
    $region27: #{transformer_decoder_forward.10} parent=1 // pred_check_branch
      %30 = sbr.rel (0) target = $region29
    $region28: #{transformer_decoder_forward.10} parent=1 // pred_region
      _
    $region29: #{transformer_decoder_forward.10} parent=1 // pred_fallthru
      _
    // Predicated region
    $region30: #{transformer_decoder_forward.10} parent=1 // pred_check
      _
    $region31: #{transformer_decoder_forward.10} parent=1 // pred_check_branch
      %32 = sbr.rel (0) target = $region33
    $region32: #{transformer_decoder_forward.10} parent=1 // pred_region
      _
    $region33: #{transformer_decoder_forward.10} parent=1 // pred_fallthru
      _
    // Predicated region
    $region34: #{transformer_decoder_forward.10} parent=1 // pred_check
      _
    $region35: #{transformer_decoder_forward.10} parent=1 // pred_check_branch
      %34 = sbr.rel (0) target = $region37
    $region36: #{transformer_decoder_forward.10} parent=1 // pred_region
      _
    $region37: #{transformer_decoder_forward.10} parent=1 // pred_fallthru
      _
    %v36 = vld [vmem:[%s0] sm:$0xff]
    %v37 = vld [vmem:[%s0 + $0x8] sm:$0xff]
    %v38 = vld [vmem:[%s1] sm:$0xf]
    %v39 = vld [vmem:[%s1 + $0x4] sm:$0xf]
    %v40 = vld [vmem:[%s1 + $0x8] sm:$0xf]
    %v41 = vld [vmem:[%s1 + $0xc] sm:$0xf]
    %v42 = vpack.c.bf16 %v37, %v36
    %v43 = vld [vmem:[%s2] sm:$0x1]
    %v45 = vlaneseq
    %v46 = vshrl.u32 %v45, 7
    %v47 = vsub.s32 0, %v46
    %v48 = vrot.slane %v43, %v47
    %v54 = vunpack.c.l.b16 %v38
    %v55 = vunpack.c.l.b16 %v39
    %v56 = vunpack.c.l.b16 %v40
    %v57 = vunpack.c.l.b16 %v41
    %v58 = vpack.c.b16 %v55, %v54
    %v59 = vpack.c.b16 %v57, %v56
    %vm62 = vcmask 261120
    %v64 = vsel %vm62, %v42, 0
    %66 = vmatprep.subr.bf16.mxu0 0
    %67 = vmatpush1.bf16.msra.mxu0 %v58
    %68 = vmatprep.subr.bf16.mxu0 0
    %69 = vmatpush1.bf16.msra.mxu0 %v59
    %70 = vmatprep.subr.bf16.mxu0 0
    %71 = vmatpush1.bf16.msra.mxu0 0
    %72 = vmatprep.subr.bf16.mxu0 0
    %73 = vmatpush1.bf16.msra.mxu0 0
    %74 = vmatprep.subr.bf16.mxu0 0
    %75 = vmatpush1.bf16.msra.mxu0 0
    %76 = vmatprep.subr.bf16.mxu0 0
    %77 = vmatpush1.bf16.msra.mxu0 0
    %78 = vmatprep.subr.bf16.mxu0 0
    %79 = vmatpush1.bf16.msra.mxu0 0
    %80 = vmatprep.subr.bf16.mxu0 0
    %81 = vmatpush1.bf16.msra.mxu0 0
    %82 = vmatprep.subr.bf16.mxu0 0
    %83 = vmatpush1.bf16.msra.mxu0 0
    %84 = vmatprep.subr.bf16.mxu0 0
    %85 = vmatpush1.bf16.msra.mxu0 0
    %86 = vmatprep.subr.bf16.mxu0 0
    %87 = vmatpush1.bf16.msra.mxu0 0
    %88 = vmatprep.subr.bf16.mxu0 0
    %89 = vmatpush1.bf16.msra.mxu0 0
    %90 = vmatprep.subr.bf16.mxu0 0
    %91 = vmatpush1.bf16.msra.mxu0 0
    %92 = vmatprep.subr.bf16.mxu0 0
    %93 = vmatpush1.bf16.msra.mxu0 0
    %94 = vmatprep.subr.bf16.mxu0 0
    %95 = vmatpush1.bf16.msra.mxu0 0
    %96 = vmatprep.subr.bf16.mxu0 0
    %97 = vmatpush1.bf16.msra.mxu0 0
    %98 = vmatprep.mubr.bf16.mxu0 0
    %99 = vmatmul.mubr.bf16.gmra.mrb[0].mxu0 %v64
    %v100 = vpop.f32.mrb[0].mxu0
    %v101 = vadd.f32 %v48, %v100
    %v102 = vpop.f32.mrb[0].mxu0
    %v103 = vpop.f32.mrb[0].mxu0
    %v104 = vadd.f32 %v48, %v103
    %v105 = vpop.f32.mrb[0].mxu0
    %106 = vdwg.mxu0
    %v107 = vmax.f32 %v101, 0.0
    %v108 = vmax.f32 %v104, 0.0
    %v109 = vld [vmem:[%s3] sm:$0xf]
    %v110 = vld [vmem:[%s3 + $0x4] sm:$0xf]
    %v111 = vld [vmem:[%s3 + $0x8] sm:$0xf]
    %v112 = vld [vmem:[%s3 + $0xc] sm:$0xf]
    %v113 = vld [vmem:[%s3 + $0x10] sm:$0xf]
    %v114 = vld [vmem:[%s3 + $0x14] sm:$0xf]
    %v115 = vld [vmem:[%s3 + $0x18] sm:$0xf]
    %v116 = vld [vmem:[%s3 + $0x1c] sm:$0xf]
    %v117 = vpack.c.bf16 %v108, %v107
    %v118 = vld [vmem:[%s4] sm:$0x1]
    %v120 = vlaneseq
    %v121 = vshrl.u32 %v120, 7
    %v122 = vsub.s32 0, %v121
    %v123 = vrot.slane %v118, %v122
    %v133 = vunpack.c.l.b16 %v109
    %v134 = vunpack.c.l.b16 %v110
    %v135 = vunpack.c.l.b16 %v111
    %v136 = vunpack.c.l.b16 %v112
    %v137 = vunpack.c.l.b16 %v113
    %v138 = vunpack.c.l.b16 %v114
    %v139 = vunpack.c.l.b16 %v115
    %v140 = vunpack.c.l.b16 %v116
    %v141 = vpack.c.b16 %v134, %v133
    %v142 = vpack.c.b16 %v136, %v135
    %v143 = vpack.c.b16 %v138, %v137
    %v144 = vpack.c.b16 %v140, %v139
    %vm149 = vcmask 523264
    %v151 = vsel %vm149, %v117, 0
    %153 = vmatprep.subr.bf16.mxu0 0
    %154 = vmatpush1.bf16.msra.mxu0 %v141
    %155 = vmatprep.subr.bf16.mxu0 0
    %156 = vmatpush1.bf16.msra.mxu0 %v142
    %157 = vmatprep.subr.bf16.mxu0 0
    %158 = vmatpush1.bf16.msra.mxu0 %v143
    %159 = vmatprep.subr.bf16.mxu0 0
    %160 = vmatpush1.bf16.msra.mxu0 %v144
    %161 = vmatprep.subr.bf16.mxu0 0
    %162 = vmatpush1.bf16.msra.mxu0 0
    %163 = vmatprep.subr.bf16.mxu0 0
    %164 = vmatpush1.bf16.msra.mxu0 0
    %165 = vmatprep.subr.bf16.mxu0 0
    %166 = vmatpush1.bf16.msra.mxu0 0
    %167 = vmatprep.subr.bf16.mxu0 0
    %168 = vmatpush1.bf16.msra.mxu0 0
    %169 = vmatprep.subr.bf16.mxu0 0
    %170 = vmatpush1.bf16.msra.mxu0 0
    %171 = vmatprep.subr.bf16.mxu0 0
    %172 = vmatpush1.bf16.msra.mxu0 0
    %173 = vmatprep.subr.bf16.mxu0 0
    %174 = vmatpush1.bf16.msra.mxu0 0
    %175 = vmatprep.subr.bf16.mxu0 0
    %176 = vmatpush1.bf16.msra.mxu0 0
    %177 = vmatprep.subr.bf16.mxu0 0
    %178 = vmatpush1.bf16.msra.mxu0 0
    %179 = vmatprep.subr.bf16.mxu0 0
    %180 = vmatpush1.bf16.msra.mxu0 0
    %181 = vmatprep.subr.bf16.mxu0 0
    %182 = vmatpush1.bf16.msra.mxu0 0
    %183 = vmatprep.subr.bf16.mxu0 0
    %184 = vmatpush1.bf16.msra.mxu0 0
    %185 = vmatprep.mubr.bf16.mxu0 0
    %186 = vmatmul.mubr.bf16.gmra.mrb[0].mxu0 %v151
    %v187 = vpop.f32.mrb[0].mxu0
    %v188 = vadd.f32 %v123, %v187
    %v189 = vpop.f32.mrb[0].mxu0
    %v190 = vpop.f32.mrb[0].mxu0
    %v191 = vadd.f32 %v123, %v190
    %v192 = vpop.f32.mrb[0].mxu0
    %193 = vdwg.mxu0
    %v194 = vadd.f32 %v36, %v188
    %v195 = vadd.f32 %v37, %v191
    %v196 = vld [vmem:[%s5] sm:$0x1]
    %v197 = vld [vmem:[%s6] sm:$0x1]
    %v198 = vsel %vm62, %v194, 0.0
    %199 = vadd.xlane.f32.xlu0 %v198
    %v200 = vpop.xlane.xlu0 %199
    %v201 = vsel %vm62, %v195, 0.0
    %202 = vadd.xlane.f32.xlu0 %v201
    %v203 = vpop.xlane.xlu0 %202
    %v204 = vrcp.pop 32.0
    %v205 = vmul.f32 %v200, %v204
    %v206 = vmul.f32 %v203, %v204
    %v207 = vsub.f32 %v194, %v205
    %v208 = vsub.f32 %v195, %v206
    %v209 = vmul.f32 %v207, %v207
    %v210 = vmul.f32 %v208, %v208
    %v211 = vsel %vm62, %v209, 0.0
    %212 = vadd.xlane.f32.xlu0 %v211
    %v213 = vpop.xlane.xlu0 %212
    %v214 = vsel %vm62, %v210, 0.0
    %215 = vadd.xlane.f32.xlu0 %v214
    %v216 = vpop.xlane.xlu0 %215
    %v217 = vmul.f32 %v213, %v204
    %v218 = vmul.f32 %v216, %v204
    %v219 = vadd.f32 %v217, 1e-05
    %v220 = vadd.f32 %v218, 1e-05
    %v221 = vrsqrt.pop %v219
    %v222 = vrsqrt.pop %v220
    %v223 = vmul.f32 %v207, %v221
    %v224 = vmul.f32 %v208, %v222
    %v226 = vlaneseq
    %v227 = vshrl.u32 %v226, 7
    %v228 = vsub.s32 0, %v227
    %v229 = vrot.slane %v196, %v228
    %v231 = vmul.f32 %v223, %v229
    %v232 = vmul.f32 %v224, %v229
    %v234 = vlaneseq
    %v235 = vshrl.u32 %v234, 7
    %v236 = vsub.s32 0, %v235
    %v237 = vrot.slane %v197, %v236
    %v239 = vadd.f32 %v231, %v237
    %v240 = vadd.f32 %v232, %v237
    %241 = vst.msk [vmem:[%s9] sm:$0xff] %vm62, %v239
    %242 = vst.msk [vmem:[%s9 + $0x8] sm:$0xff] %vm62, %v240
    %v243 = vld [vmem:[%s7] sm:$0x1]
    %v244 = vld [vmem:[%s8] sm:$0x1]
    %v245 = vsel %vm62, %v239, 0.0
    %246 = vadd.xlane.f32.xlu0 %v245
    %v247 = vpop.xlane.xlu0 %246
    %v248 = vsel %vm62, %v240, 0.0
    %249 = vadd.xlane.f32.xlu0 %v248
    %v250 = vpop.xlane.xlu0 %249
    %v251 = vmul.f32 %v247, %v204
    %v252 = vmul.f32 %v250, %v204
    %v253 = vsub.f32 %v239, %v251
    %v254 = vsub.f32 %v240, %v252
    %v255 = vmul.f32 %v253, %v253
    %v256 = vmul.f32 %v254, %v254
    %v257 = vsel %vm62, %v255, 0.0
    %258 = vadd.xlane.f32.xlu0 %v257
    %v259 = vpop.xlane.xlu0 %258
    %v260 = vsel %vm62, %v256, 0.0
    %261 = vadd.xlane.f32.xlu0 %v260
    %v262 = vpop.xlane.xlu0 %261
    %v263 = vmul.f32 %v259, %v204
    %v264 = vmul.f32 %v262, %v204
    %v265 = vadd.f32 %v263, 1e-05
    %v266 = vadd.f32 %v264, 1e-05
    %v267 = vrsqrt.pop %v265
    %v268 = vrsqrt.pop %v266
    %v269 = vmul.f32 %v253, %v267
    %v270 = vmul.f32 %v254, %v268
    %v272 = vlaneseq
    %v273 = vshrl.u32 %v272, 7
    %v274 = vsub.s32 0, %v273
    %v275 = vrot.slane %v243, %v274
    %v277 = vmul.f32 %v269, %v275
    %v278 = vmul.f32 %v270, %v275
    %v280 = vlaneseq
    %v281 = vshrl.u32 %v280, 7
    %v282 = vsub.s32 0, %v281
    %v283 = vrot.slane %v244, %v282
    %v285 = vadd.f32 %v277, %v283
    %v286 = vadd.f32 %v278, %v283
    %287 = vst.msk [vmem:[#allocation2] sm:$0xff] %vm62, %v285
    %288 = vst.msk [vmem:[#allocation2 + $0x8] sm:$0xff] %vm62, %v286
    // Predicated region
    $region38: #{transformer_decoder_forward.10} parent=1 // pred_check
      _
    $region39: #{transformer_decoder_forward.10} parent=1 // pred_check_branch
      %290 = sbr.rel (0) target = $region41
    $region40: #{transformer_decoder_forward.10} parent=1 // pred_region
      _
    $region41: #{transformer_decoder_forward.10} parent=1 // pred_fallthru
      _
    // Predicated region
    $region42: #{transformer_decoder_forward.10} parent=1 // pred_check
      _
    $region43: #{transformer_decoder_forward.10} parent=1 // pred_check_branch
      %292 = sbr.rel (0) target = $region45
    $region44: #{transformer_decoder_forward.10} parent=1 // pred_region
      %s294 = ssub.s32 256, 256
      %295 = vsyncadd [#allocation3], %s294
      %s296 = sshll.u32 [#allocation2], 4
      %s297 = int_to_ptr.vmem [resolvable:$true] %s296
      %302 = dma.vmem_to_hbm [thread:$0]  %s297, 256, %s10, [#allocation3], 128, 128, 8
    $region45: #{transformer_decoder_forward.10} parent=1 // pred_fallthru
      _
    // Predicated region
    $region46: #{transformer_decoder_forward.10} parent=1 // pred_check
      _
    $region47: #{transformer_decoder_forward.10} parent=1 // pred_check_branch
      %304 = sbr.rel (0) target = $region49
    $region48: #{transformer_decoder_forward.10} parent=1 // pred_region
      _
    $region49: #{transformer_decoder_forward.10} parent=1 // pred_fallthru
      _
    // Predicated region
    $region50: #{transformer_decoder_forward.10} parent=1 // pred_check
      _
    $region51: #{transformer_decoder_forward.10} parent=1 // pred_check_branch
      %306 = sbr.rel (0) target = $region53
    $region52: #{transformer_decoder_forward.10} parent=1 // pred_region
      %307 = dma.done [#allocation3], 256
    $region53: #{transformer_decoder_forward.10} parent=1 // pred_fallthru
      _
    %308 = vsyncpa [#allocation3], 1

// kernel: transformer_decoder_forward.8
$region0: #{transformer_decoder_forward.8}
  #allocation0 [shape = 'u32[]', space=smem, size = 0x4, offset = 0x4, fixed_abs, tag = 'smem constant byte address 0x4 - core index']
  #allocation1 [shape = 'u32[144,128]{1,0:T(1,128)}', space=vmem, size = 0x12000, scoped, tag = 'internal scratch']
  %s0 = inlined_call_operand.vmem [shape: f32[2,8,32], index: 0, kind: input, shape index: {}]
  %s1 = inlined_call_operand.vmem [shape: f32[2,8,32], index: 1, kind: input, shape index: {}]
  %s2 = inlined_call_operand.vmem [shape: bf16[32,64], index: 2, kind: input, shape index: {}]
  %s3 = inlined_call_operand.vmem [shape: f32[1,64], index: 3, kind: input, shape index: {}]
  %s4 = inlined_call_operand.vmem [shape: bf16[32,32], index: 4, kind: input, shape index: {}]
  %s5 = inlined_call_operand.vmem [shape: f32[1,32], index: 5, kind: input, shape index: {}]
  %s6 = inlined_call_operand.vmem [shape: bf16[32,32], index: 6, kind: input, shape index: {}]
  %s7 = inlined_call_operand.vmem [shape: f32[1,32], index: 7, kind: input, shape index: {}]
  %s8 = inlined_call_operand.vmem [shape: f32[1,32], index: 8, kind: input, shape index: {}]
  %s9 = inlined_call_operand.vmem [shape: f32[1,32], index: 9, kind: input, shape index: {}]
  %s10 = inlined_call_operand.vmem [shape: f32[2,8,32], index: 10, kind: output, shape index: {}]
  %s11 = sld [smem:[#allocation0]]
  $region73: #{transformer_decoder_forward.8} parent=0
    _
  %s13 = ssub.s32 1, %s11
  %s14 = scalar_select 0, %s13, %s11
  loop: start=0, step=1, limit=4
  $region2: #{transformer_decoder_forward.8} parent=0 // loop_pre_header
    _
  $region3: #{transformer_decoder_forward.8} parent=0 // loop_header
    %s16 = sphi 0, %s20
    %p17 = scmp.ge.s32.totalorder %s16, 4
    %s26 = sphi 0, %s28
    %s29 = sphi 0, %s26
    %s30 = sphi 0, %s29
    %s46 = sphi 0, %s30
    %s52 = sphi 0, %s54
    %s55 = sphi 0, %s52
    %s56 = sphi 0, %s55
    %s72 = sphi 0, %s56
    %s76 = sphi 0, %s76
    %s78 = sphi 0, %s76
    %s79 = sphi 0, %s78
    %s93 = sphi 0, %s79
    %s97 = sphi 0, %s97
    %s99 = sphi 0, %s97
    %s100 = sphi 0, %s99
    %s114 = sphi 0, %s100
    %s118 = sphi 0, %s118
    %s120 = sphi 0, %s118
    %s121 = sphi 0, %s120
    %s135 = sphi 0, %s121
    %s139 = sphi 0, %s139
    %s141 = sphi 0, %s139
    %s142 = sphi 0, %s141
    %s156 = sphi 0, %s142
    %s160 = sphi 0, %s160
    %s162 = sphi 0, %s160
    %s163 = sphi 0, %s162
    %s177 = sphi 0, %s163
    %s181 = sphi 0, %s181
    %s183 = sphi 0, %s181
    %s184 = sphi 0, %s183
    %s198 = sphi 0, %s184
    %s202 = sphi 0, %s202
    %s204 = sphi 0, %s202
    %s205 = sphi 0, %s204
    %s219 = sphi 0, %s205
    %s223 = sphi 0, %s223
    %s225 = sphi 0, %s223
    %s226 = sphi 0, %s225
    %s240 = sphi 0, %s226
    %s246 = sphi 0, %s248
    %s249 = sphi 0, %s246
    %s250 = sphi 0, %s249
    %s266 = sphi 0, %s250
  $region4: #{transformer_decoder_forward.8} parent=0 // loop_header_branch
    %19 = sbr.rel (%p17) target = $region8
  $region5: #{transformer_decoder_forward.8} parent=0 // loop_body
    %s21 = ssub.s32 %s16, 1
    %s22 = ssub.s32 %s16, 2
    %s23 = sadd.s32 %s16, 1
    %s24 = ssub.s32 %s16, %s23
    %p25 = scmp.eq.s32.totalorder %s24, 0
    %s27 = sadd.s32 %s26, 1
    %s28 = scalar_select %p25, %s26, %s27
    %p31 = pneg %p25
    %p32 = scmp.eq.s32.totalorder %s16, 1
    %p33 = por %p31, %p32
    %p34 = scmp.ne.s32.totalorder %s26, %s29
    %p35 = scmp.eq.s32.totalorder %s16, 0
    %p36 = por %p34, %p35
    %p37 = scmp.ne.s32.totalorder %s26, %s29
    %p38 = scmp.eq.s32.totalorder %s21, 1
    %p39 = por %p37, %p38
    %p40 = scmp.ne.s32.totalorder %s29, %s30
    %p41 = scmp.eq.s32.totalorder %s21, 0
    %p42 = por %p40, %p41
    %p43 = scmp.ne.s32.totalorder %s29, %s30
    %p44 = scmp.eq.s32.totalorder %s22, 1
    %p45 = por %p43, %p44
    %p47 = scmp.ne.s32.totalorder %s30, %s46
    %p48 = scmp.eq.s32.totalorder %s22, 0
    %p49 = por %p47, %p48
    %s50 = ssub.s32 %s16, %s23
    %p51 = scmp.eq.s32.totalorder %s50, 0
    %s53 = sadd.s32 %s52, 1
    %s54 = scalar_select %p51, %s52, %s53
    %p57 = pneg %p51
    %p58 = scmp.eq.s32.totalorder %s16, 1
    %p59 = por %p57, %p58
    %p60 = scmp.ne.s32.totalorder %s52, %s55
    %p61 = scmp.eq.s32.totalorder %s16, 0
    %p62 = por %p60, %p61
    %p63 = scmp.ne.s32.totalorder %s52, %s55
    %p64 = scmp.eq.s32.totalorder %s21, 1
    %p65 = por %p63, %p64
    %p66 = scmp.ne.s32.totalorder %s55, %s56
    %p67 = scmp.eq.s32.totalorder %s21, 0
    %p68 = por %p66, %p67
    %p69 = scmp.ne.s32.totalorder %s55, %s56
    %p70 = scmp.eq.s32.totalorder %s22, 1
    %p71 = por %p69, %p70
    %p73 = scmp.ne.s32.totalorder %s56, %s72
    %p74 = scmp.eq.s32.totalorder %s22, 0
    %p75 = por %p73, %p74
    %s77 = sadd.s32 %s76, 1
    %p80 = scmp.eq.s32.totalorder %s16, 1
    %p81 = scmp.ne.s32.totalorder %s76, %s78
    %p82 = scmp.eq.s32.totalorder %s16, 0
    %p83 = por %p81, %p82
    %p84 = scmp.ne.s32.totalorder %s76, %s78
    %p85 = scmp.eq.s32.totalorder %s21, 1
    %p86 = por %p84, %p85
    %p87 = scmp.ne.s32.totalorder %s78, %s79
    %p88 = scmp.eq.s32.totalorder %s21, 0
    %p89 = por %p87, %p88
    %p90 = scmp.ne.s32.totalorder %s78, %s79
    %p91 = scmp.eq.s32.totalorder %s22, 1
    %p92 = por %p90, %p91
    %p94 = scmp.ne.s32.totalorder %s79, %s93
    %p95 = scmp.eq.s32.totalorder %s22, 0
    %p96 = por %p94, %p95
    %s98 = sadd.s32 %s97, 1
    %p101 = scmp.eq.s32.totalorder %s16, 1
    %p102 = scmp.ne.s32.totalorder %s97, %s99
    %p103 = scmp.eq.s32.totalorder %s16, 0
    %p104 = por %p102, %p103
    %p105 = scmp.ne.s32.totalorder %s97, %s99
    %p106 = scmp.eq.s32.totalorder %s21, 1
    %p107 = por %p105, %p106
    %p108 = scmp.ne.s32.totalorder %s99, %s100
    %p109 = scmp.eq.s32.totalorder %s21, 0
    %p110 = por %p108, %p109
    %p111 = scmp.ne.s32.totalorder %s99, %s100
    %p112 = scmp.eq.s32.totalorder %s22, 1
    %p113 = por %p111, %p112
    %p115 = scmp.ne.s32.totalorder %s100, %s114
    %p116 = scmp.eq.s32.totalorder %s22, 0
    %p117 = por %p115, %p116
    %s119 = sadd.s32 %s118, 1
    %p122 = scmp.eq.s32.totalorder %s16, 1
    %p123 = scmp.ne.s32.totalorder %s118, %s120
    %p124 = scmp.eq.s32.totalorder %s16, 0
    %p125 = por %p123, %p124
    %p126 = scmp.ne.s32.totalorder %s118, %s120
    %p127 = scmp.eq.s32.totalorder %s21, 1
    %p128 = por %p126, %p127
    %p129 = scmp.ne.s32.totalorder %s120, %s121
    %p130 = scmp.eq.s32.totalorder %s21, 0
    %p131 = por %p129, %p130
    %p132 = scmp.ne.s32.totalorder %s120, %s121
    %p133 = scmp.eq.s32.totalorder %s22, 1
    %p134 = por %p132, %p133
    %p136 = scmp.ne.s32.totalorder %s121, %s135
    %p137 = scmp.eq.s32.totalorder %s22, 0
    %p138 = por %p136, %p137
    %s140 = sadd.s32 %s139, 1
    %p143 = scmp.eq.s32.totalorder %s16, 1
    %p144 = scmp.ne.s32.totalorder %s139, %s141
    %p145 = scmp.eq.s32.totalorder %s16, 0
    %p146 = por %p144, %p145
    %p147 = scmp.ne.s32.totalorder %s139, %s141
    %p148 = scmp.eq.s32.totalorder %s21, 1
    %p149 = por %p147, %p148
    %p150 = scmp.ne.s32.totalorder %s141, %s142
    %p151 = scmp.eq.s32.totalorder %s21, 0
    %p152 = por %p150, %p151
    %p153 = scmp.ne.s32.totalorder %s141, %s142
    %p154 = scmp.eq.s32.totalorder %s22, 1
    %p155 = por %p153, %p154
    %p157 = scmp.ne.s32.totalorder %s142, %s156
    %p158 = scmp.eq.s32.totalorder %s22, 0
    %p159 = por %p157, %p158
    %s161 = sadd.s32 %s160, 1
    %p164 = scmp.eq.s32.totalorder %s16, 1
    %p165 = scmp.ne.s32.totalorder %s160, %s162
    %p166 = scmp.eq.s32.totalorder %s16, 0
    %p167 = por %p165, %p166
    %p168 = scmp.ne.s32.totalorder %s160, %s162
    %p169 = scmp.eq.s32.totalorder %s21, 1
    %p170 = por %p168, %p169
    %p171 = scmp.ne.s32.totalorder %s162, %s163
    %p172 = scmp.eq.s32.totalorder %s21, 0
    %p173 = por %p171, %p172
    %p174 = scmp.ne.s32.totalorder %s162, %s163
    %p175 = scmp.eq.s32.totalorder %s22, 1
    %p176 = por %p174, %p175
    %p178 = scmp.ne.s32.totalorder %s163, %s177
    %p179 = scmp.eq.s32.totalorder %s22, 0
    %p180 = por %p178, %p179
    %s182 = sadd.s32 %s181, 1
    %p185 = scmp.eq.s32.totalorder %s16, 1
    %p186 = scmp.ne.s32.totalorder %s181, %s183
    %p187 = scmp.eq.s32.totalorder %s16, 0
    %p188 = por %p186, %p187
    %p189 = scmp.ne.s32.totalorder %s181, %s183
    %p190 = scmp.eq.s32.totalorder %s21, 1
    %p191 = por %p189, %p190
    %p192 = scmp.ne.s32.totalorder %s183, %s184
    %p193 = scmp.eq.s32.totalorder %s21, 0
    %p194 = por %p192, %p193
    %p195 = scmp.ne.s32.totalorder %s183, %s184
    %p196 = scmp.eq.s32.totalorder %s22, 1
    %p197 = por %p195, %p196
    %p199 = scmp.ne.s32.totalorder %s184, %s198
    %p200 = scmp.eq.s32.totalorder %s22, 0
    %p201 = por %p199, %p200
    %s203 = sadd.s32 %s202, 1
    %p206 = scmp.eq.s32.totalorder %s16, 1
    %p207 = scmp.ne.s32.totalorder %s202, %s204
    %p208 = scmp.eq.s32.totalorder %s16, 0
    %p209 = por %p207, %p208
    %p210 = scmp.ne.s32.totalorder %s202, %s204
    %p211 = scmp.eq.s32.totalorder %s21, 1
    %p212 = por %p210, %p211
    %p213 = scmp.ne.s32.totalorder %s204, %s205
    %p214 = scmp.eq.s32.totalorder %s21, 0
    %p215 = por %p213, %p214
    %p216 = scmp.ne.s32.totalorder %s204, %s205
    %p217 = scmp.eq.s32.totalorder %s22, 1
    %p218 = por %p216, %p217
    %p220 = scmp.ne.s32.totalorder %s205, %s219
    %p221 = scmp.eq.s32.totalorder %s22, 0
    %p222 = por %p220, %p221
    %s224 = sadd.s32 %s223, 1
    %p227 = scmp.eq.s32.totalorder %s16, 1
    %p228 = scmp.ne.s32.totalorder %s223, %s225
    %p229 = scmp.eq.s32.totalorder %s16, 0
    %p230 = por %p228, %p229
    %p231 = scmp.ne.s32.totalorder %s223, %s225
    %p232 = scmp.eq.s32.totalorder %s21, 1
    %p233 = por %p231, %p232
    %p234 = scmp.ne.s32.totalorder %s225, %s226
    %p235 = scmp.eq.s32.totalorder %s21, 0
    %p236 = por %p234, %p235
    %p237 = scmp.ne.s32.totalorder %s225, %s226
    %p238 = scmp.eq.s32.totalorder %s22, 1
    %p239 = por %p237, %p238
    %p241 = scmp.ne.s32.totalorder %s226, %s240
    %p242 = scmp.eq.s32.totalorder %s22, 0
    %p243 = por %p241, %p242
    %s244 = ssub.s32 %s16, %s23
    %p245 = scmp.eq.s32.totalorder %s244, 0
    %s247 = sadd.s32 %s246, 1
    %s248 = scalar_select %p245, %s246, %s247
    %p251 = pneg %p245
    %p252 = scmp.eq.s32.totalorder %s16, 1
    %p253 = por %p251, %p252
    %p254 = scmp.ne.s32.totalorder %s246, %s249
    %p255 = scmp.eq.s32.totalorder %s16, 0
    %p256 = por %p254, %p255
    %p257 = scmp.ne.s32.totalorder %s246, %s249
    %p258 = scmp.eq.s32.totalorder %s21, 1
    %p259 = por %p257, %p258
    %p260 = scmp.ne.s32.totalorder %s249, %s250
    %p261 = scmp.eq.s32.totalorder %s21, 0
    %p262 = por %p260, %p261
    %p263 = scmp.ne.s32.totalorder %s249, %s250
    %p264 = scmp.eq.s32.totalorder %s22, 1
    %p265 = por %p263, %p264
    %p267 = scmp.ne.s32.totalorder %s250, %s266
    %p268 = scmp.eq.s32.totalorder %s22, 0
    %p269 = por %p267, %p268
    %p270 = scmp.le.s32.totalorder 1, %s16
    %p271 = scmp.lt.s32.totalorder %s16, 3
    %p272 = pnand %p270, %p271
    %p273 = pneg %p272
    // Predicated region
    $region9: #{transformer_decoder_forward.8} parent=5 // pred_check
      _
    $region10: #{transformer_decoder_forward.8} parent=5 // pred_check_branch
      %275 = sbr.rel (%p272) target = $region12
    $region11: #{transformer_decoder_forward.8} parent=5 // pred_region
      %s276 = ssub.s32 %s16, 1
      // Predicated region
      $region13: #{transformer_decoder_forward.8} parent=11 // pred_check
        %p277 = pneg %p89
      $region14: #{transformer_decoder_forward.8} parent=11 // pred_check_branch
        %279 = sbr.rel (%p277) target = $region16
      $region15: #{transformer_decoder_forward.8} parent=11 // pred_region
        _
      $region16: #{transformer_decoder_forward.8} parent=11 // pred_fallthru
        _
      // Predicated region
      $region17: #{transformer_decoder_forward.8} parent=11 // pred_check
        %p280 = pneg %p110
      $region18: #{transformer_decoder_forward.8} parent=11 // pred_check_branch
        %282 = sbr.rel (%p280) target = $region20
      $region19: #{transformer_decoder_forward.8} parent=11 // pred_region
        _
      $region20: #{transformer_decoder_forward.8} parent=11 // pred_fallthru
        _
      // Predicated region
      $region21: #{transformer_decoder_forward.8} parent=11 // pred_check
        %p283 = pneg %p131
      $region22: #{transformer_decoder_forward.8} parent=11 // pred_check_branch
        %285 = sbr.rel (%p283) target = $region24
      $region23: #{transformer_decoder_forward.8} parent=11 // pred_region
        _
      $region24: #{transformer_decoder_forward.8} parent=11 // pred_fallthru
        _
      // Predicated region
      $region25: #{transformer_decoder_forward.8} parent=11 // pred_check
        %p286 = pneg %p152
      $region26: #{transformer_decoder_forward.8} parent=11 // pred_check_branch
        %288 = sbr.rel (%p286) target = $region28
      $region27: #{transformer_decoder_forward.8} parent=11 // pred_region
        _
      $region28: #{transformer_decoder_forward.8} parent=11 // pred_fallthru
        _
      // Predicated region
      $region29: #{transformer_decoder_forward.8} parent=11 // pred_check
        %p289 = pneg %p173
      $region30: #{transformer_decoder_forward.8} parent=11 // pred_check_branch
        %291 = sbr.rel (%p289) target = $region32
      $region31: #{transformer_decoder_forward.8} parent=11 // pred_region
        _
      $region32: #{transformer_decoder_forward.8} parent=11 // pred_fallthru
        _
      // Predicated region
      $region33: #{transformer_decoder_forward.8} parent=11 // pred_check
        %p292 = pneg %p194
      $region34: #{transformer_decoder_forward.8} parent=11 // pred_check_branch
        %294 = sbr.rel (%p292) target = $region36
      $region35: #{transformer_decoder_forward.8} parent=11 // pred_region
        _
      $region36: #{transformer_decoder_forward.8} parent=11 // pred_fallthru
        _
      // Predicated region
      $region37: #{transformer_decoder_forward.8} parent=11 // pred_check
        %p295 = pneg %p215
      $region38: #{transformer_decoder_forward.8} parent=11 // pred_check_branch
        %297 = sbr.rel (%p295) target = $region40
      $region39: #{transformer_decoder_forward.8} parent=11 // pred_region
        _
      $region40: #{transformer_decoder_forward.8} parent=11 // pred_fallthru
        _
      // Predicated region
      $region41: #{transformer_decoder_forward.8} parent=11 // pred_check
        %p298 = pneg %p236
      $region42: #{transformer_decoder_forward.8} parent=11 // pred_check_branch
        %300 = sbr.rel (%p298) target = $region44
      $region43: #{transformer_decoder_forward.8} parent=11 // pred_region
        _
      $region44: #{transformer_decoder_forward.8} parent=11 // pred_fallthru
        _
    $region12: #{transformer_decoder_forward.8} parent=5 // pred_fallthru
      _
    %p301 = scmp.lt.s32.totalorder %s16, 2
    // Predicated region
    $region45: #{transformer_decoder_forward.8} parent=5 // pred_check
      %p302 = pneg %p301
    $region46: #{transformer_decoder_forward.8} parent=5 // pred_check_branch
      %304 = sbr.rel (%p302) target = $region48
    $region47: #{transformer_decoder_forward.8} parent=5 // pred_region
      // Predicated region
      $region49: #{transformer_decoder_forward.8} parent=47 // pred_check
        %p305 = pneg %p36
      $region50: #{transformer_decoder_forward.8} parent=47 // pred_check_branch
        %307 = sbr.rel (%p305) target = $region52
      $region51: #{transformer_decoder_forward.8} parent=47 // pred_region
        %p308 = scmp.lt.s32.totalorder %s16, 1
        %s309 = scalar_select %p308, %s16, 1
        %s310 = smul.addr %s309, 8
        %s311 = scalar_lea.vmem %s0, %s310
      $region52: #{transformer_decoder_forward.8} parent=47 // pred_fallthru
        _
      // Predicated region
      $region53: #{transformer_decoder_forward.8} parent=47 // pred_check
        %p312 = pneg %p62
      $region54: #{transformer_decoder_forward.8} parent=47 // pred_check_branch
        %314 = sbr.rel (%p312) target = $region56
      $region55: #{transformer_decoder_forward.8} parent=47 // pred_region
        %p315 = scmp.lt.s32.totalorder %s16, 1
        %s316 = scalar_select %p315, %s16, 1
        %s317 = smul.addr %s316, 8
        %s318 = scalar_lea.vmem %s1, %s317
      $region56: #{transformer_decoder_forward.8} parent=47 // pred_fallthru
        _
    $region48: #{transformer_decoder_forward.8} parent=5 // pred_fallthru
      _
    %p319 = scmp.le.s32.totalorder 1, %s16
    %p320 = scmp.lt.s32.totalorder %s16, 3
    %p321 = pnand %p319, %p320
    %p322 = pneg %p321
    // Predicated region
    $region57: #{transformer_decoder_forward.8} parent=5 // pred_check
      _
    $region58: #{transformer_decoder_forward.8} parent=5 // pred_check_branch
      %324 = sbr.rel (%p321) target = $region60
    $region59: #{transformer_decoder_forward.8} parent=5 // pred_region
      %s325 = ssub.s32 %s16, 1
      %p326 = scmp.lt.s32.totalorder %s21, 1
      %s327 = scalar_select %p326, %s21, 1
      %s328 = smul.addr %s327, 8
      %s329 = scalar_lea.vmem %s0, %s328
      %p330 = pneg %p42
      %p331 = pneg %p39
      %p332 = scmp.lt.s32.totalorder %s21, 1
      %s333 = scalar_select %p332, %s21, 1
      %s334 = smul.addr %s333, 8
      %s335 = scalar_lea.vmem %s1, %s334
      %p336 = pneg %p68
      %p337 = pneg %p65
      %p338 = pneg %p89
      %p339 = pneg %p86
      %p340 = pneg %p110
      %p341 = pneg %p107
      %p342 = pneg %p131
      %p343 = pneg %p128
      %p344 = pneg %p152
      %p345 = pneg %p149
      %p346 = pneg %p173
      %p347 = pneg %p170
      %p348 = pneg %p194
      %p349 = pneg %p191
      %p350 = pneg %p215
      %p351 = pneg %p212
      %p352 = pneg %p236
      %p353 = pneg %p233
      %p354 = pneg %p262
      %p355 = pneg %p259
      %p356 = scmp.lt.s32.totalorder %s21, 1
      %s357 = scalar_select %p356, %s21, 1
      %s358 = smul.addr %s357, 8
      %s359 = scalar_lea.vmem %s10, %s358
      %p360 = scmp.lt.s32.totalorder %s21, 1
      %s361 = scalar_select %p360, %s21, 1
      %s362 = smul.addr %s361, 8
      %s363 = scalar_lea.vmem %s0, %s362
      %p364 = scmp.lt.s32.totalorder %s21, 1
      %s365 = scalar_select %p364, %s21, 1
      %s366 = smul.addr %s365, 8
      %s367 = scalar_lea.vmem %s1, %s366
      %p368 = scmp.lt.s32.totalorder %s21, 1
      %s369 = scalar_select %p368, %s21, 1
      %s370 = smul.addr %s369, 8
      %s371 = scalar_lea.vmem %s10, %s370
      %v373 = vld [vmem:[%s363] sm:$0xff]
      %v374 = vld [vmem:[%s367] sm:$0xff]
      %v375 = vadd.f32 %v373, %v374
      %v376 = vld [vmem:[%s2] sm:$0xf]
      %v377 = vld [vmem:[%s2 + $0x4] sm:$0xf]
      %v378 = vld [vmem:[%s2 + $0x8] sm:$0xf]
      %v379 = vld [vmem:[%s2 + $0xc] sm:$0xf]
      %v380 = vpack.c.bf16 %v375, %v375
      %v381 = vld [vmem:[%s3] sm:$0x1]
      %v383 = vlaneseq
      %v384 = vshrl.u32 %v383, 7
      %v385 = vsub.s32 0, %v384
      %v386 = vrot.slane %v381, %v385
      %v392 = vunpack.c.l.b16 %v376
      %v393 = vunpack.c.l.b16 %v377
      %v394 = vunpack.c.l.b16 %v378
      %v395 = vunpack.c.l.b16 %v379
      %v396 = vpack.c.b16 %v393, %v392
      %v397 = vpack.c.b16 %v395, %v394
      %vm400 = vcmask 261120
      %v402 = vsel %vm400, %v380, 0
      %404 = vmatprep.subr.bf16.mxu0 0
      %405 = vmatpush1.bf16.msra.mxu0 %v396
      %406 = vmatprep.subr.bf16.mxu0 0
      %407 = vmatpush1.bf16.msra.mxu0 %v397
      %408 = vmatprep.subr.bf16.mxu0 0
      %409 = vmatpush1.bf16.msra.mxu0 0
      %410 = vmatprep.subr.bf16.mxu0 0
      %411 = vmatpush1.bf16.msra.mxu0 0
      %412 = vmatprep.subr.bf16.mxu0 0
      %413 = vmatpush1.bf16.msra.mxu0 0
      %414 = vmatprep.subr.bf16.mxu0 0
      %415 = vmatpush1.bf16.msra.mxu0 0
      %416 = vmatprep.subr.bf16.mxu0 0
      %417 = vmatpush1.bf16.msra.mxu0 0
      %418 = vmatprep.subr.bf16.mxu0 0
      %419 = vmatpush1.bf16.msra.mxu0 0
      %420 = vmatprep.subr.bf16.mxu0 0
      %421 = vmatpush1.bf16.msra.mxu0 0
      %422 = vmatprep.subr.bf16.mxu0 0
      %423 = vmatpush1.bf16.msra.mxu0 0
      %424 = vmatprep.subr.bf16.mxu0 0
      %425 = vmatpush1.bf16.msra.mxu0 0
      %426 = vmatprep.subr.bf16.mxu0 0
      %427 = vmatpush1.bf16.msra.mxu0 0
      %428 = vmatprep.subr.bf16.mxu0 0
      %429 = vmatpush1.bf16.msra.mxu0 0
      %430 = vmatprep.subr.bf16.mxu0 0
      %431 = vmatpush1.bf16.msra.mxu0 0
      %432 = vmatprep.subr.bf16.mxu0 0
      %433 = vmatpush1.bf16.msra.mxu0 0
      %434 = vmatprep.subr.bf16.mxu0 0
      %435 = vmatpush1.bf16.msra.mxu0 0
      %436 = vmatprep.mubr.bf16.mxu0 0
      %437 = vmatmul.mubr.bf16.gmra.mrb[0].mxu0 %v402
      %v438 = vpop.f32.mrb[0].mxu0
      %v439 = vadd.f32 %v386, %v438
      %v440 = vpop.f32.mrb[0].mxu0
      %v441 = vpop.f32.mrb[0].mxu0
      %v442 = vpop.f32.mrb[0].mxu0
      %443 = vdwg.mxu0
      %v444 = vmul.f32 %v439, 0.35355338
      %v445 = vpack.c.bf16 %v444, %v444
      %v446 = vpack.c.bf16 %v439, %v439
      %v447 = vld [vmem:[%s4] sm:$0xf]
      %v448 = vld [vmem:[%s4 + $0x4] sm:$0xf]
      %v449 = vld [vmem:[%s4 + $0x8] sm:$0xf]
      %v450 = vld [vmem:[%s4 + $0xc] sm:$0xf]
      %v451 = vpack.c.bf16 %v373, %v373
      %v452 = vld [vmem:[%s5] sm:$0x1]
      %v454 = vlaneseq
      %v455 = vshrl.u32 %v454, 7
      %v456 = vsub.s32 0, %v455
      %v457 = vrot.slane %v452, %v456
      %v463 = vunpack.c.l.b16 %v447
      %v464 = vunpack.c.l.b16 %v448
      %v465 = vunpack.c.l.b16 %v449
      %v466 = vunpack.c.l.b16 %v450
      %v467 = vpack.c.b16 %v464, %v463
      %v468 = vpack.c.b16 %v466, %v465
      %v472 = vsel %vm400, %v451, 0
      %474 = vmatprep.subr.bf16.mxu0 0
      %475 = vmatpush1.bf16.msra.mxu0 %v467
      %476 = vmatprep.subr.bf16.mxu0 0
      %477 = vmatpush1.bf16.msra.mxu0 %v468
      %478 = vmatprep.subr.bf16.mxu0 0
      %479 = vmatpush1.bf16.msra.mxu0 0
      %480 = vmatprep.subr.bf16.mxu0 0
      %481 = vmatpush1.bf16.msra.mxu0 0
      %482 = vmatprep.subr.bf16.mxu0 0
      %483 = vmatpush1.bf16.msra.mxu0 0
      %484 = vmatprep.subr.bf16.mxu0 0
      %485 = vmatpush1.bf16.msra.mxu0 0
      %486 = vmatprep.subr.bf16.mxu0 0
      %487 = vmatpush1.bf16.msra.mxu0 0
      %488 = vmatprep.subr.bf16.mxu0 0
      %489 = vmatpush1.bf16.msra.mxu0 0
      %490 = vmatprep.subr.bf16.mxu0 0
      %491 = vmatpush1.bf16.msra.mxu0 0
      %492 = vmatprep.subr.bf16.mxu0 0
      %493 = vmatpush1.bf16.msra.mxu0 0
      %494 = vmatprep.subr.bf16.mxu0 0
      %495 = vmatpush1.bf16.msra.mxu0 0
      %496 = vmatprep.subr.bf16.mxu0 0
      %497 = vmatpush1.bf16.msra.mxu0 0
      %498 = vmatprep.subr.bf16.mxu0 0
      %499 = vmatpush1.bf16.msra.mxu0 0
      %500 = vmatprep.subr.bf16.mxu0 0
      %501 = vmatpush1.bf16.msra.mxu0 0
      %502 = vmatprep.subr.bf16.mxu0 0
      %503 = vmatpush1.bf16.msra.mxu0 0
      %504 = vmatprep.subr.bf16.mxu0 0
      %505 = vmatpush1.bf16.msra.mxu0 0
      %506 = vmatprep.mubr.bf16.mxu0 0
      %507 = vmatmul.mubr.bf16.gmra.mrb[0].mxu0 %v472
      %v508 = vpop.f32.mrb[0].mxu0
      %v509 = vadd.f32 %v457, %v508
      %v510 = vpop.f32.mrb[0].mxu0
      %v511 = vpop.f32.mrb[0].mxu0
      %v512 = vpop.f32.mrb[0].mxu0
      %513 = vdwg.mxu0
      %v514 = vpack.c.bf16 %v509, %v509
      %516 = vrot.lane.b32.xlu0 %v446, 96
      %v517 = vpop.permute.xlu0 %516
      %vm518 = vcmask 64512
      %v520 = vsel %vm518, %v445, 0
      %v523 = vsel %vm518, %v517, 0
      %525 = vmatprep.subr.bf16.mxu0 0
      %526 = vmatpush1.bf16.xpose.msra.mxu0 %v523
      %527 = vmatprep.subr.bf16.mxu0 0
      %528 = vmatpush1.bf16.xpose.msra.mxu0 0
      %529 = vmatprep.subr.bf16.mxu0 0
      %530 = vmatpush1.bf16.xpose.msra.mxu0 0
      %531 = vmatprep.subr.bf16.mxu0 0
      %532 = vmatpush1.bf16.xpose.msra.mxu0 0
      %533 = vmatprep.subr.bf16.mxu0 0
      %534 = vmatpush1.bf16.xpose.msra.mxu0 0
      %535 = vmatprep.subr.bf16.mxu0 0
      %536 = vmatpush1.bf16.xpose.msra.mxu0 0
      %537 = vmatprep.subr.bf16.mxu0 0
      %538 = vmatpush1.bf16.xpose.msra.mxu0 0
      %539 = vmatprep.subr.bf16.mxu0 0
      %540 = vmatpush1.bf16.xpose.msra.mxu0 0
      %541 = vmatprep.subr.bf16.mxu0 0
      %542 = vmatpush1.bf16.xpose.msra.mxu0 0
      %543 = vmatprep.subr.bf16.mxu0 0
      %544 = vmatpush1.bf16.xpose.msra.mxu0 0
      %545 = vmatprep.subr.bf16.mxu0 0
      %546 = vmatpush1.bf16.xpose.msra.mxu0 0
      %547 = vmatprep.subr.bf16.mxu0 0
      %548 = vmatpush1.bf16.xpose.msra.mxu0 0
      %549 = vmatprep.subr.bf16.mxu0 0
      %550 = vmatpush1.bf16.xpose.msra.mxu0 0
      %551 = vmatprep.subr.bf16.mxu0 0
      %552 = vmatpush1.bf16.xpose.msra.mxu0 0
      %553 = vmatprep.subr.bf16.mxu0 0
      %554 = vmatpush1.bf16.xpose.msra.mxu0 0
      %555 = vmatprep.subr.bf16.mxu0 0
      %556 = vmatpush1.bf16.xpose.msra.mxu0 0
      %557 = vmatprep.mubr.bf16.mxu0 0
      %558 = vmatmul.mubr.bf16.gmra.mrb[0].mxu0 %v520
      %v559 = vpop.f32.mrb[0].mxu0
      %v560 = vadd.f32 0.0, %v559
      %v561 = vpop.f32.mrb[0].mxu0
      %v562 = vpop.f32.mrb[0].mxu0
      %v563 = vpop.f32.mrb[0].mxu0
      %564 = vdwg.mxu0
      %v565 = vsel %vm518, %v560, -inf
      %566 = vmax.xlane.f32.xlu0 %v565
      %v567 = vpop.xlane.xlu0 %566
      %v568 = vsub.f32 %v560, %v567
      %v569 = vmul.f32 %v568, 1.442695
      %v570 = vpow.pop %v569
      %v571 = vsel %vm518, %v570, 0.0
      %572 = vadd.xlane.f32.xlu0 %v571
      %v573 = vpop.xlane.xlu0 %572
      %v574 = vpack.c.bf16 %v570, %v570
      %v576 = vsel %vm518, %v574, 0
      %vm578 = vcmask 1043456
      %v580 = vsel %vm578, %v514, 0
      %582 = vmatprep.subr.bf16.mxu0 0
      %583 = vmatpush1.bf16.msra.mxu0 %v580
      %584 = vmatprep.subr.bf16.mxu0 0
      %585 = vmatpush1.bf16.msra.mxu0 0
      %586 = vmatprep.subr.bf16.mxu0 0
      %587 = vmatpush1.bf16.msra.mxu0 0
      %588 = vmatprep.subr.bf16.mxu0 0
      %589 = vmatpush1.bf16.msra.mxu0 0
      %590 = vmatprep.subr.bf16.mxu0 0
      %591 = vmatpush1.bf16.msra.mxu0 0
      %592 = vmatprep.subr.bf16.mxu0 0
      %593 = vmatpush1.bf16.msra.mxu0 0
      %594 = vmatprep.subr.bf16.mxu0 0
      %595 = vmatpush1.bf16.msra.mxu0 0
      %596 = vmatprep.subr.bf16.mxu0 0
      %597 = vmatpush1.bf16.msra.mxu0 0
      %598 = vmatprep.subr.bf16.mxu0 0
      %599 = vmatpush1.bf16.msra.mxu0 0
      %600 = vmatprep.subr.bf16.mxu0 0
      %601 = vmatpush1.bf16.msra.mxu0 0
      %602 = vmatprep.subr.bf16.mxu0 0
      %603 = vmatpush1.bf16.msra.mxu0 0
      %604 = vmatprep.subr.bf16.mxu0 0
      %605 = vmatpush1.bf16.msra.mxu0 0
      %606 = vmatprep.subr.bf16.mxu0 0
      %607 = vmatpush1.bf16.msra.mxu0 0
      %608 = vmatprep.subr.bf16.mxu0 0
      %609 = vmatpush1.bf16.msra.mxu0 0
      %610 = vmatprep.subr.bf16.mxu0 0
      %611 = vmatpush1.bf16.msra.mxu0 0
      %612 = vmatprep.subr.bf16.mxu0 0
      %613 = vmatpush1.bf16.msra.mxu0 0
      %614 = vmatprep.mubr.bf16.mxu0 0
      %615 = vmatmul.mubr.bf16.gmra.mrb[0].mxu0 %v576
      %v616 = vpop.f32.mrb[0].mxu0
      %v617 = vadd.f32 0.0, %v616
      %v618 = vpop.f32.mrb[0].mxu0
      %v619 = vpop.f32.mrb[0].mxu0
      %v620 = vpop.f32.mrb[0].mxu0
      %621 = vdwg.mxu0
      %v622 = vrcp.pop %v573
      %v623 = vmul.f32 %v617, %v622
      %v624 = vld [vmem:[%s6] sm:$0xf]
      %v625 = vpack.c.bf16 %v623, %v623
      %627 = vrot.lane.b32.xlu0 %v445, 120
      %v628 = vpop.permute.xlu0 %627
      %629 = vrot.lane.b32.xlu0 %v446, 88
      %v630 = vpop.permute.xlu0 %629
      %v632 = vsel %vm518, %v628, 0
      %v635 = vsel %vm518, %v630, 0
      %637 = vmatprep.subr.bf16.mxu0 0
      %638 = vmatpush1.bf16.xpose.msra.mxu0 %v635
      %639 = vmatprep.subr.bf16.mxu0 0
      %640 = vmatpush1.bf16.xpose.msra.mxu0 0
      %641 = vmatprep.subr.bf16.mxu0 0
      %642 = vmatpush1.bf16.xpose.msra.mxu0 0
      %643 = vmatprep.subr.bf16.mxu0 0
      %644 = vmatpush1.bf16.xpose.msra.mxu0 0
      %645 = vmatprep.subr.bf16.mxu0 0
      %646 = vmatpush1.bf16.xpose.msra.mxu0 0
      %647 = vmatprep.subr.bf16.mxu0 0
      %648 = vmatpush1.bf16.xpose.msra.mxu0 0
      %649 = vmatprep.subr.bf16.mxu0 0
      %650 = vmatpush1.bf16.xpose.msra.mxu0 0
      %651 = vmatprep.subr.bf16.mxu0 0
      %652 = vmatpush1.bf16.xpose.msra.mxu0 0
      %653 = vmatprep.subr.bf16.mxu0 0
      %654 = vmatpush1.bf16.xpose.msra.mxu0 0
      %655 = vmatprep.subr.bf16.mxu0 0
      %656 = vmatpush1.bf16.xpose.msra.mxu0 0
      %657 = vmatprep.subr.bf16.mxu0 0
      %658 = vmatpush1.bf16.xpose.msra.mxu0 0
      %659 = vmatprep.subr.bf16.mxu0 0
      %660 = vmatpush1.bf16.xpose.msra.mxu0 0
      %661 = vmatprep.subr.bf16.mxu0 0
      %662 = vmatpush1.bf16.xpose.msra.mxu0 0
      %663 = vmatprep.subr.bf16.mxu0 0
      %664 = vmatpush1.bf16.xpose.msra.mxu0 0
      %665 = vmatprep.subr.bf16.mxu0 0
      %666 = vmatpush1.bf16.xpose.msra.mxu0 0
      %667 = vmatprep.subr.bf16.mxu0 0
      %668 = vmatpush1.bf16.xpose.msra.mxu0 0
      %669 = vmatprep.mubr.bf16.mxu0 0
      %670 = vmatmul.mubr.bf16.gmra.mrb[0].mxu0 %v632
      %v671 = vpop.f32.mrb[0].mxu0
      %v672 = vadd.f32 0.0, %v671
      %v673 = vpop.f32.mrb[0].mxu0
      %v674 = vpop.f32.mrb[0].mxu0
      %v675 = vpop.f32.mrb[0].mxu0
      %676 = vdwg.mxu0
      %v677 = vsel %vm518, %v672, -inf
      %678 = vmax.xlane.f32.xlu0 %v677
      %v679 = vpop.xlane.xlu0 %678
      %v680 = vsub.f32 %v672, %v679
      %v681 = vmul.f32 %v680, 1.442695
      %v682 = vpow.pop %v681
      %v683 = vsel %vm518, %v682, 0.0
      %684 = vadd.xlane.f32.xlu0 %v683
      %v685 = vpop.xlane.xlu0 %684
      %v686 = vpack.c.bf16 %v682, %v682
      %688 = vrot.lane.b32.xlu0 %v514, 120
      %v689 = vpop.permute.xlu0 %688
      %v691 = vsel %vm518, %v686, 0
      %v694 = vsel %vm578, %v689, 0
      %696 = vmatprep.subr.bf16.mxu0 0
      %697 = vmatpush1.bf16.msra.mxu0 %v694
      %698 = vmatprep.subr.bf16.mxu0 0
      %699 = vmatpush1.bf16.msra.mxu0 0
      %700 = vmatprep.subr.bf16.mxu0 0
      %701 = vmatpush1.bf16.msra.mxu0 0
      %702 = vmatprep.subr.bf16.mxu0 0
      %703 = vmatpush1.bf16.msra.mxu0 0
      %704 = vmatprep.subr.bf16.mxu0 0
      %705 = vmatpush1.bf16.msra.mxu0 0
      %706 = vmatprep.subr.bf16.mxu0 0
      %707 = vmatpush1.bf16.msra.mxu0 0
      %708 = vmatprep.subr.bf16.mxu0 0
      %709 = vmatpush1.bf16.msra.mxu0 0
      %710 = vmatprep.subr.bf16.mxu0 0
      %711 = vmatpush1.bf16.msra.mxu0 0
      %712 = vmatprep.subr.bf16.mxu0 0
      %713 = vmatpush1.bf16.msra.mxu0 0
      %714 = vmatprep.subr.bf16.mxu0 0
      %715 = vmatpush1.bf16.msra.mxu0 0
      %716 = vmatprep.subr.bf16.mxu0 0
      %717 = vmatpush1.bf16.msra.mxu0 0
      %718 = vmatprep.subr.bf16.mxu0 0
      %719 = vmatpush1.bf16.msra.mxu0 0
      %720 = vmatprep.subr.bf16.mxu0 0
      %721 = vmatpush1.bf16.msra.mxu0 0
      %722 = vmatprep.subr.bf16.mxu0 0
      %723 = vmatpush1.bf16.msra.mxu0 0
      %724 = vmatprep.subr.bf16.mxu0 0
      %725 = vmatpush1.bf16.msra.mxu0 0
      %726 = vmatprep.subr.bf16.mxu0 0
      %727 = vmatpush1.bf16.msra.mxu0 0
      %728 = vmatprep.mubr.bf16.mxu0 0
      %729 = vmatmul.mubr.bf16.gmra.mrb[0].mxu0 %v691
      %v730 = vpop.f32.mrb[0].mxu0
      %v731 = vadd.f32 0.0, %v730
      %v732 = vpop.f32.mrb[0].mxu0
      %v733 = vpop.f32.mrb[0].mxu0
      %v734 = vpop.f32.mrb[0].mxu0
      %735 = vdwg.mxu0
      %v736 = vrcp.pop %v685
      %v737 = vmul.f32 %v731, %v736
      %v738 = vld [vmem:[%s6 + $0x4] sm:$0xf]
      %v739 = vpack.c.bf16 %v737, %v737
      %v741 = vsel %vm518, %v739, 0
      %v744 = vsel %vm578, %v738, 0
      %746 = vmatprep.subr.bf16.mxu0 0
      %747 = vmatpush1.bf16.msra.mxu0 %v744
      %748 = vmatprep.subr.bf16.mxu0 0
      %749 = vmatpush1.bf16.msra.mxu0 0
      %750 = vmatprep.subr.bf16.mxu0 0
      %751 = vmatpush1.bf16.msra.mxu0 0
      %752 = vmatprep.subr.bf16.mxu0 0
      %753 = vmatpush1.bf16.msra.mxu0 0
      %754 = vmatprep.subr.bf16.mxu0 0
      %755 = vmatpush1.bf16.msra.mxu0 0
      %756 = vmatprep.subr.bf16.mxu0 0
      %757 = vmatpush1.bf16.msra.mxu0 0
      %758 = vmatprep.subr.bf16.mxu0 0
      %759 = vmatpush1.bf16.msra.mxu0 0
      %760 = vmatprep.subr.bf16.mxu0 0
      %761 = vmatpush1.bf16.msra.mxu0 0
      %762 = vmatprep.subr.bf16.mxu0 0
      %763 = vmatpush1.bf16.msra.mxu0 0
      %764 = vmatprep.subr.bf16.mxu0 0
      %765 = vmatpush1.bf16.msra.mxu0 0
      %766 = vmatprep.subr.bf16.mxu0 0
      %767 = vmatpush1.bf16.msra.mxu0 0
      %768 = vmatprep.subr.bf16.mxu0 0
      %769 = vmatpush1.bf16.msra.mxu0 0
      %770 = vmatprep.subr.bf16.mxu0 0
      %771 = vmatpush1.bf16.msra.mxu0 0
      %772 = vmatprep.subr.bf16.mxu0 0
      %773 = vmatpush1.bf16.msra.mxu0 0
      %774 = vmatprep.subr.bf16.mxu0 0
      %775 = vmatpush1.bf16.msra.mxu0 0
      %776 = vmatprep.subr.bf16.mxu0 0
      %777 = vmatpush1.bf16.msra.mxu0 0
      %778 = vmatprep.mubr.bf16.mxu0 0
      %779 = vmatmul.mubr.bf16.gmra.mrb[0].mxu0 %v741
      %v780 = vpop.f32.mrb[0].mxu0
      %v781 = vadd.f32 0.0, %v780
      %v782 = vpop.f32.mrb[0].mxu0
      %v783 = vpop.f32.mrb[0].mxu0
      %v784 = vpop.f32.mrb[0].mxu0
      %785 = vdwg.mxu0
      %v787 = vsel %vm518, %v625, 0
      %v790 = vsel %vm578, %v624, 0
      %792 = vmatprep.subr.bf16.mxu0 0
      %793 = vmatpush1.bf16.msra.mxu0 %v790
      %794 = vmatprep.subr.bf16.mxu0 0
      %795 = vmatpush1.bf16.msra.mxu0 0
      %796 = vmatprep.subr.bf16.mxu0 0
      %797 = vmatpush1.bf16.msra.mxu0 0
      %798 = vmatprep.subr.bf16.mxu0 0
      %799 = vmatpush1.bf16.msra.mxu0 0
      %800 = vmatprep.subr.bf16.mxu0 0
      %801 = vmatpush1.bf16.msra.mxu0 0
      %802 = vmatprep.subr.bf16.mxu0 0
      %803 = vmatpush1.bf16.msra.mxu0 0
      %804 = vmatprep.subr.bf16.mxu0 0
      %805 = vmatpush1.bf16.msra.mxu0 0
      %806 = vmatprep.subr.bf16.mxu0 0
      %807 = vmatpush1.bf16.msra.mxu0 0
      %808 = vmatprep.subr.bf16.mxu0 0
      %809 = vmatpush1.bf16.msra.mxu0 0
      %810 = vmatprep.subr.bf16.mxu0 0
      %811 = vmatpush1.bf16.msra.mxu0 0
      %812 = vmatprep.subr.bf16.mxu0 0
      %813 = vmatpush1.bf16.msra.mxu0 0
      %814 = vmatprep.subr.bf16.mxu0 0
      %815 = vmatpush1.bf16.msra.mxu0 0
      %816 = vmatprep.subr.bf16.mxu0 0
      %817 = vmatpush1.bf16.msra.mxu0 0
      %818 = vmatprep.subr.bf16.mxu0 0
      %819 = vmatpush1.bf16.msra.mxu0 0
      %820 = vmatprep.subr.bf16.mxu0 0
      %821 = vmatpush1.bf16.msra.mxu0 0
      %822 = vmatprep.subr.bf16.mxu0 0
      %823 = vmatpush1.bf16.msra.mxu0 0
      %824 = vmatprep.mubr.bf16.mxu0 0
      %825 = vmatmul.mubr.bf16.gmra.mrb[0].mxu0 %v787
      %v826 = vpop.f32.mrb[0].mxu0
      %v827 = vadd.f32 %v781, %v826
      %v828 = vpop.f32.mrb[0].mxu0
      %v829 = vpop.f32.mrb[0].mxu0
      %v830 = vpop.f32.mrb[0].mxu0
      %831 = vdwg.mxu0
      %832 = vrot.lane.b32.xlu0 %v445, 112
      %v833 = vpop.permute.xlu0 %832
      %834 = vrot.lane.b32.xlu0 %v446, 80
      %v835 = vpop.permute.xlu0 %834
      %v837 = vsel %vm518, %v833, 0
      %v840 = vsel %vm518, %v835, 0
      %842 = vmatprep.subr.bf16.mxu0 0
      %843 = vmatpush1.bf16.xpose.msra.mxu0 %v840
      %844 = vmatprep.subr.bf16.mxu0 0
      %845 = vmatpush1.bf16.xpose.msra.mxu0 0
      %846 = vmatprep.subr.bf16.mxu0 0
      %847 = vmatpush1.bf16.xpose.msra.mxu0 0
      %848 = vmatprep.subr.bf16.mxu0 0
      %849 = vmatpush1.bf16.xpose.msra.mxu0 0
      %850 = vmatprep.subr.bf16.mxu0 0
      %851 = vmatpush1.bf16.xpose.msra.mxu0 0
      %852 = vmatprep.subr.bf16.mxu0 0
      %853 = vmatpush1.bf16.xpose.msra.mxu0 0
      %854 = vmatprep.subr.bf16.mxu0 0
      %855 = vmatpush1.bf16.xpose.msra.mxu0 0
      %856 = vmatprep.subr.bf16.mxu0 0
      %857 = vmatpush1.bf16.xpose.msra.mxu0 0
      %858 = vmatprep.subr.bf16.mxu0 0
      %859 = vmatpush1.bf16.xpose.msra.mxu0 0
      %860 = vmatprep.subr.bf16.mxu0 0
      %861 = vmatpush1.bf16.xpose.msra.mxu0 0
      %862 = vmatprep.subr.bf16.mxu0 0
      %863 = vmatpush1.bf16.xpose.msra.mxu0 0
      %864 = vmatprep.subr.bf16.mxu0 0
      %865 = vmatpush1.bf16.xpose.msra.mxu0 0
      %866 = vmatprep.subr.bf16.mxu0 0
      %867 = vmatpush1.bf16.xpose.msra.mxu0 0
      %868 = vmatprep.subr.bf16.mxu0 0
      %869 = vmatpush1.bf16.xpose.msra.mxu0 0
      %870 = vmatprep.subr.bf16.mxu0 0
      %871 = vmatpush1.bf16.xpose.msra.mxu0 0
      %872 = vmatprep.subr.bf16.mxu0 0
      %873 = vmatpush1.bf16.xpose.msra.mxu0 0
      %874 = vmatprep.mubr.bf16.mxu0 0
      %875 = vmatmul.mubr.bf16.gmra.mrb[0].mxu0 %v837
      %v876 = vpop.f32.mrb[0].mxu0
      %v877 = vadd.f32 0.0, %v876
      %v878 = vpop.f32.mrb[0].mxu0
      %v879 = vpop.f32.mrb[0].mxu0
      %v880 = vpop.f32.mrb[0].mxu0
      %881 = vdwg.mxu0
      %v882 = vsel %vm518, %v877, -inf
      %883 = vmax.xlane.f32.xlu0 %v882
      %v884 = vpop.xlane.xlu0 %883
      %v885 = vsub.f32 %v877, %v884
      %v886 = vmul.f32 %v885, 1.442695
      %v887 = vpow.pop %v886
      %v888 = vsel %vm518, %v887, 0.0
      %889 = vadd.xlane.f32.xlu0 %v888
      %v890 = vpop.xlane.xlu0 %889
      %v891 = vpack.c.bf16 %v887, %v887
      %892 = vrot.lane.b32.xlu0 %v514, 112
      %v893 = vpop.permute.xlu0 %892
      %v895 = vsel %vm518, %v891, 0
      %v898 = vsel %vm578, %v893, 0
      %900 = vmatprep.subr.bf16.mxu0 0
      %901 = vmatpush1.bf16.msra.mxu0 %v898
      %902 = vmatprep.subr.bf16.mxu0 0
      %903 = vmatpush1.bf16.msra.mxu0 0
      %904 = vmatprep.subr.bf16.mxu0 0
      %905 = vmatpush1.bf16.msra.mxu0 0
      %906 = vmatprep.subr.bf16.mxu0 0
      %907 = vmatpush1.bf16.msra.mxu0 0
      %908 = vmatprep.subr.bf16.mxu0 0
      %909 = vmatpush1.bf16.msra.mxu0 0
      %910 = vmatprep.subr.bf16.mxu0 0
      %911 = vmatpush1.bf16.msra.mxu0 0
      %912 = vmatprep.subr.bf16.mxu0 0
      %913 = vmatpush1.bf16.msra.mxu0 0
      %914 = vmatprep.subr.bf16.mxu0 0
      %915 = vmatpush1.bf16.msra.mxu0 0
      %916 = vmatprep.subr.bf16.mxu0 0
      %917 = vmatpush1.bf16.msra.mxu0 0
      %918 = vmatprep.subr.bf16.mxu0 0
      %919 = vmatpush1.bf16.msra.mxu0 0
      %920 = vmatprep.subr.bf16.mxu0 0
      %921 = vmatpush1.bf16.msra.mxu0 0
      %922 = vmatprep.subr.bf16.mxu0 0
      %923 = vmatpush1.bf16.msra.mxu0 0
      %924 = vmatprep.subr.bf16.mxu0 0
      %925 = vmatpush1.bf16.msra.mxu0 0
      %926 = vmatprep.subr.bf16.mxu0 0
      %927 = vmatpush1.bf16.msra.mxu0 0
      %928 = vmatprep.subr.bf16.mxu0 0
      %929 = vmatpush1.bf16.msra.mxu0 0
      %930 = vmatprep.subr.bf16.mxu0 0
      %931 = vmatpush1.bf16.msra.mxu0 0
      %932 = vmatprep.mubr.bf16.mxu0 0
      %933 = vmatmul.mubr.bf16.gmra.mrb[0].mxu0 %v895
      %v934 = vpop.f32.mrb[0].mxu0
      %v935 = vadd.f32 0.0, %v934
      %v936 = vpop.f32.mrb[0].mxu0
      %v937 = vpop.f32.mrb[0].mxu0
      %v938 = vpop.f32.mrb[0].mxu0
      %939 = vdwg.mxu0
      %v940 = vrcp.pop %v890
      %v941 = vmul.f32 %v935, %v940
      %v942 = vld [vmem:[%s6 + $0x8] sm:$0xf]
      %v943 = vpack.c.bf16 %v941, %v941
      %v945 = vsel %vm518, %v943, 0
      %v948 = vsel %vm578, %v942, 0
      %950 = vmatprep.subr.bf16.mxu0 0
      %951 = vmatpush1.bf16.msra.mxu0 %v948
      %952 = vmatprep.subr.bf16.mxu0 0
      %953 = vmatpush1.bf16.msra.mxu0 0
      %954 = vmatprep.subr.bf16.mxu0 0
      %955 = vmatpush1.bf16.msra.mxu0 0
      %956 = vmatprep.subr.bf16.mxu0 0
      %957 = vmatpush1.bf16.msra.mxu0 0
      %958 = vmatprep.subr.bf16.mxu0 0
      %959 = vmatpush1.bf16.msra.mxu0 0
      %960 = vmatprep.subr.bf16.mxu0 0
      %961 = vmatpush1.bf16.msra.mxu0 0
      %962 = vmatprep.subr.bf16.mxu0 0
      %963 = vmatpush1.bf16.msra.mxu0 0
      %964 = vmatprep.subr.bf16.mxu0 0
      %965 = vmatpush1.bf16.msra.mxu0 0
      %966 = vmatprep.subr.bf16.mxu0 0
      %967 = vmatpush1.bf16.msra.mxu0 0
      %968 = vmatprep.subr.bf16.mxu0 0
      %969 = vmatpush1.bf16.msra.mxu0 0
      %970 = vmatprep.subr.bf16.mxu0 0
      %971 = vmatpush1.bf16.msra.mxu0 0
      %972 = vmatprep.subr.bf16.mxu0 0
      %973 = vmatpush1.bf16.msra.mxu0 0
      %974 = vmatprep.subr.bf16.mxu0 0
      %975 = vmatpush1.bf16.msra.mxu0 0
      %976 = vmatprep.subr.bf16.mxu0 0
      %977 = vmatpush1.bf16.msra.mxu0 0
      %978 = vmatprep.subr.bf16.mxu0 0
      %979 = vmatpush1.bf16.msra.mxu0 0
      %980 = vmatprep.subr.bf16.mxu0 0
      %981 = vmatpush1.bf16.msra.mxu0 0
      %982 = vmatprep.mubr.bf16.mxu0 0
      %983 = vmatmul.mubr.bf16.gmra.mrb[0].mxu0 %v945
      %v984 = vpop.f32.mrb[0].mxu0
      %v985 = vadd.f32 0.0, %v984
      %v986 = vpop.f32.mrb[0].mxu0
      %v987 = vpop.f32.mrb[0].mxu0
      %v988 = vpop.f32.mrb[0].mxu0
      %989 = vdwg.mxu0
      %v990 = vadd.f32 %v827, %v985
      %991 = vrot.lane.b32.xlu0 %v445, 104
      %v992 = vpop.permute.xlu0 %991
      %993 = vrot.lane.b32.xlu0 %v446, 72
      %v994 = vpop.permute.xlu0 %993
      %v996 = vsel %vm518, %v992, 0
      %v999 = vsel %vm518, %v994, 0
      %1001 = vmatprep.subr.bf16.mxu0 0
      %1002 = vmatpush1.bf16.xpose.msra.mxu0 %v999
      %1003 = vmatprep.subr.bf16.mxu0 0
      %1004 = vmatpush1.bf16.xpose.msra.mxu0 0
      %1005 = vmatprep.subr.bf16.mxu0 0
      %1006 = vmatpush1.bf16.xpose.msra.mxu0 0
      %1007 = vmatprep.subr.bf16.mxu0 0
      %1008 = vmatpush1.bf16.xpose.msra.mxu0 0
      %1009 = vmatprep.subr.bf16.mxu0 0
      %1010 = vmatpush1.bf16.xpose.msra.mxu0 0
      %1011 = vmatprep.subr.bf16.mxu0 0
      %1012 = vmatpush1.bf16.xpose.msra.mxu0 0
      %1013 = vmatprep.subr.bf16.mxu0 0
      %1014 = vmatpush1.bf16.xpose.msra.mxu0 0
      %1015 = vmatprep.subr.bf16.mxu0 0
      %1016 = vmatpush1.bf16.xpose.msra.mxu0 0
      %1017 = vmatprep.subr.bf16.mxu0 0
      %1018 = vmatpush1.bf16.xpose.msra.mxu0 0
      %1019 = vmatprep.subr.bf16.mxu0 0
      %1020 = vmatpush1.bf16.xpose.msra.mxu0 0
      %1021 = vmatprep.subr.bf16.mxu0 0
      %1022 = vmatpush1.bf16.xpose.msra.mxu0 0
      %1023 = vmatprep.subr.bf16.mxu0 0
      %1024 = vmatpush1.bf16.xpose.msra.mxu0 0
      %1025 = vmatprep.subr.bf16.mxu0 0
      %1026 = vmatpush1.bf16.xpose.msra.mxu0 0
      %1027 = vmatprep.subr.bf16.mxu0 0
      %1028 = vmatpush1.bf16.xpose.msra.mxu0 0
      %1029 = vmatprep.subr.bf16.mxu0 0
      %1030 = vmatpush1.bf16.xpose.msra.mxu0 0
      %1031 = vmatprep.subr.bf16.mxu0 0
      %1032 = vmatpush1.bf16.xpose.msra.mxu0 0
      %1033 = vmatprep.mubr.bf16.mxu0 0
      %1034 = vmatmul.mubr.bf16.gmra.mrb[0].mxu0 %v996
      %v1035 = vpop.f32.mrb[0].mxu0
      %v1036 = vadd.f32 0.0, %v1035
      %v1037 = vpop.f32.mrb[0].mxu0
      %v1038 = vpop.f32.mrb[0].mxu0
      %v1039 = vpop.f32.mrb[0].mxu0
      %1040 = vdwg.mxu0
      %v1041 = vsel %vm518, %v1036, -inf
      %1042 = vmax.xlane.f32.xlu0 %v1041
      %v1043 = vpop.xlane.xlu0 %1042
      %v1044 = vsub.f32 %v1036, %v1043
      %v1045 = vmul.f32 %v1044, 1.442695
      %v1046 = vpow.pop %v1045
      %v1047 = vsel %vm518, %v1046, 0.0
      %1048 = vadd.xlane.f32.xlu0 %v1047
      %v1049 = vpop.xlane.xlu0 %1048
      %v1050 = vpack.c.bf16 %v1046, %v1046
      %1051 = vrot.lane.b32.xlu0 %v514, 104
      %v1052 = vpop.permute.xlu0 %1051
      %v1054 = vsel %vm518, %v1050, 0
      %v1057 = vsel %vm578, %v1052, 0
      %1059 = vmatprep.subr.bf16.mxu0 0
      %1060 = vmatpush1.bf16.msra.mxu0 %v1057
      %1061 = vmatprep.subr.bf16.mxu0 0
      %1062 = vmatpush1.bf16.msra.mxu0 0
      %1063 = vmatprep.subr.bf16.mxu0 0
      %1064 = vmatpush1.bf16.msra.mxu0 0
      %1065 = vmatprep.subr.bf16.mxu0 0
      %1066 = vmatpush1.bf16.msra.mxu0 0
      %1067 = vmatprep.subr.bf16.mxu0 0
      %1068 = vmatpush1.bf16.msra.mxu0 0
      %1069 = vmatprep.subr.bf16.mxu0 0
      %1070 = vmatpush1.bf16.msra.mxu0 0
      %1071 = vmatprep.subr.bf16.mxu0 0
      %1072 = vmatpush1.bf16.msra.mxu0 0
      %1073 = vmatprep.subr.bf16.mxu0 0
      %1074 = vmatpush1.bf16.msra.mxu0 0
      %1075 = vmatprep.subr.bf16.mxu0 0
      %1076 = vmatpush1.bf16.msra.mxu0 0
      %1077 = vmatprep.subr.bf16.mxu0 0
      %1078 = vmatpush1.bf16.msra.mxu0 0
      %1079 = vmatprep.subr.bf16.mxu0 0
      %1080 = vmatpush1.bf16.msra.mxu0 0
      %1081 = vmatprep.subr.bf16.mxu0 0
      %1082 = vmatpush1.bf16.msra.mxu0 0
      %1083 = vmatprep.subr.bf16.mxu0 0
      %1084 = vmatpush1.bf16.msra.mxu0 0
      %1085 = vmatprep.subr.bf16.mxu0 0
      %1086 = vmatpush1.bf16.msra.mxu0 0
      %1087 = vmatprep.subr.bf16.mxu0 0
      %1088 = vmatpush1.bf16.msra.mxu0 0
      %1089 = vmatprep.subr.bf16.mxu0 0
      %1090 = vmatpush1.bf16.msra.mxu0 0
      %1091 = vmatprep.mubr.bf16.mxu0 0
      %1092 = vmatmul.mubr.bf16.gmra.mrb[0].mxu0 %v1054
      %v1093 = vpop.f32.mrb[0].mxu0
      %v1094 = vadd.f32 0.0, %v1093
      %v1095 = vpop.f32.mrb[0].mxu0
      %v1096 = vpop.f32.mrb[0].mxu0
      %v1097 = vpop.f32.mrb[0].mxu0
      %1098 = vdwg.mxu0
      %v1099 = vrcp.pop %v1049
      %v1100 = vmul.f32 %v1094, %v1099
      %v1101 = vld [vmem:[%s6 + $0xc] sm:$0xf]
      %v1102 = vpack.c.bf16 %v1100, %v1100
      %v1104 = vsel %vm518, %v1102, 0
      %v1107 = vsel %vm578, %v1101, 0
      %1109 = vmatprep.subr.bf16.mxu0 0
      %1110 = vmatpush1.bf16.msra.mxu0 %v1107
      %1111 = vmatprep.subr.bf16.mxu0 0
      %1112 = vmatpush1.bf16.msra.mxu0 0
      %1113 = vmatprep.subr.bf16.mxu0 0
      %1114 = vmatpush1.bf16.msra.mxu0 0
      %1115 = vmatprep.subr.bf16.mxu0 0
      %1116 = vmatpush1.bf16.msra.mxu0 0
      %1117 = vmatprep.subr.bf16.mxu0 0
      %1118 = vmatpush1.bf16.msra.mxu0 0
      %1119 = vmatprep.subr.bf16.mxu0 0
      %1120 = vmatpush1.bf16.msra.mxu0 0
      %1121 = vmatprep.subr.bf16.mxu0 0
      %1122 = vmatpush1.bf16.msra.mxu0 0
      %1123 = vmatprep.subr.bf16.mxu0 0
      %1124 = vmatpush1.bf16.msra.mxu0 0
      %1125 = vmatprep.subr.bf16.mxu0 0
      %1126 = vmatpush1.bf16.msra.mxu0 0
      %1127 = vmatprep.subr.bf16.mxu0 0
      %1128 = vmatpush1.bf16.msra.mxu0 0
      %1129 = vmatprep.subr.bf16.mxu0 0
      %1130 = vmatpush1.bf16.msra.mxu0 0
      %1131 = vmatprep.subr.bf16.mxu0 0
      %1132 = vmatpush1.bf16.msra.mxu0 0
      %1133 = vmatprep.subr.bf16.mxu0 0
      %1134 = vmatpush1.bf16.msra.mxu0 0
      %1135 = vmatprep.subr.bf16.mxu0 0
      %1136 = vmatpush1.bf16.msra.mxu0 0
      %1137 = vmatprep.subr.bf16.mxu0 0
      %1138 = vmatpush1.bf16.msra.mxu0 0
      %1139 = vmatprep.subr.bf16.mxu0 0
      %1140 = vmatpush1.bf16.msra.mxu0 0
      %1141 = vmatprep.mubr.bf16.mxu0 0
      %1142 = vmatmul.mubr.bf16.gmra.mrb[0].mxu0 %v1104
      %v1143 = vpop.f32.mrb[0].mxu0
      %v1144 = vadd.f32 0.0, %v1143
      %v1145 = vpop.f32.mrb[0].mxu0
      %v1146 = vpop.f32.mrb[0].mxu0
      %v1147 = vpop.f32.mrb[0].mxu0
      %1148 = vdwg.mxu0
      %v1149 = vadd.f32 %v990, %v1144
      %v1150 = vld [vmem:[%s7] sm:$0x1]
      %v1152 = vlaneseq
      %v1153 = vshrl.u32 %v1152, 7
      %v1154 = vsub.s32 0, %v1153
      %v1155 = vrot.slane %v1150, %v1154
      %v1157 = vadd.f32 %v1149, %v1155
      %v1158 = vadd.f32 %v373, %v1157
      %v1159 = vld [vmem:[%s8] sm:$0x1]
      %v1160 = vld [vmem:[%s9] sm:$0x1]
      %v1161 = vsel %vm400, %v1158, 0.0
      %1162 = vadd.xlane.f32.xlu0 %v1161
      %v1163 = vpop.xlane.xlu0 %1162
      %v1164 = vrcp.pop 32.0
      %v1165 = vmul.f32 %v1163, %v1164
      %v1166 = vsub.f32 %v1158, %v1165
      %v1167 = vmul.f32 %v1166, %v1166
      %v1168 = vsel %vm400, %v1167, 0.0
      %1169 = vadd.xlane.f32.xlu0 %v1168
      %v1170 = vpop.xlane.xlu0 %1169
      %v1171 = vmul.f32 %v1170, %v1164
      %v1172 = vadd.f32 %v1171, 1e-05
      %v1173 = vrsqrt.pop %v1172
      %v1174 = vmul.f32 %v1166, %v1173
      %v1176 = vlaneseq
      %v1177 = vshrl.u32 %v1176, 7
      %v1178 = vsub.s32 0, %v1177
      %v1179 = vrot.slane %v1159, %v1178
      %v1181 = vmul.f32 %v1174, %v1179
      %v1183 = vlaneseq
      %v1184 = vshrl.u32 %v1183, 7
      %v1185 = vsub.s32 0, %v1184
      %v1186 = vrot.slane %v1160, %v1185
      %v1188 = vadd.f32 %v1181, %v1186
      %1189 = vst.msk [vmem:[%s371] sm:$0xff] %vm400, %v1188
      %p1190 = scmp.lt.s32.totalorder %s21, 1
      %s1191 = scalar_select %p1190, %s21, 1
      %s1192 = smul.addr %s1191, 8
      %s1193 = scalar_lea.vmem %s10, %s1192
      // Predicated region
      $region61: #{transformer_decoder_forward.8} parent=59 // pred_check
        %p1194 = pneg %p259
      $region62: #{transformer_decoder_forward.8} parent=59 // pred_check_branch
        %1196 = sbr.rel (%p1194) target = $region64
      $region63: #{transformer_decoder_forward.8} parent=59 // pred_region
        _
      $region64: #{transformer_decoder_forward.8} parent=59 // pred_fallthru
        _
    $region60: #{transformer_decoder_forward.8} parent=5 // pred_fallthru
      _
    %p1197 = scmp.le.s32.totalorder 2, %s16
    // Predicated region
    $region65: #{transformer_decoder_forward.8} parent=5 // pred_check
      %p1198 = pneg %p1197
    $region66: #{transformer_decoder_forward.8} parent=5 // pred_check_branch
      %1200 = sbr.rel (%p1198) target = $region68
    $region67: #{transformer_decoder_forward.8} parent=5 // pred_region
      %s1201 = ssub.s32 %s16, 2
      // Predicated region
      $region69: #{transformer_decoder_forward.8} parent=67 // pred_check
        %p1202 = pneg %p265
      $region70: #{transformer_decoder_forward.8} parent=67 // pred_check_branch
        %1204 = sbr.rel (%p1202) target = $region72
      $region71: #{transformer_decoder_forward.8} parent=67 // pred_region
        %p1205 = scmp.lt.s32.totalorder %s22, 1
        %s1206 = scalar_select %p1205, %s22, 1
        %s1207 = smul.addr %s1206, 8
        %s1208 = scalar_lea.vmem %s10, %s1207
      $region72: #{transformer_decoder_forward.8} parent=67 // pred_fallthru
        _
    $region68: #{transformer_decoder_forward.8} parent=5 // pred_fallthru
      _
  $region6: #{transformer_decoder_forward.8} parent=0 // loop_footer
    %s20 = sadd.s32 1, %s16
  $region7: #{transformer_decoder_forward.8} parent=0 // loop_footer_branch
    %15 = sbr.rel target = $region3
  $region8: #{transformer_decoder_forward.8} parent=0 // loop_exit
    _

// kernel: transformer_decoder_forward.13
$region0: #{transformer_decoder_forward.13}
  #allocation0 [shape = 'u32[]', space=smem, size = 0x4, offset = 0x4, fixed_abs, tag = 'smem constant byte address 0x4 - core index']
  #allocation1 [shape = 'u32[144,128]{1,0:T(1,128)}', space=vmem, size = 0x12000, scoped, tag = 'internal scratch']
  %s0 = inlined_call_operand.vmem [shape: f32[16,32], index: 0, kind: input, shape index: {}]
  %s1 = inlined_call_operand.vmem [shape: bf16[32,64], index: 1, kind: input, shape index: {}]
  %s2 = inlined_call_operand.vmem [shape: f32[1,64], index: 2, kind: input, shape index: {}]
  %s3 = inlined_call_operand.vmem [shape: bf16[64,32], index: 3, kind: input, shape index: {}]
  %s4 = inlined_call_operand.vmem [shape: f32[1,32], index: 4, kind: input, shape index: {}]
  %s5 = inlined_call_operand.vmem [shape: f32[1,32], index: 5, kind: input, shape index: {}]
  %s6 = inlined_call_operand.vmem [shape: f32[1,32], index: 6, kind: input, shape index: {}]
  %s7 = inlined_call_operand.vmem [shape: f32[1,32], index: 7, kind: input, shape index: {}]
  %s8 = inlined_call_operand.vmem [shape: f32[1,32], index: 8, kind: input, shape index: {}]
  %s9 = inlined_call_operand.hbm [shape: f32[16,32], index: 9, kind: output, shape index: {0}]
  %s10 = inlined_call_operand.hbm [shape: f32[16,32], index: 10, kind: output, shape index: {1}]
  %11 = xla_tuple %s9, %s10
  %s12 = sld [smem:[#allocation0]]
  $region54: #{transformer_decoder_forward.13} parent=0
    _
  %s14 = ssub.s32 1, %s12
  %s15 = scalar_select 0, %s14, %s12
  $region1: #{transformer_decoder_forward.13} parent=0
    #allocation2 [shape = 'u8[8192]{0}', space=vmem, size = 0x2000, scoped, tag = 'output window, operand 0, single buffered']
    #allocation3 [shape = 's32[1]{0}', space=sflag, size = 0x4, scoped, tag = 'scoped memory for transformer_decoder_forward.13']
    #allocation4 [shape = 'u8[8192]{0}', space=vmem, size = 0x2000, scoped, tag = 'output window, operand 1, single buffered']
    #allocation5 [shape = 's32[1]{0}', space=sflag, size = 0x4, scoped, tag = 'scoped memory for transformer_decoder_forward.13']
    %16 = vsyncpa [#allocation3], 0
    %17 = vsyncpa [#allocation5], 0
    // Predicated region
    $region2: #{transformer_decoder_forward.13} parent=1 // pred_check
      _
    $region3: #{transformer_decoder_forward.13} parent=1 // pred_check_branch
      %19 = sbr.rel (0) target = $region5
    $region4: #{transformer_decoder_forward.13} parent=1 // pred_region
      _
    $region5: #{transformer_decoder_forward.13} parent=1 // pred_fallthru
      _
    // Predicated region
    $region6: #{transformer_decoder_forward.13} parent=1 // pred_check
      _
    $region7: #{transformer_decoder_forward.13} parent=1 // pred_check_branch
      %21 = sbr.rel (0) target = $region9
    $region8: #{transformer_decoder_forward.13} parent=1 // pred_region
      _
    $region9: #{transformer_decoder_forward.13} parent=1 // pred_fallthru
      _
    // Predicated region
    $region10: #{transformer_decoder_forward.13} parent=1 // pred_check
      _
    $region11: #{transformer_decoder_forward.13} parent=1 // pred_check_branch
      %23 = sbr.rel (0) target = $region13
    $region12: #{transformer_decoder_forward.13} parent=1 // pred_region
      _
    $region13: #{transformer_decoder_forward.13} parent=1 // pred_fallthru
      _
    // Predicated region
    $region14: #{transformer_decoder_forward.13} parent=1 // pred_check
      _
    $region15: #{transformer_decoder_forward.13} parent=1 // pred_check_branch
      %25 = sbr.rel (0) target = $region17
    $region16: #{transformer_decoder_forward.13} parent=1 // pred_region
      _
    $region17: #{transformer_decoder_forward.13} parent=1 // pred_fallthru
      _
    // Predicated region
    $region18: #{transformer_decoder_forward.13} parent=1 // pred_check
      _
    $region19: #{transformer_decoder_forward.13} parent=1 // pred_check_branch
      %27 = sbr.rel (0) target = $region21
    $region20: #{transformer_decoder_forward.13} parent=1 // pred_region
      _
    $region21: #{transformer_decoder_forward.13} parent=1 // pred_fallthru
      _
    // Predicated region
    $region22: #{transformer_decoder_forward.13} parent=1 // pred_check
      _
    $region23: #{transformer_decoder_forward.13} parent=1 // pred_check_branch
      %29 = sbr.rel (0) target = $region25
    $region24: #{transformer_decoder_forward.13} parent=1 // pred_region
      _
    $region25: #{transformer_decoder_forward.13} parent=1 // pred_fallthru
      _
    // Predicated region
    $region26: #{transformer_decoder_forward.13} parent=1 // pred_check
      _
    $region27: #{transformer_decoder_forward.13} parent=1 // pred_check_branch
      %31 = sbr.rel (0) target = $region29
    $region28: #{transformer_decoder_forward.13} parent=1 // pred_region
      _
    $region29: #{transformer_decoder_forward.13} parent=1 // pred_fallthru
      _
    // Predicated region
    $region30: #{transformer_decoder_forward.13} parent=1 // pred_check
      _
    $region31: #{transformer_decoder_forward.13} parent=1 // pred_check_branch
      %33 = sbr.rel (0) target = $region33
    $region32: #{transformer_decoder_forward.13} parent=1 // pred_region
      _
    $region33: #{transformer_decoder_forward.13} parent=1 // pred_fallthru
      _
    // Predicated region
    $region34: #{transformer_decoder_forward.13} parent=1 // pred_check
      _
    $region35: #{transformer_decoder_forward.13} parent=1 // pred_check_branch
      %35 = sbr.rel (0) target = $region37
    $region36: #{transformer_decoder_forward.13} parent=1 // pred_region
      _
    $region37: #{transformer_decoder_forward.13} parent=1 // pred_fallthru
      _
    %v37 = vld [vmem:[%s0] sm:$0xff]
    %v38 = vld [vmem:[%s0 + $0x8] sm:$0xff]
    %v39 = vld [vmem:[%s1] sm:$0xf]
    %v40 = vld [vmem:[%s1 + $0x4] sm:$0xf]
    %v41 = vld [vmem:[%s1 + $0x8] sm:$0xf]
    %v42 = vld [vmem:[%s1 + $0xc] sm:$0xf]
    %v43 = vpack.c.bf16 %v38, %v37
    %v44 = vld [vmem:[%s2] sm:$0x1]
    %v46 = vlaneseq
    %v47 = vshrl.u32 %v46, 7
    %v48 = vsub.s32 0, %v47
    %v49 = vrot.slane %v44, %v48
    %v55 = vunpack.c.l.b16 %v39
    %v56 = vunpack.c.l.b16 %v40
    %v57 = vunpack.c.l.b16 %v41
    %v58 = vunpack.c.l.b16 %v42
    %v59 = vpack.c.b16 %v56, %v55
    %v60 = vpack.c.b16 %v58, %v57
    %vm63 = vcmask 261120
    %v65 = vsel %vm63, %v43, 0
    %67 = vmatprep.subr.bf16.mxu0 0
    %68 = vmatpush1.bf16.msra.mxu0 %v59
    %69 = vmatprep.subr.bf16.mxu0 0
    %70 = vmatpush1.bf16.msra.mxu0 %v60
    %71 = vmatprep.subr.bf16.mxu0 0
    %72 = vmatpush1.bf16.msra.mxu0 0
    %73 = vmatprep.subr.bf16.mxu0 0
    %74 = vmatpush1.bf16.msra.mxu0 0
    %75 = vmatprep.subr.bf16.mxu0 0
    %76 = vmatpush1.bf16.msra.mxu0 0
    %77 = vmatprep.subr.bf16.mxu0 0
    %78 = vmatpush1.bf16.msra.mxu0 0
    %79 = vmatprep.subr.bf16.mxu0 0
    %80 = vmatpush1.bf16.msra.mxu0 0
    %81 = vmatprep.subr.bf16.mxu0 0
    %82 = vmatpush1.bf16.msra.mxu0 0
    %83 = vmatprep.subr.bf16.mxu0 0
    %84 = vmatpush1.bf16.msra.mxu0 0
    %85 = vmatprep.subr.bf16.mxu0 0
    %86 = vmatpush1.bf16.msra.mxu0 0
    %87 = vmatprep.subr.bf16.mxu0 0
    %88 = vmatpush1.bf16.msra.mxu0 0
    %89 = vmatprep.subr.bf16.mxu0 0
    %90 = vmatpush1.bf16.msra.mxu0 0
    %91 = vmatprep.subr.bf16.mxu0 0
    %92 = vmatpush1.bf16.msra.mxu0 0
    %93 = vmatprep.subr.bf16.mxu0 0
    %94 = vmatpush1.bf16.msra.mxu0 0
    %95 = vmatprep.subr.bf16.mxu0 0
    %96 = vmatpush1.bf16.msra.mxu0 0
    %97 = vmatprep.subr.bf16.mxu0 0
    %98 = vmatpush1.bf16.msra.mxu0 0
    %99 = vmatprep.mubr.bf16.mxu0 0
    %100 = vmatmul.mubr.bf16.gmra.mrb[0].mxu0 %v65
    %v101 = vpop.f32.mrb[0].mxu0
    %v102 = vadd.f32 %v49, %v101
    %v103 = vpop.f32.mrb[0].mxu0
    %v104 = vpop.f32.mrb[0].mxu0
    %v105 = vadd.f32 %v49, %v104
    %v106 = vpop.f32.mrb[0].mxu0
    %107 = vdwg.mxu0
    %v108 = vmax.f32 %v102, 0.0
    %v109 = vmax.f32 %v105, 0.0
    %v110 = vld [vmem:[%s3] sm:$0xf]
    %v111 = vld [vmem:[%s3 + $0x4] sm:$0xf]
    %v112 = vld [vmem:[%s3 + $0x8] sm:$0xf]
    %v113 = vld [vmem:[%s3 + $0xc] sm:$0xf]
    %v114 = vld [vmem:[%s3 + $0x10] sm:$0xf]
    %v115 = vld [vmem:[%s3 + $0x14] sm:$0xf]
    %v116 = vld [vmem:[%s3 + $0x18] sm:$0xf]
    %v117 = vld [vmem:[%s3 + $0x1c] sm:$0xf]
    %v118 = vpack.c.bf16 %v109, %v108
    %v119 = vld [vmem:[%s4] sm:$0x1]
    %v121 = vlaneseq
    %v122 = vshrl.u32 %v121, 7
    %v123 = vsub.s32 0, %v122
    %v124 = vrot.slane %v119, %v123
    %v134 = vunpack.c.l.b16 %v110
    %v135 = vunpack.c.l.b16 %v111
    %v136 = vunpack.c.l.b16 %v112
    %v137 = vunpack.c.l.b16 %v113
    %v138 = vunpack.c.l.b16 %v114
    %v139 = vunpack.c.l.b16 %v115
    %v140 = vunpack.c.l.b16 %v116
    %v141 = vunpack.c.l.b16 %v117
    %v142 = vpack.c.b16 %v135, %v134
    %v143 = vpack.c.b16 %v137, %v136
    %v144 = vpack.c.b16 %v139, %v138
    %v145 = vpack.c.b16 %v141, %v140
    %vm150 = vcmask 523264
    %v152 = vsel %vm150, %v118, 0
    %154 = vmatprep.subr.bf16.mxu0 0
    %155 = vmatpush1.bf16.msra.mxu0 %v142
    %156 = vmatprep.subr.bf16.mxu0 0
    %157 = vmatpush1.bf16.msra.mxu0 %v143
    %158 = vmatprep.subr.bf16.mxu0 0
    %159 = vmatpush1.bf16.msra.mxu0 %v144
    %160 = vmatprep.subr.bf16.mxu0 0
    %161 = vmatpush1.bf16.msra.mxu0 %v145
    %162 = vmatprep.subr.bf16.mxu0 0
    %163 = vmatpush1.bf16.msra.mxu0 0
    %164 = vmatprep.subr.bf16.mxu0 0
    %165 = vmatpush1.bf16.msra.mxu0 0
    %166 = vmatprep.subr.bf16.mxu0 0
    %167 = vmatpush1.bf16.msra.mxu0 0
    %168 = vmatprep.subr.bf16.mxu0 0
    %169 = vmatpush1.bf16.msra.mxu0 0
    %170 = vmatprep.subr.bf16.mxu0 0
    %171 = vmatpush1.bf16.msra.mxu0 0
    %172 = vmatprep.subr.bf16.mxu0 0
    %173 = vmatpush1.bf16.msra.mxu0 0
    %174 = vmatprep.subr.bf16.mxu0 0
    %175 = vmatpush1.bf16.msra.mxu0 0
    %176 = vmatprep.subr.bf16.mxu0 0
    %177 = vmatpush1.bf16.msra.mxu0 0
    %178 = vmatprep.subr.bf16.mxu0 0
    %179 = vmatpush1.bf16.msra.mxu0 0
    %180 = vmatprep.subr.bf16.mxu0 0
    %181 = vmatpush1.bf16.msra.mxu0 0
    %182 = vmatprep.subr.bf16.mxu0 0
    %183 = vmatpush1.bf16.msra.mxu0 0
    %184 = vmatprep.subr.bf16.mxu0 0
    %185 = vmatpush1.bf16.msra.mxu0 0
    %186 = vmatprep.mubr.bf16.mxu0 0
    %187 = vmatmul.mubr.bf16.gmra.mrb[0].mxu0 %v152
    %v188 = vpop.f32.mrb[0].mxu0
    %v189 = vadd.f32 %v124, %v188
    %v190 = vpop.f32.mrb[0].mxu0
    %v191 = vpop.f32.mrb[0].mxu0
    %v192 = vadd.f32 %v124, %v191
    %v193 = vpop.f32.mrb[0].mxu0
    %194 = vdwg.mxu0
    %v195 = vadd.f32 %v37, %v189
    %v196 = vadd.f32 %v38, %v192
    %v197 = vld [vmem:[%s5] sm:$0x1]
    %v198 = vld [vmem:[%s6] sm:$0x1]
    %v199 = vsel %vm63, %v195, 0.0
    %200 = vadd.xlane.f32.xlu0 %v199
    %v201 = vpop.xlane.xlu0 %200
    %v202 = vsel %vm63, %v196, 0.0
    %203 = vadd.xlane.f32.xlu0 %v202
    %v204 = vpop.xlane.xlu0 %203
    %v205 = vrcp.pop 32.0
    %v206 = vmul.f32 %v201, %v205
    %v207 = vmul.f32 %v204, %v205
    %v208 = vsub.f32 %v195, %v206
    %v209 = vsub.f32 %v196, %v207
    %v210 = vmul.f32 %v208, %v208
    %v211 = vmul.f32 %v209, %v209
    %v212 = vsel %vm63, %v210, 0.0
    %213 = vadd.xlane.f32.xlu0 %v212
    %v214 = vpop.xlane.xlu0 %213
    %v215 = vsel %vm63, %v211, 0.0
    %216 = vadd.xlane.f32.xlu0 %v215
    %v217 = vpop.xlane.xlu0 %216
    %v218 = vmul.f32 %v214, %v205
    %v219 = vmul.f32 %v217, %v205
    %v220 = vadd.f32 %v218, 1e-05
    %v221 = vadd.f32 %v219, 1e-05
    %v222 = vrsqrt.pop %v220
    %v223 = vrsqrt.pop %v221
    %v224 = vmul.f32 %v208, %v222
    %v225 = vmul.f32 %v209, %v223
    %v227 = vlaneseq
    %v228 = vshrl.u32 %v227, 7
    %v229 = vsub.s32 0, %v228
    %v230 = vrot.slane %v197, %v229
    %v232 = vmul.f32 %v224, %v230
    %v233 = vmul.f32 %v225, %v230
    %v235 = vlaneseq
    %v236 = vshrl.u32 %v235, 7
    %v237 = vsub.s32 0, %v236
    %v238 = vrot.slane %v198, %v237
    %v240 = vadd.f32 %v232, %v238
    %v241 = vadd.f32 %v233, %v238
    %242 = vst.msk [vmem:[#allocation2] sm:$0xff] %vm63, %v240
    %243 = vst.msk [vmem:[#allocation2 + $0x8] sm:$0xff] %vm63, %v241
    %v244 = vld [vmem:[%s7] sm:$0x1]
    %v245 = vld [vmem:[%s8] sm:$0x1]
    %v246 = vsel %vm63, %v240, 0.0
    %247 = vadd.xlane.f32.xlu0 %v246
    %v248 = vpop.xlane.xlu0 %247
    %v249 = vsel %vm63, %v241, 0.0
    %250 = vadd.xlane.f32.xlu0 %v249
    %v251 = vpop.xlane.xlu0 %250
    %v252 = vmul.f32 %v248, %v205
    %v253 = vmul.f32 %v251, %v205
    %v254 = vsub.f32 %v240, %v252
    %v255 = vsub.f32 %v241, %v253
    %v256 = vmul.f32 %v254, %v254
    %v257 = vmul.f32 %v255, %v255
    %v258 = vsel %vm63, %v256, 0.0
    %259 = vadd.xlane.f32.xlu0 %v258
    %v260 = vpop.xlane.xlu0 %259
    %v261 = vsel %vm63, %v257, 0.0
    %262 = vadd.xlane.f32.xlu0 %v261
    %v263 = vpop.xlane.xlu0 %262
    %v264 = vmul.f32 %v260, %v205
    %v265 = vmul.f32 %v263, %v205
    %v266 = vadd.f32 %v264, 1e-05
    %v267 = vadd.f32 %v265, 1e-05
    %v268 = vrsqrt.pop %v266
    %v269 = vrsqrt.pop %v267
    %v270 = vmul.f32 %v254, %v268
    %v271 = vmul.f32 %v255, %v269
    %v273 = vlaneseq
    %v274 = vshrl.u32 %v273, 7
    %v275 = vsub.s32 0, %v274
    %v276 = vrot.slane %v244, %v275
    %v278 = vmul.f32 %v270, %v276
    %v279 = vmul.f32 %v271, %v276
    %v281 = vlaneseq
    %v282 = vshrl.u32 %v281, 7
    %v283 = vsub.s32 0, %v282
    %v284 = vrot.slane %v245, %v283
    %v286 = vadd.f32 %v278, %v284
    %v287 = vadd.f32 %v279, %v284
    %288 = vst.msk [vmem:[#allocation4] sm:$0xff] %vm63, %v286
    %289 = vst.msk [vmem:[#allocation4 + $0x8] sm:$0xff] %vm63, %v287
    // Predicated region
    $region38: #{transformer_decoder_forward.13} parent=1 // pred_check
      _
    $region39: #{transformer_decoder_forward.13} parent=1 // pred_check_branch
      %291 = sbr.rel (0) target = $region41
    $region40: #{transformer_decoder_forward.13} parent=1 // pred_region
      %s293 = ssub.s32 256, 256
      %294 = vsyncadd [#allocation3], %s293
      %s295 = sshll.u32 [#allocation2], 4
      %s296 = int_to_ptr.vmem [resolvable:$true] %s295
      %301 = dma.vmem_to_hbm [thread:$0]  %s296, 256, %s9, [#allocation3], 128, 128, 8
    $region41: #{transformer_decoder_forward.13} parent=1 // pred_fallthru
      _
    // Predicated region
    $region42: #{transformer_decoder_forward.13} parent=1 // pred_check
      _
    $region43: #{transformer_decoder_forward.13} parent=1 // pred_check_branch
      %303 = sbr.rel (0) target = $region45
    $region44: #{transformer_decoder_forward.13} parent=1 // pred_region
      %s305 = ssub.s32 256, 256
      %306 = vsyncadd [#allocation5], %s305
      %s307 = sshll.u32 [#allocation4], 4
      %s308 = int_to_ptr.vmem [resolvable:$true] %s307
      %313 = dma.vmem_to_hbm [thread:$0]  %s308, 256, %s10, [#allocation5], 128, 128, 8
    $region45: #{transformer_decoder_forward.13} parent=1 // pred_fallthru
      _
    // Predicated region
    $region46: #{transformer_decoder_forward.13} parent=1 // pred_check
      _
    $region47: #{transformer_decoder_forward.13} parent=1 // pred_check_branch
      %315 = sbr.rel (0) target = $region49
    $region48: #{transformer_decoder_forward.13} parent=1 // pred_region
      %316 = dma.done [#allocation3], 256
    $region49: #{transformer_decoder_forward.13} parent=1 // pred_fallthru
      _
    // Predicated region
    $region50: #{transformer_decoder_forward.13} parent=1 // pred_check
      _
    $region51: #{transformer_decoder_forward.13} parent=1 // pred_check_branch
      %318 = sbr.rel (0) target = $region53
    $region52: #{transformer_decoder_forward.13} parent=1 // pred_region
      %319 = dma.done [#allocation5], 256
    $region53: #{transformer_decoder_forward.13} parent=1 // pred_fallthru
      _
    %320 = vsyncpa [#allocation3], 1
    %321 = vsyncpa [#allocation5], 1

// kernel: transformer_decoder_forward.9
$region0: #{transformer_decoder_forward.9}
  #allocation0 [shape = 'u32[]', space=smem, size = 0x4, offset = 0x4, fixed_abs, tag = 'smem constant byte address 0x4 - core index']
  #allocation1 [shape = 'u32[144,128]{1,0:T(1,128)}', space=vmem, size = 0x12000, scoped, tag = 'internal scratch']
  #allocation2 [shape = 'bf16[4,8,8]{2,1,0:T(8,128)(2,1)}', space=vmem, size = 0x2000, scoped, tag = 'scratch operand']
  #allocation3 [shape = 'f32[4,8,1]{2,1,0:T(8,128)}', space=vmem, size = 0x4000, scoped, tag = 'scratch operand']
  #allocation4 [shape = 'f32[4,8,1]{2,1,0:T(8,128)}', space=vmem, size = 0x4000, scoped, tag = 'scratch operand']
  #allocation5 [shape = 'f32[4,8,8]{2,1,0:T(8,128)}', space=vmem, size = 0x4000, scoped, tag = 'scratch operand']
  %s0 = inlined_call_operand.vmem [shape: f32[2,8,32], index: 0, kind: input, shape index: {}]
  %s1 = inlined_call_operand.vmem [shape: f32[2,8,32], index: 1, kind: input, shape index: {}]
  %s2 = inlined_call_operand.vmem [shape: f32[2,1024,32], index: 2, kind: input, shape index: {}]
  %s3 = inlined_call_operand.vmem [shape: f32[2,1024,32], index: 3, kind: input, shape index: {}]
  %s4 = inlined_call_operand.vmem [shape: bf16[32,32], index: 4, kind: input, shape index: {}]
  %s5 = inlined_call_operand.vmem [shape: f32[1,32], index: 5, kind: input, shape index: {}]
  %s6 = inlined_call_operand.vmem [shape: bf16[32,32], index: 6, kind: input, shape index: {}]
  %s7 = inlined_call_operand.vmem [shape: f32[1,32], index: 7, kind: input, shape index: {}]
  %s8 = inlined_call_operand.vmem [shape: bf16[32,32], index: 8, kind: input, shape index: {}]
  %s9 = inlined_call_operand.vmem [shape: f32[1,32], index: 9, kind: input, shape index: {}]
  %s10 = inlined_call_operand.vmem [shape: bf16[32,32], index: 10, kind: input, shape index: {}]
  %s11 = inlined_call_operand.vmem [shape: f32[1,32], index: 11, kind: input, shape index: {}]
  %s12 = inlined_call_operand.vmem [shape: f32[1,32], index: 12, kind: input, shape index: {}]
  %s13 = inlined_call_operand.vmem [shape: f32[1,32], index: 13, kind: input, shape index: {}]
  %s14 = inlined_call_operand.vmem [shape: f32[2,8,32], index: 14, kind: output, shape index: {}]
  %s15 = sld [smem:[#allocation0]]
  $region97: #{transformer_decoder_forward.9} parent=0
    _
  %s17 = ssub.s32 1, %s15
  %s18 = scalar_select 0, %s17, %s15
  loop: start=0, step=1, limit=6
  $region2: #{transformer_decoder_forward.9} parent=0 // loop_pre_header
    _
  $region3: #{transformer_decoder_forward.9} parent=0 // loop_header
    %s20 = sphi 0, %s24
    %p21 = scmp.ge.s32.totalorder %s20, 6
    %s27 = sphi 0, %s46
    %s28 = sphi 0, %s42
    %s29 = sphi 0, %s38
    %s30 = sphi 0, %s27
    %s31 = sphi 0, %s28
    %s32 = sphi 0, %s29
    %s33 = sphi 0, %s30
    %s34 = sphi 0, %s31
    %s35 = sphi 0, %s32
    %s51 = sphi 0, %s53
    %s54 = sphi 0, %s51
    %s55 = sphi 0, %s54
    %s71 = sphi 0, %s55
    %s79 = sphi 0, %s81
    %s82 = sphi 0, %s79
    %s83 = sphi 0, %s82
    %s99 = sphi 0, %s83
    %s107 = sphi 0, %s109
    %s110 = sphi 0, %s107
    %s111 = sphi 0, %s110
    %s127 = sphi 0, %s111
    %s135 = sphi 0, %s137
    %s138 = sphi 0, %s135
    %s139 = sphi 0, %s138
    %s155 = sphi 0, %s139
    %s159 = sphi 0, %s159
    %s161 = sphi 0, %s159
    %s162 = sphi 0, %s161
    %s176 = sphi 0, %s162
    %s180 = sphi 0, %s180
    %s182 = sphi 0, %s180
    %s183 = sphi 0, %s182
    %s197 = sphi 0, %s183
    %s201 = sphi 0, %s201
    %s203 = sphi 0, %s201
    %s204 = sphi 0, %s203
    %s218 = sphi 0, %s204
    %s222 = sphi 0, %s222
    %s224 = sphi 0, %s222
    %s225 = sphi 0, %s224
    %s239 = sphi 0, %s225
    %s243 = sphi 0, %s243
    %s245 = sphi 0, %s243
    %s246 = sphi 0, %s245
    %s260 = sphi 0, %s246
    %s264 = sphi 0, %s264
    %s266 = sphi 0, %s264
    %s267 = sphi 0, %s266
    %s281 = sphi 0, %s267
    %s285 = sphi 0, %s285
    %s287 = sphi 0, %s285
    %s288 = sphi 0, %s287
    %s302 = sphi 0, %s288
    %s306 = sphi 0, %s306
    %s308 = sphi 0, %s306
    %s309 = sphi 0, %s308
    %s323 = sphi 0, %s309
    %s327 = sphi 0, %s327
    %s329 = sphi 0, %s327
    %s330 = sphi 0, %s329
    %s344 = sphi 0, %s330
    %s348 = sphi 0, %s348
    %s350 = sphi 0, %s348
    %s351 = sphi 0, %s350
    %s365 = sphi 0, %s351
    %s373 = sphi 0, %s375
    %s376 = sphi 0, %s373
    %s377 = sphi 0, %s376
    %s393 = sphi 0, %s377
  $region4: #{transformer_decoder_forward.9} parent=0 // loop_header_branch
    %23 = sbr.rel (%p21) target = $region8
  $region5: #{transformer_decoder_forward.9} parent=0 // loop_body
    %s25 = ssub.s32 %s20, 1
    %s26 = ssub.s32 %s20, 2
    %s36 = sadd.s32 1, %s29
    %p37 = scmp.ge.s32.totalorder %s36, 2
    %s38 = scalar_select %p37, 0, %s36
    %s39 = sadd.s32 1, %s28
    %s40 = scalar_select %p37, %s39, %s28
    %p41 = scmp.ge.s32.totalorder %s40, 1
    %s42 = scalar_select %p41, 0, %s40
    %s43 = sadd.s32 1, %s27
    %s44 = scalar_select %p41, %s43, %s27
    %p45 = scmp.ge.s32.totalorder %s44, 2
    %s46 = scalar_select %p45, 0, %s44
    %s47 = ssub.s32 %s27, %s46
    %s48 = ssub.s32 %s28, %s42
    %s49 = sor.u32 %s47, %s48
    %p50 = scmp.eq.s32.totalorder %s49, 0
    %s52 = sadd.s32 %s51, 1
    %s53 = scalar_select %p50, %s51, %s52
    %p56 = pneg %p50
    %p57 = scmp.eq.s32.totalorder %s20, 3
    %p58 = por %p56, %p57
    %p59 = scmp.ne.s32.totalorder %s51, %s54
    %p60 = scmp.eq.s32.totalorder %s20, 0
    %p61 = por %p59, %p60
    %p62 = scmp.ne.s32.totalorder %s51, %s54
    %p63 = scmp.eq.s32.totalorder %s25, 3
    %p64 = por %p62, %p63
    %p65 = scmp.ne.s32.totalorder %s54, %s55
    %p66 = scmp.eq.s32.totalorder %s25, 0
    %p67 = por %p65, %p66
    %p68 = scmp.ne.s32.totalorder %s54, %s55
    %p69 = scmp.eq.s32.totalorder %s26, 3
    %p70 = por %p68, %p69
    %p72 = scmp.ne.s32.totalorder %s55, %s71
    %p73 = scmp.eq.s32.totalorder %s26, 0
    %p74 = por %p72, %p73
    %s75 = ssub.s32 %s27, %s46
    %s76 = ssub.s32 %s28, %s42
    %s77 = sor.u32 %s75, %s76
    %p78 = scmp.eq.s32.totalorder %s77, 0
    %s80 = sadd.s32 %s79, 1
    %s81 = scalar_select %p78, %s79, %s80
    %p84 = pneg %p78
    %p85 = scmp.eq.s32.totalorder %s20, 3
    %p86 = por %p84, %p85
    %p87 = scmp.ne.s32.totalorder %s79, %s82
    %p88 = scmp.eq.s32.totalorder %s20, 0
    %p89 = por %p87, %p88
    %p90 = scmp.ne.s32.totalorder %s79, %s82
    %p91 = scmp.eq.s32.totalorder %s25, 3
    %p92 = por %p90, %p91
    %p93 = scmp.ne.s32.totalorder %s82, %s83
    %p94 = scmp.eq.s32.totalorder %s25, 0
    %p95 = por %p93, %p94
    %p96 = scmp.ne.s32.totalorder %s82, %s83
    %p97 = scmp.eq.s32.totalorder %s26, 3
    %p98 = por %p96, %p97
    %p100 = scmp.ne.s32.totalorder %s83, %s99
    %p101 = scmp.eq.s32.totalorder %s26, 0
    %p102 = por %p100, %p101
    %s103 = ssub.s32 %s27, %s46
    %s104 = ssub.s32 %s29, %s38
    %s105 = sor.u32 %s103, %s104
    %p106 = scmp.eq.s32.totalorder %s105, 0
    %s108 = sadd.s32 %s107, 1
    %s109 = scalar_select %p106, %s107, %s108
    %p112 = pneg %p106
    %p113 = scmp.eq.s32.totalorder %s20, 3
    %p114 = por %p112, %p113
    %p115 = scmp.ne.s32.totalorder %s107, %s110
    %p116 = scmp.eq.s32.totalorder %s20, 0
    %p117 = por %p115, %p116
    %p118 = scmp.ne.s32.totalorder %s107, %s110
    %p119 = scmp.eq.s32.totalorder %s25, 3
    %p120 = por %p118, %p119
    %p121 = scmp.ne.s32.totalorder %s110, %s111
    %p122 = scmp.eq.s32.totalorder %s25, 0
    %p123 = por %p121, %p122
    %p124 = scmp.ne.s32.totalorder %s110, %s111
    %p125 = scmp.eq.s32.totalorder %s26, 3
    %p126 = por %p124, %p125
    %p128 = scmp.ne.s32.totalorder %s111, %s127
    %p129 = scmp.eq.s32.totalorder %s26, 0
    %p130 = por %p128, %p129
    %s131 = ssub.s32 %s27, %s46
    %s132 = ssub.s32 %s29, %s38
    %s133 = sor.u32 %s131, %s132
    %p134 = scmp.eq.s32.totalorder %s133, 0
    %s136 = sadd.s32 %s135, 1
    %s137 = scalar_select %p134, %s135, %s136
    %p140 = pneg %p134
    %p141 = scmp.eq.s32.totalorder %s20, 3
    %p142 = por %p140, %p141
    %p143 = scmp.ne.s32.totalorder %s135, %s138
    %p144 = scmp.eq.s32.totalorder %s20, 0
    %p145 = por %p143, %p144
    %p146 = scmp.ne.s32.totalorder %s135, %s138
    %p147 = scmp.eq.s32.totalorder %s25, 3
    %p148 = por %p146, %p147
    %p149 = scmp.ne.s32.totalorder %s138, %s139
    %p150 = scmp.eq.s32.totalorder %s25, 0
    %p151 = por %p149, %p150
    %p152 = scmp.ne.s32.totalorder %s138, %s139
    %p153 = scmp.eq.s32.totalorder %s26, 3
    %p154 = por %p152, %p153
    %p156 = scmp.ne.s32.totalorder %s139, %s155
    %p157 = scmp.eq.s32.totalorder %s26, 0
    %p158 = por %p156, %p157
    %s160 = sadd.s32 %s159, 1
    %p163 = scmp.eq.s32.totalorder %s20, 3
    %p164 = scmp.ne.s32.totalorder %s159, %s161
    %p165 = scmp.eq.s32.totalorder %s20, 0
    %p166 = por %p164, %p165
    %p167 = scmp.ne.s32.totalorder %s159, %s161
    %p168 = scmp.eq.s32.totalorder %s25, 3
    %p169 = por %p167, %p168
    %p170 = scmp.ne.s32.totalorder %s161, %s162
    %p171 = scmp.eq.s32.totalorder %s25, 0
    %p172 = por %p170, %p171
    %p173 = scmp.ne.s32.totalorder %s161, %s162
    %p174 = scmp.eq.s32.totalorder %s26, 3
    %p175 = por %p173, %p174
    %p177 = scmp.ne.s32.totalorder %s162, %s176
    %p178 = scmp.eq.s32.totalorder %s26, 0
    %p179 = por %p177, %p178
    %s181 = sadd.s32 %s180, 1
    %p184 = scmp.eq.s32.totalorder %s20, 3
    %p185 = scmp.ne.s32.totalorder %s180, %s182
    %p186 = scmp.eq.s32.totalorder %s20, 0
    %p187 = por %p185, %p186
    %p188 = scmp.ne.s32.totalorder %s180, %s182
    %p189 = scmp.eq.s32.totalorder %s25, 3
    %p190 = por %p188, %p189
    %p191 = scmp.ne.s32.totalorder %s182, %s183
    %p192 = scmp.eq.s32.totalorder %s25, 0
    %p193 = por %p191, %p192
    %p194 = scmp.ne.s32.totalorder %s182, %s183
    %p195 = scmp.eq.s32.totalorder %s26, 3
    %p196 = por %p194, %p195
    %p198 = scmp.ne.s32.totalorder %s183, %s197
    %p199 = scmp.eq.s32.totalorder %s26, 0
    %p200 = por %p198, %p199
    %s202 = sadd.s32 %s201, 1
    %p205 = scmp.eq.s32.totalorder %s20, 3
    %p206 = scmp.ne.s32.totalorder %s201, %s203
    %p207 = scmp.eq.s32.totalorder %s20, 0
    %p208 = por %p206, %p207
    %p209 = scmp.ne.s32.totalorder %s201, %s203
    %p210 = scmp.eq.s32.totalorder %s25, 3
    %p211 = por %p209, %p210
    %p212 = scmp.ne.s32.totalorder %s203, %s204
    %p213 = scmp.eq.s32.totalorder %s25, 0
    %p214 = por %p212, %p213
    %p215 = scmp.ne.s32.totalorder %s203, %s204
    %p216 = scmp.eq.s32.totalorder %s26, 3
    %p217 = por %p215, %p216
    %p219 = scmp.ne.s32.totalorder %s204, %s218
    %p220 = scmp.eq.s32.totalorder %s26, 0
    %p221 = por %p219, %p220
    %s223 = sadd.s32 %s222, 1
    %p226 = scmp.eq.s32.totalorder %s20, 3
    %p227 = scmp.ne.s32.totalorder %s222, %s224
    %p228 = scmp.eq.s32.totalorder %s20, 0
    %p229 = por %p227, %p228
    %p230 = scmp.ne.s32.totalorder %s222, %s224
    %p231 = scmp.eq.s32.totalorder %s25, 3
    %p232 = por %p230, %p231
    %p233 = scmp.ne.s32.totalorder %s224, %s225
    %p234 = scmp.eq.s32.totalorder %s25, 0
    %p235 = por %p233, %p234
    %p236 = scmp.ne.s32.totalorder %s224, %s225
    %p237 = scmp.eq.s32.totalorder %s26, 3
    %p238 = por %p236, %p237
    %p240 = scmp.ne.s32.totalorder %s225, %s239
    %p241 = scmp.eq.s32.totalorder %s26, 0
    %p242 = por %p240, %p241
    %s244 = sadd.s32 %s243, 1
    %p247 = scmp.eq.s32.totalorder %s20, 3
    %p248 = scmp.ne.s32.totalorder %s243, %s245
    %p249 = scmp.eq.s32.totalorder %s20, 0
    %p250 = por %p248, %p249
    %p251 = scmp.ne.s32.totalorder %s243, %s245
    %p252 = scmp.eq.s32.totalorder %s25, 3
    %p253 = por %p251, %p252
    %p254 = scmp.ne.s32.totalorder %s245, %s246
    %p255 = scmp.eq.s32.totalorder %s25, 0
    %p256 = por %p254, %p255
    %p257 = scmp.ne.s32.totalorder %s245, %s246
    %p258 = scmp.eq.s32.totalorder %s26, 3
    %p259 = por %p257, %p258
    %p261 = scmp.ne.s32.totalorder %s246, %s260
    %p262 = scmp.eq.s32.totalorder %s26, 0
    %p263 = por %p261, %p262
    %s265 = sadd.s32 %s264, 1
    %p268 = scmp.eq.s32.totalorder %s20, 3
    %p269 = scmp.ne.s32.totalorder %s264, %s266
    %p270 = scmp.eq.s32.totalorder %s20, 0
    %p271 = por %p269, %p270
    %p272 = scmp.ne.s32.totalorder %s264, %s266
    %p273 = scmp.eq.s32.totalorder %s25, 3
    %p274 = por %p272, %p273
    %p275 = scmp.ne.s32.totalorder %s266, %s267
    %p276 = scmp.eq.s32.totalorder %s25, 0
    %p277 = por %p275, %p276
    %p278 = scmp.ne.s32.totalorder %s266, %s267
    %p279 = scmp.eq.s32.totalorder %s26, 3
    %p280 = por %p278, %p279
    %p282 = scmp.ne.s32.totalorder %s267, %s281
    %p283 = scmp.eq.s32.totalorder %s26, 0
    %p284 = por %p282, %p283
    %s286 = sadd.s32 %s285, 1
    %p289 = scmp.eq.s32.totalorder %s20, 3
    %p290 = scmp.ne.s32.totalorder %s285, %s287
    %p291 = scmp.eq.s32.totalorder %s20, 0
    %p292 = por %p290, %p291
    %p293 = scmp.ne.s32.totalorder %s285, %s287
    %p294 = scmp.eq.s32.totalorder %s25, 3
    %p295 = por %p293, %p294
    %p296 = scmp.ne.s32.totalorder %s287, %s288
    %p297 = scmp.eq.s32.totalorder %s25, 0
    %p298 = por %p296, %p297
    %p299 = scmp.ne.s32.totalorder %s287, %s288
    %p300 = scmp.eq.s32.totalorder %s26, 3
    %p301 = por %p299, %p300
    %p303 = scmp.ne.s32.totalorder %s288, %s302
    %p304 = scmp.eq.s32.totalorder %s26, 0
    %p305 = por %p303, %p304
    %s307 = sadd.s32 %s306, 1
    %p310 = scmp.eq.s32.totalorder %s20, 3
    %p311 = scmp.ne.s32.totalorder %s306, %s308
    %p312 = scmp.eq.s32.totalorder %s20, 0
    %p313 = por %p311, %p312
    %p314 = scmp.ne.s32.totalorder %s306, %s308
    %p315 = scmp.eq.s32.totalorder %s25, 3
    %p316 = por %p314, %p315
    %p317 = scmp.ne.s32.totalorder %s308, %s309
    %p318 = scmp.eq.s32.totalorder %s25, 0
    %p319 = por %p317, %p318
    %p320 = scmp.ne.s32.totalorder %s308, %s309
    %p321 = scmp.eq.s32.totalorder %s26, 3
    %p322 = por %p320, %p321
    %p324 = scmp.ne.s32.totalorder %s309, %s323
    %p325 = scmp.eq.s32.totalorder %s26, 0
    %p326 = por %p324, %p325
    %s328 = sadd.s32 %s327, 1
    %p331 = scmp.eq.s32.totalorder %s20, 3
    %p332 = scmp.ne.s32.totalorder %s327, %s329
    %p333 = scmp.eq.s32.totalorder %s20, 0
    %p334 = por %p332, %p333
    %p335 = scmp.ne.s32.totalorder %s327, %s329
    %p336 = scmp.eq.s32.totalorder %s25, 3
    %p337 = por %p335, %p336
    %p338 = scmp.ne.s32.totalorder %s329, %s330
    %p339 = scmp.eq.s32.totalorder %s25, 0
    %p340 = por %p338, %p339
    %p341 = scmp.ne.s32.totalorder %s329, %s330
    %p342 = scmp.eq.s32.totalorder %s26, 3
    %p343 = por %p341, %p342
    %p345 = scmp.ne.s32.totalorder %s330, %s344
    %p346 = scmp.eq.s32.totalorder %s26, 0
    %p347 = por %p345, %p346
    %s349 = sadd.s32 %s348, 1
    %p352 = scmp.eq.s32.totalorder %s20, 3
    %p353 = scmp.ne.s32.totalorder %s348, %s350
    %p354 = scmp.eq.s32.totalorder %s20, 0
    %p355 = por %p353, %p354
    %p356 = scmp.ne.s32.totalorder %s348, %s350
    %p357 = scmp.eq.s32.totalorder %s25, 3
    %p358 = por %p356, %p357
    %p359 = scmp.ne.s32.totalorder %s350, %s351
    %p360 = scmp.eq.s32.totalorder %s25, 0
    %p361 = por %p359, %p360
    %p362 = scmp.ne.s32.totalorder %s350, %s351
    %p363 = scmp.eq.s32.totalorder %s26, 3
    %p364 = por %p362, %p363
    %p366 = scmp.ne.s32.totalorder %s351, %s365
    %p367 = scmp.eq.s32.totalorder %s26, 0
    %p368 = por %p366, %p367
    %s369 = ssub.s32 %s27, %s46
    %s370 = ssub.s32 %s28, %s42
    %s371 = sor.u32 %s369, %s370
    %p372 = scmp.eq.s32.totalorder %s371, 0
    %s374 = sadd.s32 %s373, 1
    %s375 = scalar_select %p372, %s373, %s374
    %p378 = pneg %p372
    %p379 = scmp.eq.s32.totalorder %s20, 3
    %p380 = por %p378, %p379
    %p381 = scmp.ne.s32.totalorder %s373, %s376
    %p382 = scmp.eq.s32.totalorder %s20, 0
    %p383 = por %p381, %p382
    %p384 = scmp.ne.s32.totalorder %s373, %s376
    %p385 = scmp.eq.s32.totalorder %s25, 3
    %p386 = por %p384, %p385
    %p387 = scmp.ne.s32.totalorder %s376, %s377
    %p388 = scmp.eq.s32.totalorder %s25, 0
    %p389 = por %p387, %p388
    %p390 = scmp.ne.s32.totalorder %s376, %s377
    %p391 = scmp.eq.s32.totalorder %s26, 3
    %p392 = por %p390, %p391
    %p394 = scmp.ne.s32.totalorder %s377, %s393
    %p395 = scmp.eq.s32.totalorder %s26, 0
    %p396 = por %p394, %p395
    %p397 = scmp.le.s32.totalorder 1, %s20
    %p398 = scmp.lt.s32.totalorder %s20, 5
    %p399 = pnand %p397, %p398
    %p400 = pneg %p399
    // Predicated region
    $region9: #{transformer_decoder_forward.9} parent=5 // pred_check
      _
    $region10: #{transformer_decoder_forward.9} parent=5 // pred_check_branch
      %402 = sbr.rel (%p399) target = $region12
    $region11: #{transformer_decoder_forward.9} parent=5 // pred_region
      %s403 = ssub.s32 %s20, 1
      // Predicated region
      $region13: #{transformer_decoder_forward.9} parent=11 // pred_check
        %p404 = pneg %p172
      $region14: #{transformer_decoder_forward.9} parent=11 // pred_check_branch
        %406 = sbr.rel (%p404) target = $region16
      $region15: #{transformer_decoder_forward.9} parent=11 // pred_region
        _
      $region16: #{transformer_decoder_forward.9} parent=11 // pred_fallthru
        _
      // Predicated region
      $region17: #{transformer_decoder_forward.9} parent=11 // pred_check
        %p407 = pneg %p193
      $region18: #{transformer_decoder_forward.9} parent=11 // pred_check_branch
        %409 = sbr.rel (%p407) target = $region20
      $region19: #{transformer_decoder_forward.9} parent=11 // pred_region
        _
      $region20: #{transformer_decoder_forward.9} parent=11 // pred_fallthru
        _
      // Predicated region
      $region21: #{transformer_decoder_forward.9} parent=11 // pred_check
        %p410 = pneg %p214
      $region22: #{transformer_decoder_forward.9} parent=11 // pred_check_branch
        %412 = sbr.rel (%p410) target = $region24
      $region23: #{transformer_decoder_forward.9} parent=11 // pred_region
        _
      $region24: #{transformer_decoder_forward.9} parent=11 // pred_fallthru
        _
      // Predicated region
      $region25: #{transformer_decoder_forward.9} parent=11 // pred_check
        %p413 = pneg %p235
      $region26: #{transformer_decoder_forward.9} parent=11 // pred_check_branch
        %415 = sbr.rel (%p413) target = $region28
      $region27: #{transformer_decoder_forward.9} parent=11 // pred_region
        _
      $region28: #{transformer_decoder_forward.9} parent=11 // pred_fallthru
        _
      // Predicated region
      $region29: #{transformer_decoder_forward.9} parent=11 // pred_check
        %p416 = pneg %p256
      $region30: #{transformer_decoder_forward.9} parent=11 // pred_check_branch
        %418 = sbr.rel (%p416) target = $region32
      $region31: #{transformer_decoder_forward.9} parent=11 // pred_region
        _
      $region32: #{transformer_decoder_forward.9} parent=11 // pred_fallthru
        _
      // Predicated region
      $region33: #{transformer_decoder_forward.9} parent=11 // pred_check
        %p419 = pneg %p277
      $region34: #{transformer_decoder_forward.9} parent=11 // pred_check_branch
        %421 = sbr.rel (%p419) target = $region36
      $region35: #{transformer_decoder_forward.9} parent=11 // pred_region
        _
      $region36: #{transformer_decoder_forward.9} parent=11 // pred_fallthru
        _
      // Predicated region
      $region37: #{transformer_decoder_forward.9} parent=11 // pred_check
        %p422 = pneg %p298
      $region38: #{transformer_decoder_forward.9} parent=11 // pred_check_branch
        %424 = sbr.rel (%p422) target = $region40
      $region39: #{transformer_decoder_forward.9} parent=11 // pred_region
        _
      $region40: #{transformer_decoder_forward.9} parent=11 // pred_fallthru
        _
      // Predicated region
      $region41: #{transformer_decoder_forward.9} parent=11 // pred_check
        %p425 = pneg %p319
      $region42: #{transformer_decoder_forward.9} parent=11 // pred_check_branch
        %427 = sbr.rel (%p425) target = $region44
      $region43: #{transformer_decoder_forward.9} parent=11 // pred_region
        _
      $region44: #{transformer_decoder_forward.9} parent=11 // pred_fallthru
        _
      // Predicated region
      $region45: #{transformer_decoder_forward.9} parent=11 // pred_check
        %p428 = pneg %p340
      $region46: #{transformer_decoder_forward.9} parent=11 // pred_check_branch
        %430 = sbr.rel (%p428) target = $region48
      $region47: #{transformer_decoder_forward.9} parent=11 // pred_region
        _
      $region48: #{transformer_decoder_forward.9} parent=11 // pred_fallthru
        _
      // Predicated region
      $region49: #{transformer_decoder_forward.9} parent=11 // pred_check
        %p431 = pneg %p361
      $region50: #{transformer_decoder_forward.9} parent=11 // pred_check_branch
        %433 = sbr.rel (%p431) target = $region52
      $region51: #{transformer_decoder_forward.9} parent=11 // pred_region
        _
      $region52: #{transformer_decoder_forward.9} parent=11 // pred_fallthru
        _
    $region12: #{transformer_decoder_forward.9} parent=5 // pred_fallthru
      _
    %p434 = scmp.lt.s32.totalorder %s20, 4
    // Predicated region
    $region53: #{transformer_decoder_forward.9} parent=5 // pred_check
      %p435 = pneg %p434
    $region54: #{transformer_decoder_forward.9} parent=5 // pred_check_branch
      %437 = sbr.rel (%p435) target = $region56
    $region55: #{transformer_decoder_forward.9} parent=5 // pred_region
      // Predicated region
      $region57: #{transformer_decoder_forward.9} parent=55 // pred_check
        %p438 = pneg %p61
      $region58: #{transformer_decoder_forward.9} parent=55 // pred_check_branch
        %440 = sbr.rel (%p438) target = $region60
      $region59: #{transformer_decoder_forward.9} parent=55 // pred_region
        %p441 = scmp.lt.s32.totalorder %s27, 1
        %s442 = scalar_select %p441, %s27, 1
        %p443 = scmp.lt.s32.totalorder %s28, 0
        %s444 = scalar_select %p443, %s28, 0
        %s445 = sadd.s32 %s444, %s442
        %s446 = smul.addr %s445, 8
        %s447 = scalar_lea.vmem %s0, %s446
      $region60: #{transformer_decoder_forward.9} parent=55 // pred_fallthru
        _
      // Predicated region
      $region61: #{transformer_decoder_forward.9} parent=55 // pred_check
        %p448 = pneg %p89
      $region62: #{transformer_decoder_forward.9} parent=55 // pred_check_branch
        %450 = sbr.rel (%p448) target = $region64
      $region63: #{transformer_decoder_forward.9} parent=55 // pred_region
        %p451 = scmp.lt.s32.totalorder %s27, 1
        %s452 = scalar_select %p451, %s27, 1
        %p453 = scmp.lt.s32.totalorder %s28, 0
        %s454 = scalar_select %p453, %s28, 0
        %s455 = sadd.s32 %s454, %s452
        %s456 = smul.addr %s455, 8
        %s457 = scalar_lea.vmem %s1, %s456
      $region64: #{transformer_decoder_forward.9} parent=55 // pred_fallthru
        _
      // Predicated region
      $region65: #{transformer_decoder_forward.9} parent=55 // pred_check
        %p458 = pneg %p117
      $region66: #{transformer_decoder_forward.9} parent=55 // pred_check_branch
        %460 = sbr.rel (%p458) target = $region68
      $region67: #{transformer_decoder_forward.9} parent=55 // pred_region
        %s461 = smul.u32 64, %s29
        %p462 = scmp.lt.s32.totalorder %s27, 1
        %s463 = scalar_select %p462, %s27, 1
        %p464 = scmp.lt.s32.totalorder %s461, 127
        %s465 = scalar_select %p464, %s461, 127
        %s466 = smul.addr %s463, 128
        %s467 = sadd.s32 %s465, %s466
        %s468 = smul.addr %s467, 8
        %s469 = scalar_lea.vmem %s2, %s468
        %s470 = smul.u32 64, %s29
      $region68: #{transformer_decoder_forward.9} parent=55 // pred_fallthru
        _
      // Predicated region
      $region69: #{transformer_decoder_forward.9} parent=55 // pred_check
        %p471 = pneg %p145
      $region70: #{transformer_decoder_forward.9} parent=55 // pred_check_branch
        %473 = sbr.rel (%p471) target = $region72
      $region71: #{transformer_decoder_forward.9} parent=55 // pred_region
        %s474 = smul.u32 64, %s29
        %p475 = scmp.lt.s32.totalorder %s27, 1
        %s476 = scalar_select %p475, %s27, 1
        %p477 = scmp.lt.s32.totalorder %s474, 127
        %s478 = scalar_select %p477, %s474, 127
        %s479 = smul.addr %s476, 128
        %s480 = sadd.s32 %s478, %s479
        %s481 = smul.addr %s480, 8
        %s482 = scalar_lea.vmem %s3, %s481
        %s483 = smul.u32 64, %s29
      $region72: #{transformer_decoder_forward.9} parent=55 // pred_fallthru
        _
    $region56: #{transformer_decoder_forward.9} parent=5 // pred_fallthru
      _
    %p484 = scmp.le.s32.totalorder 1, %s20
    %p485 = scmp.lt.s32.totalorder %s20, 5
    %p486 = pnand %p484, %p485
    %p487 = pneg %p486
    // Predicated region
    $region73: #{transformer_decoder_forward.9} parent=5 // pred_check
      _
    $region74: #{transformer_decoder_forward.9} parent=5 // pred_check_branch
      %489 = sbr.rel (%p486) target = $region76
    $region75: #{transformer_decoder_forward.9} parent=5 // pred_region
      %s490 = ssub.s32 %s20, 1
      %p491 = scmp.lt.s32.totalorder %s30, 1
      %s492 = scalar_select %p491, %s30, 1
      %p493 = scmp.lt.s32.totalorder %s31, 0
      %s494 = scalar_select %p493, %s31, 0
      %s495 = sadd.s32 %s494, %s492
      %s496 = smul.addr %s495, 8
      %s497 = scalar_lea.vmem %s0, %s496
      %p498 = pneg %p67
      %p499 = pneg %p64
      %p500 = scmp.lt.s32.totalorder %s30, 1
      %s501 = scalar_select %p500, %s30, 1
      %p502 = scmp.lt.s32.totalorder %s31, 0
      %s503 = scalar_select %p502, %s31, 0
      %s504 = sadd.s32 %s503, %s501
      %s505 = smul.addr %s504, 8
      %s506 = scalar_lea.vmem %s1, %s505
      %p507 = pneg %p95
      %p508 = pneg %p92
      %s509 = smul.u32 64, %s32
      %p510 = scmp.lt.s32.totalorder %s30, 1
      %s511 = scalar_select %p510, %s30, 1
      %p512 = scmp.lt.s32.totalorder %s509, 127
      %s513 = scalar_select %p512, %s509, 127
      %s514 = smul.addr %s511, 128
      %s515 = sadd.s32 %s513, %s514
      %s516 = smul.addr %s515, 8
      %s517 = scalar_lea.vmem %s2, %s516
      %p518 = pneg %p123
      %p519 = pneg %p120
      %s520 = smul.u32 64, %s32
      %p521 = scmp.lt.s32.totalorder %s30, 1
      %s522 = scalar_select %p521, %s30, 1
      %p523 = scmp.lt.s32.totalorder %s520, 127
      %s524 = scalar_select %p523, %s520, 127
      %s525 = smul.addr %s522, 128
      %s526 = sadd.s32 %s524, %s525
      %s527 = smul.addr %s526, 8
      %s528 = scalar_lea.vmem %s3, %s527
      %p529 = pneg %p151
      %p530 = pneg %p148
      %p531 = pneg %p172
      %p532 = pneg %p169
      %p533 = pneg %p193
      %p534 = pneg %p190
      %p535 = pneg %p214
      %p536 = pneg %p211
      %p537 = pneg %p235
      %p538 = pneg %p232
      %p539 = pneg %p256
      %p540 = pneg %p253
      %p541 = pneg %p277
      %p542 = pneg %p274
      %p543 = pneg %p298
      %p544 = pneg %p295
      %p545 = pneg %p319
      %p546 = pneg %p316
      %p547 = pneg %p340
      %p548 = pneg %p337
      %p549 = pneg %p361
      %p550 = pneg %p358
      %p551 = pneg %p389
      %p552 = pneg %p386
      %p553 = scmp.lt.s32.totalorder %s30, 1
      %s554 = scalar_select %p553, %s30, 1
      %p555 = scmp.lt.s32.totalorder %s31, 0
      %s556 = scalar_select %p555, %s31, 0
      %s557 = sadd.s32 %s556, %s554
      %s558 = smul.addr %s557, 8
      %s559 = scalar_lea.vmem %s14, %s558
      %p560 = scmp.lt.s32.totalorder %s30, 1
      %s561 = scalar_select %p560, %s30, 1
      %p562 = scmp.lt.s32.totalorder %s31, 0
      %s563 = scalar_select %p562, %s31, 0
      %s564 = sadd.s32 %s563, %s561
      %s565 = smul.addr %s564, 8
      %s566 = scalar_lea.vmem %s0, %s565
      %p567 = scmp.lt.s32.totalorder %s30, 1
      %s568 = scalar_select %p567, %s30, 1
      %p569 = scmp.lt.s32.totalorder %s31, 0
      %s570 = scalar_select %p569, %s31, 0
      %s571 = sadd.s32 %s570, %s568
      %s572 = smul.addr %s571, 8
      %s573 = scalar_lea.vmem %s1, %s572
      %s574 = smul.u32 64, %s32
      %p575 = scmp.lt.s32.totalorder %s30, 1
      %s576 = scalar_select %p575, %s30, 1
      %p577 = scmp.lt.s32.totalorder %s574, 127
      %s578 = scalar_select %p577, %s574, 127
      %s579 = smul.addr %s576, 128
      %s580 = sadd.s32 %s578, %s579
      %s581 = smul.addr %s580, 8
      %s582 = scalar_lea.vmem %s2, %s581
      %s583 = smul.u32 64, %s32
      %s584 = smul.u32 64, %s32
      %p585 = scmp.lt.s32.totalorder %s30, 1
      %s586 = scalar_select %p585, %s30, 1
      %p587 = scmp.lt.s32.totalorder %s584, 127
      %s588 = scalar_select %p587, %s584, 127
      %s589 = smul.addr %s586, 128
      %s590 = sadd.s32 %s588, %s589
      %s591 = smul.addr %s590, 8
      %s592 = scalar_lea.vmem %s3, %s591
      %s593 = smul.u32 64, %s32
      %p594 = scmp.lt.s32.totalorder %s30, 1
      %s595 = scalar_select %p594, %s30, 1
      %p596 = scmp.lt.s32.totalorder %s31, 0
      %s597 = scalar_select %p596, %s31, 0
      %s598 = sadd.s32 %s597, %s595
      %s599 = smul.addr %s598, 8
      %s600 = scalar_lea.vmem %s14, %s599
      %p602 = scmp.eq.s32.totalorder %s32, 0
      // Predicated region
      $region77: #{transformer_decoder_forward.9} parent=75 // pred_check
        %p603 = pneg %p602
      $region78: #{transformer_decoder_forward.9} parent=75 // pred_check_branch
        %605 = sbr.rel (%p603) target = $region80
      $region79: #{transformer_decoder_forward.9} parent=75 // pred_region
        %v606 = vld [vmem:[%s566] sm:$0xff]
        %v607 = vld [vmem:[%s573] sm:$0xff]
        %v608 = vadd.f32 %v606, %v607
        %v609 = vld [vmem:[%s4] sm:$0xf]
        %v610 = vld [vmem:[%s4 + $0x4] sm:$0xf]
        %v611 = vld [vmem:[%s4 + $0x8] sm:$0xf]
        %v612 = vld [vmem:[%s4 + $0xc] sm:$0xf]
        %v613 = vpack.c.bf16 %v608, %v608
        %v614 = vld [vmem:[%s5] sm:$0x1]
        %v616 = vlaneseq
        %v617 = vshrl.u32 %v616, 7
        %v618 = vsub.s32 0, %v617
        %v619 = vrot.slane %v614, %v618
        %v625 = vunpack.c.l.b16 %v609
        %v626 = vunpack.c.l.b16 %v610
        %v627 = vunpack.c.l.b16 %v611
        %v628 = vunpack.c.l.b16 %v612
        %v629 = vpack.c.b16 %v626, %v625
        %v630 = vpack.c.b16 %v628, %v627
        %vm633 = vcmask 261120
        %v635 = vsel %vm633, %v613, 0
        %637 = vmatprep.subr.bf16.mxu0 0
        %638 = vmatpush1.bf16.msra.mxu0 %v629
        %639 = vmatprep.subr.bf16.mxu0 0
        %640 = vmatpush1.bf16.msra.mxu0 %v630
        %641 = vmatprep.subr.bf16.mxu0 0
        %642 = vmatpush1.bf16.msra.mxu0 0
        %643 = vmatprep.subr.bf16.mxu0 0
        %644 = vmatpush1.bf16.msra.mxu0 0
        %645 = vmatprep.subr.bf16.mxu0 0
        %646 = vmatpush1.bf16.msra.mxu0 0
        %647 = vmatprep.subr.bf16.mxu0 0
        %648 = vmatpush1.bf16.msra.mxu0 0
        %649 = vmatprep.subr.bf16.mxu0 0
        %650 = vmatpush1.bf16.msra.mxu0 0
        %651 = vmatprep.subr.bf16.mxu0 0
        %652 = vmatpush1.bf16.msra.mxu0 0
        %653 = vmatprep.subr.bf16.mxu0 0
        %654 = vmatpush1.bf16.msra.mxu0 0
        %655 = vmatprep.subr.bf16.mxu0 0
        %656 = vmatpush1.bf16.msra.mxu0 0
        %657 = vmatprep.subr.bf16.mxu0 0
        %658 = vmatpush1.bf16.msra.mxu0 0
        %659 = vmatprep.subr.bf16.mxu0 0
        %660 = vmatpush1.bf16.msra.mxu0 0
        %661 = vmatprep.subr.bf16.mxu0 0
        %662 = vmatpush1.bf16.msra.mxu0 0
        %663 = vmatprep.subr.bf16.mxu0 0
        %664 = vmatpush1.bf16.msra.mxu0 0
        %665 = vmatprep.subr.bf16.mxu0 0
        %666 = vmatpush1.bf16.msra.mxu0 0
        %667 = vmatprep.subr.bf16.mxu0 0
        %668 = vmatpush1.bf16.msra.mxu0 0
        %669 = vmatprep.mubr.bf16.mxu0 0
        %670 = vmatmul.mubr.bf16.gmra.mrb[0].mxu0 %v635
        %v671 = vpop.f32.mrb[0].mxu0
        %v672 = vadd.f32 %v619, %v671
        %v673 = vpop.f32.mrb[0].mxu0
        %v674 = vpop.f32.mrb[0].mxu0
        %v675 = vpop.f32.mrb[0].mxu0
        %676 = vdwg.mxu0
        %v677 = vmul.f32 %v672, 0.35355338
        %v678 = vpack.c.bf16 %v677, %v677
        %vm679 = vcmask 60416
        %680 = vst.msk [vmem:[#allocation2] sm:$0xf] %vm679, %v678
        %v682 = vunpack.c.l.b16 %v678
        %v683 = vpack.c.b16 %v682, %v682
        %684 = vrot.lane.b32.xlu0 %v683, 120
        %v685 = vpop.permute.xlu0 %684
        %s687 = scalar_lea.vmem [#allocation2], 4
        %688 = vst.msk [vmem:[%s687] sm:$0xf] %vm679, %v685
        %689 = vrot.lane.b32.xlu0 %v683, 112
        %v690 = vpop.permute.xlu0 %689
        %s692 = scalar_lea.vmem [#allocation2], 8
        %693 = vst.msk [vmem:[%s692] sm:$0xf] %vm679, %v690
        %694 = vrot.lane.b32.xlu0 %v683, 104
        %v695 = vpop.permute.xlu0 %694
        %s697 = scalar_lea.vmem [#allocation2], 12
        %698 = vst.msk [vmem:[%s697] sm:$0xf] %vm679, %v695
        %vm699 = vcmask 7168
        %700 = vst.msk [vmem:[#allocation3] sm:$0xff] %vm699, -inf
        %701 = vst.msk [vmem:[#allocation3 + $0x8] sm:$0xff] %vm699, -inf
        %702 = vst.msk [vmem:[#allocation3 + $0x10] sm:$0xff] %vm699, -inf
        %703 = vst.msk [vmem:[#allocation3 + $0x18] sm:$0xff] %vm699, -inf
        %704 = vst.msk [vmem:[#allocation4] sm:$0xff] %vm699, 0.0
        %705 = vst.msk [vmem:[#allocation4 + $0x8] sm:$0xff] %vm699, 0.0
        %706 = vst.msk [vmem:[#allocation4 + $0x10] sm:$0xff] %vm699, 0.0
        %707 = vst.msk [vmem:[#allocation4 + $0x18] sm:$0xff] %vm699, 0.0
        %vm708 = vcmask 64512
        %709 = vst.msk [vmem:[#allocation5] sm:$0xff] %vm708, 0.0
        %710 = vst.msk [vmem:[#allocation5 + $0x8] sm:$0xff] %vm708, 0.0
        %711 = vst.msk [vmem:[#allocation5 + $0x10] sm:$0xff] %vm708, 0.0
        %712 = vst.msk [vmem:[#allocation5 + $0x18] sm:$0xff] %vm708, 0.0
      $region80: #{transformer_decoder_forward.9} parent=75 // pred_fallthru
        _
      %v713 = vld [vmem:[%s582] sm:$0xff]
      %v714 = vld [vmem:[%s582 + $0x8] sm:$0xff]
      %v715 = vld [vmem:[%s582 + $0x10] sm:$0xff]
      %v716 = vld [vmem:[%s582 + $0x18] sm:$0xff]
      %v717 = vld [vmem:[%s582 + $0x20] sm:$0xff]
      %v718 = vld [vmem:[%s582 + $0x28] sm:$0xff]
      %v719 = vld [vmem:[%s582 + $0x30] sm:$0xff]
      %v720 = vld [vmem:[%s582 + $0x38] sm:$0xff]
      %v721 = vld [vmem:[%s582 + $0x40] sm:$0xff]
      %v722 = vld [vmem:[%s582 + $0x48] sm:$0xff]
      %v723 = vld [vmem:[%s582 + $0x50] sm:$0xff]
      %v724 = vld [vmem:[%s582 + $0x58] sm:$0xff]
      %v725 = vld [vmem:[%s582 + $0x60] sm:$0xff]
      %v726 = vld [vmem:[%s582 + $0x68] sm:$0xff]
      %v727 = vld [vmem:[%s582 + $0x70] sm:$0xff]
      %v728 = vld [vmem:[%s582 + $0x78] sm:$0xff]
      %v729 = vld [vmem:[%s582 + $0x80] sm:$0xff]
      %v730 = vld [vmem:[%s582 + $0x88] sm:$0xff]
      %v731 = vld [vmem:[%s582 + $0x90] sm:$0xff]
      %v732 = vld [vmem:[%s582 + $0x98] sm:$0xff]
      %v733 = vld [vmem:[%s582 + $0xa0] sm:$0xff]
      %v734 = vld [vmem:[%s582 + $0xa8] sm:$0xff]
      %v735 = vld [vmem:[%s582 + $0xb0] sm:$0xff]
      %v736 = vld [vmem:[%s582 + $0xb8] sm:$0xff]
      %v737 = vld [vmem:[%s582 + $0xc0] sm:$0xff]
      %v738 = vld [vmem:[%s582 + $0xc8] sm:$0xff]
      %v739 = vld [vmem:[%s582 + $0xd0] sm:$0xff]
      %v740 = vld [vmem:[%s582 + $0xd8] sm:$0xff]
      %v741 = vld [vmem:[%s582 + $0xe0] sm:$0xff]
      %v742 = vld [vmem:[%s582 + $0xe8] sm:$0xff]
      %v743 = vld [vmem:[%s582 + $0xf0] sm:$0xff]
      %v744 = vld [vmem:[%s582 + $0xf8] sm:$0xff]
      %v745 = vld [vmem:[%s582 + $0x100] sm:$0xff]
      %v746 = vld [vmem:[%s582 + $0x108] sm:$0xff]
      %v747 = vld [vmem:[%s582 + $0x110] sm:$0xff]
      %v748 = vld [vmem:[%s582 + $0x118] sm:$0xff]
      %v749 = vld [vmem:[%s582 + $0x120] sm:$0xff]
      %v750 = vld [vmem:[%s582 + $0x128] sm:$0xff]
      %v751 = vld [vmem:[%s582 + $0x130] sm:$0xff]
      %v752 = vld [vmem:[%s582 + $0x138] sm:$0xff]
      %v753 = vld [vmem:[%s582 + $0x140] sm:$0xff]
      %v754 = vld [vmem:[%s582 + $0x148] sm:$0xff]
      %v755 = vld [vmem:[%s582 + $0x150] sm:$0xff]
      %v756 = vld [vmem:[%s582 + $0x158] sm:$0xff]
      %v757 = vld [vmem:[%s582 + $0x160] sm:$0xff]
      %v758 = vld [vmem:[%s582 + $0x168] sm:$0xff]
      %v759 = vld [vmem:[%s582 + $0x170] sm:$0xff]
      %v760 = vld [vmem:[%s582 + $0x178] sm:$0xff]
      %v761 = vld [vmem:[%s582 + $0x180] sm:$0xff]
      %v762 = vld [vmem:[%s582 + $0x188] sm:$0xff]
      %v763 = vld [vmem:[%s582 + $0x190] sm:$0xff]
      %v764 = vld [vmem:[%s582 + $0x198] sm:$0xff]
      %v765 = vld [vmem:[%s582 + $0x1a0] sm:$0xff]
      %v766 = vld [vmem:[%s582 + $0x1a8] sm:$0xff]
      %v767 = vld [vmem:[%s582 + $0x1b0] sm:$0xff]
      %v768 = vld [vmem:[%s582 + $0x1b8] sm:$0xff]
      %v769 = vld [vmem:[%s582 + $0x1c0] sm:$0xff]
      %v770 = vld [vmem:[%s582 + $0x1c8] sm:$0xff]
      %v771 = vld [vmem:[%s582 + $0x1d0] sm:$0xff]
      %v772 = vld [vmem:[%s582 + $0x1d8] sm:$0xff]
      %v773 = vld [vmem:[%s582 + $0x1e0] sm:$0xff]
      %v774 = vld [vmem:[%s582 + $0x1e8] sm:$0xff]
      %v775 = vld [vmem:[%s582 + $0x1f0] sm:$0xff]
      %v776 = vld [vmem:[%s582 + $0x1f8] sm:$0xff]
      %v777 = vld [vmem:[%s6] sm:$0xf]
      %v778 = vld [vmem:[%s6 + $0x4] sm:$0xf]
      %v779 = vld [vmem:[%s6 + $0x8] sm:$0xf]
      %v780 = vld [vmem:[%s6 + $0xc] sm:$0xf]
      %v781 = vpack.c.bf16 %v714, %v713
      %v782 = vpack.c.bf16 %v716, %v715
      %v783 = vpack.c.bf16 %v718, %v717
      %v784 = vpack.c.bf16 %v720, %v719
      %v785 = vpack.c.bf16 %v722, %v721
      %v786 = vpack.c.bf16 %v724, %v723
      %v787 = vpack.c.bf16 %v726, %v725
      %v788 = vpack.c.bf16 %v728, %v727
      %v789 = vpack.c.bf16 %v730, %v729
      %v790 = vpack.c.bf16 %v732, %v731
      %v791 = vpack.c.bf16 %v734, %v733
      %v792 = vpack.c.bf16 %v736, %v735
      %v793 = vpack.c.bf16 %v738, %v737
      %v794 = vpack.c.bf16 %v740, %v739
      %v795 = vpack.c.bf16 %v742, %v741
      %v796 = vpack.c.bf16 %v744, %v743
      %v797 = vpack.c.bf16 %v746, %v745
      %v798 = vpack.c.bf16 %v748, %v747
      %v799 = vpack.c.bf16 %v750, %v749
      %v800 = vpack.c.bf16 %v752, %v751
      %v801 = vpack.c.bf16 %v754, %v753
      %v802 = vpack.c.bf16 %v756, %v755
      %v803 = vpack.c.bf16 %v758, %v757
      %v804 = vpack.c.bf16 %v760, %v759
      %v805 = vpack.c.bf16 %v762, %v761
      %v806 = vpack.c.bf16 %v764, %v763
      %v807 = vpack.c.bf16 %v766, %v765
      %v808 = vpack.c.bf16 %v768, %v767
      %v809 = vpack.c.bf16 %v770, %v769
      %v810 = vpack.c.bf16 %v772, %v771
      %v811 = vpack.c.bf16 %v774, %v773
      %v812 = vpack.c.bf16 %v776, %v775
      %v813 = vld [vmem:[%s7] sm:$0x1]
      %v815 = vlaneseq
      %v816 = vshrl.u32 %v815, 7
      %v817 = vsub.s32 0, %v816
      %v818 = vrot.slane %v813, %v817
      %v824 = vunpack.c.l.b16 %v777
      %v825 = vunpack.c.l.b16 %v778
      %v826 = vunpack.c.l.b16 %v779
      %v827 = vunpack.c.l.b16 %v780
      %v828 = vpack.c.b16 %v825, %v824
      %v829 = vpack.c.b16 %v827, %v826
      %vm832 = vcmask 261120
      %v834 = vsel %vm832, %v781, 0
      %v837 = vsel %vm832, %v782, 0
      %v840 = vsel %vm832, %v783, 0
      %v843 = vsel %vm832, %v784, 0
      %v846 = vsel %vm832, %v785, 0
      %v849 = vsel %vm832, %v786, 0
      %v852 = vsel %vm832, %v787, 0
      %v855 = vsel %vm832, %v788, 0
      %v858 = vsel %vm832, %v789, 0
      %v861 = vsel %vm832, %v790, 0
      %v864 = vsel %vm832, %v791, 0
      %v867 = vsel %vm832, %v792, 0
      %v870 = vsel %vm832, %v793, 0
      %v873 = vsel %vm832, %v794, 0
      %v876 = vsel %vm832, %v795, 0
      %v879 = vsel %vm832, %v796, 0
      %v882 = vsel %vm832, %v797, 0
      %v885 = vsel %vm832, %v798, 0
      %v888 = vsel %vm832, %v799, 0
      %v891 = vsel %vm832, %v800, 0
      %v894 = vsel %vm832, %v801, 0
      %v897 = vsel %vm832, %v802, 0
      %v900 = vsel %vm832, %v803, 0
      %v903 = vsel %vm832, %v804, 0
      %v906 = vsel %vm832, %v805, 0
      %v909 = vsel %vm832, %v806, 0
      %v912 = vsel %vm832, %v807, 0
      %v915 = vsel %vm832, %v808, 0
      %v918 = vsel %vm832, %v809, 0
      %v921 = vsel %vm832, %v810, 0
      %v924 = vsel %vm832, %v811, 0
      %v927 = vsel %vm832, %v812, 0
      %929 = vmatprep.subr.bf16.mxu0 0
      %930 = vmatpush1.bf16.msra.mxu0 %v828
      %931 = vmatprep.subr.bf16.mxu0 0
      %932 = vmatpush1.bf16.msra.mxu0 %v829
      %933 = vmatprep.subr.bf16.mxu0 0
      %934 = vmatpush1.bf16.msra.mxu0 0
      %935 = vmatprep.subr.bf16.mxu0 0
      %936 = vmatpush1.bf16.msra.mxu0 0
      %937 = vmatprep.subr.bf16.mxu0 0
      %938 = vmatpush1.bf16.msra.mxu0 0
      %939 = vmatprep.subr.bf16.mxu0 0
      %940 = vmatpush1.bf16.msra.mxu0 0
      %941 = vmatprep.subr.bf16.mxu0 0
      %942 = vmatpush1.bf16.msra.mxu0 0
      %943 = vmatprep.subr.bf16.mxu0 0
      %944 = vmatpush1.bf16.msra.mxu0 0
      %945 = vmatprep.subr.bf16.mxu0 0
      %946 = vmatpush1.bf16.msra.mxu0 0
      %947 = vmatprep.subr.bf16.mxu0 0
      %948 = vmatpush1.bf16.msra.mxu0 0
      %949 = vmatprep.subr.bf16.mxu0 0
      %950 = vmatpush1.bf16.msra.mxu0 0
      %951 = vmatprep.subr.bf16.mxu0 0
      %952 = vmatpush1.bf16.msra.mxu0 0
      %953 = vmatprep.subr.bf16.mxu0 0
      %954 = vmatpush1.bf16.msra.mxu0 0
      %955 = vmatprep.subr.bf16.mxu0 0
      %956 = vmatpush1.bf16.msra.mxu0 0
      %957 = vmatprep.subr.bf16.mxu0 0
      %958 = vmatpush1.bf16.msra.mxu0 0
      %959 = vmatprep.subr.bf16.mxu0 0
      %960 = vmatpush1.bf16.msra.mxu0 0
      %961 = vmatprep.mubr.bf16.mxu0 0
      %962 = vmatmul.mubr.bf16.gmra.mrb[0].mxu0 %v834
      %v963 = vpop.f32.mrb[0].mxu0
      %v964 = vadd.f32 %v818, %v963
      %v965 = vpop.f32.mrb[0].mxu0
      %v966 = vpop.f32.mrb[0].mxu0
      %v967 = vadd.f32 %v818, %v966
      %v968 = vpop.f32.mrb[0].mxu0
      %969 = vmatprep.mubr.bf16.mxu0 0
      %970 = vmatmul.mubr.bf16.gmra.mrb[0].mxu0 %v837
      %v971 = vpop.f32.mrb[0].mxu0
      %v972 = vadd.f32 %v818, %v971
      %v973 = vpop.f32.mrb[0].mxu0
      %v974 = vpop.f32.mrb[0].mxu0
      %v975 = vadd.f32 %v818, %v974
      %v976 = vpop.f32.mrb[0].mxu0
      %977 = vmatprep.mubr.bf16.mxu0 0
      %978 = vmatmul.mubr.bf16.gmra.mrb[0].mxu0 %v840
      %v979 = vpop.f32.mrb[0].mxu0
      %v980 = vadd.f32 %v818, %v979
      %v981 = vpop.f32.mrb[0].mxu0
      %v982 = vpop.f32.mrb[0].mxu0
      %v983 = vadd.f32 %v818, %v982
      %v984 = vpop.f32.mrb[0].mxu0
      %985 = vmatprep.mubr.bf16.mxu0 0
      %986 = vmatmul.mubr.bf16.gmra.mrb[0].mxu0 %v843
      %v987 = vpop.f32.mrb[0].mxu0
      %v988 = vadd.f32 %v818, %v987
      %v989 = vpop.f32.mrb[0].mxu0
      %v990 = vpop.f32.mrb[0].mxu0
      %v991 = vadd.f32 %v818, %v990
      %v992 = vpop.f32.mrb[0].mxu0
      %993 = vmatprep.mubr.bf16.mxu0 0
      %994 = vmatmul.mubr.bf16.gmra.mrb[0].mxu0 %v846
      %v995 = vpop.f32.mrb[0].mxu0
      %v996 = vadd.f32 %v818, %v995
      %v997 = vpop.f32.mrb[0].mxu0
      %v998 = vpop.f32.mrb[0].mxu0
      %v999 = vadd.f32 %v818, %v998
      %v1000 = vpop.f32.mrb[0].mxu0
      %1001 = vmatprep.mubr.bf16.mxu0 0
      %1002 = vmatmul.mubr.bf16.gmra.mrb[0].mxu0 %v849
      %v1003 = vpop.f32.mrb[0].mxu0
      %v1004 = vadd.f32 %v818, %v1003
      %v1005 = vpop.f32.mrb[0].mxu0
      %v1006 = vpop.f32.mrb[0].mxu0
      %v1007 = vadd.f32 %v818, %v1006
      %v1008 = vpop.f32.mrb[0].mxu0
      %1009 = vmatprep.mubr.bf16.mxu0 0
      %1010 = vmatmul.mubr.bf16.gmra.mrb[0].mxu0 %v852
      %v1011 = vpop.f32.mrb[0].mxu0
      %v1012 = vadd.f32 %v818, %v1011
      %v1013 = vpop.f32.mrb[0].mxu0
      %v1014 = vpop.f32.mrb[0].mxu0
      %v1015 = vadd.f32 %v818, %v1014
      %v1016 = vpop.f32.mrb[0].mxu0
      %1017 = vmatprep.mubr.bf16.mxu0 0
      %1018 = vmatmul.mubr.bf16.gmra.mrb[0].mxu0 %v855
      %v1019 = vpop.f32.mrb[0].mxu0
      %v1020 = vadd.f32 %v818, %v1019
      %v1021 = vpop.f32.mrb[0].mxu0
      %v1022 = vpop.f32.mrb[0].mxu0
      %v1023 = vadd.f32 %v818, %v1022
      %v1024 = vpop.f32.mrb[0].mxu0
      %1025 = vmatprep.mubr.bf16.mxu0 0
      %1026 = vmatmul.mubr.bf16.gmra.mrb[0].mxu0 %v858
      %v1027 = vpop.f32.mrb[0].mxu0
      %v1028 = vadd.f32 %v818, %v1027
      %v1029 = vpop.f32.mrb[0].mxu0
      %v1030 = vpop.f32.mrb[0].mxu0
      %v1031 = vadd.f32 %v818, %v1030
      %v1032 = vpop.f32.mrb[0].mxu0
      %1033 = vmatprep.mubr.bf16.mxu0 0
      %1034 = vmatmul.mubr.bf16.gmra.mrb[0].mxu0 %v861
      %v1035 = vpop.f32.mrb[0].mxu0
      %v1036 = vadd.f32 %v818, %v1035
      %v1037 = vpop.f32.mrb[0].mxu0
      %v1038 = vpop.f32.mrb[0].mxu0
      %v1039 = vadd.f32 %v818, %v1038
      %v1040 = vpop.f32.mrb[0].mxu0
      %1041 = vmatprep.mubr.bf16.mxu0 0
      %1042 = vmatmul.mubr.bf16.gmra.mrb[0].mxu0 %v864
      %v1043 = vpop.f32.mrb[0].mxu0
      %v1044 = vadd.f32 %v818, %v1043
      %v1045 = vpop.f32.mrb[0].mxu0
      %v1046 = vpop.f32.mrb[0].mxu0
      %v1047 = vadd.f32 %v818, %v1046
      %v1048 = vpop.f32.mrb[0].mxu0
      %1049 = vmatprep.mubr.bf16.mxu0 0
      %1050 = vmatmul.mubr.bf16.gmra.mrb[0].mxu0 %v867
      %v1051 = vpop.f32.mrb[0].mxu0
      %v1052 = vadd.f32 %v818, %v1051
      %v1053 = vpop.f32.mrb[0].mxu0
      %v1054 = vpop.f32.mrb[0].mxu0
      %v1055 = vadd.f32 %v818, %v1054
      %v1056 = vpop.f32.mrb[0].mxu0
      %1057 = vmatprep.mubr.bf16.mxu0 0
      %1058 = vmatmul.mubr.bf16.gmra.mrb[0].mxu0 %v870
      %v1059 = vpop.f32.mrb[0].mxu0
      %v1060 = vadd.f32 %v818, %v1059
      %v1061 = vpop.f32.mrb[0].mxu0
      %v1062 = vpop.f32.mrb[0].mxu0
      %v1063 = vadd.f32 %v818, %v1062
      %v1064 = vpop.f32.mrb[0].mxu0
      %1065 = vmatprep.mubr.bf16.mxu0 0
      %1066 = vmatmul.mubr.bf16.gmra.mrb[0].mxu0 %v873
      %v1067 = vpop.f32.mrb[0].mxu0
      %v1068 = vadd.f32 %v818, %v1067
      %v1069 = vpop.f32.mrb[0].mxu0
      %v1070 = vpop.f32.mrb[0].mxu0
      %v1071 = vadd.f32 %v818, %v1070
      %v1072 = vpop.f32.mrb[0].mxu0
      %1073 = vmatprep.mubr.bf16.mxu0 0
      %1074 = vmatmul.mubr.bf16.gmra.mrb[0].mxu0 %v876
      %v1075 = vpop.f32.mrb[0].mxu0
      %v1076 = vadd.f32 %v818, %v1075
      %v1077 = vpop.f32.mrb[0].mxu0
      %v1078 = vpop.f32.mrb[0].mxu0
      %v1079 = vadd.f32 %v818, %v1078
      %v1080 = vpop.f32.mrb[0].mxu0
      %1081 = vmatprep.mubr.bf16.mxu0 0
      %1082 = vmatmul.mubr.bf16.gmra.mrb[0].mxu0 %v879
      %v1083 = vpop.f32.mrb[0].mxu0
      %v1084 = vadd.f32 %v818, %v1083
      %v1085 = vpop.f32.mrb[0].mxu0
      %v1086 = vpop.f32.mrb[0].mxu0
      %v1087 = vadd.f32 %v818, %v1086
      %v1088 = vpop.f32.mrb[0].mxu0
      %1089 = vmatprep.mubr.bf16.mxu0 0
      %1090 = vmatmul.mubr.bf16.gmra.mrb[0].mxu0 %v882
      %v1091 = vpop.f32.mrb[0].mxu0
      %v1092 = vadd.f32 %v818, %v1091
      %v1093 = vpop.f32.mrb[0].mxu0
      %v1094 = vpop.f32.mrb[0].mxu0
      %v1095 = vadd.f32 %v818, %v1094
      %v1096 = vpop.f32.mrb[0].mxu0
      %1097 = vmatprep.mubr.bf16.mxu0 0
      %1098 = vmatmul.mubr.bf16.gmra.mrb[0].mxu0 %v885
      %v1099 = vpop.f32.mrb[0].mxu0
      %v1100 = vadd.f32 %v818, %v1099
      %v1101 = vpop.f32.mrb[0].mxu0
      %v1102 = vpop.f32.mrb[0].mxu0
      %v1103 = vadd.f32 %v818, %v1102
      %v1104 = vpop.f32.mrb[0].mxu0
      %1105 = vmatprep.mubr.bf16.mxu0 0
      %1106 = vmatmul.mubr.bf16.gmra.mrb[0].mxu0 %v888
      %v1107 = vpop.f32.mrb[0].mxu0
      %v1108 = vadd.f32 %v818, %v1107
      %v1109 = vpop.f32.mrb[0].mxu0
      %v1110 = vpop.f32.mrb[0].mxu0
      %v1111 = vadd.f32 %v818, %v1110
      %v1112 = vpop.f32.mrb[0].mxu0
      %1113 = vmatprep.mubr.bf16.mxu0 0
      %1114 = vmatmul.mubr.bf16.gmra.mrb[0].mxu0 %v891
      %v1115 = vpop.f32.mrb[0].mxu0
      %v1116 = vadd.f32 %v818, %v1115
      %v1117 = vpop.f32.mrb[0].mxu0
      %v1118 = vpop.f32.mrb[0].mxu0
      %v1119 = vadd.f32 %v818, %v1118
      %v1120 = vpop.f32.mrb[0].mxu0
      %1121 = vmatprep.mubr.bf16.mxu0 0
      %1122 = vmatmul.mubr.bf16.gmra.mrb[0].mxu0 %v894
      %v1123 = vpop.f32.mrb[0].mxu0
      %v1124 = vadd.f32 %v818, %v1123
      %v1125 = vpop.f32.mrb[0].mxu0
      %v1126 = vpop.f32.mrb[0].mxu0
      %v1127 = vadd.f32 %v818, %v1126
      %v1128 = vpop.f32.mrb[0].mxu0
      %1129 = vmatprep.mubr.bf16.mxu0 0
      %1130 = vmatmul.mubr.bf16.gmra.mrb[0].mxu0 %v897
      %v1131 = vpop.f32.mrb[0].mxu0
      %v1132 = vadd.f32 %v818, %v1131
      %v1133 = vpop.f32.mrb[0].mxu0
      %v1134 = vpop.f32.mrb[0].mxu0
      %v1135 = vadd.f32 %v818, %v1134
      %v1136 = vpop.f32.mrb[0].mxu0
      %1137 = vmatprep.mubr.bf16.mxu0 0
      %1138 = vmatmul.mubr.bf16.gmra.mrb[0].mxu0 %v900
      %v1139 = vpop.f32.mrb[0].mxu0
      %v1140 = vadd.f32 %v818, %v1139
      %v1141 = vpop.f32.mrb[0].mxu0
      %v1142 = vpop.f32.mrb[0].mxu0
      %v1143 = vadd.f32 %v818, %v1142
      %v1144 = vpop.f32.mrb[0].mxu0
      %1145 = vmatprep.mubr.bf16.mxu0 0
      %1146 = vmatmul.mubr.bf16.gmra.mrb[0].mxu0 %v903
      %v1147 = vpop.f32.mrb[0].mxu0
      %v1148 = vadd.f32 %v818, %v1147
      %v1149 = vpop.f32.mrb[0].mxu0
      %v1150 = vpop.f32.mrb[0].mxu0
      %v1151 = vadd.f32 %v818, %v1150
      %v1152 = vpop.f32.mrb[0].mxu0
      %1153 = vmatprep.mubr.bf16.mxu0 0
      %1154 = vmatmul.mubr.bf16.gmra.mrb[0].mxu0 %v906
      %v1155 = vpop.f32.mrb[0].mxu0
      %v1156 = vadd.f32 %v818, %v1155
      %v1157 = vpop.f32.mrb[0].mxu0
      %v1158 = vpop.f32.mrb[0].mxu0
      %v1159 = vadd.f32 %v818, %v1158
      %v1160 = vpop.f32.mrb[0].mxu0
      %1161 = vmatprep.mubr.bf16.mxu0 0
      %1162 = vmatmul.mubr.bf16.gmra.mrb[0].mxu0 %v909
      %v1163 = vpop.f32.mrb[0].mxu0
      %v1164 = vadd.f32 %v818, %v1163
      %v1165 = vpop.f32.mrb[0].mxu0
      %v1166 = vpop.f32.mrb[0].mxu0
      %v1167 = vadd.f32 %v818, %v1166
      %v1168 = vpop.f32.mrb[0].mxu0
      %1169 = vmatprep.mubr.bf16.mxu0 0
      %1170 = vmatmul.mubr.bf16.gmra.mrb[0].mxu0 %v912
      %v1171 = vpop.f32.mrb[0].mxu0
      %v1172 = vadd.f32 %v818, %v1171
      %v1173 = vpop.f32.mrb[0].mxu0
      %v1174 = vpop.f32.mrb[0].mxu0
      %v1175 = vadd.f32 %v818, %v1174
      %v1176 = vpop.f32.mrb[0].mxu0
      %1177 = vmatprep.mubr.bf16.mxu0 0
      %1178 = vmatmul.mubr.bf16.gmra.mrb[0].mxu0 %v915
      %v1179 = vpop.f32.mrb[0].mxu0
      %v1180 = vadd.f32 %v818, %v1179
      %v1181 = vpop.f32.mrb[0].mxu0
      %v1182 = vpop.f32.mrb[0].mxu0
      %v1183 = vadd.f32 %v818, %v1182
      %v1184 = vpop.f32.mrb[0].mxu0
      %1185 = vmatprep.mubr.bf16.mxu0 0
      %1186 = vmatmul.mubr.bf16.gmra.mrb[0].mxu0 %v918
      %v1187 = vpop.f32.mrb[0].mxu0
      %v1188 = vadd.f32 %v818, %v1187
      %v1189 = vpop.f32.mrb[0].mxu0
      %v1190 = vpop.f32.mrb[0].mxu0
      %v1191 = vadd.f32 %v818, %v1190
      %v1192 = vpop.f32.mrb[0].mxu0
      %1193 = vmatprep.mubr.bf16.mxu0 0
      %1194 = vmatmul.mubr.bf16.gmra.mrb[0].mxu0 %v921
      %v1195 = vpop.f32.mrb[0].mxu0
      %v1196 = vadd.f32 %v818, %v1195
      %v1197 = vpop.f32.mrb[0].mxu0
      %v1198 = vpop.f32.mrb[0].mxu0
      %v1199 = vadd.f32 %v818, %v1198
      %v1200 = vpop.f32.mrb[0].mxu0
      %1201 = vmatprep.mubr.bf16.mxu0 0
      %1202 = vmatmul.mubr.bf16.gmra.mrb[0].mxu0 %v924
      %v1203 = vpop.f32.mrb[0].mxu0
      %v1204 = vadd.f32 %v818, %v1203
      %v1205 = vpop.f32.mrb[0].mxu0
      %v1206 = vpop.f32.mrb[0].mxu0
      %v1207 = vadd.f32 %v818, %v1206
      %v1208 = vpop.f32.mrb[0].mxu0
      %1209 = vmatprep.mubr.bf16.mxu0 0
      %1210 = vmatmul.mubr.bf16.gmra.mrb[0].mxu0 %v927
      %v1211 = vpop.f32.mrb[0].mxu0
      %v1212 = vadd.f32 %v818, %v1211
      %v1213 = vpop.f32.mrb[0].mxu0
      %v1214 = vpop.f32.mrb[0].mxu0
      %v1215 = vadd.f32 %v818, %v1214
      %v1216 = vpop.f32.mrb[0].mxu0
      %1217 = vdwg.mxu0
      %v1218 = vpack.c.bf16 %v967, %v964
      %v1219 = vpack.c.bf16 %v975, %v972
      %v1220 = vpack.c.bf16 %v983, %v980
      %v1221 = vpack.c.bf16 %v991, %v988
      %v1222 = vpack.c.bf16 %v999, %v996
      %v1223 = vpack.c.bf16 %v1007, %v1004
      %v1224 = vpack.c.bf16 %v1015, %v1012
      %v1225 = vpack.c.bf16 %v1023, %v1020
      %v1226 = vpack.c.bf16 %v1031, %v1028
      %v1227 = vpack.c.bf16 %v1039, %v1036
      %v1228 = vpack.c.bf16 %v1047, %v1044
      %v1229 = vpack.c.bf16 %v1055, %v1052
      %v1230 = vpack.c.bf16 %v1063, %v1060
      %v1231 = vpack.c.bf16 %v1071, %v1068
      %v1232 = vpack.c.bf16 %v1079, %v1076
      %v1233 = vpack.c.bf16 %v1087, %v1084
      %v1234 = vpack.c.bf16 %v1095, %v1092
      %v1235 = vpack.c.bf16 %v1103, %v1100
      %v1236 = vpack.c.bf16 %v1111, %v1108
      %v1237 = vpack.c.bf16 %v1119, %v1116
      %v1238 = vpack.c.bf16 %v1127, %v1124
      %v1239 = vpack.c.bf16 %v1135, %v1132
      %v1240 = vpack.c.bf16 %v1143, %v1140
      %v1241 = vpack.c.bf16 %v1151, %v1148
      %v1242 = vpack.c.bf16 %v1159, %v1156
      %v1243 = vpack.c.bf16 %v1167, %v1164
      %v1244 = vpack.c.bf16 %v1175, %v1172
      %v1245 = vpack.c.bf16 %v1183, %v1180
      %v1246 = vpack.c.bf16 %v1191, %v1188
      %v1247 = vpack.c.bf16 %v1199, %v1196
      %v1248 = vpack.c.bf16 %v1207, %v1204
      %v1249 = vpack.c.bf16 %v1215, %v1212
      %v1250 = vld [vmem:[%s592] sm:$0xff]
      %v1251 = vld [vmem:[%s592 + $0x8] sm:$0xff]
      %v1252 = vld [vmem:[%s592 + $0x10] sm:$0xff]
      %v1253 = vld [vmem:[%s592 + $0x18] sm:$0xff]
      %v1254 = vld [vmem:[%s592 + $0x20] sm:$0xff]
      %v1255 = vld [vmem:[%s592 + $0x28] sm:$0xff]
      %v1256 = vld [vmem:[%s592 + $0x30] sm:$0xff]
      %v1257 = vld [vmem:[%s592 + $0x38] sm:$0xff]
      %v1258 = vld [vmem:[%s592 + $0x40] sm:$0xff]
      %v1259 = vld [vmem:[%s592 + $0x48] sm:$0xff]
      %v1260 = vld [vmem:[%s592 + $0x50] sm:$0xff]
      %v1261 = vld [vmem:[%s592 + $0x58] sm:$0xff]
      %v1262 = vld [vmem:[%s592 + $0x60] sm:$0xff]
      %v1263 = vld [vmem:[%s592 + $0x68] sm:$0xff]
      %v1264 = vld [vmem:[%s592 + $0x70] sm:$0xff]
      %v1265 = vld [vmem:[%s592 + $0x78] sm:$0xff]
      %v1266 = vld [vmem:[%s592 + $0x80] sm:$0xff]
      %v1267 = vld [vmem:[%s592 + $0x88] sm:$0xff]
      %v1268 = vld [vmem:[%s592 + $0x90] sm:$0xff]
      %v1269 = vld [vmem:[%s592 + $0x98] sm:$0xff]
      %v1270 = vld [vmem:[%s592 + $0xa0] sm:$0xff]
      %v1271 = vld [vmem:[%s592 + $0xa8] sm:$0xff]
      %v1272 = vld [vmem:[%s592 + $0xb0] sm:$0xff]
      %v1273 = vld [vmem:[%s592 + $0xb8] sm:$0xff]
      %v1274 = vld [vmem:[%s592 + $0xc0] sm:$0xff]
      %v1275 = vld [vmem:[%s592 + $0xc8] sm:$0xff]
      %v1276 = vld [vmem:[%s592 + $0xd0] sm:$0xff]
      %v1277 = vld [vmem:[%s592 + $0xd8] sm:$0xff]
      %v1278 = vld [vmem:[%s592 + $0xe0] sm:$0xff]
      %v1279 = vld [vmem:[%s592 + $0xe8] sm:$0xff]
      %v1280 = vld [vmem:[%s592 + $0xf0] sm:$0xff]
      %v1281 = vld [vmem:[%s592 + $0xf8] sm:$0xff]
      %v1282 = vld [vmem:[%s592 + $0x100] sm:$0xff]
      %v1283 = vld [vmem:[%s592 + $0x108] sm:$0xff]
      %v1284 = vld [vmem:[%s592 + $0x110] sm:$0xff]
      %v1285 = vld [vmem:[%s592 + $0x118] sm:$0xff]
      %v1286 = vld [vmem:[%s592 + $0x120] sm:$0xff]
      %v1287 = vld [vmem:[%s592 + $0x128] sm:$0xff]
      %v1288 = vld [vmem:[%s592 + $0x130] sm:$0xff]
      %v1289 = vld [vmem:[%s592 + $0x138] sm:$0xff]
      %v1290 = vld [vmem:[%s592 + $0x140] sm:$0xff]
      %v1291 = vld [vmem:[%s592 + $0x148] sm:$0xff]
      %v1292 = vld [vmem:[%s592 + $0x150] sm:$0xff]
      %v1293 = vld [vmem:[%s592 + $0x158] sm:$0xff]
      %v1294 = vld [vmem:[%s592 + $0x160] sm:$0xff]
      %v1295 = vld [vmem:[%s592 + $0x168] sm:$0xff]
      %v1296 = vld [vmem:[%s592 + $0x170] sm:$0xff]
      %v1297 = vld [vmem:[%s592 + $0x178] sm:$0xff]
      %v1298 = vld [vmem:[%s592 + $0x180] sm:$0xff]
      %v1299 = vld [vmem:[%s592 + $0x188] sm:$0xff]
      %v1300 = vld [vmem:[%s592 + $0x190] sm:$0xff]
      %v1301 = vld [vmem:[%s592 + $0x198] sm:$0xff]
      %v1302 = vld [vmem:[%s592 + $0x1a0] sm:$0xff]
      %v1303 = vld [vmem:[%s592 + $0x1a8] sm:$0xff]
      %v1304 = vld [vmem:[%s592 + $0x1b0] sm:$0xff]
      %v1305 = vld [vmem:[%s592 + $0x1b8] sm:$0xff]
      %v1306 = vld [vmem:[%s592 + $0x1c0] sm:$0xff]
      %v1307 = vld [vmem:[%s592 + $0x1c8] sm:$0xff]
      %v1308 = vld [vmem:[%s592 + $0x1d0] sm:$0xff]
      %v1309 = vld [vmem:[%s592 + $0x1d8] sm:$0xff]
      %v1310 = vld [vmem:[%s592 + $0x1e0] sm:$0xff]
      %v1311 = vld [vmem:[%s592 + $0x1e8] sm:$0xff]
      %v1312 = vld [vmem:[%s592 + $0x1f0] sm:$0xff]
      %v1313 = vld [vmem:[%s592 + $0x1f8] sm:$0xff]
      %v1314 = vld [vmem:[%s8] sm:$0xf]
      %v1315 = vld [vmem:[%s8 + $0x4] sm:$0xf]
      %v1316 = vld [vmem:[%s8 + $0x8] sm:$0xf]
      %v1317 = vld [vmem:[%s8 + $0xc] sm:$0xf]
      %v1318 = vpack.c.bf16 %v1251, %v1250
      %v1319 = vpack.c.bf16 %v1253, %v1252
      %v1320 = vpack.c.bf16 %v1255, %v1254
      %v1321 = vpack.c.bf16 %v1257, %v1256
      %v1322 = vpack.c.bf16 %v1259, %v1258
      %v1323 = vpack.c.bf16 %v1261, %v1260
      %v1324 = vpack.c.bf16 %v1263, %v1262
      %v1325 = vpack.c.bf16 %v1265, %v1264
      %v1326 = vpack.c.bf16 %v1267, %v1266
      %v1327 = vpack.c.bf16 %v1269, %v1268
      %v1328 = vpack.c.bf16 %v1271, %v1270
      %v1329 = vpack.c.bf16 %v1273, %v1272
      %v1330 = vpack.c.bf16 %v1275, %v1274
      %v1331 = vpack.c.bf16 %v1277, %v1276
      %v1332 = vpack.c.bf16 %v1279, %v1278
      %v1333 = vpack.c.bf16 %v1281, %v1280
      %v1334 = vpack.c.bf16 %v1283, %v1282
      %v1335 = vpack.c.bf16 %v1285, %v1284
      %v1336 = vpack.c.bf16 %v1287, %v1286
      %v1337 = vpack.c.bf16 %v1289, %v1288
      %v1338 = vpack.c.bf16 %v1291, %v1290
      %v1339 = vpack.c.bf16 %v1293, %v1292
      %v1340 = vpack.c.bf16 %v1295, %v1294
      %v1341 = vpack.c.bf16 %v1297, %v1296
      %v1342 = vpack.c.bf16 %v1299, %v1298
      %v1343 = vpack.c.bf16 %v1301, %v1300
      %v1344 = vpack.c.bf16 %v1303, %v1302
      %v1345 = vpack.c.bf16 %v1305, %v1304
      %v1346 = vpack.c.bf16 %v1307, %v1306
      %v1347 = vpack.c.bf16 %v1309, %v1308
      %v1348 = vpack.c.bf16 %v1311, %v1310
      %v1349 = vpack.c.bf16 %v1313, %v1312
      %v1350 = vld [vmem:[%s9] sm:$0x1]
      %v1352 = vlaneseq
      %v1353 = vshrl.u32 %v1352, 7
      %v1354 = vsub.s32 0, %v1353
      %v1355 = vrot.slane %v1350, %v1354
      %v1361 = vunpack.c.l.b16 %v1314
      %v1362 = vunpack.c.l.b16 %v1315
      %v1363 = vunpack.c.l.b16 %v1316
      %v1364 = vunpack.c.l.b16 %v1317
      %v1365 = vpack.c.b16 %v1362, %v1361
      %v1366 = vpack.c.b16 %v1364, %v1363
      %v1370 = vsel %vm832, %v1318, 0
      %v1373 = vsel %vm832, %v1319, 0
      %v1376 = vsel %vm832, %v1320, 0
      %v1379 = vsel %vm832, %v1321, 0
      %v1382 = vsel %vm832, %v1322, 0
      %v1385 = vsel %vm832, %v1323, 0
      %v1388 = vsel %vm832, %v1324, 0
      %v1391 = vsel %vm832, %v1325, 0
      %v1394 = vsel %vm832, %v1326, 0
      %v1397 = vsel %vm832, %v1327, 0
      %v1400 = vsel %vm832, %v1328, 0
      %v1403 = vsel %vm832, %v1329, 0
      %v1406 = vsel %vm832, %v1330, 0
      %v1409 = vsel %vm832, %v1331, 0
      %v1412 = vsel %vm832, %v1332, 0
      %v1415 = vsel %vm832, %v1333, 0
      %v1418 = vsel %vm832, %v1334, 0
      %v1421 = vsel %vm832, %v1335, 0
      %v1424 = vsel %vm832, %v1336, 0
      %v1427 = vsel %vm832, %v1337, 0
      %v1430 = vsel %vm832, %v1338, 0
      %v1433 = vsel %vm832, %v1339, 0
      %v1436 = vsel %vm832, %v1340, 0
      %v1439 = vsel %vm832, %v1341, 0
      %v1442 = vsel %vm832, %v1342, 0
      %v1445 = vsel %vm832, %v1343, 0
      %v1448 = vsel %vm832, %v1344, 0
      %v1451 = vsel %vm832, %v1345, 0
      %v1454 = vsel %vm832, %v1346, 0
      %v1457 = vsel %vm832, %v1347, 0
      %v1460 = vsel %vm832, %v1348, 0
      %v1463 = vsel %vm832, %v1349, 0
      %1465 = vmatprep.subr.bf16.mxu0 0
      %1466 = vmatpush1.bf16.msra.mxu0 %v1365
      %1467 = vmatprep.subr.bf16.mxu0 0
      %1468 = vmatpush1.bf16.msra.mxu0 %v1366
      %1469 = vmatprep.subr.bf16.mxu0 0
      %1470 = vmatpush1.bf16.msra.mxu0 0
      %1471 = vmatprep.subr.bf16.mxu0 0
      %1472 = vmatpush1.bf16.msra.mxu0 0
      %1473 = vmatprep.subr.bf16.mxu0 0
      %1474 = vmatpush1.bf16.msra.mxu0 0
      %1475 = vmatprep.subr.bf16.mxu0 0
      %1476 = vmatpush1.bf16.msra.mxu0 0
      %1477 = vmatprep.subr.bf16.mxu0 0
      %1478 = vmatpush1.bf16.msra.mxu0 0
      %1479 = vmatprep.subr.bf16.mxu0 0
      %1480 = vmatpush1.bf16.msra.mxu0 0
      %1481 = vmatprep.subr.bf16.mxu0 0
      %1482 = vmatpush1.bf16.msra.mxu0 0
      %1483 = vmatprep.subr.bf16.mxu0 0
      %1484 = vmatpush1.bf16.msra.mxu0 0
      %1485 = vmatprep.subr.bf16.mxu0 0
      %1486 = vmatpush1.bf16.msra.mxu0 0
      %1487 = vmatprep.subr.bf16.mxu0 0
      %1488 = vmatpush1.bf16.msra.mxu0 0
      %1489 = vmatprep.subr.bf16.mxu0 0
      %1490 = vmatpush1.bf16.msra.mxu0 0
      %1491 = vmatprep.subr.bf16.mxu0 0
      %1492 = vmatpush1.bf16.msra.mxu0 0
      %1493 = vmatprep.subr.bf16.mxu0 0
      %1494 = vmatpush1.bf16.msra.mxu0 0
      %1495 = vmatprep.subr.bf16.mxu0 0
      %1496 = vmatpush1.bf16.msra.mxu0 0
      %1497 = vmatprep.mubr.bf16.mxu0 0
      %1498 = vmatmul.mubr.bf16.gmra.mrb[0].mxu0 %v1370
      %v1499 = vpop.f32.mrb[0].mxu0
      %v1500 = vadd.f32 %v1355, %v1499
      %v1501 = vpop.f32.mrb[0].mxu0
      %v1502 = vpop.f32.mrb[0].mxu0
      %v1503 = vadd.f32 %v1355, %v1502
      %v1504 = vpop.f32.mrb[0].mxu0
      %1505 = vmatprep.mubr.bf16.mxu0 0
      %1506 = vmatmul.mubr.bf16.gmra.mrb[0].mxu0 %v1373
      %v1507 = vpop.f32.mrb[0].mxu0
      %v1508 = vadd.f32 %v1355, %v1507
      %v1509 = vpop.f32.mrb[0].mxu0
      %v1510 = vpop.f32.mrb[0].mxu0
      %v1511 = vadd.f32 %v1355, %v1510
      %v1512 = vpop.f32.mrb[0].mxu0
      %1513 = vmatprep.mubr.bf16.mxu0 0
      %1514 = vmatmul.mubr.bf16.gmra.mrb[0].mxu0 %v1376
      %v1515 = vpop.f32.mrb[0].mxu0
      %v1516 = vadd.f32 %v1355, %v1515
      %v1517 = vpop.f32.mrb[0].mxu0
      %v1518 = vpop.f32.mrb[0].mxu0
      %v1519 = vadd.f32 %v1355, %v1518
      %v1520 = vpop.f32.mrb[0].mxu0
      %1521 = vmatprep.mubr.bf16.mxu0 0
      %1522 = vmatmul.mubr.bf16.gmra.mrb[0].mxu0 %v1379
      %v1523 = vpop.f32.mrb[0].mxu0
      %v1524 = vadd.f32 %v1355, %v1523
      %v1525 = vpop.f32.mrb[0].mxu0
      %v1526 = vpop.f32.mrb[0].mxu0
      %v1527 = vadd.f32 %v1355, %v1526
      %v1528 = vpop.f32.mrb[0].mxu0
      %1529 = vmatprep.mubr.bf16.mxu0 0
      %1530 = vmatmul.mubr.bf16.gmra.mrb[0].mxu0 %v1382
      %v1531 = vpop.f32.mrb[0].mxu0
      %v1532 = vadd.f32 %v1355, %v1531
      %v1533 = vpop.f32.mrb[0].mxu0
      %v1534 = vpop.f32.mrb[0].mxu0
      %v1535 = vadd.f32 %v1355, %v1534
      %v1536 = vpop.f32.mrb[0].mxu0
      %1537 = vmatprep.mubr.bf16.mxu0 0
      %1538 = vmatmul.mubr.bf16.gmra.mrb[0].mxu0 %v1385
      %v1539 = vpop.f32.mrb[0].mxu0
      %v1540 = vadd.f32 %v1355, %v1539
      %v1541 = vpop.f32.mrb[0].mxu0
      %v1542 = vpop.f32.mrb[0].mxu0
      %v1543 = vadd.f32 %v1355, %v1542
      %v1544 = vpop.f32.mrb[0].mxu0
      %1545 = vmatprep.mubr.bf16.mxu0 0
      %1546 = vmatmul.mubr.bf16.gmra.mrb[0].mxu0 %v1388
      %v1547 = vpop.f32.mrb[0].mxu0
      %v1548 = vadd.f32 %v1355, %v1547
      %v1549 = vpop.f32.mrb[0].mxu0
      %v1550 = vpop.f32.mrb[0].mxu0
      %v1551 = vadd.f32 %v1355, %v1550
      %v1552 = vpop.f32.mrb[0].mxu0
      %1553 = vmatprep.mubr.bf16.mxu0 0
      %1554 = vmatmul.mubr.bf16.gmra.mrb[0].mxu0 %v1391
      %v1555 = vpop.f32.mrb[0].mxu0
      %v1556 = vadd.f32 %v1355, %v1555
      %v1557 = vpop.f32.mrb[0].mxu0
      %v1558 = vpop.f32.mrb[0].mxu0
      %v1559 = vadd.f32 %v1355, %v1558
      %v1560 = vpop.f32.mrb[0].mxu0
      %1561 = vmatprep.mubr.bf16.mxu0 0
      %1562 = vmatmul.mubr.bf16.gmra.mrb[0].mxu0 %v1394
      %v1563 = vpop.f32.mrb[0].mxu0
      %v1564 = vadd.f32 %v1355, %v1563
      %v1565 = vpop.f32.mrb[0].mxu0
      %v1566 = vpop.f32.mrb[0].mxu0
      %v1567 = vadd.f32 %v1355, %v1566
      %v1568 = vpop.f32.mrb[0].mxu0
      %1569 = vmatprep.mubr.bf16.mxu0 0
      %1570 = vmatmul.mubr.bf16.gmra.mrb[0].mxu0 %v1397
      %v1571 = vpop.f32.mrb[0].mxu0
      %v1572 = vadd.f32 %v1355, %v1571
      %v1573 = vpop.f32.mrb[0].mxu0
      %v1574 = vpop.f32.mrb[0].mxu0
      %v1575 = vadd.f32 %v1355, %v1574
      %v1576 = vpop.f32.mrb[0].mxu0
      %1577 = vmatprep.mubr.bf16.mxu0 0
      %1578 = vmatmul.mubr.bf16.gmra.mrb[0].mxu0 %v1400
      %v1579 = vpop.f32.mrb[0].mxu0
      %v1580 = vadd.f32 %v1355, %v1579
      %v1581 = vpop.f32.mrb[0].mxu0
      %v1582 = vpop.f32.mrb[0].mxu0
      %v1583 = vadd.f32 %v1355, %v1582
      %v1584 = vpop.f32.mrb[0].mxu0
      %1585 = vmatprep.mubr.bf16.mxu0 0
      %1586 = vmatmul.mubr.bf16.gmra.mrb[0].mxu0 %v1403
      %v1587 = vpop.f32.mrb[0].mxu0
      %v1588 = vadd.f32 %v1355, %v1587
      %v1589 = vpop.f32.mrb[0].mxu0
      %v1590 = vpop.f32.mrb[0].mxu0
      %v1591 = vadd.f32 %v1355, %v1590
      %v1592 = vpop.f32.mrb[0].mxu0
      %1593 = vmatprep.mubr.bf16.mxu0 0
      %1594 = vmatmul.mubr.bf16.gmra.mrb[0].mxu0 %v1406
      %v1595 = vpop.f32.mrb[0].mxu0
      %v1596 = vadd.f32 %v1355, %v1595
      %v1597 = vpop.f32.mrb[0].mxu0
      %v1598 = vpop.f32.mrb[0].mxu0
      %v1599 = vadd.f32 %v1355, %v1598
      %v1600 = vpop.f32.mrb[0].mxu0
      %1601 = vmatprep.mubr.bf16.mxu0 0
      %1602 = vmatmul.mubr.bf16.gmra.mrb[0].mxu0 %v1409
      %v1603 = vpop.f32.mrb[0].mxu0
      %v1604 = vadd.f32 %v1355, %v1603
      %v1605 = vpop.f32.mrb[0].mxu0
      %v1606 = vpop.f32.mrb[0].mxu0
      %v1607 = vadd.f32 %v1355, %v1606
      %v1608 = vpop.f32.mrb[0].mxu0
      %1609 = vmatprep.mubr.bf16.mxu0 0
      %1610 = vmatmul.mubr.bf16.gmra.mrb[0].mxu0 %v1412
      %v1611 = vpop.f32.mrb[0].mxu0
      %v1612 = vadd.f32 %v1355, %v1611
      %v1613 = vpop.f32.mrb[0].mxu0
      %v1614 = vpop.f32.mrb[0].mxu0
      %v1615 = vadd.f32 %v1355, %v1614
      %v1616 = vpop.f32.mrb[0].mxu0
      %1617 = vmatprep.mubr.bf16.mxu0 0
      %1618 = vmatmul.mubr.bf16.gmra.mrb[0].mxu0 %v1415
      %v1619 = vpop.f32.mrb[0].mxu0
      %v1620 = vadd.f32 %v1355, %v1619
      %v1621 = vpop.f32.mrb[0].mxu0
      %v1622 = vpop.f32.mrb[0].mxu0
      %v1623 = vadd.f32 %v1355, %v1622
      %v1624 = vpop.f32.mrb[0].mxu0
      %1625 = vmatprep.mubr.bf16.mxu0 0
      %1626 = vmatmul.mubr.bf16.gmra.mrb[0].mxu0 %v1418
      %v1627 = vpop.f32.mrb[0].mxu0
      %v1628 = vadd.f32 %v1355, %v1627
      %v1629 = vpop.f32.mrb[0].mxu0
      %v1630 = vpop.f32.mrb[0].mxu0
      %v1631 = vadd.f32 %v1355, %v1630
      %v1632 = vpop.f32.mrb[0].mxu0
      %1633 = vmatprep.mubr.bf16.mxu0 0
      %1634 = vmatmul.mubr.bf16.gmra.mrb[0].mxu0 %v1421
      %v1635 = vpop.f32.mrb[0].mxu0
      %v1636 = vadd.f32 %v1355, %v1635
      %v1637 = vpop.f32.mrb[0].mxu0
      %v1638 = vpop.f32.mrb[0].mxu0
      %v1639 = vadd.f32 %v1355, %v1638
      %v1640 = vpop.f32.mrb[0].mxu0
      %1641 = vmatprep.mubr.bf16.mxu0 0
      %1642 = vmatmul.mubr.bf16.gmra.mrb[0].mxu0 %v1424
      %v1643 = vpop.f32.mrb[0].mxu0
      %v1644 = vadd.f32 %v1355, %v1643
      %v1645 = vpop.f32.mrb[0].mxu0
      %v1646 = vpop.f32.mrb[0].mxu0
      %v1647 = vadd.f32 %v1355, %v1646
      %v1648 = vpop.f32.mrb[0].mxu0
      %1649 = vmatprep.mubr.bf16.mxu0 0
      %1650 = vmatmul.mubr.bf16.gmra.mrb[0].mxu0 %v1427
      %v1651 = vpop.f32.mrb[0].mxu0
      %v1652 = vadd.f32 %v1355, %v1651
      %v1653 = vpop.f32.mrb[0].mxu0
      %v1654 = vpop.f32.mrb[0].mxu0
      %v1655 = vadd.f32 %v1355, %v1654
      %v1656 = vpop.f32.mrb[0].mxu0
      %1657 = vmatprep.mubr.bf16.mxu0 0
      %1658 = vmatmul.mubr.bf16.gmra.mrb[0].mxu0 %v1430
      %v1659 = vpop.f32.mrb[0].mxu0
      %v1660 = vadd.f32 %v1355, %v1659
      %v1661 = vpop.f32.mrb[0].mxu0
      %v1662 = vpop.f32.mrb[0].mxu0
      %v1663 = vadd.f32 %v1355, %v1662
      %v1664 = vpop.f32.mrb[0].mxu0
      %1665 = vmatprep.mubr.bf16.mxu0 0
      %1666 = vmatmul.mubr.bf16.gmra.mrb[0].mxu0 %v1433
      %v1667 = vpop.f32.mrb[0].mxu0
      %v1668 = vadd.f32 %v1355, %v1667
      %v1669 = vpop.f32.mrb[0].mxu0
      %v1670 = vpop.f32.mrb[0].mxu0
      %v1671 = vadd.f32 %v1355, %v1670
      %v1672 = vpop.f32.mrb[0].mxu0
      %1673 = vmatprep.mubr.bf16.mxu0 0
      %1674 = vmatmul.mubr.bf16.gmra.mrb[0].mxu0 %v1436
      %v1675 = vpop.f32.mrb[0].mxu0
      %v1676 = vadd.f32 %v1355, %v1675
      %v1677 = vpop.f32.mrb[0].mxu0
      %v1678 = vpop.f32.mrb[0].mxu0
      %v1679 = vadd.f32 %v1355, %v1678
      %v1680 = vpop.f32.mrb[0].mxu0
      %1681 = vmatprep.mubr.bf16.mxu0 0
      %1682 = vmatmul.mubr.bf16.gmra.mrb[0].mxu0 %v1439
      %v1683 = vpop.f32.mrb[0].mxu0
      %v1684 = vadd.f32 %v1355, %v1683
      %v1685 = vpop.f32.mrb[0].mxu0
      %v1686 = vpop.f32.mrb[0].mxu0
      %v1687 = vadd.f32 %v1355, %v1686
      %v1688 = vpop.f32.mrb[0].mxu0
      %1689 = vmatprep.mubr.bf16.mxu0 0
      %1690 = vmatmul.mubr.bf16.gmra.mrb[0].mxu0 %v1442
      %v1691 = vpop.f32.mrb[0].mxu0
      %v1692 = vadd.f32 %v1355, %v1691
      %v1693 = vpop.f32.mrb[0].mxu0
      %v1694 = vpop.f32.mrb[0].mxu0
      %v1695 = vadd.f32 %v1355, %v1694
      %v1696 = vpop.f32.mrb[0].mxu0
      %1697 = vmatprep.mubr.bf16.mxu0 0
      %1698 = vmatmul.mubr.bf16.gmra.mrb[0].mxu0 %v1445
      %v1699 = vpop.f32.mrb[0].mxu0
      %v1700 = vadd.f32 %v1355, %v1699
      %v1701 = vpop.f32.mrb[0].mxu0
      %v1702 = vpop.f32.mrb[0].mxu0
      %v1703 = vadd.f32 %v1355, %v1702
      %v1704 = vpop.f32.mrb[0].mxu0
      %1705 = vmatprep.mubr.bf16.mxu0 0
      %1706 = vmatmul.mubr.bf16.gmra.mrb[0].mxu0 %v1448
      %v1707 = vpop.f32.mrb[0].mxu0
      %v1708 = vadd.f32 %v1355, %v1707
      %v1709 = vpop.f32.mrb[0].mxu0
      %v1710 = vpop.f32.mrb[0].mxu0
      %v1711 = vadd.f32 %v1355, %v1710
      %v1712 = vpop.f32.mrb[0].mxu0
      %1713 = vmatprep.mubr.bf16.mxu0 0
      %1714 = vmatmul.mubr.bf16.gmra.mrb[0].mxu0 %v1451
      %v1715 = vpop.f32.mrb[0].mxu0
      %v1716 = vadd.f32 %v1355, %v1715
      %v1717 = vpop.f32.mrb[0].mxu0
      %v1718 = vpop.f32.mrb[0].mxu0
      %v1719 = vadd.f32 %v1355, %v1718
      %v1720 = vpop.f32.mrb[0].mxu0
      %1721 = vmatprep.mubr.bf16.mxu0 0
      %1722 = vmatmul.mubr.bf16.gmra.mrb[0].mxu0 %v1454
      %v1723 = vpop.f32.mrb[0].mxu0
      %v1724 = vadd.f32 %v1355, %v1723
      %v1725 = vpop.f32.mrb[0].mxu0
      %v1726 = vpop.f32.mrb[0].mxu0
      %v1727 = vadd.f32 %v1355, %v1726
      %v1728 = vpop.f32.mrb[0].mxu0
      %1729 = vmatprep.mubr.bf16.mxu0 0
      %1730 = vmatmul.mubr.bf16.gmra.mrb[0].mxu0 %v1457
      %v1731 = vpop.f32.mrb[0].mxu0
      %v1732 = vadd.f32 %v1355, %v1731
      %v1733 = vpop.f32.mrb[0].mxu0
      %v1734 = vpop.f32.mrb[0].mxu0
      %v1735 = vadd.f32 %v1355, %v1734
      %v1736 = vpop.f32.mrb[0].mxu0
      %1737 = vmatprep.mubr.bf16.mxu0 0
      %1738 = vmatmul.mubr.bf16.gmra.mrb[0].mxu0 %v1460
      %v1739 = vpop.f32.mrb[0].mxu0
      %v1740 = vadd.f32 %v1355, %v1739
      %v1741 = vpop.f32.mrb[0].mxu0
      %v1742 = vpop.f32.mrb[0].mxu0
      %v1743 = vadd.f32 %v1355, %v1742
      %v1744 = vpop.f32.mrb[0].mxu0
      %1745 = vmatprep.mubr.bf16.mxu0 0
      %1746 = vmatmul.mubr.bf16.gmra.mrb[0].mxu0 %v1463
      %v1747 = vpop.f32.mrb[0].mxu0
      %v1748 = vadd.f32 %v1355, %v1747
      %v1749 = vpop.f32.mrb[0].mxu0
      %v1750 = vpop.f32.mrb[0].mxu0
      %v1751 = vadd.f32 %v1355, %v1750
      %v1752 = vpop.f32.mrb[0].mxu0
      %1753 = vdwg.mxu0
      %v1754 = vpack.c.bf16 %v1503, %v1500
      %v1755 = vpack.c.bf16 %v1511, %v1508
      %v1756 = vpack.c.bf16 %v1519, %v1516
      %v1757 = vpack.c.bf16 %v1527, %v1524
      %v1758 = vpack.c.bf16 %v1535, %v1532
      %v1759 = vpack.c.bf16 %v1543, %v1540
      %v1760 = vpack.c.bf16 %v1551, %v1548
      %v1761 = vpack.c.bf16 %v1559, %v1556
      %v1762 = vpack.c.bf16 %v1567, %v1564
      %v1763 = vpack.c.bf16 %v1575, %v1572
      %v1764 = vpack.c.bf16 %v1583, %v1580
      %v1765 = vpack.c.bf16 %v1591, %v1588
      %v1766 = vpack.c.bf16 %v1599, %v1596
      %v1767 = vpack.c.bf16 %v1607, %v1604
      %v1768 = vpack.c.bf16 %v1615, %v1612
      %v1769 = vpack.c.bf16 %v1623, %v1620
      %v1770 = vpack.c.bf16 %v1631, %v1628
      %v1771 = vpack.c.bf16 %v1639, %v1636
      %v1772 = vpack.c.bf16 %v1647, %v1644
      %v1773 = vpack.c.bf16 %v1655, %v1652
      %v1774 = vpack.c.bf16 %v1663, %v1660
      %v1775 = vpack.c.bf16 %v1671, %v1668
      %v1776 = vpack.c.bf16 %v1679, %v1676
      %v1777 = vpack.c.bf16 %v1687, %v1684
      %v1778 = vpack.c.bf16 %v1695, %v1692
      %v1779 = vpack.c.bf16 %v1703, %v1700
      %v1780 = vpack.c.bf16 %v1711, %v1708
      %v1781 = vpack.c.bf16 %v1719, %v1716
      %v1782 = vpack.c.bf16 %v1727, %v1724
      %v1783 = vpack.c.bf16 %v1735, %v1732
      %v1784 = vpack.c.bf16 %v1743, %v1740
      %v1785 = vpack.c.bf16 %v1751, %v1748
      %v1786 = vld [vmem:[#allocation2] sm:$0xf]
      %vm1787 = vcmask 64512
      %v1789 = vsel %vm1787, %v1786, 0
      %v1792 = vsel %vm1787, %v1218, 0
      %v1795 = vsel %vm1787, %v1219, 0
      %v1798 = vsel %vm1787, %v1220, 0
      %v1801 = vsel %vm1787, %v1221, 0
      %v1804 = vsel %vm1787, %v1222, 0
      %v1807 = vsel %vm1787, %v1223, 0
      %v1810 = vsel %vm1787, %v1224, 0
      %v1813 = vsel %vm1787, %v1225, 0
      %v1816 = vsel %vm1787, %v1226, 0
      %v1819 = vsel %vm1787, %v1227, 0
      %v1822 = vsel %vm1787, %v1228, 0
      %v1825 = vsel %vm1787, %v1229, 0
      %v1828 = vsel %vm1787, %v1230, 0
      %v1831 = vsel %vm1787, %v1231, 0
      %v1834 = vsel %vm1787, %v1232, 0
      %v1837 = vsel %vm1787, %v1233, 0
      %v1840 = vsel %vm1787, %v1234, 0
      %v1843 = vsel %vm1787, %v1235, 0
      %v1846 = vsel %vm1787, %v1236, 0
      %v1849 = vsel %vm1787, %v1237, 0
      %v1852 = vsel %vm1787, %v1238, 0
      %v1855 = vsel %vm1787, %v1239, 0
      %v1858 = vsel %vm1787, %v1240, 0
      %v1861 = vsel %vm1787, %v1241, 0
      %v1864 = vsel %vm1787, %v1242, 0
      %v1867 = vsel %vm1787, %v1243, 0
      %v1870 = vsel %vm1787, %v1244, 0
      %v1873 = vsel %vm1787, %v1245, 0
      %v1876 = vsel %vm1787, %v1246, 0
      %v1879 = vsel %vm1787, %v1247, 0
      %v1882 = vsel %vm1787, %v1248, 0
      %v1885 = vsel %vm1787, %v1249, 0
      %1887 = vmatprep.subr.bf16.mxu0 0
      %1888 = vmatpush1.bf16.xpose.msra.mxu0 %v1792
      %1889 = vmatprep.subr.bf16.mxu0 0
      %1890 = vmatpush1.bf16.xpose.msra.mxu0 %v1795
      %1891 = vmatprep.subr.bf16.mxu0 0
      %1892 = vmatpush1.bf16.xpose.msra.mxu0 %v1798
      %1893 = vmatprep.subr.bf16.mxu0 0
      %1894 = vmatpush1.bf16.xpose.msra.mxu0 %v1801
      %1895 = vmatprep.subr.bf16.mxu0 0
      %1896 = vmatpush1.bf16.xpose.msra.mxu0 %v1804
      %1897 = vmatprep.subr.bf16.mxu0 0
      %1898 = vmatpush1.bf16.xpose.msra.mxu0 %v1807
      %1899 = vmatprep.subr.bf16.mxu0 0
      %1900 = vmatpush1.bf16.xpose.msra.mxu0 %v1810
      %1901 = vmatprep.subr.bf16.mxu0 0
      %1902 = vmatpush1.bf16.xpose.msra.mxu0 %v1813
      %1903 = vmatprep.subr.bf16.mxu0 0
      %1904 = vmatpush1.bf16.xpose.msra.mxu0 %v1816
      %1905 = vmatprep.subr.bf16.mxu0 0
      %1906 = vmatpush1.bf16.xpose.msra.mxu0 %v1819
      %1907 = vmatprep.subr.bf16.mxu0 0
      %1908 = vmatpush1.bf16.xpose.msra.mxu0 %v1822
      %1909 = vmatprep.subr.bf16.mxu0 0
      %1910 = vmatpush1.bf16.xpose.msra.mxu0 %v1825
      %1911 = vmatprep.subr.bf16.mxu0 0
      %1912 = vmatpush1.bf16.xpose.msra.mxu0 %v1828
      %1913 = vmatprep.subr.bf16.mxu0 0
      %1914 = vmatpush1.bf16.xpose.msra.mxu0 %v1831
      %1915 = vmatprep.subr.bf16.mxu0 0
      %1916 = vmatpush1.bf16.xpose.msra.mxu0 %v1834
      %1917 = vmatprep.subr.bf16.mxu0 0
      %1918 = vmatpush1.bf16.xpose.msra.mxu0 %v1837
      %1919 = vmatprep.mubr.bf16.mxu0 0
      %1920 = vmatmul.mubr.bf16.gmra.mrb[0].mxu0 %v1789
      %v1921 = vpop.f32.mrb[0].mxu0
      %v1922 = vadd.f32 0.0, %v1921
      %v1923 = vpop.f32.mrb[0].mxu0
      %v1924 = vadd.f32 0.0, %v1923
      %v1925 = vpop.f32.mrb[0].mxu0
      %v1926 = vpop.f32.mrb[0].mxu0
      %1927 = vdwg.mxu0
      %1928 = vmatprep.subr.bf16.mxu0 0
      %1929 = vmatpush1.bf16.xpose.msra.mxu0 %v1840
      %1930 = vmatprep.subr.bf16.mxu0 0
      %1931 = vmatpush1.bf16.xpose.msra.mxu0 %v1843
      %1932 = vmatprep.subr.bf16.mxu0 0
      %1933 = vmatpush1.bf16.xpose.msra.mxu0 %v1846
      %1934 = vmatprep.subr.bf16.mxu0 0
      %1935 = vmatpush1.bf16.xpose.msra.mxu0 %v1849
      %1936 = vmatprep.subr.bf16.mxu0 0
      %1937 = vmatpush1.bf16.xpose.msra.mxu0 %v1852
      %1938 = vmatprep.subr.bf16.mxu0 0
      %1939 = vmatpush1.bf16.xpose.msra.mxu0 %v1855
      %1940 = vmatprep.subr.bf16.mxu0 0
      %1941 = vmatpush1.bf16.xpose.msra.mxu0 %v1858
      %1942 = vmatprep.subr.bf16.mxu0 0
      %1943 = vmatpush1.bf16.xpose.msra.mxu0 %v1861
      %1944 = vmatprep.subr.bf16.mxu0 0
      %1945 = vmatpush1.bf16.xpose.msra.mxu0 %v1864
      %1946 = vmatprep.subr.bf16.mxu0 0
      %1947 = vmatpush1.bf16.xpose.msra.mxu0 %v1867
      %1948 = vmatprep.subr.bf16.mxu0 0
      %1949 = vmatpush1.bf16.xpose.msra.mxu0 %v1870
      %1950 = vmatprep.subr.bf16.mxu0 0
      %1951 = vmatpush1.bf16.xpose.msra.mxu0 %v1873
      %1952 = vmatprep.subr.bf16.mxu0 0
      %1953 = vmatpush1.bf16.xpose.msra.mxu0 %v1876
      %1954 = vmatprep.subr.bf16.mxu0 0
      %1955 = vmatpush1.bf16.xpose.msra.mxu0 %v1879
      %1956 = vmatprep.subr.bf16.mxu0 0
      %1957 = vmatpush1.bf16.xpose.msra.mxu0 %v1882
      %1958 = vmatprep.subr.bf16.mxu0 0
      %1959 = vmatpush1.bf16.xpose.msra.mxu0 %v1885
      %1960 = vmatprep.mubr.bf16.mxu0 0
      %1961 = vmatmul.mubr.bf16.gmra.mrb[0].mxu0 %v1789
      %v1962 = vpop.f32.mrb[0].mxu0
      %v1963 = vadd.f32 0.0, %v1962
      %v1964 = vpop.f32.mrb[0].mxu0
      %v1965 = vadd.f32 0.0, %v1964
      %v1966 = vpop.f32.mrb[0].mxu0
      %v1967 = vpop.f32.mrb[0].mxu0
      %1968 = vdwg.mxu0
      %v1969 = vld [vmem:[#allocation3] sm:$0xff]
      %v1970 = vmax.f32 %v1922, %v1924
      %v1971 = vmax.f32 %v1963, %v1965
      %v1972 = vmax.f32 %v1970, %v1971
      %1973 = vmax.xlane.f32.xlu0 %v1972
      %v1974 = vpop.xlane.xlu0 %1973
      %v1975 = vmax.f32 %v1969, %v1974
      %v1976 = vsub.f32 %v1969, %v1975
      %v1977 = vmul.f32 %v1976, 1.442695
      %v1978 = vpow.pop %v1977
      %1980 = vset.pattern.permute.xlu0 0
      %1981 = vperm.xlu0 %1980, %v1975
      %v1982 = vpop.permute.xlu0 %1981
      %v1984 = vsub.f32 %v1922, %v1982
      %v1985 = vsub.f32 %v1924, %v1982
      %v1986 = vsub.f32 %v1963, %v1982
      %v1987 = vsub.f32 %v1965, %v1982
      %v1988 = vmul.f32 %v1984, 1.442695
      %v1989 = vpow.pop %v1988
      %v1990 = vmul.f32 %v1985, 1.442695
      %v1991 = vpow.pop %v1990
      %v1992 = vmul.f32 %v1986, 1.442695
      %v1993 = vpow.pop %v1992
      %v1994 = vmul.f32 %v1987, 1.442695
      %v1995 = vpow.pop %v1994
      %v1996 = vld [vmem:[#allocation4] sm:$0xff]
      %v1997 = vmul.f32 %v1978, %v1996
      %v1998 = vadd.f32 %v1989, %v1991
      %v1999 = vadd.f32 %v1998, %v1993
      %v2000 = vadd.f32 %v1999, %v1995
      %2001 = vadd.xlane.f32.xlu0 %v2000
      %v2002 = vpop.xlane.xlu0 %2001
      %v2003 = vadd.f32 %v1997, %v2002
      %vm2004 = vcmask 7168
      %2005 = vst.msk [vmem:[#allocation4] sm:$0xff] %vm2004, %v2003
      %v2006 = vld [vmem:[#allocation5] sm:$0xff]
      %2008 = vset.pattern.permute.xlu0 0
      %2009 = vperm.xlu0 %2008, %v1978
      %v2010 = vpop.permute.xlu0 %2009
      %v2012 = vmul.f32 %v2010, %v2006
      %v2013 = vpack.c.bf16 %v1989, %v1989
      %v2014 = vpack.c.bf16 %v1991, %v1991
      %v2015 = vpack.c.bf16 %v1993, %v1993
      %v2016 = vpack.c.bf16 %v1995, %v1995
      %2017 = vmatprep.subr.bf16.mxu0 0
      %2018 = vmatpush1.bf16.msra.mxu0 %v1754
      %2019 = vmatprep.subr.bf16.mxu0 0
      %2020 = vmatpush1.bf16.msra.mxu0 %v1755
      %2021 = vmatprep.subr.bf16.mxu0 0
      %2022 = vmatpush1.bf16.msra.mxu0 %v1756
      %2023 = vmatprep.subr.bf16.mxu0 0
      %2024 = vmatpush1.bf16.msra.mxu0 %v1757
      %2025 = vmatprep.subr.bf16.mxu0 0
      %2026 = vmatpush1.bf16.msra.mxu0 %v1758
      %2027 = vmatprep.subr.bf16.mxu0 0
      %2028 = vmatpush1.bf16.msra.mxu0 %v1759
      %2029 = vmatprep.subr.bf16.mxu0 0
      %2030 = vmatpush1.bf16.msra.mxu0 %v1760
      %2031 = vmatprep.subr.bf16.mxu0 0
      %2032 = vmatpush1.bf16.msra.mxu0 %v1761
      %2033 = vmatprep.subr.bf16.mxu0 0
      %2034 = vmatpush1.bf16.msra.mxu0 %v1762
      %2035 = vmatprep.subr.bf16.mxu0 0
      %2036 = vmatpush1.bf16.msra.mxu0 %v1763
      %2037 = vmatprep.subr.bf16.mxu0 0
      %2038 = vmatpush1.bf16.msra.mxu0 %v1764
      %2039 = vmatprep.subr.bf16.mxu0 0
      %2040 = vmatpush1.bf16.msra.mxu0 %v1765
      %2041 = vmatprep.subr.bf16.mxu0 0
      %2042 = vmatpush1.bf16.msra.mxu0 %v1766
      %2043 = vmatprep.subr.bf16.mxu0 0
      %2044 = vmatpush1.bf16.msra.mxu0 %v1767
      %2045 = vmatprep.subr.bf16.mxu0 0
      %2046 = vmatpush1.bf16.msra.mxu0 %v1768
      %2047 = vmatprep.subr.bf16.mxu0 0
      %2048 = vmatpush1.bf16.msra.mxu0 %v1769
      %2049 = vmatprep.mubr.bf16.mxu0 %v2014
      %2050 = vmatmul.mubr.bf16.gmra.mrb[0].mxu0 %v2013
      %v2051 = vpop.f32.mrb[0].mxu0
      %v2052 = vadd.f32 0.0, %v2051
      %v2053 = vpop.f32.mrb[0].mxu0
      %v2054 = vpop.f32.mrb[0].mxu0
      %v2055 = vpop.f32.mrb[0].mxu0
      %2056 = vdwg.mxu0
      %2057 = vmatprep.subr.bf16.mxu0 0
      %2058 = vmatpush1.bf16.msra.mxu0 %v1770
      %2059 = vmatprep.subr.bf16.mxu0 0
      %2060 = vmatpush1.bf16.msra.mxu0 %v1771
      %2061 = vmatprep.subr.bf16.mxu0 0
      %2062 = vmatpush1.bf16.msra.mxu0 %v1772
      %2063 = vmatprep.subr.bf16.mxu0 0
      %2064 = vmatpush1.bf16.msra.mxu0 %v1773
      %2065 = vmatprep.subr.bf16.mxu0 0
      %2066 = vmatpush1.bf16.msra.mxu0 %v1774
      %2067 = vmatprep.subr.bf16.mxu0 0
      %2068 = vmatpush1.bf16.msra.mxu0 %v1775
      %2069 = vmatprep.subr.bf16.mxu0 0
      %2070 = vmatpush1.bf16.msra.mxu0 %v1776
      %2071 = vmatprep.subr.bf16.mxu0 0
      %2072 = vmatpush1.bf16.msra.mxu0 %v1777
      %2073 = vmatprep.subr.bf16.mxu0 0
      %2074 = vmatpush1.bf16.msra.mxu0 %v1778
      %2075 = vmatprep.subr.bf16.mxu0 0
      %2076 = vmatpush1.bf16.msra.mxu0 %v1779
      %2077 = vmatprep.subr.bf16.mxu0 0
      %2078 = vmatpush1.bf16.msra.mxu0 %v1780
      %2079 = vmatprep.subr.bf16.mxu0 0
      %2080 = vmatpush1.bf16.msra.mxu0 %v1781
      %2081 = vmatprep.subr.bf16.mxu0 0
      %2082 = vmatpush1.bf16.msra.mxu0 %v1782
      %2083 = vmatprep.subr.bf16.mxu0 0
      %2084 = vmatpush1.bf16.msra.mxu0 %v1783
      %2085 = vmatprep.subr.bf16.mxu0 0
      %2086 = vmatpush1.bf16.msra.mxu0 %v1784
      %2087 = vmatprep.subr.bf16.mxu0 0
      %2088 = vmatpush1.bf16.msra.mxu0 %v1785
      %2089 = vmatprep.mubr.bf16.mxu0 %v2016
      %2090 = vmatmul.mubr.bf16.gmra.mrb[0].mxu0 %v2015
      %v2091 = vpop.f32.mrb[0].mxu0
      %v2092 = vadd.f32 %v2052, %v2091
      %v2093 = vpop.f32.mrb[0].mxu0
      %v2094 = vpop.f32.mrb[0].mxu0
      %v2095 = vpop.f32.mrb[0].mxu0
      %2096 = vdwg.mxu0
      %v2097 = vadd.f32 %v2012, %v2092
      %2098 = vst.msk [vmem:[#allocation5] sm:$0xff] %vm1787, %v2097
      %2099 = vst.msk [vmem:[#allocation3] sm:$0xff] %vm2004, %v1975
      %s2100 = scalar_lea.vmem [#allocation2], 4
      %v2101 = vld [vmem:[%s2100] sm:$0xf]
      %2134 = vrot.lane.b32.xlu0 %v1218, 120
      %v2135 = vpop.permute.xlu0 %2134
      %2136 = vrot.lane.b32.xlu0 %v1219, 120
      %v2137 = vpop.permute.xlu0 %2136
      %2138 = vrot.lane.b32.xlu0 %v1220, 120
      %v2139 = vpop.permute.xlu0 %2138
      %2140 = vrot.lane.b32.xlu0 %v1221, 120
      %v2141 = vpop.permute.xlu0 %2140
      %2142 = vrot.lane.b32.xlu0 %v1222, 120
      %v2143 = vpop.permute.xlu0 %2142
      %2144 = vrot.lane.b32.xlu0 %v1223, 120
      %v2145 = vpop.permute.xlu0 %2144
      %2146 = vrot.lane.b32.xlu0 %v1224, 120
      %v2147 = vpop.permute.xlu0 %2146
      %2148 = vrot.lane.b32.xlu0 %v1225, 120
      %v2149 = vpop.permute.xlu0 %2148
      %2150 = vrot.lane.b32.xlu0 %v1226, 120
      %v2151 = vpop.permute.xlu0 %2150
      %2152 = vrot.lane.b32.xlu0 %v1227, 120
      %v2153 = vpop.permute.xlu0 %2152
      %2154 = vrot.lane.b32.xlu0 %v1228, 120
      %v2155 = vpop.permute.xlu0 %2154
      %2156 = vrot.lane.b32.xlu0 %v1229, 120
      %v2157 = vpop.permute.xlu0 %2156
      %2158 = vrot.lane.b32.xlu0 %v1230, 120
      %v2159 = vpop.permute.xlu0 %2158
      %2160 = vrot.lane.b32.xlu0 %v1231, 120
      %v2161 = vpop.permute.xlu0 %2160
      %2162 = vrot.lane.b32.xlu0 %v1232, 120
      %v2163 = vpop.permute.xlu0 %2162
      %2164 = vrot.lane.b32.xlu0 %v1233, 120
      %v2165 = vpop.permute.xlu0 %2164
      %2166 = vrot.lane.b32.xlu0 %v1234, 120
      %v2167 = vpop.permute.xlu0 %2166
      %2168 = vrot.lane.b32.xlu0 %v1235, 120
      %v2169 = vpop.permute.xlu0 %2168
      %2170 = vrot.lane.b32.xlu0 %v1236, 120
      %v2171 = vpop.permute.xlu0 %2170
      %2172 = vrot.lane.b32.xlu0 %v1237, 120
      %v2173 = vpop.permute.xlu0 %2172
      %2174 = vrot.lane.b32.xlu0 %v1238, 120
      %v2175 = vpop.permute.xlu0 %2174
      %2176 = vrot.lane.b32.xlu0 %v1239, 120
      %v2177 = vpop.permute.xlu0 %2176
      %2178 = vrot.lane.b32.xlu0 %v1240, 120
      %v2179 = vpop.permute.xlu0 %2178
      %2180 = vrot.lane.b32.xlu0 %v1241, 120
      %v2181 = vpop.permute.xlu0 %2180
      %2182 = vrot.lane.b32.xlu0 %v1242, 120
      %v2183 = vpop.permute.xlu0 %2182
      %2184 = vrot.lane.b32.xlu0 %v1243, 120
      %v2185 = vpop.permute.xlu0 %2184
      %2186 = vrot.lane.b32.xlu0 %v1244, 120
      %v2187 = vpop.permute.xlu0 %2186
      %2188 = vrot.lane.b32.xlu0 %v1245, 120
      %v2189 = vpop.permute.xlu0 %2188
      %2190 = vrot.lane.b32.xlu0 %v1246, 120
      %v2191 = vpop.permute.xlu0 %2190
      %2192 = vrot.lane.b32.xlu0 %v1247, 120
      %v2193 = vpop.permute.xlu0 %2192
      %2194 = vrot.lane.b32.xlu0 %v1248, 120
      %v2195 = vpop.permute.xlu0 %2194
      %2196 = vrot.lane.b32.xlu0 %v1249, 120
      %v2197 = vpop.permute.xlu0 %2196
      %v2199 = vsel %vm1787, %v2101, 0
      %v2202 = vsel %vm1787, %v2135, 0
      %v2205 = vsel %vm1787, %v2137, 0
      %v2208 = vsel %vm1787, %v2139, 0
      %v2211 = vsel %vm1787, %v2141, 0
      %v2214 = vsel %vm1787, %v2143, 0
      %v2217 = vsel %vm1787, %v2145, 0
      %v2220 = vsel %vm1787, %v2147, 0
      %v2223 = vsel %vm1787, %v2149, 0
      %v2226 = vsel %vm1787, %v2151, 0
      %v2229 = vsel %vm1787, %v2153, 0
      %v2232 = vsel %vm1787, %v2155, 0
      %v2235 = vsel %vm1787, %v2157, 0
      %v2238 = vsel %vm1787, %v2159, 0
      %v2241 = vsel %vm1787, %v2161, 0
      %v2244 = vsel %vm1787, %v2163, 0
      %v2247 = vsel %vm1787, %v2165, 0
      %v2250 = vsel %vm1787, %v2167, 0
      %v2253 = vsel %vm1787, %v2169, 0
      %v2256 = vsel %vm1787, %v2171, 0
      %v2259 = vsel %vm1787, %v2173, 0
      %v2262 = vsel %vm1787, %v2175, 0
      %v2265 = vsel %vm1787, %v2177, 0
      %v2268 = vsel %vm1787, %v2179, 0
      %v2271 = vsel %vm1787, %v2181, 0
      %v2274 = vsel %vm1787, %v2183, 0
      %v2277 = vsel %vm1787, %v2185, 0
      %v2280 = vsel %vm1787, %v2187, 0
      %v2283 = vsel %vm1787, %v2189, 0
      %v2286 = vsel %vm1787, %v2191, 0
      %v2289 = vsel %vm1787, %v2193, 0
      %v2292 = vsel %vm1787, %v2195, 0
      %v2295 = vsel %vm1787, %v2197, 0
      %2297 = vmatprep.subr.bf16.mxu0 0
      %2298 = vmatpush1.bf16.xpose.msra.mxu0 %v2202
      %2299 = vmatprep.subr.bf16.mxu0 0
      %2300 = vmatpush1.bf16.xpose.msra.mxu0 %v2205
      %2301 = vmatprep.subr.bf16.mxu0 0
      %2302 = vmatpush1.bf16.xpose.msra.mxu0 %v2208
      %2303 = vmatprep.subr.bf16.mxu0 0
      %2304 = vmatpush1.bf16.xpose.msra.mxu0 %v2211
      %2305 = vmatprep.subr.bf16.mxu0 0
      %2306 = vmatpush1.bf16.xpose.msra.mxu0 %v2214
      %2307 = vmatprep.subr.bf16.mxu0 0
      %2308 = vmatpush1.bf16.xpose.msra.mxu0 %v2217
      %2309 = vmatprep.subr.bf16.mxu0 0
      %2310 = vmatpush1.bf16.xpose.msra.mxu0 %v2220
      %2311 = vmatprep.subr.bf16.mxu0 0
      %2312 = vmatpush1.bf16.xpose.msra.mxu0 %v2223
      %2313 = vmatprep.subr.bf16.mxu0 0
      %2314 = vmatpush1.bf16.xpose.msra.mxu0 %v2226
      %2315 = vmatprep.subr.bf16.mxu0 0
      %2316 = vmatpush1.bf16.xpose.msra.mxu0 %v2229
      %2317 = vmatprep.subr.bf16.mxu0 0
      %2318 = vmatpush1.bf16.xpose.msra.mxu0 %v2232
      %2319 = vmatprep.subr.bf16.mxu0 0
      %2320 = vmatpush1.bf16.xpose.msra.mxu0 %v2235
      %2321 = vmatprep.subr.bf16.mxu0 0
      %2322 = vmatpush1.bf16.xpose.msra.mxu0 %v2238
      %2323 = vmatprep.subr.bf16.mxu0 0
      %2324 = vmatpush1.bf16.xpose.msra.mxu0 %v2241
      %2325 = vmatprep.subr.bf16.mxu0 0
      %2326 = vmatpush1.bf16.xpose.msra.mxu0 %v2244
      %2327 = vmatprep.subr.bf16.mxu0 0
      %2328 = vmatpush1.bf16.xpose.msra.mxu0 %v2247
      %2329 = vmatprep.mubr.bf16.mxu0 0
      %2330 = vmatmul.mubr.bf16.gmra.mrb[0].mxu0 %v2199
      %v2331 = vpop.f32.mrb[0].mxu0
      %v2332 = vadd.f32 0.0, %v2331
      %v2333 = vpop.f32.mrb[0].mxu0
      %v2334 = vadd.f32 0.0, %v2333
      %v2335 = vpop.f32.mrb[0].mxu0
      %v2336 = vpop.f32.mrb[0].mxu0
      %2337 = vdwg.mxu0
      %2338 = vmatprep.subr.bf16.mxu0 0
      %2339 = vmatpush1.bf16.xpose.msra.mxu0 %v2250
      %2340 = vmatprep.subr.bf16.mxu0 0
      %2341 = vmatpush1.bf16.xpose.msra.mxu0 %v2253
      %2342 = vmatprep.subr.bf16.mxu0 0
      %2343 = vmatpush1.bf16.xpose.msra.mxu0 %v2256
      %2344 = vmatprep.subr.bf16.mxu0 0
      %2345 = vmatpush1.bf16.xpose.msra.mxu0 %v2259
      %2346 = vmatprep.subr.bf16.mxu0 0
      %2347 = vmatpush1.bf16.xpose.msra.mxu0 %v2262
      %2348 = vmatprep.subr.bf16.mxu0 0
      %2349 = vmatpush1.bf16.xpose.msra.mxu0 %v2265
      %2350 = vmatprep.subr.bf16.mxu0 0
      %2351 = vmatpush1.bf16.xpose.msra.mxu0 %v2268
      %2352 = vmatprep.subr.bf16.mxu0 0
      %2353 = vmatpush1.bf16.xpose.msra.mxu0 %v2271
      %2354 = vmatprep.subr.bf16.mxu0 0
      %2355 = vmatpush1.bf16.xpose.msra.mxu0 %v2274
      %2356 = vmatprep.subr.bf16.mxu0 0
      %2357 = vmatpush1.bf16.xpose.msra.mxu0 %v2277
      %2358 = vmatprep.subr.bf16.mxu0 0
      %2359 = vmatpush1.bf16.xpose.msra.mxu0 %v2280
      %2360 = vmatprep.subr.bf16.mxu0 0
      %2361 = vmatpush1.bf16.xpose.msra.mxu0 %v2283
      %2362 = vmatprep.subr.bf16.mxu0 0
      %2363 = vmatpush1.bf16.xpose.msra.mxu0 %v2286
      %2364 = vmatprep.subr.bf16.mxu0 0
      %2365 = vmatpush1.bf16.xpose.msra.mxu0 %v2289
      %2366 = vmatprep.subr.bf16.mxu0 0
      %2367 = vmatpush1.bf16.xpose.msra.mxu0 %v2292
      %2368 = vmatprep.subr.bf16.mxu0 0
      %2369 = vmatpush1.bf16.xpose.msra.mxu0 %v2295
      %2370 = vmatprep.mubr.bf16.mxu0 0
      %2371 = vmatmul.mubr.bf16.gmra.mrb[0].mxu0 %v2199
      %v2372 = vpop.f32.mrb[0].mxu0
      %v2373 = vadd.f32 0.0, %v2372
      %v2374 = vpop.f32.mrb[0].mxu0
      %v2375 = vadd.f32 0.0, %v2374
      %v2376 = vpop.f32.mrb[0].mxu0
      %v2377 = vpop.f32.mrb[0].mxu0
      %2378 = vdwg.mxu0
      %s2379 = scalar_lea.vmem [#allocation3], 8
      %v2380 = vld [vmem:[%s2379] sm:$0xff]
      %v2381 = vmax.f32 %v2332, %v2334
      %v2382 = vmax.f32 %v2373, %v2375
      %v2383 = vmax.f32 %v2381, %v2382
      %2384 = vmax.xlane.f32.xlu0 %v2383
      %v2385 = vpop.xlane.xlu0 %2384
      %v2386 = vmax.f32 %v2380, %v2385
      %v2387 = vsub.f32 %v2380, %v2386
      %v2388 = vmul.f32 %v2387, 1.442695
      %v2389 = vpow.pop %v2388
      %2391 = vset.pattern.permute.xlu0 0
      %2392 = vperm.xlu0 %2391, %v2386
      %v2393 = vpop.permute.xlu0 %2392
      %v2395 = vsub.f32 %v2332, %v2393
      %v2396 = vsub.f32 %v2334, %v2393
      %v2397 = vsub.f32 %v2373, %v2393
      %v2398 = vsub.f32 %v2375, %v2393
      %v2399 = vmul.f32 %v2395, 1.442695
      %v2400 = vpow.pop %v2399
      %v2401 = vmul.f32 %v2396, 1.442695
      %v2402 = vpow.pop %v2401
      %v2403 = vmul.f32 %v2397, 1.442695
      %v2404 = vpow.pop %v2403
      %v2405 = vmul.f32 %v2398, 1.442695
      %v2406 = vpow.pop %v2405
      %s2407 = scalar_lea.vmem [#allocation4], 8
      %v2408 = vld [vmem:[%s2407] sm:$0xff]
      %v2409 = vmul.f32 %v2389, %v2408
      %v2410 = vadd.f32 %v2400, %v2402
      %v2411 = vadd.f32 %v2410, %v2404
      %v2412 = vadd.f32 %v2411, %v2406
      %2413 = vadd.xlane.f32.xlu0 %v2412
      %v2414 = vpop.xlane.xlu0 %2413
      %v2415 = vadd.f32 %v2409, %v2414
      %2416 = vst.msk [vmem:[%s2407] sm:$0xff] %vm2004, %v2415
      %s2417 = scalar_lea.vmem [#allocation5], 8
      %v2418 = vld [vmem:[%s2417] sm:$0xff]
      %2420 = vset.pattern.permute.xlu0 0
      %2421 = vperm.xlu0 %2420, %v2389
      %v2422 = vpop.permute.xlu0 %2421
      %v2424 = vmul.f32 %v2422, %v2418
      %v2425 = vpack.c.bf16 %v2400, %v2400
      %v2426 = vpack.c.bf16 %v2402, %v2402
      %v2427 = vpack.c.bf16 %v2404, %v2404
      %v2428 = vpack.c.bf16 %v2406, %v2406
      %2461 = vrot.lane.b32.xlu0 %v1754, 120
      %v2462 = vpop.permute.xlu0 %2461
      %2463 = vrot.lane.b32.xlu0 %v1755, 120
      %v2464 = vpop.permute.xlu0 %2463
      %2465 = vrot.lane.b32.xlu0 %v1756, 120
      %v2466 = vpop.permute.xlu0 %2465
      %2467 = vrot.lane.b32.xlu0 %v1757, 120
      %v2468 = vpop.permute.xlu0 %2467
      %2469 = vrot.lane.b32.xlu0 %v1758, 120
      %v2470 = vpop.permute.xlu0 %2469
      %2471 = vrot.lane.b32.xlu0 %v1759, 120
      %v2472 = vpop.permute.xlu0 %2471
      %2473 = vrot.lane.b32.xlu0 %v1760, 120
      %v2474 = vpop.permute.xlu0 %2473
      %2475 = vrot.lane.b32.xlu0 %v1761, 120
      %v2476 = vpop.permute.xlu0 %2475
      %2477 = vrot.lane.b32.xlu0 %v1762, 120
      %v2478 = vpop.permute.xlu0 %2477
      %2479 = vrot.lane.b32.xlu0 %v1763, 120
      %v2480 = vpop.permute.xlu0 %2479
      %2481 = vrot.lane.b32.xlu0 %v1764, 120
      %v2482 = vpop.permute.xlu0 %2481
      %2483 = vrot.lane.b32.xlu0 %v1765, 120
      %v2484 = vpop.permute.xlu0 %2483
      %2485 = vrot.lane.b32.xlu0 %v1766, 120
      %v2486 = vpop.permute.xlu0 %2485
      %2487 = vrot.lane.b32.xlu0 %v1767, 120
      %v2488 = vpop.permute.xlu0 %2487
      %2489 = vrot.lane.b32.xlu0 %v1768, 120
      %v2490 = vpop.permute.xlu0 %2489
      %2491 = vrot.lane.b32.xlu0 %v1769, 120
      %v2492 = vpop.permute.xlu0 %2491
      %2493 = vrot.lane.b32.xlu0 %v1770, 120
      %v2494 = vpop.permute.xlu0 %2493
      %2495 = vrot.lane.b32.xlu0 %v1771, 120
      %v2496 = vpop.permute.xlu0 %2495
      %2497 = vrot.lane.b32.xlu0 %v1772, 120
      %v2498 = vpop.permute.xlu0 %2497
      %2499 = vrot.lane.b32.xlu0 %v1773, 120
      %v2500 = vpop.permute.xlu0 %2499
      %2501 = vrot.lane.b32.xlu0 %v1774, 120
      %v2502 = vpop.permute.xlu0 %2501
      %2503 = vrot.lane.b32.xlu0 %v1775, 120
      %v2504 = vpop.permute.xlu0 %2503
      %2505 = vrot.lane.b32.xlu0 %v1776, 120
      %v2506 = vpop.permute.xlu0 %2505
      %2507 = vrot.lane.b32.xlu0 %v1777, 120
      %v2508 = vpop.permute.xlu0 %2507
      %2509 = vrot.lane.b32.xlu0 %v1778, 120
      %v2510 = vpop.permute.xlu0 %2509
      %2511 = vrot.lane.b32.xlu0 %v1779, 120
      %v2512 = vpop.permute.xlu0 %2511
      %2513 = vrot.lane.b32.xlu0 %v1780, 120
      %v2514 = vpop.permute.xlu0 %2513
      %2515 = vrot.lane.b32.xlu0 %v1781, 120
      %v2516 = vpop.permute.xlu0 %2515
      %2517 = vrot.lane.b32.xlu0 %v1782, 120
      %v2518 = vpop.permute.xlu0 %2517
      %2519 = vrot.lane.b32.xlu0 %v1783, 120
      %v2520 = vpop.permute.xlu0 %2519
      %2521 = vrot.lane.b32.xlu0 %v1784, 120
      %v2522 = vpop.permute.xlu0 %2521
      %2523 = vrot.lane.b32.xlu0 %v1785, 120
      %v2524 = vpop.permute.xlu0 %2523
      %2557 = vmatprep.subr.bf16.mxu0 0
      %2558 = vmatpush1.bf16.msra.mxu0 %v2462
      %2559 = vmatprep.subr.bf16.mxu0 0
      %2560 = vmatpush1.bf16.msra.mxu0 %v2464
      %2561 = vmatprep.subr.bf16.mxu0 0
      %2562 = vmatpush1.bf16.msra.mxu0 %v2466
      %2563 = vmatprep.subr.bf16.mxu0 0
      %2564 = vmatpush1.bf16.msra.mxu0 %v2468
      %2565 = vmatprep.subr.bf16.mxu0 0
      %2566 = vmatpush1.bf16.msra.mxu0 %v2470
      %2567 = vmatprep.subr.bf16.mxu0 0
      %2568 = vmatpush1.bf16.msra.mxu0 %v2472
      %2569 = vmatprep.subr.bf16.mxu0 0
      %2570 = vmatpush1.bf16.msra.mxu0 %v2474
      %2571 = vmatprep.subr.bf16.mxu0 0
      %2572 = vmatpush1.bf16.msra.mxu0 %v2476
      %2573 = vmatprep.subr.bf16.mxu0 0
      %2574 = vmatpush1.bf16.msra.mxu0 %v2478
      %2575 = vmatprep.subr.bf16.mxu0 0
      %2576 = vmatpush1.bf16.msra.mxu0 %v2480
      %2577 = vmatprep.subr.bf16.mxu0 0
      %2578 = vmatpush1.bf16.msra.mxu0 %v2482
      %2579 = vmatprep.subr.bf16.mxu0 0
      %2580 = vmatpush1.bf16.msra.mxu0 %v2484
      %2581 = vmatprep.subr.bf16.mxu0 0
      %2582 = vmatpush1.bf16.msra.mxu0 %v2486
      %2583 = vmatprep.subr.bf16.mxu0 0
      %2584 = vmatpush1.bf16.msra.mxu0 %v2488
      %2585 = vmatprep.subr.bf16.mxu0 0
      %2586 = vmatpush1.bf16.msra.mxu0 %v2490
      %2587 = vmatprep.subr.bf16.mxu0 0
      %2588 = vmatpush1.bf16.msra.mxu0 %v2492
      %2589 = vmatprep.mubr.bf16.mxu0 %v2426
      %2590 = vmatmul.mubr.bf16.gmra.mrb[0].mxu0 %v2425
      %v2591 = vpop.f32.mrb[0].mxu0
      %v2592 = vadd.f32 0.0, %v2591
      %v2593 = vpop.f32.mrb[0].mxu0
      %v2594 = vpop.f32.mrb[0].mxu0
      %v2595 = vpop.f32.mrb[0].mxu0
      %2596 = vdwg.mxu0
      %2597 = vmatprep.subr.bf16.mxu0 0
      %2598 = vmatpush1.bf16.msra.mxu0 %v2494
      %2599 = vmatprep.subr.bf16.mxu0 0
      %2600 = vmatpush1.bf16.msra.mxu0 %v2496
      %2601 = vmatprep.subr.bf16.mxu0 0
      %2602 = vmatpush1.bf16.msra.mxu0 %v2498
      %2603 = vmatprep.subr.bf16.mxu0 0
      %2604 = vmatpush1.bf16.msra.mxu0 %v2500
      %2605 = vmatprep.subr.bf16.mxu0 0
      %2606 = vmatpush1.bf16.msra.mxu0 %v2502
      %2607 = vmatprep.subr.bf16.mxu0 0
      %2608 = vmatpush1.bf16.msra.mxu0 %v2504
      %2609 = vmatprep.subr.bf16.mxu0 0
      %2610 = vmatpush1.bf16.msra.mxu0 %v2506
      %2611 = vmatprep.subr.bf16.mxu0 0
      %2612 = vmatpush1.bf16.msra.mxu0 %v2508
      %2613 = vmatprep.subr.bf16.mxu0 0
      %2614 = vmatpush1.bf16.msra.mxu0 %v2510
      %2615 = vmatprep.subr.bf16.mxu0 0
      %2616 = vmatpush1.bf16.msra.mxu0 %v2512
      %2617 = vmatprep.subr.bf16.mxu0 0
      %2618 = vmatpush1.bf16.msra.mxu0 %v2514
      %2619 = vmatprep.subr.bf16.mxu0 0
      %2620 = vmatpush1.bf16.msra.mxu0 %v2516
      %2621 = vmatprep.subr.bf16.mxu0 0
      %2622 = vmatpush1.bf16.msra.mxu0 %v2518
      %2623 = vmatprep.subr.bf16.mxu0 0
      %2624 = vmatpush1.bf16.msra.mxu0 %v2520
      %2625 = vmatprep.subr.bf16.mxu0 0
      %2626 = vmatpush1.bf16.msra.mxu0 %v2522
      %2627 = vmatprep.subr.bf16.mxu0 0
      %2628 = vmatpush1.bf16.msra.mxu0 %v2524
      %2629 = vmatprep.mubr.bf16.mxu0 %v2428
      %2630 = vmatmul.mubr.bf16.gmra.mrb[0].mxu0 %v2427
      %v2631 = vpop.f32.mrb[0].mxu0
      %v2632 = vadd.f32 %v2592, %v2631
      %v2633 = vpop.f32.mrb[0].mxu0
      %v2634 = vpop.f32.mrb[0].mxu0
      %v2635 = vpop.f32.mrb[0].mxu0
      %2636 = vdwg.mxu0
      %v2637 = vadd.f32 %v2424, %v2632
      %2638 = vst.msk [vmem:[%s2417] sm:$0xff] %vm1787, %v2637
      %2639 = vst.msk [vmem:[%s2379] sm:$0xff] %vm2004, %v2386
      %s2640 = scalar_lea.vmem [#allocation2], 8
      %v2641 = vld [vmem:[%s2640] sm:$0xf]
      %2642 = vrot.lane.b32.xlu0 %v1218, 112
      %v2643 = vpop.permute.xlu0 %2642
      %2644 = vrot.lane.b32.xlu0 %v1219, 112
      %v2645 = vpop.permute.xlu0 %2644
      %2646 = vrot.lane.b32.xlu0 %v1220, 112
      %v2647 = vpop.permute.xlu0 %2646
      %2648 = vrot.lane.b32.xlu0 %v1221, 112
      %v2649 = vpop.permute.xlu0 %2648
      %2650 = vrot.lane.b32.xlu0 %v1222, 112
      %v2651 = vpop.permute.xlu0 %2650
      %2652 = vrot.lane.b32.xlu0 %v1223, 112
      %v2653 = vpop.permute.xlu0 %2652
      %2654 = vrot.lane.b32.xlu0 %v1224, 112
      %v2655 = vpop.permute.xlu0 %2654
      %2656 = vrot.lane.b32.xlu0 %v1225, 112
      %v2657 = vpop.permute.xlu0 %2656
      %2658 = vrot.lane.b32.xlu0 %v1226, 112
      %v2659 = vpop.permute.xlu0 %2658
      %2660 = vrot.lane.b32.xlu0 %v1227, 112
      %v2661 = vpop.permute.xlu0 %2660
      %2662 = vrot.lane.b32.xlu0 %v1228, 112
      %v2663 = vpop.permute.xlu0 %2662
      %2664 = vrot.lane.b32.xlu0 %v1229, 112
      %v2665 = vpop.permute.xlu0 %2664
      %2666 = vrot.lane.b32.xlu0 %v1230, 112
      %v2667 = vpop.permute.xlu0 %2666
      %2668 = vrot.lane.b32.xlu0 %v1231, 112
      %v2669 = vpop.permute.xlu0 %2668
      %2670 = vrot.lane.b32.xlu0 %v1232, 112
      %v2671 = vpop.permute.xlu0 %2670
      %2672 = vrot.lane.b32.xlu0 %v1233, 112
      %v2673 = vpop.permute.xlu0 %2672
      %2674 = vrot.lane.b32.xlu0 %v1234, 112
      %v2675 = vpop.permute.xlu0 %2674
      %2676 = vrot.lane.b32.xlu0 %v1235, 112
      %v2677 = vpop.permute.xlu0 %2676
      %2678 = vrot.lane.b32.xlu0 %v1236, 112
      %v2679 = vpop.permute.xlu0 %2678
      %2680 = vrot.lane.b32.xlu0 %v1237, 112
      %v2681 = vpop.permute.xlu0 %2680
      %2682 = vrot.lane.b32.xlu0 %v1238, 112
      %v2683 = vpop.permute.xlu0 %2682
      %2684 = vrot.lane.b32.xlu0 %v1239, 112
      %v2685 = vpop.permute.xlu0 %2684
      %2686 = vrot.lane.b32.xlu0 %v1240, 112
      %v2687 = vpop.permute.xlu0 %2686
      %2688 = vrot.lane.b32.xlu0 %v1241, 112
      %v2689 = vpop.permute.xlu0 %2688
      %2690 = vrot.lane.b32.xlu0 %v1242, 112
      %v2691 = vpop.permute.xlu0 %2690
      %2692 = vrot.lane.b32.xlu0 %v1243, 112
      %v2693 = vpop.permute.xlu0 %2692
      %2694 = vrot.lane.b32.xlu0 %v1244, 112
      %v2695 = vpop.permute.xlu0 %2694
      %2696 = vrot.lane.b32.xlu0 %v1245, 112
      %v2697 = vpop.permute.xlu0 %2696
      %2698 = vrot.lane.b32.xlu0 %v1246, 112
      %v2699 = vpop.permute.xlu0 %2698
      %2700 = vrot.lane.b32.xlu0 %v1247, 112
      %v2701 = vpop.permute.xlu0 %2700
      %2702 = vrot.lane.b32.xlu0 %v1248, 112
      %v2703 = vpop.permute.xlu0 %2702
      %2704 = vrot.lane.b32.xlu0 %v1249, 112
      %v2705 = vpop.permute.xlu0 %2704
      %v2707 = vsel %vm1787, %v2641, 0
      %v2710 = vsel %vm1787, %v2643, 0
      %v2713 = vsel %vm1787, %v2645, 0
      %v2716 = vsel %vm1787, %v2647, 0
      %v2719 = vsel %vm1787, %v2649, 0
      %v2722 = vsel %vm1787, %v2651, 0
      %v2725 = vsel %vm1787, %v2653, 0
      %v2728 = vsel %vm1787, %v2655, 0
      %v2731 = vsel %vm1787, %v2657, 0
      %v2734 = vsel %vm1787, %v2659, 0
      %v2737 = vsel %vm1787, %v2661, 0
      %v2740 = vsel %vm1787, %v2663, 0
      %v2743 = vsel %vm1787, %v2665, 0
      %v2746 = vsel %vm1787, %v2667, 0
      %v2749 = vsel %vm1787, %v2669, 0
      %v2752 = vsel %vm1787, %v2671, 0
      %v2755 = vsel %vm1787, %v2673, 0
      %v2758 = vsel %vm1787, %v2675, 0
      %v2761 = vsel %vm1787, %v2677, 0
      %v2764 = vsel %vm1787, %v2679, 0
      %v2767 = vsel %vm1787, %v2681, 0
      %v2770 = vsel %vm1787, %v2683, 0
      %v2773 = vsel %vm1787, %v2685, 0
      %v2776 = vsel %vm1787, %v2687, 0
      %v2779 = vsel %vm1787, %v2689, 0
      %v2782 = vsel %vm1787, %v2691, 0
      %v2785 = vsel %vm1787, %v2693, 0
      %v2788 = vsel %vm1787, %v2695, 0
      %v2791 = vsel %vm1787, %v2697, 0
      %v2794 = vsel %vm1787, %v2699, 0
      %v2797 = vsel %vm1787, %v2701, 0
      %v2800 = vsel %vm1787, %v2703, 0
      %v2803 = vsel %vm1787, %v2705, 0
      %2805 = vmatprep.subr.bf16.mxu0 0
      %2806 = vmatpush1.bf16.xpose.msra.mxu0 %v2710
      %2807 = vmatprep.subr.bf16.mxu0 0
      %2808 = vmatpush1.bf16.xpose.msra.mxu0 %v2713
      %2809 = vmatprep.subr.bf16.mxu0 0
      %2810 = vmatpush1.bf16.xpose.msra.mxu0 %v2716
      %2811 = vmatprep.subr.bf16.mxu0 0
      %2812 = vmatpush1.bf16.xpose.msra.mxu0 %v2719
      %2813 = vmatprep.subr.bf16.mxu0 0
      %2814 = vmatpush1.bf16.xpose.msra.mxu0 %v2722
      %2815 = vmatprep.subr.bf16.mxu0 0
      %2816 = vmatpush1.bf16.xpose.msra.mxu0 %v2725
      %2817 = vmatprep.subr.bf16.mxu0 0
      %2818 = vmatpush1.bf16.xpose.msra.mxu0 %v2728
      %2819 = vmatprep.subr.bf16.mxu0 0
      %2820 = vmatpush1.bf16.xpose.msra.mxu0 %v2731
      %2821 = vmatprep.subr.bf16.mxu0 0
      %2822 = vmatpush1.bf16.xpose.msra.mxu0 %v2734
      %2823 = vmatprep.subr.bf16.mxu0 0
      %2824 = vmatpush1.bf16.xpose.msra.mxu0 %v2737
      %2825 = vmatprep.subr.bf16.mxu0 0
      %2826 = vmatpush1.bf16.xpose.msra.mxu0 %v2740
      %2827 = vmatprep.subr.bf16.mxu0 0
      %2828 = vmatpush1.bf16.xpose.msra.mxu0 %v2743
      %2829 = vmatprep.subr.bf16.mxu0 0
      %2830 = vmatpush1.bf16.xpose.msra.mxu0 %v2746
      %2831 = vmatprep.subr.bf16.mxu0 0
      %2832 = vmatpush1.bf16.xpose.msra.mxu0 %v2749
      %2833 = vmatprep.subr.bf16.mxu0 0
      %2834 = vmatpush1.bf16.xpose.msra.mxu0 %v2752
      %2835 = vmatprep.subr.bf16.mxu0 0
      %2836 = vmatpush1.bf16.xpose.msra.mxu0 %v2755
      %2837 = vmatprep.mubr.bf16.mxu0 0
      %2838 = vmatmul.mubr.bf16.gmra.mrb[0].mxu0 %v2707
      %v2839 = vpop.f32.mrb[0].mxu0
      %v2840 = vadd.f32 0.0, %v2839
      %v2841 = vpop.f32.mrb[0].mxu0
      %v2842 = vadd.f32 0.0, %v2841
      %v2843 = vpop.f32.mrb[0].mxu0
      %v2844 = vpop.f32.mrb[0].mxu0
      %2845 = vdwg.mxu0
      %2846 = vmatprep.subr.bf16.mxu0 0
      %2847 = vmatpush1.bf16.xpose.msra.mxu0 %v2758
      %2848 = vmatprep.subr.bf16.mxu0 0
      %2849 = vmatpush1.bf16.xpose.msra.mxu0 %v2761
      %2850 = vmatprep.subr.bf16.mxu0 0
      %2851 = vmatpush1.bf16.xpose.msra.mxu0 %v2764
      %2852 = vmatprep.subr.bf16.mxu0 0
      %2853 = vmatpush1.bf16.xpose.msra.mxu0 %v2767
      %2854 = vmatprep.subr.bf16.mxu0 0
      %2855 = vmatpush1.bf16.xpose.msra.mxu0 %v2770
      %2856 = vmatprep.subr.bf16.mxu0 0
      %2857 = vmatpush1.bf16.xpose.msra.mxu0 %v2773
      %2858 = vmatprep.subr.bf16.mxu0 0
      %2859 = vmatpush1.bf16.xpose.msra.mxu0 %v2776
      %2860 = vmatprep.subr.bf16.mxu0 0
      %2861 = vmatpush1.bf16.xpose.msra.mxu0 %v2779
      %2862 = vmatprep.subr.bf16.mxu0 0
      %2863 = vmatpush1.bf16.xpose.msra.mxu0 %v2782
      %2864 = vmatprep.subr.bf16.mxu0 0
      %2865 = vmatpush1.bf16.xpose.msra.mxu0 %v2785
      %2866 = vmatprep.subr.bf16.mxu0 0
      %2867 = vmatpush1.bf16.xpose.msra.mxu0 %v2788
      %2868 = vmatprep.subr.bf16.mxu0 0
      %2869 = vmatpush1.bf16.xpose.msra.mxu0 %v2791
      %2870 = vmatprep.subr.bf16.mxu0 0
      %2871 = vmatpush1.bf16.xpose.msra.mxu0 %v2794
      %2872 = vmatprep.subr.bf16.mxu0 0
      %2873 = vmatpush1.bf16.xpose.msra.mxu0 %v2797
      %2874 = vmatprep.subr.bf16.mxu0 0
      %2875 = vmatpush1.bf16.xpose.msra.mxu0 %v2800
      %2876 = vmatprep.subr.bf16.mxu0 0
      %2877 = vmatpush1.bf16.xpose.msra.mxu0 %v2803
      %2878 = vmatprep.mubr.bf16.mxu0 0
      %2879 = vmatmul.mubr.bf16.gmra.mrb[0].mxu0 %v2707
      %v2880 = vpop.f32.mrb[0].mxu0
      %v2881 = vadd.f32 0.0, %v2880
      %v2882 = vpop.f32.mrb[0].mxu0
      %v2883 = vadd.f32 0.0, %v2882
      %v2884 = vpop.f32.mrb[0].mxu0
      %v2885 = vpop.f32.mrb[0].mxu0
      %2886 = vdwg.mxu0
      %s2887 = scalar_lea.vmem [#allocation3], 16
      %v2888 = vld [vmem:[%s2887] sm:$0xff]
      %v2889 = vmax.f32 %v2840, %v2842
      %v2890 = vmax.f32 %v2881, %v2883
      %v2891 = vmax.f32 %v2889, %v2890
      %2892 = vmax.xlane.f32.xlu0 %v2891
      %v2893 = vpop.xlane.xlu0 %2892
      %v2894 = vmax.f32 %v2888, %v2893
      %v2895 = vsub.f32 %v2888, %v2894
      %v2896 = vmul.f32 %v2895, 1.442695
      %v2897 = vpow.pop %v2896
      %2899 = vset.pattern.permute.xlu0 0
      %2900 = vperm.xlu0 %2899, %v2894
      %v2901 = vpop.permute.xlu0 %2900
      %v2903 = vsub.f32 %v2840, %v2901
      %v2904 = vsub.f32 %v2842, %v2901
      %v2905 = vsub.f32 %v2881, %v2901
      %v2906 = vsub.f32 %v2883, %v2901
      %v2907 = vmul.f32 %v2903, 1.442695
      %v2908 = vpow.pop %v2907
      %v2909 = vmul.f32 %v2904, 1.442695
      %v2910 = vpow.pop %v2909
      %v2911 = vmul.f32 %v2905, 1.442695
      %v2912 = vpow.pop %v2911
      %v2913 = vmul.f32 %v2906, 1.442695
      %v2914 = vpow.pop %v2913
      %s2915 = scalar_lea.vmem [#allocation4], 16
      %v2916 = vld [vmem:[%s2915] sm:$0xff]
      %v2917 = vmul.f32 %v2897, %v2916
      %v2918 = vadd.f32 %v2908, %v2910
      %v2919 = vadd.f32 %v2918, %v2912
      %v2920 = vadd.f32 %v2919, %v2914
      %2921 = vadd.xlane.f32.xlu0 %v2920
      %v2922 = vpop.xlane.xlu0 %2921
      %v2923 = vadd.f32 %v2917, %v2922
      %2924 = vst.msk [vmem:[%s2915] sm:$0xff] %vm2004, %v2923
      %s2925 = scalar_lea.vmem [#allocation5], 16
      %v2926 = vld [vmem:[%s2925] sm:$0xff]
      %2928 = vset.pattern.permute.xlu0 0
      %2929 = vperm.xlu0 %2928, %v2897
      %v2930 = vpop.permute.xlu0 %2929
      %v2932 = vmul.f32 %v2930, %v2926
      %v2933 = vpack.c.bf16 %v2908, %v2908
      %v2934 = vpack.c.bf16 %v2910, %v2910
      %v2935 = vpack.c.bf16 %v2912, %v2912
      %v2936 = vpack.c.bf16 %v2914, %v2914
      %2937 = vrot.lane.b32.xlu0 %v1754, 112
      %v2938 = vpop.permute.xlu0 %2937
      %2939 = vrot.lane.b32.xlu0 %v1755, 112
      %v2940 = vpop.permute.xlu0 %2939
      %2941 = vrot.lane.b32.xlu0 %v1756, 112
      %v2942 = vpop.permute.xlu0 %2941
      %2943 = vrot.lane.b32.xlu0 %v1757, 112
      %v2944 = vpop.permute.xlu0 %2943
      %2945 = vrot.lane.b32.xlu0 %v1758, 112
      %v2946 = vpop.permute.xlu0 %2945
      %2947 = vrot.lane.b32.xlu0 %v1759, 112
      %v2948 = vpop.permute.xlu0 %2947
      %2949 = vrot.lane.b32.xlu0 %v1760, 112
      %v2950 = vpop.permute.xlu0 %2949
      %2951 = vrot.lane.b32.xlu0 %v1761, 112
      %v2952 = vpop.permute.xlu0 %2951
      %2953 = vrot.lane.b32.xlu0 %v1762, 112
      %v2954 = vpop.permute.xlu0 %2953
      %2955 = vrot.lane.b32.xlu0 %v1763, 112
      %v2956 = vpop.permute.xlu0 %2955
      %2957 = vrot.lane.b32.xlu0 %v1764, 112
      %v2958 = vpop.permute.xlu0 %2957
      %2959 = vrot.lane.b32.xlu0 %v1765, 112
      %v2960 = vpop.permute.xlu0 %2959
      %2961 = vrot.lane.b32.xlu0 %v1766, 112
      %v2962 = vpop.permute.xlu0 %2961
      %2963 = vrot.lane.b32.xlu0 %v1767, 112
      %v2964 = vpop.permute.xlu0 %2963
      %2965 = vrot.lane.b32.xlu0 %v1768, 112
      %v2966 = vpop.permute.xlu0 %2965
      %2967 = vrot.lane.b32.xlu0 %v1769, 112
      %v2968 = vpop.permute.xlu0 %2967
      %2969 = vrot.lane.b32.xlu0 %v1770, 112
      %v2970 = vpop.permute.xlu0 %2969
      %2971 = vrot.lane.b32.xlu0 %v1771, 112
      %v2972 = vpop.permute.xlu0 %2971
      %2973 = vrot.lane.b32.xlu0 %v1772, 112
      %v2974 = vpop.permute.xlu0 %2973
      %2975 = vrot.lane.b32.xlu0 %v1773, 112
      %v2976 = vpop.permute.xlu0 %2975
      %2977 = vrot.lane.b32.xlu0 %v1774, 112
      %v2978 = vpop.permute.xlu0 %2977
      %2979 = vrot.lane.b32.xlu0 %v1775, 112
      %v2980 = vpop.permute.xlu0 %2979
      %2981 = vrot.lane.b32.xlu0 %v1776, 112
      %v2982 = vpop.permute.xlu0 %2981
      %2983 = vrot.lane.b32.xlu0 %v1777, 112
      %v2984 = vpop.permute.xlu0 %2983
      %2985 = vrot.lane.b32.xlu0 %v1778, 112
      %v2986 = vpop.permute.xlu0 %2985
      %2987 = vrot.lane.b32.xlu0 %v1779, 112
      %v2988 = vpop.permute.xlu0 %2987
      %2989 = vrot.lane.b32.xlu0 %v1780, 112
      %v2990 = vpop.permute.xlu0 %2989
      %2991 = vrot.lane.b32.xlu0 %v1781, 112
      %v2992 = vpop.permute.xlu0 %2991
      %2993 = vrot.lane.b32.xlu0 %v1782, 112
      %v2994 = vpop.permute.xlu0 %2993
      %2995 = vrot.lane.b32.xlu0 %v1783, 112
      %v2996 = vpop.permute.xlu0 %2995
      %2997 = vrot.lane.b32.xlu0 %v1784, 112
      %v2998 = vpop.permute.xlu0 %2997
      %2999 = vrot.lane.b32.xlu0 %v1785, 112
      %v3000 = vpop.permute.xlu0 %2999
      %3033 = vmatprep.subr.bf16.mxu0 0
      %3034 = vmatpush1.bf16.msra.mxu0 %v2938
      %3035 = vmatprep.subr.bf16.mxu0 0
      %3036 = vmatpush1.bf16.msra.mxu0 %v2940
      %3037 = vmatprep.subr.bf16.mxu0 0
      %3038 = vmatpush1.bf16.msra.mxu0 %v2942
      %3039 = vmatprep.subr.bf16.mxu0 0
      %3040 = vmatpush1.bf16.msra.mxu0 %v2944
      %3041 = vmatprep.subr.bf16.mxu0 0
      %3042 = vmatpush1.bf16.msra.mxu0 %v2946
      %3043 = vmatprep.subr.bf16.mxu0 0
      %3044 = vmatpush1.bf16.msra.mxu0 %v2948
      %3045 = vmatprep.subr.bf16.mxu0 0
      %3046 = vmatpush1.bf16.msra.mxu0 %v2950
      %3047 = vmatprep.subr.bf16.mxu0 0
      %3048 = vmatpush1.bf16.msra.mxu0 %v2952
      %3049 = vmatprep.subr.bf16.mxu0 0
      %3050 = vmatpush1.bf16.msra.mxu0 %v2954
      %3051 = vmatprep.subr.bf16.mxu0 0
      %3052 = vmatpush1.bf16.msra.mxu0 %v2956
      %3053 = vmatprep.subr.bf16.mxu0 0
      %3054 = vmatpush1.bf16.msra.mxu0 %v2958
      %3055 = vmatprep.subr.bf16.mxu0 0
      %3056 = vmatpush1.bf16.msra.mxu0 %v2960
      %3057 = vmatprep.subr.bf16.mxu0 0
      %3058 = vmatpush1.bf16.msra.mxu0 %v2962
      %3059 = vmatprep.subr.bf16.mxu0 0
      %3060 = vmatpush1.bf16.msra.mxu0 %v2964
      %3061 = vmatprep.subr.bf16.mxu0 0
      %3062 = vmatpush1.bf16.msra.mxu0 %v2966
      %3063 = vmatprep.subr.bf16.mxu0 0
      %3064 = vmatpush1.bf16.msra.mxu0 %v2968
      %3065 = vmatprep.mubr.bf16.mxu0 %v2934
      %3066 = vmatmul.mubr.bf16.gmra.mrb[0].mxu0 %v2933
      %v3067 = vpop.f32.mrb[0].mxu0
      %v3068 = vadd.f32 0.0, %v3067
      %v3069 = vpop.f32.mrb[0].mxu0
      %v3070 = vpop.f32.mrb[0].mxu0
      %v3071 = vpop.f32.mrb[0].mxu0
      %3072 = vdwg.mxu0
      %3073 = vmatprep.subr.bf16.mxu0 0
      %3074 = vmatpush1.bf16.msra.mxu0 %v2970
      %3075 = vmatprep.subr.bf16.mxu0 0
      %3076 = vmatpush1.bf16.msra.mxu0 %v2972
      %3077 = vmatprep.subr.bf16.mxu0 0
      %3078 = vmatpush1.bf16.msra.mxu0 %v2974
      %3079 = vmatprep.subr.bf16.mxu0 0
      %3080 = vmatpush1.bf16.msra.mxu0 %v2976
      %3081 = vmatprep.subr.bf16.mxu0 0
      %3082 = vmatpush1.bf16.msra.mxu0 %v2978
      %3083 = vmatprep.subr.bf16.mxu0 0
      %3084 = vmatpush1.bf16.msra.mxu0 %v2980
      %3085 = vmatprep.subr.bf16.mxu0 0
      %3086 = vmatpush1.bf16.msra.mxu0 %v2982
      %3087 = vmatprep.subr.bf16.mxu0 0
      %3088 = vmatpush1.bf16.msra.mxu0 %v2984
      %3089 = vmatprep.subr.bf16.mxu0 0
      %3090 = vmatpush1.bf16.msra.mxu0 %v2986
      %3091 = vmatprep.subr.bf16.mxu0 0
      %3092 = vmatpush1.bf16.msra.mxu0 %v2988
      %3093 = vmatprep.subr.bf16.mxu0 0
      %3094 = vmatpush1.bf16.msra.mxu0 %v2990
      %3095 = vmatprep.subr.bf16.mxu0 0
      %3096 = vmatpush1.bf16.msra.mxu0 %v2992
      %3097 = vmatprep.subr.bf16.mxu0 0
      %3098 = vmatpush1.bf16.msra.mxu0 %v2994
      %3099 = vmatprep.subr.bf16.mxu0 0
      %3100 = vmatpush1.bf16.msra.mxu0 %v2996
      %3101 = vmatprep.subr.bf16.mxu0 0
      %3102 = vmatpush1.bf16.msra.mxu0 %v2998
      %3103 = vmatprep.subr.bf16.mxu0 0
      %3104 = vmatpush1.bf16.msra.mxu0 %v3000
      %3105 = vmatprep.mubr.bf16.mxu0 %v2936
      %3106 = vmatmul.mubr.bf16.gmra.mrb[0].mxu0 %v2935
      %v3107 = vpop.f32.mrb[0].mxu0
      %v3108 = vadd.f32 %v3068, %v3107
      %v3109 = vpop.f32.mrb[0].mxu0
      %v3110 = vpop.f32.mrb[0].mxu0
      %v3111 = vpop.f32.mrb[0].mxu0
      %3112 = vdwg.mxu0
      %v3113 = vadd.f32 %v2932, %v3108
      %3114 = vst.msk [vmem:[%s2925] sm:$0xff] %vm1787, %v3113
      %3115 = vst.msk [vmem:[%s2887] sm:$0xff] %vm2004, %v2894
      %s3116 = scalar_lea.vmem [#allocation2], 12
      %v3117 = vld [vmem:[%s3116] sm:$0xf]
      %3118 = vrot.lane.b32.xlu0 %v1218, 104
      %v3119 = vpop.permute.xlu0 %3118
      %3120 = vrot.lane.b32.xlu0 %v1219, 104
      %v3121 = vpop.permute.xlu0 %3120
      %3122 = vrot.lane.b32.xlu0 %v1220, 104
      %v3123 = vpop.permute.xlu0 %3122
      %3124 = vrot.lane.b32.xlu0 %v1221, 104
      %v3125 = vpop.permute.xlu0 %3124
      %3126 = vrot.lane.b32.xlu0 %v1222, 104
      %v3127 = vpop.permute.xlu0 %3126
      %3128 = vrot.lane.b32.xlu0 %v1223, 104
      %v3129 = vpop.permute.xlu0 %3128
      %3130 = vrot.lane.b32.xlu0 %v1224, 104
      %v3131 = vpop.permute.xlu0 %3130
      %3132 = vrot.lane.b32.xlu0 %v1225, 104
      %v3133 = vpop.permute.xlu0 %3132
      %3134 = vrot.lane.b32.xlu0 %v1226, 104
      %v3135 = vpop.permute.xlu0 %3134
      %3136 = vrot.lane.b32.xlu0 %v1227, 104
      %v3137 = vpop.permute.xlu0 %3136
      %3138 = vrot.lane.b32.xlu0 %v1228, 104
      %v3139 = vpop.permute.xlu0 %3138
      %3140 = vrot.lane.b32.xlu0 %v1229, 104
      %v3141 = vpop.permute.xlu0 %3140
      %3142 = vrot.lane.b32.xlu0 %v1230, 104
      %v3143 = vpop.permute.xlu0 %3142
      %3144 = vrot.lane.b32.xlu0 %v1231, 104
      %v3145 = vpop.permute.xlu0 %3144
      %3146 = vrot.lane.b32.xlu0 %v1232, 104
      %v3147 = vpop.permute.xlu0 %3146
      %3148 = vrot.lane.b32.xlu0 %v1233, 104
      %v3149 = vpop.permute.xlu0 %3148
      %3150 = vrot.lane.b32.xlu0 %v1234, 104
      %v3151 = vpop.permute.xlu0 %3150
      %3152 = vrot.lane.b32.xlu0 %v1235, 104
      %v3153 = vpop.permute.xlu0 %3152
      %3154 = vrot.lane.b32.xlu0 %v1236, 104
      %v3155 = vpop.permute.xlu0 %3154
      %3156 = vrot.lane.b32.xlu0 %v1237, 104
      %v3157 = vpop.permute.xlu0 %3156
      %3158 = vrot.lane.b32.xlu0 %v1238, 104
      %v3159 = vpop.permute.xlu0 %3158
      %3160 = vrot.lane.b32.xlu0 %v1239, 104
      %v3161 = vpop.permute.xlu0 %3160
      %3162 = vrot.lane.b32.xlu0 %v1240, 104
      %v3163 = vpop.permute.xlu0 %3162
      %3164 = vrot.lane.b32.xlu0 %v1241, 104
      %v3165 = vpop.permute.xlu0 %3164
      %3166 = vrot.lane.b32.xlu0 %v1242, 104
      %v3167 = vpop.permute.xlu0 %3166
      %3168 = vrot.lane.b32.xlu0 %v1243, 104
      %v3169 = vpop.permute.xlu0 %3168
      %3170 = vrot.lane.b32.xlu0 %v1244, 104
      %v3171 = vpop.permute.xlu0 %3170
      %3172 = vrot.lane.b32.xlu0 %v1245, 104
      %v3173 = vpop.permute.xlu0 %3172
      %3174 = vrot.lane.b32.xlu0 %v1246, 104
      %v3175 = vpop.permute.xlu0 %3174
      %3176 = vrot.lane.b32.xlu0 %v1247, 104
      %v3177 = vpop.permute.xlu0 %3176
      %3178 = vrot.lane.b32.xlu0 %v1248, 104
      %v3179 = vpop.permute.xlu0 %3178
      %3180 = vrot.lane.b32.xlu0 %v1249, 104
      %v3181 = vpop.permute.xlu0 %3180
      %v3183 = vsel %vm1787, %v3117, 0
      %v3186 = vsel %vm1787, %v3119, 0
      %v3189 = vsel %vm1787, %v3121, 0
      %v3192 = vsel %vm1787, %v3123, 0
      %v3195 = vsel %vm1787, %v3125, 0
      %v3198 = vsel %vm1787, %v3127, 0
      %v3201 = vsel %vm1787, %v3129, 0
      %v3204 = vsel %vm1787, %v3131, 0
      %v3207 = vsel %vm1787, %v3133, 0
      %v3210 = vsel %vm1787, %v3135, 0
      %v3213 = vsel %vm1787, %v3137, 0
      %v3216 = vsel %vm1787, %v3139, 0
      %v3219 = vsel %vm1787, %v3141, 0
      %v3222 = vsel %vm1787, %v3143, 0
      %v3225 = vsel %vm1787, %v3145, 0
      %v3228 = vsel %vm1787, %v3147, 0
      %v3231 = vsel %vm1787, %v3149, 0
      %v3234 = vsel %vm1787, %v3151, 0
      %v3237 = vsel %vm1787, %v3153, 0
      %v3240 = vsel %vm1787, %v3155, 0
      %v3243 = vsel %vm1787, %v3157, 0
      %v3246 = vsel %vm1787, %v3159, 0
      %v3249 = vsel %vm1787, %v3161, 0
      %v3252 = vsel %vm1787, %v3163, 0
      %v3255 = vsel %vm1787, %v3165, 0
      %v3258 = vsel %vm1787, %v3167, 0
      %v3261 = vsel %vm1787, %v3169, 0
      %v3264 = vsel %vm1787, %v3171, 0
      %v3267 = vsel %vm1787, %v3173, 0
      %v3270 = vsel %vm1787, %v3175, 0
      %v3273 = vsel %vm1787, %v3177, 0
      %v3276 = vsel %vm1787, %v3179, 0
      %v3279 = vsel %vm1787, %v3181, 0
      %3281 = vmatprep.subr.bf16.mxu0 0
      %3282 = vmatpush1.bf16.xpose.msra.mxu0 %v3186
      %3283 = vmatprep.subr.bf16.mxu0 0
      %3284 = vmatpush1.bf16.xpose.msra.mxu0 %v3189
      %3285 = vmatprep.subr.bf16.mxu0 0
      %3286 = vmatpush1.bf16.xpose.msra.mxu0 %v3192
      %3287 = vmatprep.subr.bf16.mxu0 0
      %3288 = vmatpush1.bf16.xpose.msra.mxu0 %v3195
      %3289 = vmatprep.subr.bf16.mxu0 0
      %3290 = vmatpush1.bf16.xpose.msra.mxu0 %v3198
      %3291 = vmatprep.subr.bf16.mxu0 0
      %3292 = vmatpush1.bf16.xpose.msra.mxu0 %v3201
      %3293 = vmatprep.subr.bf16.mxu0 0
      %3294 = vmatpush1.bf16.xpose.msra.mxu0 %v3204
      %3295 = vmatprep.subr.bf16.mxu0 0
      %3296 = vmatpush1.bf16.xpose.msra.mxu0 %v3207
      %3297 = vmatprep.subr.bf16.mxu0 0
      %3298 = vmatpush1.bf16.xpose.msra.mxu0 %v3210
      %3299 = vmatprep.subr.bf16.mxu0 0
      %3300 = vmatpush1.bf16.xpose.msra.mxu0 %v3213
      %3301 = vmatprep.subr.bf16.mxu0 0
      %3302 = vmatpush1.bf16.xpose.msra.mxu0 %v3216
      %3303 = vmatprep.subr.bf16.mxu0 0
      %3304 = vmatpush1.bf16.xpose.msra.mxu0 %v3219
      %3305 = vmatprep.subr.bf16.mxu0 0
      %3306 = vmatpush1.bf16.xpose.msra.mxu0 %v3222
      %3307 = vmatprep.subr.bf16.mxu0 0
      %3308 = vmatpush1.bf16.xpose.msra.mxu0 %v3225
      %3309 = vmatprep.subr.bf16.mxu0 0
      %3310 = vmatpush1.bf16.xpose.msra.mxu0 %v3228
      %3311 = vmatprep.subr.bf16.mxu0 0
      %3312 = vmatpush1.bf16.xpose.msra.mxu0 %v3231
      %3313 = vmatprep.mubr.bf16.mxu0 0
      %3314 = vmatmul.mubr.bf16.gmra.mrb[0].mxu0 %v3183
      %v3315 = vpop.f32.mrb[0].mxu0
      %v3316 = vadd.f32 0.0, %v3315
      %v3317 = vpop.f32.mrb[0].mxu0
      %v3318 = vadd.f32 0.0, %v3317
      %v3319 = vpop.f32.mrb[0].mxu0
      %v3320 = vpop.f32.mrb[0].mxu0
      %3321 = vdwg.mxu0
      %3322 = vmatprep.subr.bf16.mxu0 0
      %3323 = vmatpush1.bf16.xpose.msra.mxu0 %v3234
      %3324 = vmatprep.subr.bf16.mxu0 0
      %3325 = vmatpush1.bf16.xpose.msra.mxu0 %v3237
      %3326 = vmatprep.subr.bf16.mxu0 0
      %3327 = vmatpush1.bf16.xpose.msra.mxu0 %v3240
      %3328 = vmatprep.subr.bf16.mxu0 0
      %3329 = vmatpush1.bf16.xpose.msra.mxu0 %v3243
      %3330 = vmatprep.subr.bf16.mxu0 0
      %3331 = vmatpush1.bf16.xpose.msra.mxu0 %v3246
      %3332 = vmatprep.subr.bf16.mxu0 0
      %3333 = vmatpush1.bf16.xpose.msra.mxu0 %v3249
      %3334 = vmatprep.subr.bf16.mxu0 0
      %3335 = vmatpush1.bf16.xpose.msra.mxu0 %v3252
      %3336 = vmatprep.subr.bf16.mxu0 0
      %3337 = vmatpush1.bf16.xpose.msra.mxu0 %v3255
      %3338 = vmatprep.subr.bf16.mxu0 0
      %3339 = vmatpush1.bf16.xpose.msra.mxu0 %v3258
      %3340 = vmatprep.subr.bf16.mxu0 0
      %3341 = vmatpush1.bf16.xpose.msra.mxu0 %v3261
      %3342 = vmatprep.subr.bf16.mxu0 0
      %3343 = vmatpush1.bf16.xpose.msra.mxu0 %v3264
      %3344 = vmatprep.subr.bf16.mxu0 0
      %3345 = vmatpush1.bf16.xpose.msra.mxu0 %v3267
      %3346 = vmatprep.subr.bf16.mxu0 0
      %3347 = vmatpush1.bf16.xpose.msra.mxu0 %v3270
      %3348 = vmatprep.subr.bf16.mxu0 0
      %3349 = vmatpush1.bf16.xpose.msra.mxu0 %v3273
      %3350 = vmatprep.subr.bf16.mxu0 0
      %3351 = vmatpush1.bf16.xpose.msra.mxu0 %v3276
      %3352 = vmatprep.subr.bf16.mxu0 0
      %3353 = vmatpush1.bf16.xpose.msra.mxu0 %v3279
      %3354 = vmatprep.mubr.bf16.mxu0 0
      %3355 = vmatmul.mubr.bf16.gmra.mrb[0].mxu0 %v3183
      %v3356 = vpop.f32.mrb[0].mxu0
      %v3357 = vadd.f32 0.0, %v3356
      %v3358 = vpop.f32.mrb[0].mxu0
      %v3359 = vadd.f32 0.0, %v3358
      %v3360 = vpop.f32.mrb[0].mxu0
      %v3361 = vpop.f32.mrb[0].mxu0
      %3362 = vdwg.mxu0
      %s3363 = scalar_lea.vmem [#allocation3], 24
      %v3364 = vld [vmem:[%s3363] sm:$0xff]
      %v3365 = vmax.f32 %v3316, %v3318
      %v3366 = vmax.f32 %v3357, %v3359
      %v3367 = vmax.f32 %v3365, %v3366
      %3368 = vmax.xlane.f32.xlu0 %v3367
      %v3369 = vpop.xlane.xlu0 %3368
      %v3370 = vmax.f32 %v3364, %v3369
      %v3371 = vsub.f32 %v3364, %v3370
      %v3372 = vmul.f32 %v3371, 1.442695
      %v3373 = vpow.pop %v3372
      %3375 = vset.pattern.permute.xlu0 0
      %3376 = vperm.xlu0 %3375, %v3370
      %v3377 = vpop.permute.xlu0 %3376
      %v3379 = vsub.f32 %v3316, %v3377
      %v3380 = vsub.f32 %v3318, %v3377
      %v3381 = vsub.f32 %v3357, %v3377
      %v3382 = vsub.f32 %v3359, %v3377
      %v3383 = vmul.f32 %v3379, 1.442695
      %v3384 = vpow.pop %v3383
      %v3385 = vmul.f32 %v3380, 1.442695
      %v3386 = vpow.pop %v3385
      %v3387 = vmul.f32 %v3381, 1.442695
      %v3388 = vpow.pop %v3387
      %v3389 = vmul.f32 %v3382, 1.442695
      %v3390 = vpow.pop %v3389
      %s3391 = scalar_lea.vmem [#allocation4], 24
      %v3392 = vld [vmem:[%s3391] sm:$0xff]
      %v3393 = vmul.f32 %v3373, %v3392
      %v3394 = vadd.f32 %v3384, %v3386
      %v3395 = vadd.f32 %v3394, %v3388
      %v3396 = vadd.f32 %v3395, %v3390
      %3397 = vadd.xlane.f32.xlu0 %v3396
      %v3398 = vpop.xlane.xlu0 %3397
      %v3399 = vadd.f32 %v3393, %v3398
      %3400 = vst.msk [vmem:[%s3391] sm:$0xff] %vm2004, %v3399
      %s3401 = scalar_lea.vmem [#allocation5], 24
      %v3402 = vld [vmem:[%s3401] sm:$0xff]
      %3404 = vset.pattern.permute.xlu0 0
      %3405 = vperm.xlu0 %3404, %v3373
      %v3406 = vpop.permute.xlu0 %3405
      %v3408 = vmul.f32 %v3406, %v3402
      %v3409 = vpack.c.bf16 %v3384, %v3384
      %v3410 = vpack.c.bf16 %v3386, %v3386
      %v3411 = vpack.c.bf16 %v3388, %v3388
      %v3412 = vpack.c.bf16 %v3390, %v3390
      %3413 = vrot.lane.b32.xlu0 %v1754, 104
      %v3414 = vpop.permute.xlu0 %3413
      %3415 = vrot.lane.b32.xlu0 %v1755, 104
      %v3416 = vpop.permute.xlu0 %3415
      %3417 = vrot.lane.b32.xlu0 %v1756, 104
      %v3418 = vpop.permute.xlu0 %3417
      %3419 = vrot.lane.b32.xlu0 %v1757, 104
      %v3420 = vpop.permute.xlu0 %3419
      %3421 = vrot.lane.b32.xlu0 %v1758, 104
      %v3422 = vpop.permute.xlu0 %3421
      %3423 = vrot.lane.b32.xlu0 %v1759, 104
      %v3424 = vpop.permute.xlu0 %3423
      %3425 = vrot.lane.b32.xlu0 %v1760, 104
      %v3426 = vpop.permute.xlu0 %3425
      %3427 = vrot.lane.b32.xlu0 %v1761, 104
      %v3428 = vpop.permute.xlu0 %3427
      %3429 = vrot.lane.b32.xlu0 %v1762, 104
      %v3430 = vpop.permute.xlu0 %3429
      %3431 = vrot.lane.b32.xlu0 %v1763, 104
      %v3432 = vpop.permute.xlu0 %3431
      %3433 = vrot.lane.b32.xlu0 %v1764, 104
      %v3434 = vpop.permute.xlu0 %3433
      %3435 = vrot.lane.b32.xlu0 %v1765, 104
      %v3436 = vpop.permute.xlu0 %3435
      %3437 = vrot.lane.b32.xlu0 %v1766, 104
      %v3438 = vpop.permute.xlu0 %3437
      %3439 = vrot.lane.b32.xlu0 %v1767, 104
      %v3440 = vpop.permute.xlu0 %3439
      %3441 = vrot.lane.b32.xlu0 %v1768, 104
      %v3442 = vpop.permute.xlu0 %3441
      %3443 = vrot.lane.b32.xlu0 %v1769, 104
      %v3444 = vpop.permute.xlu0 %3443
      %3445 = vrot.lane.b32.xlu0 %v1770, 104
      %v3446 = vpop.permute.xlu0 %3445
      %3447 = vrot.lane.b32.xlu0 %v1771, 104
      %v3448 = vpop.permute.xlu0 %3447
      %3449 = vrot.lane.b32.xlu0 %v1772, 104
      %v3450 = vpop.permute.xlu0 %3449
      %3451 = vrot.lane.b32.xlu0 %v1773, 104
      %v3452 = vpop.permute.xlu0 %3451
      %3453 = vrot.lane.b32.xlu0 %v1774, 104
      %v3454 = vpop.permute.xlu0 %3453
      %3455 = vrot.lane.b32.xlu0 %v1775, 104
      %v3456 = vpop.permute.xlu0 %3455
      %3457 = vrot.lane.b32.xlu0 %v1776, 104
      %v3458 = vpop.permute.xlu0 %3457
      %3459 = vrot.lane.b32.xlu0 %v1777, 104
      %v3460 = vpop.permute.xlu0 %3459
      %3461 = vrot.lane.b32.xlu0 %v1778, 104
      %v3462 = vpop.permute.xlu0 %3461
      %3463 = vrot.lane.b32.xlu0 %v1779, 104
      %v3464 = vpop.permute.xlu0 %3463
      %3465 = vrot.lane.b32.xlu0 %v1780, 104
      %v3466 = vpop.permute.xlu0 %3465
      %3467 = vrot.lane.b32.xlu0 %v1781, 104
      %v3468 = vpop.permute.xlu0 %3467
      %3469 = vrot.lane.b32.xlu0 %v1782, 104
      %v3470 = vpop.permute.xlu0 %3469
      %3471 = vrot.lane.b32.xlu0 %v1783, 104
      %v3472 = vpop.permute.xlu0 %3471
      %3473 = vrot.lane.b32.xlu0 %v1784, 104
      %v3474 = vpop.permute.xlu0 %3473
      %3475 = vrot.lane.b32.xlu0 %v1785, 104
      %v3476 = vpop.permute.xlu0 %3475
      %3509 = vmatprep.subr.bf16.mxu0 0
      %3510 = vmatpush1.bf16.msra.mxu0 %v3414
      %3511 = vmatprep.subr.bf16.mxu0 0
      %3512 = vmatpush1.bf16.msra.mxu0 %v3416
      %3513 = vmatprep.subr.bf16.mxu0 0
      %3514 = vmatpush1.bf16.msra.mxu0 %v3418
      %3515 = vmatprep.subr.bf16.mxu0 0
      %3516 = vmatpush1.bf16.msra.mxu0 %v3420
      %3517 = vmatprep.subr.bf16.mxu0 0
      %3518 = vmatpush1.bf16.msra.mxu0 %v3422
      %3519 = vmatprep.subr.bf16.mxu0 0
      %3520 = vmatpush1.bf16.msra.mxu0 %v3424
      %3521 = vmatprep.subr.bf16.mxu0 0
      %3522 = vmatpush1.bf16.msra.mxu0 %v3426
      %3523 = vmatprep.subr.bf16.mxu0 0
      %3524 = vmatpush1.bf16.msra.mxu0 %v3428
      %3525 = vmatprep.subr.bf16.mxu0 0
      %3526 = vmatpush1.bf16.msra.mxu0 %v3430
      %3527 = vmatprep.subr.bf16.mxu0 0
      %3528 = vmatpush1.bf16.msra.mxu0 %v3432
      %3529 = vmatprep.subr.bf16.mxu0 0
      %3530 = vmatpush1.bf16.msra.mxu0 %v3434
      %3531 = vmatprep.subr.bf16.mxu0 0
      %3532 = vmatpush1.bf16.msra.mxu0 %v3436
      %3533 = vmatprep.subr.bf16.mxu0 0
      %3534 = vmatpush1.bf16.msra.mxu0 %v3438
      %3535 = vmatprep.subr.bf16.mxu0 0
      %3536 = vmatpush1.bf16.msra.mxu0 %v3440
      %3537 = vmatprep.subr.bf16.mxu0 0
      %3538 = vmatpush1.bf16.msra.mxu0 %v3442
      %3539 = vmatprep.subr.bf16.mxu0 0
      %3540 = vmatpush1.bf16.msra.mxu0 %v3444
      %3541 = vmatprep.mubr.bf16.mxu0 %v3410
      %3542 = vmatmul.mubr.bf16.gmra.mrb[0].mxu0 %v3409
      %v3543 = vpop.f32.mrb[0].mxu0
      %v3544 = vadd.f32 0.0, %v3543
      %v3545 = vpop.f32.mrb[0].mxu0
      %v3546 = vpop.f32.mrb[0].mxu0
      %v3547 = vpop.f32.mrb[0].mxu0
      %3548 = vdwg.mxu0
      %3549 = vmatprep.subr.bf16.mxu0 0
      %3550 = vmatpush1.bf16.msra.mxu0 %v3446
      %3551 = vmatprep.subr.bf16.mxu0 0
      %3552 = vmatpush1.bf16.msra.mxu0 %v3448
      %3553 = vmatprep.subr.bf16.mxu0 0
      %3554 = vmatpush1.bf16.msra.mxu0 %v3450
      %3555 = vmatprep.subr.bf16.mxu0 0
      %3556 = vmatpush1.bf16.msra.mxu0 %v3452
      %3557 = vmatprep.subr.bf16.mxu0 0
      %3558 = vmatpush1.bf16.msra.mxu0 %v3454
      %3559 = vmatprep.subr.bf16.mxu0 0
      %3560 = vmatpush1.bf16.msra.mxu0 %v3456
      %3561 = vmatprep.subr.bf16.mxu0 0
      %3562 = vmatpush1.bf16.msra.mxu0 %v3458
      %3563 = vmatprep.subr.bf16.mxu0 0
      %3564 = vmatpush1.bf16.msra.mxu0 %v3460
      %3565 = vmatprep.subr.bf16.mxu0 0
      %3566 = vmatpush1.bf16.msra.mxu0 %v3462
      %3567 = vmatprep.subr.bf16.mxu0 0
      %3568 = vmatpush1.bf16.msra.mxu0 %v3464
      %3569 = vmatprep.subr.bf16.mxu0 0
      %3570 = vmatpush1.bf16.msra.mxu0 %v3466
      %3571 = vmatprep.subr.bf16.mxu0 0
      %3572 = vmatpush1.bf16.msra.mxu0 %v3468
      %3573 = vmatprep.subr.bf16.mxu0 0
      %3574 = vmatpush1.bf16.msra.mxu0 %v3470
      %3575 = vmatprep.subr.bf16.mxu0 0
      %3576 = vmatpush1.bf16.msra.mxu0 %v3472
      %3577 = vmatprep.subr.bf16.mxu0 0
      %3578 = vmatpush1.bf16.msra.mxu0 %v3474
      %3579 = vmatprep.subr.bf16.mxu0 0
      %3580 = vmatpush1.bf16.msra.mxu0 %v3476
      %3581 = vmatprep.mubr.bf16.mxu0 %v3412
      %3582 = vmatmul.mubr.bf16.gmra.mrb[0].mxu0 %v3411
      %v3583 = vpop.f32.mrb[0].mxu0
      %v3584 = vadd.f32 %v3544, %v3583
      %v3585 = vpop.f32.mrb[0].mxu0
      %v3586 = vpop.f32.mrb[0].mxu0
      %v3587 = vpop.f32.mrb[0].mxu0
      %3588 = vdwg.mxu0
      %v3589 = vadd.f32 %v3408, %v3584
      %3590 = vst.msk [vmem:[%s3401] sm:$0xff] %vm1787, %v3589
      %3591 = vst.msk [vmem:[%s3363] sm:$0xff] %vm2004, %v3370
      %p3592 = scmp.eq.s32.totalorder %s32, 1
      // Predicated region
      $region81: #{transformer_decoder_forward.9} parent=75 // pred_check
        %p3593 = pneg %p3592
      $region82: #{transformer_decoder_forward.9} parent=75 // pred_check_branch
        %3595 = sbr.rel (%p3593) target = $region84
      $region83: #{transformer_decoder_forward.9} parent=75 // pred_region
        %v3596 = vld [vmem:[%s566] sm:$0xff]
        %v3597 = vld [vmem:[#allocation5] sm:$0xff]
        %v3598 = vld [vmem:[#allocation4] sm:$0xff]
        %v3599 = vrcp.pop %v3598
        %3601 = vset.pattern.permute.xlu0 0
        %3602 = vperm.xlu0 %3601, %v3599
        %v3603 = vpop.permute.xlu0 %3602
        %v3605 = vmul.f32 %v3597, %v3603
        %v3606 = vld [vmem:[%s10] sm:$0xf]
        %v3607 = vpack.c.bf16 %v3605, %v3605
        %v3608 = vld [vmem:[%s2417] sm:$0xff]
        %v3609 = vld [vmem:[%s2407] sm:$0xff]
        %v3610 = vrcp.pop %v3609
        %3612 = vset.pattern.permute.xlu0 0
        %3613 = vperm.xlu0 %3612, %v3610
        %v3614 = vpop.permute.xlu0 %3613
        %v3616 = vmul.f32 %v3608, %v3614
        %v3617 = vld [vmem:[%s10 + $0x4] sm:$0xf]
        %v3618 = vpack.c.bf16 %v3616, %v3616
        %v3620 = vsel %vm1787, %v3618, 0
        %vm3622 = vcmask 1043456
        %v3624 = vsel %vm3622, %v3617, 0
        %3626 = vmatprep.subr.bf16.mxu0 0
        %3627 = vmatpush1.bf16.msra.mxu0 %v3624
        %3628 = vmatprep.subr.bf16.mxu0 0
        %3629 = vmatpush1.bf16.msra.mxu0 0
        %3630 = vmatprep.subr.bf16.mxu0 0
        %3631 = vmatpush1.bf16.msra.mxu0 0
        %3632 = vmatprep.subr.bf16.mxu0 0
        %3633 = vmatpush1.bf16.msra.mxu0 0
        %3634 = vmatprep.subr.bf16.mxu0 0
        %3635 = vmatpush1.bf16.msra.mxu0 0
        %3636 = vmatprep.subr.bf16.mxu0 0
        %3637 = vmatpush1.bf16.msra.mxu0 0
        %3638 = vmatprep.subr.bf16.mxu0 0
        %3639 = vmatpush1.bf16.msra.mxu0 0
        %3640 = vmatprep.subr.bf16.mxu0 0
        %3641 = vmatpush1.bf16.msra.mxu0 0
        %3642 = vmatprep.subr.bf16.mxu0 0
        %3643 = vmatpush1.bf16.msra.mxu0 0
        %3644 = vmatprep.subr.bf16.mxu0 0
        %3645 = vmatpush1.bf16.msra.mxu0 0
        %3646 = vmatprep.subr.bf16.mxu0 0
        %3647 = vmatpush1.bf16.msra.mxu0 0
        %3648 = vmatprep.subr.bf16.mxu0 0
        %3649 = vmatpush1.bf16.msra.mxu0 0
        %3650 = vmatprep.subr.bf16.mxu0 0
        %3651 = vmatpush1.bf16.msra.mxu0 0
        %3652 = vmatprep.subr.bf16.mxu0 0
        %3653 = vmatpush1.bf16.msra.mxu0 0
        %3654 = vmatprep.subr.bf16.mxu0 0
        %3655 = vmatpush1.bf16.msra.mxu0 0
        %3656 = vmatprep.subr.bf16.mxu0 0
        %3657 = vmatpush1.bf16.msra.mxu0 0
        %3658 = vmatprep.mubr.bf16.mxu0 0
        %3659 = vmatmul.mubr.bf16.gmra.mrb[0].mxu0 %v3620
        %v3660 = vpop.f32.mrb[0].mxu0
        %v3661 = vadd.f32 0.0, %v3660
        %v3662 = vpop.f32.mrb[0].mxu0
        %v3663 = vpop.f32.mrb[0].mxu0
        %v3664 = vpop.f32.mrb[0].mxu0
        %3665 = vdwg.mxu0
        %v3667 = vsel %vm1787, %v3607, 0
        %v3670 = vsel %vm3622, %v3606, 0
        %3672 = vmatprep.subr.bf16.mxu0 0
        %3673 = vmatpush1.bf16.msra.mxu0 %v3670
        %3674 = vmatprep.subr.bf16.mxu0 0
        %3675 = vmatpush1.bf16.msra.mxu0 0
        %3676 = vmatprep.subr.bf16.mxu0 0
        %3677 = vmatpush1.bf16.msra.mxu0 0
        %3678 = vmatprep.subr.bf16.mxu0 0
        %3679 = vmatpush1.bf16.msra.mxu0 0
        %3680 = vmatprep.subr.bf16.mxu0 0
        %3681 = vmatpush1.bf16.msra.mxu0 0
        %3682 = vmatprep.subr.bf16.mxu0 0
        %3683 = vmatpush1.bf16.msra.mxu0 0
        %3684 = vmatprep.subr.bf16.mxu0 0
        %3685 = vmatpush1.bf16.msra.mxu0 0
        %3686 = vmatprep.subr.bf16.mxu0 0
        %3687 = vmatpush1.bf16.msra.mxu0 0
        %3688 = vmatprep.subr.bf16.mxu0 0
        %3689 = vmatpush1.bf16.msra.mxu0 0
        %3690 = vmatprep.subr.bf16.mxu0 0
        %3691 = vmatpush1.bf16.msra.mxu0 0
        %3692 = vmatprep.subr.bf16.mxu0 0
        %3693 = vmatpush1.bf16.msra.mxu0 0
        %3694 = vmatprep.subr.bf16.mxu0 0
        %3695 = vmatpush1.bf16.msra.mxu0 0
        %3696 = vmatprep.subr.bf16.mxu0 0
        %3697 = vmatpush1.bf16.msra.mxu0 0
        %3698 = vmatprep.subr.bf16.mxu0 0
        %3699 = vmatpush1.bf16.msra.mxu0 0
        %3700 = vmatprep.subr.bf16.mxu0 0
        %3701 = vmatpush1.bf16.msra.mxu0 0
        %3702 = vmatprep.subr.bf16.mxu0 0
        %3703 = vmatpush1.bf16.msra.mxu0 0
        %3704 = vmatprep.mubr.bf16.mxu0 0
        %3705 = vmatmul.mubr.bf16.gmra.mrb[0].mxu0 %v3667
        %v3706 = vpop.f32.mrb[0].mxu0
        %v3707 = vadd.f32 %v3661, %v3706
        %v3708 = vpop.f32.mrb[0].mxu0
        %v3709 = vpop.f32.mrb[0].mxu0
        %v3710 = vpop.f32.mrb[0].mxu0
        %3711 = vdwg.mxu0
        %v3712 = vld [vmem:[%s2925] sm:$0xff]
        %v3713 = vld [vmem:[%s2915] sm:$0xff]
        %v3714 = vrcp.pop %v3713
        %3716 = vset.pattern.permute.xlu0 0
        %3717 = vperm.xlu0 %3716, %v3714
        %v3718 = vpop.permute.xlu0 %3717
        %v3720 = vmul.f32 %v3712, %v3718
        %v3721 = vld [vmem:[%s10 + $0x8] sm:$0xf]
        %v3722 = vpack.c.bf16 %v3720, %v3720
        %v3724 = vsel %vm1787, %v3722, 0
        %v3727 = vsel %vm3622, %v3721, 0
        %3729 = vmatprep.subr.bf16.mxu0 0
        %3730 = vmatpush1.bf16.msra.mxu0 %v3727
        %3731 = vmatprep.subr.bf16.mxu0 0
        %3732 = vmatpush1.bf16.msra.mxu0 0
        %3733 = vmatprep.subr.bf16.mxu0 0
        %3734 = vmatpush1.bf16.msra.mxu0 0
        %3735 = vmatprep.subr.bf16.mxu0 0
        %3736 = vmatpush1.bf16.msra.mxu0 0
        %3737 = vmatprep.subr.bf16.mxu0 0
        %3738 = vmatpush1.bf16.msra.mxu0 0
        %3739 = vmatprep.subr.bf16.mxu0 0
        %3740 = vmatpush1.bf16.msra.mxu0 0
        %3741 = vmatprep.subr.bf16.mxu0 0
        %3742 = vmatpush1.bf16.msra.mxu0 0
        %3743 = vmatprep.subr.bf16.mxu0 0
        %3744 = vmatpush1.bf16.msra.mxu0 0
        %3745 = vmatprep.subr.bf16.mxu0 0
        %3746 = vmatpush1.bf16.msra.mxu0 0
        %3747 = vmatprep.subr.bf16.mxu0 0
        %3748 = vmatpush1.bf16.msra.mxu0 0
        %3749 = vmatprep.subr.bf16.mxu0 0
        %3750 = vmatpush1.bf16.msra.mxu0 0
        %3751 = vmatprep.subr.bf16.mxu0 0
        %3752 = vmatpush1.bf16.msra.mxu0 0
        %3753 = vmatprep.subr.bf16.mxu0 0
        %3754 = vmatpush1.bf16.msra.mxu0 0
        %3755 = vmatprep.subr.bf16.mxu0 0
        %3756 = vmatpush1.bf16.msra.mxu0 0
        %3757 = vmatprep.subr.bf16.mxu0 0
        %3758 = vmatpush1.bf16.msra.mxu0 0
        %3759 = vmatprep.subr.bf16.mxu0 0
        %3760 = vmatpush1.bf16.msra.mxu0 0
        %3761 = vmatprep.mubr.bf16.mxu0 0
        %3762 = vmatmul.mubr.bf16.gmra.mrb[0].mxu0 %v3724
        %v3763 = vpop.f32.mrb[0].mxu0
        %v3764 = vadd.f32 0.0, %v3763
        %v3765 = vpop.f32.mrb[0].mxu0
        %v3766 = vpop.f32.mrb[0].mxu0
        %v3767 = vpop.f32.mrb[0].mxu0
        %3768 = vdwg.mxu0
        %v3769 = vadd.f32 %v3707, %v3764
        %v3770 = vld [vmem:[%s3401] sm:$0xff]
        %v3771 = vld [vmem:[%s3391] sm:$0xff]
        %v3772 = vrcp.pop %v3771
        %3774 = vset.pattern.permute.xlu0 0
        %3775 = vperm.xlu0 %3774, %v3772
        %v3776 = vpop.permute.xlu0 %3775
        %v3778 = vmul.f32 %v3770, %v3776
        %v3779 = vld [vmem:[%s10 + $0xc] sm:$0xf]
        %v3780 = vpack.c.bf16 %v3778, %v3778
        %v3782 = vsel %vm1787, %v3780, 0
        %v3785 = vsel %vm3622, %v3779, 0
        %3787 = vmatprep.subr.bf16.mxu0 0
        %3788 = vmatpush1.bf16.msra.mxu0 %v3785
        %3789 = vmatprep.subr.bf16.mxu0 0
        %3790 = vmatpush1.bf16.msra.mxu0 0
        %3791 = vmatprep.subr.bf16.mxu0 0
        %3792 = vmatpush1.bf16.msra.mxu0 0
        %3793 = vmatprep.subr.bf16.mxu0 0
        %3794 = vmatpush1.bf16.msra.mxu0 0
        %3795 = vmatprep.subr.bf16.mxu0 0
        %3796 = vmatpush1.bf16.msra.mxu0 0
        %3797 = vmatprep.subr.bf16.mxu0 0
        %3798 = vmatpush1.bf16.msra.mxu0 0
        %3799 = vmatprep.subr.bf16.mxu0 0
        %3800 = vmatpush1.bf16.msra.mxu0 0
        %3801 = vmatprep.subr.bf16.mxu0 0
        %3802 = vmatpush1.bf16.msra.mxu0 0
        %3803 = vmatprep.subr.bf16.mxu0 0
        %3804 = vmatpush1.bf16.msra.mxu0 0
        %3805 = vmatprep.subr.bf16.mxu0 0
        %3806 = vmatpush1.bf16.msra.mxu0 0
        %3807 = vmatprep.subr.bf16.mxu0 0
        %3808 = vmatpush1.bf16.msra.mxu0 0
        %3809 = vmatprep.subr.bf16.mxu0 0
        %3810 = vmatpush1.bf16.msra.mxu0 0
        %3811 = vmatprep.subr.bf16.mxu0 0
        %3812 = vmatpush1.bf16.msra.mxu0 0
        %3813 = vmatprep.subr.bf16.mxu0 0
        %3814 = vmatpush1.bf16.msra.mxu0 0
        %3815 = vmatprep.subr.bf16.mxu0 0
        %3816 = vmatpush1.bf16.msra.mxu0 0
        %3817 = vmatprep.subr.bf16.mxu0 0
        %3818 = vmatpush1.bf16.msra.mxu0 0
        %3819 = vmatprep.mubr.bf16.mxu0 0
        %3820 = vmatmul.mubr.bf16.gmra.mrb[0].mxu0 %v3782
        %v3821 = vpop.f32.mrb[0].mxu0
        %v3822 = vadd.f32 0.0, %v3821
        %v3823 = vpop.f32.mrb[0].mxu0
        %v3824 = vpop.f32.mrb[0].mxu0
        %v3825 = vpop.f32.mrb[0].mxu0
        %3826 = vdwg.mxu0
        %v3827 = vadd.f32 %v3769, %v3822
        %v3828 = vld [vmem:[%s11] sm:$0x1]
        %v3830 = vlaneseq
        %v3831 = vshrl.u32 %v3830, 7
        %v3832 = vsub.s32 0, %v3831
        %v3833 = vrot.slane %v3828, %v3832
        %v3835 = vadd.f32 %v3827, %v3833
        %v3836 = vadd.f32 %v3596, %v3835
        %v3837 = vld [vmem:[%s12] sm:$0x1]
        %v3838 = vld [vmem:[%s13] sm:$0x1]
        %v3839 = vsel %vm832, %v3836, 0.0
        %3840 = vadd.xlane.f32.xlu0 %v3839
        %v3841 = vpop.xlane.xlu0 %3840
        %v3842 = vrcp.pop 32.0
        %v3843 = vmul.f32 %v3841, %v3842
        %v3844 = vsub.f32 %v3836, %v3843
        %v3845 = vmul.f32 %v3844, %v3844
        %v3846 = vsel %vm832, %v3845, 0.0
        %3847 = vadd.xlane.f32.xlu0 %v3846
        %v3848 = vpop.xlane.xlu0 %3847
        %v3849 = vmul.f32 %v3848, %v3842
        %v3850 = vadd.f32 %v3849, 1e-05
        %v3851 = vrsqrt.pop %v3850
        %v3852 = vmul.f32 %v3844, %v3851
        %v3854 = vlaneseq
        %v3855 = vshrl.u32 %v3854, 7
        %v3856 = vsub.s32 0, %v3855
        %v3857 = vrot.slane %v3837, %v3856
        %v3859 = vmul.f32 %v3852, %v3857
        %v3861 = vlaneseq
        %v3862 = vshrl.u32 %v3861, 7
        %v3863 = vsub.s32 0, %v3862
        %v3864 = vrot.slane %v3838, %v3863
        %v3866 = vadd.f32 %v3859, %v3864
        %3867 = vst.msk [vmem:[%s600] sm:$0xff] %vm832, %v3866
      $region84: #{transformer_decoder_forward.9} parent=75 // pred_fallthru
        _
      %p3868 = scmp.lt.s32.totalorder %s30, 1
      %s3869 = scalar_select %p3868, %s30, 1
      %p3870 = scmp.lt.s32.totalorder %s31, 0
      %s3871 = scalar_select %p3870, %s31, 0
      %s3872 = sadd.s32 %s3871, %s3869
      %s3873 = smul.addr %s3872, 8
      %s3874 = scalar_lea.vmem %s14, %s3873
      // Predicated region
      $region85: #{transformer_decoder_forward.9} parent=75 // pred_check
        %p3875 = pneg %p386
      $region86: #{transformer_decoder_forward.9} parent=75 // pred_check_branch
        %3877 = sbr.rel (%p3875) target = $region88
      $region87: #{transformer_decoder_forward.9} parent=75 // pred_region
        _
      $region88: #{transformer_decoder_forward.9} parent=75 // pred_fallthru
        _
    $region76: #{transformer_decoder_forward.9} parent=5 // pred_fallthru
      _
    %p3878 = scmp.le.s32.totalorder 2, %s20
    // Predicated region
    $region89: #{transformer_decoder_forward.9} parent=5 // pred_check
      %p3879 = pneg %p3878
    $region90: #{transformer_decoder_forward.9} parent=5 // pred_check_branch
      %3881 = sbr.rel (%p3879) target = $region92
    $region91: #{transformer_decoder_forward.9} parent=5 // pred_region
      %s3882 = ssub.s32 %s20, 2
      // Predicated region
      $region93: #{transformer_decoder_forward.9} parent=91 // pred_check
        %p3883 = pneg %p392
      $region94: #{transformer_decoder_forward.9} parent=91 // pred_check_branch
        %3885 = sbr.rel (%p3883) target = $region96
      $region95: #{transformer_decoder_forward.9} parent=91 // pred_region
        %p3886 = scmp.lt.s32.totalorder %s33, 1
        %s3887 = scalar_select %p3886, %s33, 1
        %p3888 = scmp.lt.s32.totalorder %s34, 0
        %s3889 = scalar_select %p3888, %s34, 0
        %s3890 = sadd.s32 %s3889, %s3887
        %s3891 = smul.addr %s3890, 8
        %s3892 = scalar_lea.vmem %s14, %s3891
      $region96: #{transformer_decoder_forward.9} parent=91 // pred_fallthru
        _
    $region92: #{transformer_decoder_forward.9} parent=5 // pred_fallthru
      _
  $region6: #{transformer_decoder_forward.9} parent=0 // loop_footer
    %s24 = sadd.s32 1, %s20
  $region7: #{transformer_decoder_forward.9} parent=0 // loop_footer_branch
    %19 = sbr.rel target = $region3
  $region8: #{transformer_decoder_forward.9} parent=0 // loop_exit
    _

</llo_original>
